<compile_context>
chip_gen: v7x
topology: tpu7x:2x2x1
jax: 0.10.0
libtpu: 0.0.40
codegen_flags: <defaults>
</compile_context>

<pallas_src>
import functools
import math
import random

import jax
import jax.numpy as jnp
from jax import lax
from jax.experimental import pallas as pl
from jax.experimental.pallas import tpu as pltpu


# ----------------------------------------------------------------------------
# Fused kernel: encoder recurrence + decoder recurrence + output projection +
# greedy feedback, all in one invocation.
#
#   gi = x @ [W_ir|W_iz|W_in] + [b_ir|b_iz|b_in]      (precomputed, resident)
#   gh = h @ [W_hr|W_hz|W_hn] + [b_hr|b_hz|b_hn]      (per step, in kernel)
#   r = sigmoid(gi_r + gh_r); z = sigmoid(gi_z + gh_z)
#   n = tanh(gi_n + r * gh_n); h' = (1-z)*n + z*h     (PyTorch nn.GRU semantics)
# ----------------------------------------------------------------------------
def _seq2seq_kernel(use_tf_ref,                       # (steps,) int32, SMEM (prefetch)
                    gi_enc_ref,                       # (src_len, B, 3H) resident
                    gi_dec_ref,                       # (steps,  B, 3H) resident
                    wh_enc_ref, bh_enc_ref,           # (H, 3H), (1, 3H)
                    wh_dec_ref, bh_dec_ref,           # (H, 3H), (1, 3H)
                    dec_proj_ref,                     # (Vp, 3H) pre-projected dec emb
                    wout_ref, bout_ref,               # (H, Vp), (1, Vp)
                    out_ref,                          # (trg_len, B, Vp)
                    *, src_len, steps, B, H, Vp):
    H2, H3 = 2 * H, 3 * H

    def gru_step(gi, h, wh_ref, bh_ref):
        gh = (jnp.dot(h, wh_ref[...], preferred_element_type=jnp.float32)
              + bh_ref[...])
        r = jax.nn.sigmoid(gi[:, 0:H] + gh[:, 0:H])
        z = jax.nn.sigmoid(gi[:, H:H2] + gh[:, H:H2])
        n = jnp.tanh(gi[:, H2:H3] + r * gh[:, H2:H3])
        return (1.0 - z) * n + z * h

    # --------------------------- Encoder ------------------------------------
    def enc_body(t, h):
        return gru_step(gi_enc_ref[t], h, wh_enc_ref, bh_enc_ref)

    h = lax.fori_loop(0, src_len, enc_body,
                      jnp.zeros((B, H), jnp.float32), unroll=True)

    # --------------------------- Decoder ------------------------------------
    out_ref[0] = jnp.zeros((B, Vp), jnp.float32)       # module's untouched row 0

    def dec_body(t, carry):
        h, gi_greedy = carry
        # Teacher-forcing select as an arithmetic blend with the 0/1 mask
        # (exact, no boolean broadcast needed).  use_tf[0] == 1 is guaranteed
        # by the wrapper, so the zero-initialized gi_greedy is never used.
        w = use_tf_ref[t].astype(jnp.float32)
        gi = w * gi_dec_ref[t] + (1.0 - w) * gi_greedy

        h = gru_step(gi, h, wh_dec_ref, bh_dec_ref)

        # Output projection; vocab padded to 128 lanes, padded bias = -1e9.
        logits = (jnp.dot(h, wout_ref[...], preferred_element_type=jnp.float32)
                  + bout_ref[...])                      # (B, Vp)
        out_ref[t + 1] = logits

        # Greedy feedback: first-argmax -> one-hot -> pre-projected embedding,
        # which is exactly the next step's input-side projection.
        vmax = jnp.max(logits, axis=-1, keepdims=True)
        col = lax.broadcasted_iota(jnp.int32, logits.shape, 1)
        top1 = jnp.min(jnp.where(logits >= vmax, col, 2147483647),
                       axis=-1, keepdims=True)          # (B, 1) first argmax
        onehot = (col == top1).astype(jnp.float32)       # (B, Vp)
        gi_next = jnp.dot(onehot, dec_proj_ref[...],
                          preferred_element_type=jnp.float32)   # (B, 3H)
        return h, gi_next

    lax.fori_loop(0, steps, dec_body,
                  (h, jnp.zeros((B, H3), jnp.float32)), unroll=True)


def _run_seq2seq(use_tf, gi_enc, gi_dec, wh_enc, bh_enc, wh_dec, bh_dec,
                 dec_proj_pad, wout_pad, bout_pad):
    src_len, B, H3 = gi_enc.shape
    steps = gi_dec.shape[0]
    H = H3 // 3
    Vp = wout_pad.shape[1]
    trg_len = steps + 1

    def full_spec(shape):
        nd = len(shape)
        return pl.BlockSpec(shape, lambda i, tf, nd=nd: (0,) * nd)

    return pl.pallas_call(
        functools.partial(_seq2seq_kernel, src_len=src_len, steps=steps,
                          B=B, H=H, Vp=Vp),
        out_shape=jax.ShapeDtypeStruct((trg_len, B, Vp), jnp.float32),
        grid_spec=pltpu.PrefetchScalarGridSpec(
            num_scalar_prefetch=1,                      # teacher-forcing mask -> SMEM
            grid=(1,),                                  # single invocation; loops in-kernel
            in_specs=[full_spec(gi_enc.shape),
                      full_spec(gi_dec.shape),
                      full_spec(wh_enc.shape), full_spec(bh_enc.shape),
                      full_spec(wh_dec.shape), full_spec(bh_dec.shape),
                      full_spec(dec_proj_pad.shape),
                      full_spec(wout_pad.shape), full_spec(bout_pad.shape)],
            out_specs=full_spec((trg_len, B, Vp)),
        ),
        compiler_params=pltpu.CompilerParams(
            dimension_semantics=("arbitrary",)),
    )(use_tf, gi_enc, gi_dec, wh_enc, bh_enc, wh_dec, bh_dec,
      dec_proj_pad, wout_pad, bout_pad)


# ----------------------------------------------------------------------------
# Parameters: per-gate (PyTorch-style) raw params + packed kernel layouts.
# ----------------------------------------------------------------------------
def init_raw_params(key, input_size, output_size, hidden_size):
    H, Vi, Vo = hidden_size, input_size, output_size
    s = 1.0 / math.sqrt(H)
    ki = iter(jax.random.split(key, 32))

    def u(shape):
        return jax.random.uniform(next(ki), shape, jnp.float32, -s, s)

    p = {
        "enc_emb": jax.random.normal(next(ki), (Vi, H), jnp.float32),
        "dec_emb": jax.random.normal(next(ki), (Vo, H), jnp.float32),
    }
    for pre in ("enc_", "dec_"):
        for g in ("r", "z", "n"):
            p[pre + "w_i" + g] = u((H, H))
            p[pre + "w_h" + g] = u((H, H))
            p[pre + "b_i" + g] = u((H,))
            p[pre + "b_h" + g] = u((H,))
    p["w_out"] = u((H, Vo))
    p["b_out"] = u((Vo,))
    return p


def pack_params(raw):
    H = raw["enc_emb"].shape[1]
    V = raw["dec_emb"].shape[0]
    Vp = ((V + 127) // 128) * 128
    hp = jax.lax.Precision.HIGHEST

    def cat_w(pre, side):
        return jnp.concatenate([raw[f"{pre}w_{side}r"], raw[f"{pre}w_{side}z"],
                                raw[f"{pre}w_{side}n"]], axis=1)          # (H, 3H)

    def cat_b(pre, side):
        return jnp.concatenate([raw[f"{pre}b_{side}r"], raw[f"{pre}b_{side}z"],
                                raw[f"{pre}b_{side}n"]]).reshape(1, 3 * H)

    # Hoisted input-side projections: token id -> (gi_r | gi_z | gi_n) lookup.
    enc_proj = jnp.dot(raw["enc_emb"], cat_w("enc_", "i"), precision=hp) + cat_b("enc_", "i")
    dec_proj = jnp.dot(raw["dec_emb"], cat_w("dec_", "i"), precision=hp) + cat_b("dec_", "i")
    dec_proj_pad = jnp.zeros((Vp, 3 * H), jnp.float32).at[:V].set(dec_proj)

    wout_pad = jnp.zeros((H, Vp), jnp.float32).at[:, :V].set(raw["w_out"])
    bout_pad = jnp.full((1, Vp), -1e9, jnp.float32).at[0, :V].set(raw["b_out"])

    return {
        "enc_proj": enc_proj,                  # (Vi, 3H)
        "dec_proj": dec_proj,                  # (Vo, 3H)
        "dec_proj_pad": dec_proj_pad,          # (Vp, 3H)
        "enc_wh": cat_w("enc_", "h"), "enc_bh": cat_b("enc_", "h"),
        "dec_wh": cat_w("dec_", "h"), "dec_bh": cat_b("dec_", "h"),
        "wout_pad": wout_pad, "bout_pad": bout_pad,
    }


# ----------------------------------------------------------------------------
# Forward: two small table gathers (XLA glue) + ONE fused pallas_call.
# ----------------------------------------------------------------------------
@jax.jit
def seq2seq_forward(packed, src, trg, use_tf):
    """src: (src_len, B) int32, trg: (trg_len, B) int32,
    use_tf: (trg_len-1,) int32 teacher-forcing mask (use_tf[0] must be 1).
    Returns (trg_len, B, V) float32 with row 0 zeros (matches the PyTorch module)."""
    V = packed["dec_proj"].shape[0]
    gi_enc = packed["enc_proj"][src]           # (src_len, B, 3H)
    gi_dec = packed["dec_proj"][trg[:-1]]      # (trg_len-1, B, 3H)
    out_pad = _run_seq2seq(use_tf, gi_enc, gi_dec,
                           packed["enc_wh"], packed["enc_bh"],
                           packed["dec_wh"], packed["dec_bh"],
                           packed["dec_proj_pad"],
                           packed["wout_pad"], packed["bout_pad"])
    return out_pad[:, :, :V]                   # drop the 128-lane vocab padding once


# ----------------------------------------------------------------------------
# Pure-JAX per-gate reference (PyTorch nn.GRU semantics) for validation.
# ----------------------------------------------------------------------------
_HIGH = jax.lax.Precision.HIGHEST


def _gru_cell_ref(x, h, p, pre):
    dot = functools.partial(jnp.dot, precision=_HIGH)
    i_r = dot(x, p[pre + "w_ir"]) + p[pre + "b_ir"]
    i_z = dot(x, p[pre + "w_iz"]) + p[pre + "b_iz"]
    i_n = dot(x, p[pre + "w_in"]) + p[pre + "b_in"]
    h_r = dot(h, p[pre + "w_hr"]) + p[pre + "b_hr"]
    h_z = dot(h, p[pre + "w_hz"]) + p[pre + "b_hz"]
    h_n = dot(h, p[pre + "w_hn"]) + p[pre + "b_hn"]
    r = jax.nn.sigmoid(i_r + h_r)
    z = jax.nn.sigmoid(i_z + h_z)
    n = jnp.tanh(i_n + r * h_n)
    return (1.0 - z) * n + z * h


def reference_forward(raw, src, trg, use_tf, pinned_greedy):
    """Discrete argmax-feedback tokens are pinned from the kernel's own logits so
    float-level differences cannot cause divergent branches in the comparison."""
    src_len, B = src.shape
    T = trg.shape[0]
    H = raw["enc_emb"].shape[1]
    V = raw["dec_emb"].shape[0]

    h = jnp.zeros((B, H), jnp.float32)
    for t in range(src_len):
        h = _gru_cell_ref(raw["enc_emb"][src[t]], h, raw, "enc_")

    outs = [jnp.zeros((B, V), jnp.float32)]
    for s in range(T - 1):
        tok = trg[s] if bool(use_tf[s]) else pinned_greedy[s - 1]
        x = raw["dec_emb"][tok]
        h = _gru_cell_ref(x, h, raw, "dec_")
        outs.append(jnp.dot(h, raw["w_out"], precision=_HIGH) + raw["b_out"])
    return jnp.stack(outs, axis=0)


# ----------------------------------------------------------------------------
if __name__ == "__main__":
    random.seed(0)  # deterministic teacher-forcing coin flips (host-side data)

    input_size = 10      # encoder vocab
    output_size = 10     # decoder vocab
    hidden_size = 256    # matches the module spec; gate slices stay lane-aligned
    src_len, trg_len, batch = 5, 7, 32

    key = jax.random.PRNGKey(0)
    k_p, k_src, k_trg = jax.random.split(key, 3)

    raw = init_raw_params(k_p, input_size, output_size, hidden_size)
    packed = pack_params(raw)

    src = jax.random.randint(k_src, (src_len, batch), 0, input_size, jnp.int32)
    trg = jax.random.randint(k_trg, (trg_len, batch), 0, output_size, jnp.int32)

    # Teacher-forcing decisions as data: the first decoder input is always trg[0]
    # (use_tf[0] == 1 by construction); later steps follow seeded coin flips, the
    # same structure as the PyTorch module's per-step random.random() < ratio.
    ratio = 0.5
    coins = [random.random() < ratio for _ in range(trg_len - 1)]
    use_tf = jnp.array([1] + [int(c) for c in coins[:trg_len - 2]], jnp.int32)
    assert int(use_tf[0]) == 1, "first decoder step must be teacher-forced (trg[0])"

    outputs = jax.block_until_ready(seq2seq_forward(packed, src, trg, use_tf))

    assert outputs.shape == (trg_len, batch, output_size)
    assert bool(jnp.all(outputs[0] == 0.0))
    assert bool(jnp.all(jnp.isfinite(outputs)))

    # Validate against the per-gate pure-JAX reference (HIGHEST precision); the
    # kernel's h-side matmuls run at default MXU precision, so allow a small gap.
    pinned_greedy = jnp.argmax(outputs[1:], axis=-1).astype(jnp.int32)
    ref = reference_forward(raw, src, trg, use_tf, pinned_greedy)
    max_err = float(jnp.max(jnp.abs(outputs - ref)))
    assert max_err < 2e-2, f"mismatch vs reference: max abs err = {max_err}"

    print("KERNEL_OK")
</pallas_src>

<mosaic_0001>
module attributes {stable_mosaic.version = 11 : i64} {
  func.func @_seq2seq_kernel(%arg0: i32, %arg1: memref<6xi32, #tpu.memory_space<smem>>, %arg2: memref<5x32x768xf32, #tpu.memory_space<vmem>>, %arg3: memref<6x32x768xf32, #tpu.memory_space<vmem>>, %arg4: memref<256x768xf32, #tpu.memory_space<vmem>>, %arg5: memref<1x768xf32, #tpu.memory_space<vmem>>, %arg6: memref<256x768xf32, #tpu.memory_space<vmem>>, %arg7: memref<1x768xf32, #tpu.memory_space<vmem>>, %arg8: memref<128x768xf32, #tpu.memory_space<vmem>>, %arg9: memref<256x128xf32, #tpu.memory_space<vmem>>, %arg10: memref<1x128xf32, #tpu.memory_space<vmem>>, %arg11: memref<7x32x128xf32, #tpu.memory_space<vmem>>) attributes {dimension_semantics = [#tpu.dimension_semantics<arbitrary>], iteration_bounds = array<i64: 1>, scalar_prefetch = 1 : i64, scratch_operands = 0 : i64, tpu.core_type = #tpu.core_type<tc>, window_params = [{pipeline_mode = #tpu.pipeline_mode<synchronous>, transform_indices = @transform_0, window_bounds = array<i64: 5, 32, 768>}, {pipeline_mode = #tpu.pipeline_mode<synchronous>, transform_indices = @transform_1, window_bounds = array<i64: 6, 32, 768>}, {pipeline_mode = #tpu.pipeline_mode<synchronous>, transform_indices = @transform_2, window_bounds = array<i64: 256, 768>}, {pipeline_mode = #tpu.pipeline_mode<synchronous>, transform_indices = @transform_3, window_bounds = array<i64: 1, 768>}, {pipeline_mode = #tpu.pipeline_mode<synchronous>, transform_indices = @transform_4, window_bounds = array<i64: 256, 768>}, {pipeline_mode = #tpu.pipeline_mode<synchronous>, transform_indices = @transform_5, window_bounds = array<i64: 1, 768>}, {pipeline_mode = #tpu.pipeline_mode<synchronous>, transform_indices = @transform_6, window_bounds = array<i64: 128, 768>}, {pipeline_mode = #tpu.pipeline_mode<synchronous>, transform_indices = @transform_7, window_bounds = array<i64: 256, 128>}, {pipeline_mode = #tpu.pipeline_mode<synchronous>, transform_indices = @transform_8, window_bounds = array<i64: 1, 128>}, {pipeline_mode = #tpu.pipeline_mode<synchronous>, transform_indices = @transform_9, window_bounds = array<i64: 7, 32, 128>}]} {
    %cst = arith.constant 0.000000e+00 : f32
    %0 = vector.broadcast %cst : f32 to vector<32x256xf32>
    %c0_i32 = arith.constant 0 : i32
    %1 = arith.index_cast %c0_i32 : i32 to index
    %c0 = arith.constant 0 : index
    %c0_0 = arith.constant 0 : index
    %2 = vector.load %arg2[%1, %c0, %c0_0] : memref<5x32x768xf32, #tpu.memory_space<vmem>>, vector<1x32x768xf32>
    %3 = vector.shape_cast %2 : vector<1x32x768xf32> to vector<32x768xf32>
    %c0_1 = arith.constant 0 : index
    %c0_2 = arith.constant 0 : index
    %4 = vector.load %arg4[%c0_1, %c0_2] : memref<256x768xf32, #tpu.memory_space<vmem>>, vector<256x768xf32>
    %cst_3 = arith.constant dense<0.000000e+00> : vector<32x768xf32>
    %5 = tpu.matmul %0, %4, %cst_3 {dimension_numbers = #tpu.dot_dimension_numbers<[1], [0], [0], [1], [0, 0, 1, 1], [], []>} : vector<32x256xf32>, vector<256x768xf32>, vector<32x768xf32> -> vector<32x768xf32>
    %c0_4 = arith.constant 0 : index
    %c0_5 = arith.constant 0 : index
    %6 = vector.load %arg5[%c0_4, %c0_5] : memref<1x768xf32, #tpu.memory_space<vmem>>, vector<1x768xf32>
    %7 = vector.broadcast %6 : vector<1x768xf32> to vector<32x768xf32>
    %8 = arith.addf %5, %7 : vector<32x768xf32>
    %9 = vector.extract_strided_slice %3 {offsets = [0, 0], sizes = [32, 256], strides = [1, 1]} : vector<32x768xf32> to vector<32x256xf32>
    %10 = vector.extract_strided_slice %8 {offsets = [0, 0], sizes = [32, 256], strides = [1, 1]} : vector<32x768xf32> to vector<32x256xf32>
    %11 = arith.addf %9, %10 : vector<32x256xf32>
    %12 = arith.negf %11 : vector<32x256xf32>
    %13 = math.exp %12 : vector<32x256xf32>
    %cst_6 = arith.constant 1.000000e+00 : f32
    %14 = vector.broadcast %cst_6 : f32 to vector<32x256xf32>
    %15 = arith.addf %14, %13 : vector<32x256xf32>
    %16 = arith.divf %14, %15 : vector<32x256xf32>
    %17 = vector.extract_strided_slice %3 {offsets = [0, 256], sizes = [32, 256], strides = [1, 1]} : vector<32x768xf32> to vector<32x256xf32>
    %18 = vector.extract_strided_slice %8 {offsets = [0, 256], sizes = [32, 256], strides = [1, 1]} : vector<32x768xf32> to vector<32x256xf32>
    %19 = arith.addf %17, %18 : vector<32x256xf32>
    %20 = arith.negf %19 : vector<32x256xf32>
    %21 = math.exp %20 : vector<32x256xf32>
    %cst_7 = arith.constant 1.000000e+00 : f32
    %22 = vector.broadcast %cst_7 : f32 to vector<32x256xf32>
    %23 = arith.addf %22, %21 : vector<32x256xf32>
    %24 = arith.divf %22, %23 : vector<32x256xf32>
    %25 = vector.extract_strided_slice %3 {offsets = [0, 512], sizes = [32, 256], strides = [1, 1]} : vector<32x768xf32> to vector<32x256xf32>
    %26 = vector.extract_strided_slice %8 {offsets = [0, 512], sizes = [32, 256], strides = [1, 1]} : vector<32x768xf32> to vector<32x256xf32>
    %27 = arith.mulf %16, %26 : vector<32x256xf32>
    %28 = arith.addf %25, %27 : vector<32x256xf32>
    %29 = math.tanh %28 : vector<32x256xf32>
    %cst_8 = arith.constant 1.000000e+00 : f32
    %30 = vector.broadcast %cst_8 : f32 to vector<32x256xf32>
    %31 = arith.subf %30, %24 : vector<32x256xf32>
    %32 = arith.mulf %31, %29 : vector<32x256xf32>
    %33 = arith.mulf %24, %0 : vector<32x256xf32>
    %34 = arith.addf %32, %33 : vector<32x256xf32>
    %c1_i32 = arith.constant 1 : i32
    %35 = arith.index_cast %c1_i32 : i32 to index
    %c0_9 = arith.constant 0 : index
    %c0_10 = arith.constant 0 : index
    %36 = vector.load %arg2[%35, %c0_9, %c0_10] : memref<5x32x768xf32, #tpu.memory_space<vmem>>, vector<1x32x768xf32>
    %37 = vector.shape_cast %36 : vector<1x32x768xf32> to vector<32x768xf32>
    %c0_11 = arith.constant 0 : index
    %c0_12 = arith.constant 0 : index
    %38 = vector.load %arg4[%c0_11, %c0_12] : memref<256x768xf32, #tpu.memory_space<vmem>>, vector<256x768xf32>
    %cst_13 = arith.constant dense<0.000000e+00> : vector<32x768xf32>
    %39 = tpu.matmul %34, %38, %cst_13 {dimension_numbers = #tpu.dot_dimension_numbers<[1], [0], [0], [1], [0, 0, 1, 1], [], []>} : vector<32x256xf32>, vector<256x768xf32>, vector<32x768xf32> -> vector<32x768xf32>
    %c0_14 = arith.constant 0 : index
    %c0_15 = arith.constant 0 : index
    %40 = vector.load %arg5[%c0_14, %c0_15] : memref<1x768xf32, #tpu.memory_space<vmem>>, vector<1x768xf32>
    %41 = vector.broadcast %40 : vector<1x768xf32> to vector<32x768xf32>
    %42 = arith.addf %39, %41 : vector<32x768xf32>
    %43 = vector.extract_strided_slice %37 {offsets = [0, 0], sizes = [32, 256], strides = [1, 1]} : vector<32x768xf32> to vector<32x256xf32>
    %44 = vector.extract_strided_slice %42 {offsets = [0, 0], sizes = [32, 256], strides = [1, 1]} : vector<32x768xf32> to vector<32x256xf32>
    %45 = arith.addf %43, %44 : vector<32x256xf32>
    %46 = arith.negf %45 : vector<32x256xf32>
    %47 = math.exp %46 : vector<32x256xf32>
    %cst_16 = arith.constant 1.000000e+00 : f32
    %48 = vector.broadcast %cst_16 : f32 to vector<32x256xf32>
    %49 = arith.addf %48, %47 : vector<32x256xf32>
    %50 = arith.divf %48, %49 : vector<32x256xf32>
    %51 = vector.extract_strided_slice %37 {offsets = [0, 256], sizes = [32, 256], strides = [1, 1]} : vector<32x768xf32> to vector<32x256xf32>
    %52 = vector.extract_strided_slice %42 {offsets = [0, 256], sizes = [32, 256], strides = [1, 1]} : vector<32x768xf32> to vector<32x256xf32>
    %53 = arith.addf %51, %52 : vector<32x256xf32>
    %54 = arith.negf %53 : vector<32x256xf32>
    %55 = math.exp %54 : vector<32x256xf32>
    %cst_17 = arith.constant 1.000000e+00 : f32
    %56 = vector.broadcast %cst_17 : f32 to vector<32x256xf32>
    %57 = arith.addf %56, %55 : vector<32x256xf32>
    %58 = arith.divf %56, %57 : vector<32x256xf32>
    %59 = vector.extract_strided_slice %37 {offsets = [0, 512], sizes = [32, 256], strides = [1, 1]} : vector<32x768xf32> to vector<32x256xf32>
    %60 = vector.extract_strided_slice %42 {offsets = [0, 512], sizes = [32, 256], strides = [1, 1]} : vector<32x768xf32> to vector<32x256xf32>
    %61 = arith.mulf %50, %60 : vector<32x256xf32>
    %62 = arith.addf %59, %61 : vector<32x256xf32>
    %63 = math.tanh %62 : vector<32x256xf32>
    %cst_18 = arith.constant 1.000000e+00 : f32
    %64 = vector.broadcast %cst_18 : f32 to vector<32x256xf32>
    %65 = arith.subf %64, %58 : vector<32x256xf32>
    %66 = arith.mulf %65, %63 : vector<32x256xf32>
    %67 = arith.mulf %58, %34 : vector<32x256xf32>
    %68 = arith.addf %66, %67 : vector<32x256xf32>
    %c2_i32 = arith.constant 2 : i32
    %69 = arith.index_cast %c2_i32 : i32 to index
    %c0_19 = arith.constant 0 : index
    %c0_20 = arith.constant 0 : index
    %70 = vector.load %arg2[%69, %c0_19, %c0_20] : memref<5x32x768xf32, #tpu.memory_space<vmem>>, vector<1x32x768xf32>
    %71 = vector.shape_cast %70 : vector<1x32x768xf32> to vector<32x768xf32>
    %c0_21 = arith.constant 0 : index
    %c0_22 = arith.constant 0 : index
    %72 = vector.load %arg4[%c0_21, %c0_22] : memref<256x768xf32, #tpu.memory_space<vmem>>, vector<256x768xf32>
    %cst_23 = arith.constant dense<0.000000e+00> : vector<32x768xf32>
    %73 = tpu.matmul %68, %72, %cst_23 {dimension_numbers = #tpu.dot_dimension_numbers<[1], [0], [0], [1], [0, 0, 1, 1], [], []>} : vector<32x256xf32>, vector<256x768xf32>, vector<32x768xf32> -> vector<32x768xf32>
    %c0_24 = arith.constant 0 : index
    %c0_25 = arith.constant 0 : index
    %74 = vector.load %arg5[%c0_24, %c0_25] : memref<1x768xf32, #tpu.memory_space<vmem>>, vector<1x768xf32>
    %75 = vector.broadcast %74 : vector<1x768xf32> to vector<32x768xf32>
    %76 = arith.addf %73, %75 : vector<32x768xf32>
    %77 = vector.extract_strided_slice %71 {offsets = [0, 0], sizes = [32, 256], strides = [1, 1]} : vector<32x768xf32> to vector<32x256xf32>
    %78 = vector.extract_strided_slice %76 {offsets = [0, 0], sizes = [32, 256], strides = [1, 1]} : vector<32x768xf32> to vector<32x256xf32>
    %79 = arith.addf %77, %78 : vector<32x256xf32>
    %80 = arith.negf %79 : vector<32x256xf32>
    %81 = math.exp %80 : vector<32x256xf32>
    %cst_26 = arith.constant 1.000000e+00 : f32
    %82 = vector.broadcast %cst_26 : f32 to vector<32x256xf32>
    %83 = arith.addf %82, %81 : vector<32x256xf32>
    %84 = arith.divf %82, %83 : vector<32x256xf32>
    %85 = vector.extract_strided_slice %71 {offsets = [0, 256], sizes = [32, 256], strides = [1, 1]} : vector<32x768xf32> to vector<32x256xf32>
    %86 = vector.extract_strided_slice %76 {offsets = [0, 256], sizes = [32, 256], strides = [1, 1]} : vector<32x768xf32> to vector<32x256xf32>
    %87 = arith.addf %85, %86 : vector<32x256xf32>
    %88 = arith.negf %87 : vector<32x256xf32>
    %89 = math.exp %88 : vector<32x256xf32>
    %cst_27 = arith.constant 1.000000e+00 : f32
    %90 = vector.broadcast %cst_27 : f32 to vector<32x256xf32>
    %91 = arith.addf %90, %89 : vector<32x256xf32>
    %92 = arith.divf %90, %91 : vector<32x256xf32>
    %93 = vector.extract_strided_slice %71 {offsets = [0, 512], sizes = [32, 256], strides = [1, 1]} : vector<32x768xf32> to vector<32x256xf32>
    %94 = vector.extract_strided_slice %76 {offsets = [0, 512], sizes = [32, 256], strides = [1, 1]} : vector<32x768xf32> to vector<32x256xf32>
    %95 = arith.mulf %84, %94 : vector<32x256xf32>
    %96 = arith.addf %93, %95 : vector<32x256xf32>
    %97 = math.tanh %96 : vector<32x256xf32>
    %cst_28 = arith.constant 1.000000e+00 : f32
    %98 = vector.broadcast %cst_28 : f32 to vector<32x256xf32>
    %99 = arith.subf %98, %92 : vector<32x256xf32>
    %100 = arith.mulf %99, %97 : vector<32x256xf32>
    %101 = arith.mulf %92, %68 : vector<32x256xf32>
    %102 = arith.addf %100, %101 : vector<32x256xf32>
    %c3_i32 = arith.constant 3 : i32
    %103 = arith.index_cast %c3_i32 : i32 to index
    %c0_29 = arith.constant 0 : index
    %c0_30 = arith.constant 0 : index
    %104 = vector.load %arg2[%103, %c0_29, %c0_30] : memref<5x32x768xf32, #tpu.memory_space<vmem>>, vector<1x32x768xf32>
    %105 = vector.shape_cast %104 : vector<1x32x768xf32> to vector<32x768xf32>
    %c0_31 = arith.constant 0 : index
    %c0_32 = arith.constant 0 : index
    %106 = vector.load %arg4[%c0_31, %c0_32] : memref<256x768xf32, #tpu.memory_space<vmem>>, vector<256x768xf32>
    %cst_33 = arith.constant dense<0.000000e+00> : vector<32x768xf32>
    %107 = tpu.matmul %102, %106, %cst_33 {dimension_numbers = #tpu.dot_dimension_numbers<[1], [0], [0], [1], [0, 0, 1, 1], [], []>} : vector<32x256xf32>, vector<256x768xf32>, vector<32x768xf32> -> vector<32x768xf32>
    %c0_34 = arith.constant 0 : index
    %c0_35 = arith.constant 0 : index
    %108 = vector.load %arg5[%c0_34, %c0_35] : memref<1x768xf32, #tpu.memory_space<vmem>>, vector<1x768xf32>
    %109 = vector.broadcast %108 : vector<1x768xf32> to vector<32x768xf32>
    %110 = arith.addf %107, %109 : vector<32x768xf32>
    %111 = vector.extract_strided_slice %105 {offsets = [0, 0], sizes = [32, 256], strides = [1, 1]} : vector<32x768xf32> to vector<32x256xf32>
    %112 = vector.extract_strided_slice %110 {offsets = [0, 0], sizes = [32, 256], strides = [1, 1]} : vector<32x768xf32> to vector<32x256xf32>
    %113 = arith.addf %111, %112 : vector<32x256xf32>
    %114 = arith.negf %113 : vector<32x256xf32>
    %115 = math.exp %114 : vector<32x256xf32>
    %cst_36 = arith.constant 1.000000e+00 : f32
    %116 = vector.broadcast %cst_36 : f32 to vector<32x256xf32>
    %117 = arith.addf %116, %115 : vector<32x256xf32>
    %118 = arith.divf %116, %117 : vector<32x256xf32>
    %119 = vector.extract_strided_slice %105 {offsets = [0, 256], sizes = [32, 256], strides = [1, 1]} : vector<32x768xf32> to vector<32x256xf32>
    %120 = vector.extract_strided_slice %110 {offsets = [0, 256], sizes = [32, 256], strides = [1, 1]} : vector<32x768xf32> to vector<32x256xf32>
    %121 = arith.addf %119, %120 : vector<32x256xf32>
    %122 = arith.negf %121 : vector<32x256xf32>
    %123 = math.exp %122 : vector<32x256xf32>
    %cst_37 = arith.constant 1.000000e+00 : f32
    %124 = vector.broadcast %cst_37 : f32 to vector<32x256xf32>
    %125 = arith.addf %124, %123 : vector<32x256xf32>
    %126 = arith.divf %124, %125 : vector<32x256xf32>
    %127 = vector.extract_strided_slice %105 {offsets = [0, 512], sizes = [32, 256], strides = [1, 1]} : vector<32x768xf32> to vector<32x256xf32>
    %128 = vector.extract_strided_slice %110 {offsets = [0, 512], sizes = [32, 256], strides = [1, 1]} : vector<32x768xf32> to vector<32x256xf32>
    %129 = arith.mulf %118, %128 : vector<32x256xf32>
    %130 = arith.addf %127, %129 : vector<32x256xf32>
    %131 = math.tanh %130 : vector<32x256xf32>
    %cst_38 = arith.constant 1.000000e+00 : f32
    %132 = vector.broadcast %cst_38 : f32 to vector<32x256xf32>
    %133 = arith.subf %132, %126 : vector<32x256xf32>
    %134 = arith.mulf %133, %131 : vector<32x256xf32>
    %135 = arith.mulf %126, %102 : vector<32x256xf32>
    %136 = arith.addf %134, %135 : vector<32x256xf32>
    %c4_i32 = arith.constant 4 : i32
    %137 = arith.index_cast %c4_i32 : i32 to index
    %c0_39 = arith.constant 0 : index
    %c0_40 = arith.constant 0 : index
    %138 = vector.load %arg2[%137, %c0_39, %c0_40] : memref<5x32x768xf32, #tpu.memory_space<vmem>>, vector<1x32x768xf32>
    %139 = vector.shape_cast %138 : vector<1x32x768xf32> to vector<32x768xf32>
    %c0_41 = arith.constant 0 : index
    %c0_42 = arith.constant 0 : index
    %140 = vector.load %arg4[%c0_41, %c0_42] : memref<256x768xf32, #tpu.memory_space<vmem>>, vector<256x768xf32>
    %cst_43 = arith.constant dense<0.000000e+00> : vector<32x768xf32>
    %141 = tpu.matmul %136, %140, %cst_43 {dimension_numbers = #tpu.dot_dimension_numbers<[1], [0], [0], [1], [0, 0, 1, 1], [], []>} : vector<32x256xf32>, vector<256x768xf32>, vector<32x768xf32> -> vector<32x768xf32>
    %c0_44 = arith.constant 0 : index
    %c0_45 = arith.constant 0 : index
    %142 = vector.load %arg5[%c0_44, %c0_45] : memref<1x768xf32, #tpu.memory_space<vmem>>, vector<1x768xf32>
    %143 = vector.broadcast %142 : vector<1x768xf32> to vector<32x768xf32>
    %144 = arith.addf %141, %143 : vector<32x768xf32>
    %145 = vector.extract_strided_slice %139 {offsets = [0, 0], sizes = [32, 256], strides = [1, 1]} : vector<32x768xf32> to vector<32x256xf32>
    %146 = vector.extract_strided_slice %144 {offsets = [0, 0], sizes = [32, 256], strides = [1, 1]} : vector<32x768xf32> to vector<32x256xf32>
    %147 = arith.addf %145, %146 : vector<32x256xf32>
    %148 = arith.negf %147 : vector<32x256xf32>
    %149 = math.exp %148 : vector<32x256xf32>
    %cst_46 = arith.constant 1.000000e+00 : f32
    %150 = vector.broadcast %cst_46 : f32 to vector<32x256xf32>
    %151 = arith.addf %150, %149 : vector<32x256xf32>
    %152 = arith.divf %150, %151 : vector<32x256xf32>
    %153 = vector.extract_strided_slice %139 {offsets = [0, 256], sizes = [32, 256], strides = [1, 1]} : vector<32x768xf32> to vector<32x256xf32>
    %154 = vector.extract_strided_slice %144 {offsets = [0, 256], sizes = [32, 256], strides = [1, 1]} : vector<32x768xf32> to vector<32x256xf32>
    %155 = arith.addf %153, %154 : vector<32x256xf32>
    %156 = arith.negf %155 : vector<32x256xf32>
    %157 = math.exp %156 : vector<32x256xf32>
    %cst_47 = arith.constant 1.000000e+00 : f32
    %158 = vector.broadcast %cst_47 : f32 to vector<32x256xf32>
    %159 = arith.addf %158, %157 : vector<32x256xf32>
    %160 = arith.divf %158, %159 : vector<32x256xf32>
    %161 = vector.extract_strided_slice %139 {offsets = [0, 512], sizes = [32, 256], strides = [1, 1]} : vector<32x768xf32> to vector<32x256xf32>
    %162 = vector.extract_strided_slice %144 {offsets = [0, 512], sizes = [32, 256], strides = [1, 1]} : vector<32x768xf32> to vector<32x256xf32>
    %163 = arith.mulf %152, %162 : vector<32x256xf32>
    %164 = arith.addf %161, %163 : vector<32x256xf32>
    %165 = math.tanh %164 : vector<32x256xf32>
    %cst_48 = arith.constant 1.000000e+00 : f32
    %166 = vector.broadcast %cst_48 : f32 to vector<32x256xf32>
    %167 = arith.subf %166, %160 : vector<32x256xf32>
    %168 = arith.mulf %167, %165 : vector<32x256xf32>
    %169 = arith.mulf %160, %136 : vector<32x256xf32>
    %170 = arith.addf %168, %169 : vector<32x256xf32>
    %c5_i32 = arith.constant 5 : i32
    %cst_49 = arith.constant 0.000000e+00 : f32
    %171 = vector.broadcast %cst_49 : f32 to vector<32x128xf32>
    %c0_50 = arith.constant 0 : index
    %c0_51 = arith.constant 0 : index
    %c0_52 = arith.constant 0 : index
    %172 = vector.load %arg11[%c0_50, %c0_51, %c0_52] : memref<7x32x128xf32, #tpu.memory_space<vmem>>, vector<1x32x128xf32>
    %173 = vector.shape_cast %172 : vector<1x32x128xf32> to vector<32x128xf32>
    %174 = vector.shape_cast %171 : vector<32x128xf32> to vector<1x32x128xf32>
    tpu.vector_store %arg11[%c0_50, %c0_51, %c0_52], %174 {strides = array<i32>} : memref<7x32x128xf32, #tpu.memory_space<vmem>>, vector<1x32x128xf32>,
    %cst_53 = arith.constant 0.000000e+00 : f32
    %175 = vector.broadcast %cst_53 : f32 to vector<32x768xf32>
    %c0_i32_54 = arith.constant 0 : i32
    %176 = arith.index_cast %c0_i32_54 : i32 to index
    %177 = memref.load %arg1[%176] : memref<6xi32, #tpu.memory_space<smem>>
    %178 = arith.sitofp %177 : i32 to f32
    %179 = arith.index_cast %c0_i32_54 : i32 to index
    %c0_55 = arith.constant 0 : index
    %c0_56 = arith.constant 0 : index
    %180 = vector.load %arg3[%179, %c0_55, %c0_56] : memref<6x32x768xf32, #tpu.memory_space<vmem>>, vector<1x32x768xf32>
    %181 = vector.shape_cast %180 : vector<1x32x768xf32> to vector<32x768xf32>
    %182 = vector.broadcast %178 : f32 to vector<32x768xf32>
    %183 = arith.mulf %182, %181 : vector<32x768xf32>
    %cst_57 = arith.constant 1.000000e+00 : f32
    %184 = arith.subf %cst_57, %178 : f32
    %185 = vector.broadcast %184 : f32 to vector<32x768xf32>
    %186 = arith.mulf %185, %175 : vector<32x768xf32>
    %187 = arith.addf %183, %186 : vector<32x768xf32>
    %c0_58 = arith.constant 0 : index
    %c0_59 = arith.constant 0 : index
    %188 = vector.load %arg6[%c0_58, %c0_59] : memref<256x768xf32, #tpu.memory_space<vmem>>, vector<256x768xf32>
    %cst_60 = arith.constant dense<0.000000e+00> : vector<32x768xf32>
    %189 = tpu.matmul %170, %188, %cst_60 {dimension_numbers = #tpu.dot_dimension_numbers<[1], [0], [0], [1], [0, 0, 1, 1], [], []>} : vector<32x256xf32>, vector<256x768xf32>, vector<32x768xf32> -> vector<32x768xf32>
    %c0_61 = arith.constant 0 : index
    %c0_62 = arith.constant 0 : index
    %190 = vector.load %arg7[%c0_61, %c0_62] : memref<1x768xf32, #tpu.memory_space<vmem>>, vector<1x768xf32>
    %191 = vector.broadcast %190 : vector<1x768xf32> to vector<32x768xf32>
    %192 = arith.addf %189, %191 : vector<32x768xf32>
    %193 = vector.extract_strided_slice %187 {offsets = [0, 0], sizes = [32, 256], strides = [1, 1]} : vector<32x768xf32> to vector<32x256xf32>
    %194 = vector.extract_strided_slice %192 {offsets = [0, 0], sizes = [32, 256], strides = [1, 1]} : vector<32x768xf32> to vector<32x256xf32>
    %195 = arith.addf %193, %194 : vector<32x256xf32>
    %196 = arith.negf %195 : vector<32x256xf32>
    %197 = math.exp %196 : vector<32x256xf32>
    %cst_63 = arith.constant 1.000000e+00 : f32
    %198 = vector.broadcast %cst_63 : f32 to vector<32x256xf32>
    %199 = arith.addf %198, %197 : vector<32x256xf32>
    %200 = arith.divf %198, %199 : vector<32x256xf32>
    %201 = vector.extract_strided_slice %187 {offsets = [0, 256], sizes = [32, 256], strides = [1, 1]} : vector<32x768xf32> to vector<32x256xf32>
    %202 = vector.extract_strided_slice %192 {offsets = [0, 256], sizes = [32, 256], strides = [1, 1]} : vector<32x768xf32> to vector<32x256xf32>
    %203 = arith.addf %201, %202 : vector<32x256xf32>
    %204 = arith.negf %203 : vector<32x256xf32>
    %205 = math.exp %204 : vector<32x256xf32>
    %cst_64 = arith.constant 1.000000e+00 : f32
    %206 = vector.broadcast %cst_64 : f32 to vector<32x256xf32>
    %207 = arith.addf %206, %205 : vector<32x256xf32>
    %208 = arith.divf %206, %207 : vector<32x256xf32>
    %209 = vector.extract_strided_slice %187 {offsets = [0, 512], sizes = [32, 256], strides = [1, 1]} : vector<32x768xf32> to vector<32x256xf32>
    %210 = vector.extract_strided_slice %192 {offsets = [0, 512], sizes = [32, 256], strides = [1, 1]} : vector<32x768xf32> to vector<32x256xf32>
    %211 = arith.mulf %200, %210 : vector<32x256xf32>
    %212 = arith.addf %209, %211 : vector<32x256xf32>
    %213 = math.tanh %212 : vector<32x256xf32>
    %cst_65 = arith.constant 1.000000e+00 : f32
    %214 = vector.broadcast %cst_65 : f32 to vector<32x256xf32>
    %215 = arith.subf %214, %208 : vector<32x256xf32>
    %216 = arith.mulf %215, %213 : vector<32x256xf32>
    %217 = arith.mulf %208, %170 : vector<32x256xf32>
    %218 = arith.addf %216, %217 : vector<32x256xf32>
    %c0_66 = arith.constant 0 : index
    %c0_67 = arith.constant 0 : index
    %219 = vector.load %arg9[%c0_66, %c0_67] : memref<256x128xf32, #tpu.memory_space<vmem>>, vector<256x128xf32>
    %cst_68 = arith.constant dense<0.000000e+00> : vector<32x128xf32>
    %220 = tpu.matmul %218, %219, %cst_68 {dimension_numbers = #tpu.dot_dimension_numbers<[1], [0], [0], [1], [0, 0, 1, 1], [], []>} : vector<32x256xf32>, vector<256x128xf32>, vector<32x128xf32> -> vector<32x128xf32>
    %c0_69 = arith.constant 0 : index
    %c0_70 = arith.constant 0 : index
    %221 = vector.load %arg10[%c0_69, %c0_70] : memref<1x128xf32, #tpu.memory_space<vmem>>, vector<1x128xf32>
    %222 = vector.broadcast %221 : vector<1x128xf32> to vector<32x128xf32>
    %223 = arith.addf %220, %222 : vector<32x128xf32>
    %c1_i32_71 = arith.constant 1 : i32
    %224 = arith.addi %c0_i32_54, %c1_i32_71 : i32
    %225 = arith.index_cast %224 : i32 to index
    %c0_72 = arith.constant 0 : index
    %c0_73 = arith.constant 0 : index
    %226 = vector.load %arg11[%225, %c0_72, %c0_73] : memref<7x32x128xf32, #tpu.memory_space<vmem>>, vector<1x32x128xf32>
    %227 = vector.shape_cast %226 : vector<1x32x128xf32> to vector<32x128xf32>
    %228 = vector.shape_cast %223 : vector<32x128xf32> to vector<1x32x128xf32>
    tpu.vector_store %arg11[%225, %c0_72, %c0_73], %228 {strides = array<i32>} : memref<7x32x128xf32, #tpu.memory_space<vmem>>, vector<1x32x128xf32>,
    %cst_74 = arith.constant dense<0xFF800000> : vector<32xf32>
    %229 = vector.multi_reduction <maximumf>, %223, %cst_74 [1] : vector<32x128xf32> to vector<32xf32>
    %230 = vector.shape_cast %229 : vector<32xf32> to vector<32x1xf32>
    %231 = tpu.iota {dimensions = array<i32: 1>} : vector<32x128xi32>
    %232 = vector.broadcast %230 : vector<32x1xf32> to vector<32x128xf32>
    %233 = arith.cmpf oge, %223, %232 : vector<32x128xf32>
    %c2147483647_i32 = arith.constant 2147483647 : i32
    %234 = vector.broadcast %c2147483647_i32 : i32 to vector<32x128xi32>
    %235 = arith.select %233, %231, %234 : vector<32x128xi1>, vector<32x128xi32>
    %cst_75 = arith.constant dense<2147483647> : vector<32xi32>
    %236 = vector.multi_reduction <minsi>, %235, %cst_75 [1] : vector<32x128xi32> to vector<32xi32>
    %237 = vector.shape_cast %236 : vector<32xi32> to vector<32x1xi32>
    %238 = vector.broadcast %237 : vector<32x1xi32> to vector<32x128xi32>
    %239 = arith.cmpi eq, %231, %238 : vector<32x128xi32>
    %240 = arith.extui %239 : vector<32x128xi1> to vector<32x128xi32>
    %241 = arith.sitofp %240 : vector<32x128xi32> to vector<32x128xf32>
    %c0_76 = arith.constant 0 : index
    %c0_77 = arith.constant 0 : index
    %242 = vector.load %arg8[%c0_76, %c0_77] : memref<128x768xf32, #tpu.memory_space<vmem>>, vector<128x768xf32>
    %cst_78 = arith.constant dense<0.000000e+00> : vector<32x768xf32>
    %243 = tpu.matmul %241, %242, %cst_78 {dimension_numbers = #tpu.dot_dimension_numbers<[1], [0], [0], [1], [0, 0, 1, 1], [], []>} : vector<32x128xf32>, vector<128x768xf32>, vector<32x768xf32> -> vector<32x768xf32>
    %c1_i32_79 = arith.constant 1 : i32
    %244 = arith.index_cast %c1_i32_79 : i32 to index
    %245 = memref.load %arg1[%244] : memref<6xi32, #tpu.memory_space<smem>>
    %246 = arith.sitofp %245 : i32 to f32
    %247 = arith.index_cast %c1_i32_79 : i32 to index
    %c0_80 = arith.constant 0 : index
    %c0_81 = arith.constant 0 : index
    %248 = vector.load %arg3[%247, %c0_80, %c0_81] : memref<6x32x768xf32, #tpu.memory_space<vmem>>, vector<1x32x768xf32>
    %249 = vector.shape_cast %248 : vector<1x32x768xf32> to vector<32x768xf32>
    %250 = vector.broadcast %246 : f32 to vector<32x768xf32>
    %251 = arith.mulf %250, %249 : vector<32x768xf32>
    %cst_82 = arith.constant 1.000000e+00 : f32
    %252 = arith.subf %cst_82, %246 : f32
    %253 = vector.broadcast %252 : f32 to vector<32x768xf32>
    %254 = arith.mulf %253, %243 : vector<32x768xf32>
    %255 = arith.addf %251, %254 : vector<32x768xf32>
    %c0_83 = arith.constant 0 : index
    %c0_84 = arith.constant 0 : index
    %256 = vector.load %arg6[%c0_83, %c0_84] : memref<256x768xf32, #tpu.memory_space<vmem>>, vector<256x768xf32>
    %cst_85 = arith.constant dense<0.000000e+00> : vector<32x768xf32>
    %257 = tpu.matmul %218, %256, %cst_85 {dimension_numbers = #tpu.dot_dimension_numbers<[1], [0], [0], [1], [0, 0, 1, 1], [], []>} : vector<32x256xf32>, vector<256x768xf32>, vector<32x768xf32> -> vector<32x768xf32>
    %c0_86 = arith.constant 0 : index
    %c0_87 = arith.constant 0 : index
    %258 = vector.load %arg7[%c0_86, %c0_87] : memref<1x768xf32, #tpu.memory_space<vmem>>, vector<1x768xf32>
    %259 = vector.broadcast %258 : vector<1x768xf32> to vector<32x768xf32>
    %260 = arith.addf %257, %259 : vector<32x768xf32>
    %261 = vector.extract_strided_slice %255 {offsets = [0, 0], sizes = [32, 256], strides = [1, 1]} : vector<32x768xf32> to vector<32x256xf32>
    %262 = vector.extract_strided_slice %260 {offsets = [0, 0], sizes = [32, 256], strides = [1, 1]} : vector<32x768xf32> to vector<32x256xf32>
    %263 = arith.addf %261, %262 : vector<32x256xf32>
    %264 = arith.negf %263 : vector<32x256xf32>
    %265 = math.exp %264 : vector<32x256xf32>
    %cst_88 = arith.constant 1.000000e+00 : f32
    %266 = vector.broadcast %cst_88 : f32 to vector<32x256xf32>
    %267 = arith.addf %266, %265 : vector<32x256xf32>
    %268 = arith.divf %266, %267 : vector<32x256xf32>
    %269 = vector.extract_strided_slice %255 {offsets = [0, 256], sizes = [32, 256], strides = [1, 1]} : vector<32x768xf32> to vector<32x256xf32>
    %270 = vector.extract_strided_slice %260 {offsets = [0, 256], sizes = [32, 256], strides = [1, 1]} : vector<32x768xf32> to vector<32x256xf32>
    %271 = arith.addf %269, %270 : vector<32x256xf32>
    %272 = arith.negf %271 : vector<32x256xf32>
    %273 = math.exp %272 : vector<32x256xf32>
    %cst_89 = arith.constant 1.000000e+00 : f32
    %274 = vector.broadcast %cst_89 : f32 to vector<32x256xf32>
    %275 = arith.addf %274, %273 : vector<32x256xf32>
    %276 = arith.divf %274, %275 : vector<32x256xf32>
    %277 = vector.extract_strided_slice %255 {offsets = [0, 512], sizes = [32, 256], strides = [1, 1]} : vector<32x768xf32> to vector<32x256xf32>
    %278 = vector.extract_strided_slice %260 {offsets = [0, 512], sizes = [32, 256], strides = [1, 1]} : vector<32x768xf32> to vector<32x256xf32>
    %279 = arith.mulf %268, %278 : vector<32x256xf32>
    %280 = arith.addf %277, %279 : vector<32x256xf32>
    %281 = math.tanh %280 : vector<32x256xf32>
    %cst_90 = arith.constant 1.000000e+00 : f32
    %282 = vector.broadcast %cst_90 : f32 to vector<32x256xf32>
    %283 = arith.subf %282, %276 : vector<32x256xf32>
    %284 = arith.mulf %283, %281 : vector<32x256xf32>
    %285 = arith.mulf %276, %218 : vector<32x256xf32>
    %286 = arith.addf %284, %285 : vector<32x256xf32>
    %c0_91 = arith.constant 0 : index
    %c0_92 = arith.constant 0 : index
    %287 = vector.load %arg9[%c0_91, %c0_92] : memref<256x128xf32, #tpu.memory_space<vmem>>, vector<256x128xf32>
    %cst_93 = arith.constant dense<0.000000e+00> : vector<32x128xf32>
    %288 = tpu.matmul %286, %287, %cst_93 {dimension_numbers = #tpu.dot_dimension_numbers<[1], [0], [0], [1], [0, 0, 1, 1], [], []>} : vector<32x256xf32>, vector<256x128xf32>, vector<32x128xf32> -> vector<32x128xf32>
    %c0_94 = arith.constant 0 : index
    %c0_95 = arith.constant 0 : index
    %289 = vector.load %arg10[%c0_94, %c0_95] : memref<1x128xf32, #tpu.memory_space<vmem>>, vector<1x128xf32>
    %290 = vector.broadcast %289 : vector<1x128xf32> to vector<32x128xf32>
    %291 = arith.addf %288, %290 : vector<32x128xf32>
    %c1_i32_96 = arith.constant 1 : i32
    %292 = arith.addi %c1_i32_79, %c1_i32_96 : i32
    %293 = arith.index_cast %292 : i32 to index
    %c0_97 = arith.constant 0 : index
    %c0_98 = arith.constant 0 : index
    %294 = vector.load %arg11[%293, %c0_97, %c0_98] : memref<7x32x128xf32, #tpu.memory_space<vmem>>, vector<1x32x128xf32>
    %295 = vector.shape_cast %294 : vector<1x32x128xf32> to vector<32x128xf32>
    %296 = vector.shape_cast %291 : vector<32x128xf32> to vector<1x32x128xf32>
    tpu.vector_store %arg11[%293, %c0_97, %c0_98], %296 {strides = array<i32>} : memref<7x32x128xf32, #tpu.memory_space<vmem>>, vector<1x32x128xf32>,
    %cst_99 = arith.constant dense<0xFF800000> : vector<32xf32>
    %297 = vector.multi_reduction <maximumf>, %291, %cst_99 [1] : vector<32x128xf32> to vector<32xf32>
    %298 = vector.shape_cast %297 : vector<32xf32> to vector<32x1xf32>
    %299 = tpu.iota {dimensions = array<i32: 1>} : vector<32x128xi32>
    %300 = vector.broadcast %298 : vector<32x1xf32> to vector<32x128xf32>
    %301 = arith.cmpf oge, %291, %300 : vector<32x128xf32>
    %c2147483647_i32_100 = arith.constant 2147483647 : i32
    %302 = vector.broadcast %c2147483647_i32_100 : i32 to vector<32x128xi32>
    %303 = arith.select %301, %299, %302 : vector<32x128xi1>, vector<32x128xi32>
    %cst_101 = arith.constant dense<2147483647> : vector<32xi32>
    %304 = vector.multi_reduction <minsi>, %303, %cst_101 [1] : vector<32x128xi32> to vector<32xi32>
    %305 = vector.shape_cast %304 : vector<32xi32> to vector<32x1xi32>
    %306 = vector.broadcast %305 : vector<32x1xi32> to vector<32x128xi32>
    %307 = arith.cmpi eq, %299, %306 : vector<32x128xi32>
    %308 = arith.extui %307 : vector<32x128xi1> to vector<32x128xi32>
    %309 = arith.sitofp %308 : vector<32x128xi32> to vector<32x128xf32>
    %c0_102 = arith.constant 0 : index
    %c0_103 = arith.constant 0 : index
    %310 = vector.load %arg8[%c0_102, %c0_103] : memref<128x768xf32, #tpu.memory_space<vmem>>, vector<128x768xf32>
    %cst_104 = arith.constant dense<0.000000e+00> : vector<32x768xf32>
    %311 = tpu.matmul %309, %310, %cst_104 {dimension_numbers = #tpu.dot_dimension_numbers<[1], [0], [0], [1], [0, 0, 1, 1], [], []>} : vector<32x128xf32>, vector<128x768xf32>, vector<32x768xf32> -> vector<32x768xf32>
    %c2_i32_105 = arith.constant 2 : i32
    %312 = arith.index_cast %c2_i32_105 : i32 to index
    %313 = memref.load %arg1[%312] : memref<6xi32, #tpu.memory_space<smem>>
    %314 = arith.sitofp %313 : i32 to f32
    %315 = arith.index_cast %c2_i32_105 : i32 to index
    %c0_106 = arith.constant 0 : index
    %c0_107 = arith.constant 0 : index
    %316 = vector.load %arg3[%315, %c0_106, %c0_107] : memref<6x32x768xf32, #tpu.memory_space<vmem>>, vector<1x32x768xf32>
    %317 = vector.shape_cast %316 : vector<1x32x768xf32> to vector<32x768xf32>
    %318 = vector.broadcast %314 : f32 to vector<32x768xf32>
    %319 = arith.mulf %318, %317 : vector<32x768xf32>
    %cst_108 = arith.constant 1.000000e+00 : f32
    %320 = arith.subf %cst_108, %314 : f32
    %321 = vector.broadcast %320 : f32 to vector<32x768xf32>
    %322 = arith.mulf %321, %311 : vector<32x768xf32>
    %323 = arith.addf %319, %322 : vector<32x768xf32>
    %c0_109 = arith.constant 0 : index
    %c0_110 = arith.constant 0 : index
    %324 = vector.load %arg6[%c0_109, %c0_110] : memref<256x768xf32, #tpu.memory_space<vmem>>, vector<256x768xf32>
    %cst_111 = arith.constant dense<0.000000e+00> : vector<32x768xf32>
    %325 = tpu.matmul %286, %324, %cst_111 {dimension_numbers = #tpu.dot_dimension_numbers<[1], [0], [0], [1], [0, 0, 1, 1], [], []>} : vector<32x256xf32>, vector<256x768xf32>, vector<32x768xf32> -> vector<32x768xf32>
    %c0_112 = arith.constant 0 : index
    %c0_113 = arith.constant 0 : index
    %326 = vector.load %arg7[%c0_112, %c0_113] : memref<1x768xf32, #tpu.memory_space<vmem>>, vector<1x768xf32>
    %327 = vector.broadcast %326 : vector<1x768xf32> to vector<32x768xf32>
    %328 = arith.addf %325, %327 : vector<32x768xf32>
    %329 = vector.extract_strided_slice %323 {offsets = [0, 0], sizes = [32, 256], strides = [1, 1]} : vector<32x768xf32> to vector<32x256xf32>
    %330 = vector.extract_strided_slice %328 {offsets = [0, 0], sizes = [32, 256], strides = [1, 1]} : vector<32x768xf32> to vector<32x256xf32>
    %331 = arith.addf %329, %330 : vector<32x256xf32>
    %332 = arith.negf %331 : vector<32x256xf32>
    %333 = math.exp %332 : vector<32x256xf32>
    %cst_114 = arith.constant 1.000000e+00 : f32
    %334 = vector.broadcast %cst_114 : f32 to vector<32x256xf32>
    %335 = arith.addf %334, %333 : vector<32x256xf32>
    %336 = arith.divf %334, %335 : vector<32x256xf32>
    %337 = vector.extract_strided_slice %323 {offsets = [0, 256], sizes = [32, 256], strides = [1, 1]} : vector<32x768xf32> to vector<32x256xf32>
    %338 = vector.extract_strided_slice %328 {offsets = [0, 256], sizes = [32, 256], strides = [1, 1]} : vector<32x768xf32> to vector<32x256xf32>
    %339 = arith.addf %337, %338 : vector<32x256xf32>
    %340 = arith.negf %339 : vector<32x256xf32>
    %341 = math.exp %340 : vector<32x256xf32>
    %cst_115 = arith.constant 1.000000e+00 : f32
    %342 = vector.broadcast %cst_115 : f32 to vector<32x256xf32>
    %343 = arith.addf %342, %341 : vector<32x256xf32>
    %344 = arith.divf %342, %343 : vector<32x256xf32>
    %345 = vector.extract_strided_slice %323 {offsets = [0, 512], sizes = [32, 256], strides = [1, 1]} : vector<32x768xf32> to vector<32x256xf32>
    %346 = vector.extract_strided_slice %328 {offsets = [0, 512], sizes = [32, 256], strides = [1, 1]} : vector<32x768xf32> to vector<32x256xf32>
    %347 = arith.mulf %336, %346 : vector<32x256xf32>
    %348 = arith.addf %345, %347 : vector<32x256xf32>
    %349 = math.tanh %348 : vector<32x256xf32>
    %cst_116 = arith.constant 1.000000e+00 : f32
    %350 = vector.broadcast %cst_116 : f32 to vector<32x256xf32>
    %351 = arith.subf %350, %344 : vector<32x256xf32>
    %352 = arith.mulf %351, %349 : vector<32x256xf32>
    %353 = arith.mulf %344, %286 : vector<32x256xf32>
    %354 = arith.addf %352, %353 : vector<32x256xf32>
    %c0_117 = arith.constant 0 : index
    %c0_118 = arith.constant 0 : index
    %355 = vector.load %arg9[%c0_117, %c0_118] : memref<256x128xf32, #tpu.memory_space<vmem>>, vector<256x128xf32>
    %cst_119 = arith.constant dense<0.000000e+00> : vector<32x128xf32>
    %356 = tpu.matmul %354, %355, %cst_119 {dimension_numbers = #tpu.dot_dimension_numbers<[1], [0], [0], [1], [0, 0, 1, 1], [], []>} : vector<32x256xf32>, vector<256x128xf32>, vector<32x128xf32> -> vector<32x128xf32>
    %c0_120 = arith.constant 0 : index
    %c0_121 = arith.constant 0 : index
    %357 = vector.load %arg10[%c0_120, %c0_121] : memref<1x128xf32, #tpu.memory_space<vmem>>, vector<1x128xf32>
    %358 = vector.broadcast %357 : vector<1x128xf32> to vector<32x128xf32>
    %359 = arith.addf %356, %358 : vector<32x128xf32>
    %c1_i32_122 = arith.constant 1 : i32
    %360 = arith.addi %c2_i32_105, %c1_i32_122 : i32
    %361 = arith.index_cast %360 : i32 to index
    %c0_123 = arith.constant 0 : index
    %c0_124 = arith.constant 0 : index
    %362 = vector.load %arg11[%361, %c0_123, %c0_124] : memref<7x32x128xf32, #tpu.memory_space<vmem>>, vector<1x32x128xf32>
    %363 = vector.shape_cast %362 : vector<1x32x128xf32> to vector<32x128xf32>
    %364 = vector.shape_cast %359 : vector<32x128xf32> to vector<1x32x128xf32>
    tpu.vector_store %arg11[%361, %c0_123, %c0_124], %364 {strides = array<i32>} : memref<7x32x128xf32, #tpu.memory_space<vmem>>, vector<1x32x128xf32>,
    %cst_125 = arith.constant dense<0xFF800000> : vector<32xf32>
    %365 = vector.multi_reduction <maximumf>, %359, %cst_125 [1] : vector<32x128xf32> to vector<32xf32>
    %366 = vector.shape_cast %365 : vector<32xf32> to vector<32x1xf32>
    %367 = tpu.iota {dimensions = array<i32: 1>} : vector<32x128xi32>
    %368 = vector.broadcast %366 : vector<32x1xf32> to vector<32x128xf32>
    %369 = arith.cmpf oge, %359, %368 : vector<32x128xf32>
    %c2147483647_i32_126 = arith.constant 2147483647 : i32
    %370 = vector.broadcast %c2147483647_i32_126 : i32 to vector<32x128xi32>
    %371 = arith.select %369, %367, %370 : vector<32x128xi1>, vector<32x128xi32>
    %cst_127 = arith.constant dense<2147483647> : vector<32xi32>
    %372 = vector.multi_reduction <minsi>, %371, %cst_127 [1] : vector<32x128xi32> to vector<32xi32>
    %373 = vector.shape_cast %372 : vector<32xi32> to vector<32x1xi32>
    %374 = vector.broadcast %373 : vector<32x1xi32> to vector<32x128xi32>
    %375 = arith.cmpi eq, %367, %374 : vector<32x128xi32>
    %376 = arith.extui %375 : vector<32x128xi1> to vector<32x128xi32>
    %377 = arith.sitofp %376 : vector<32x128xi32> to vector<32x128xf32>
    %c0_128 = arith.constant 0 : index
    %c0_129 = arith.constant 0 : index
    %378 = vector.load %arg8[%c0_128, %c0_129] : memref<128x768xf32, #tpu.memory_space<vmem>>, vector<128x768xf32>
    %cst_130 = arith.constant dense<0.000000e+00> : vector<32x768xf32>
    %379 = tpu.matmul %377, %378, %cst_130 {dimension_numbers = #tpu.dot_dimension_numbers<[1], [0], [0], [1], [0, 0, 1, 1], [], []>} : vector<32x128xf32>, vector<128x768xf32>, vector<32x768xf32> -> vector<32x768xf32>
    %c3_i32_131 = arith.constant 3 : i32
    %380 = arith.index_cast %c3_i32_131 : i32 to index
    %381 = memref.load %arg1[%380] : memref<6xi32, #tpu.memory_space<smem>>
    %382 = arith.sitofp %381 : i32 to f32
    %383 = arith.index_cast %c3_i32_131 : i32 to index
    %c0_132 = arith.constant 0 : index
    %c0_133 = arith.constant 0 : index
    %384 = vector.load %arg3[%383, %c0_132, %c0_133] : memref<6x32x768xf32, #tpu.memory_space<vmem>>, vector<1x32x768xf32>
    %385 = vector.shape_cast %384 : vector<1x32x768xf32> to vector<32x768xf32>
    %386 = vector.broadcast %382 : f32 to vector<32x768xf32>
    %387 = arith.mulf %386, %385 : vector<32x768xf32>
    %cst_134 = arith.constant 1.000000e+00 : f32
    %388 = arith.subf %cst_134, %382 : f32
    %389 = vector.broadcast %388 : f32 to vector<32x768xf32>
    %390 = arith.mulf %389, %379 : vector<32x768xf32>
    %391 = arith.addf %387, %390 : vector<32x768xf32>
    %c0_135 = arith.constant 0 : index
    %c0_136 = arith.constant 0 : index
    %392 = vector.load %arg6[%c0_135, %c0_136] : memref<256x768xf32, #tpu.memory_space<vmem>>, vector<256x768xf32>
    %cst_137 = arith.constant dense<0.000000e+00> : vector<32x768xf32>
    %393 = tpu.matmul %354, %392, %cst_137 {dimension_numbers = #tpu.dot_dimension_numbers<[1], [0], [0], [1], [0, 0, 1, 1], [], []>} : vector<32x256xf32>, vector<256x768xf32>, vector<32x768xf32> -> vector<32x768xf32>
    %c0_138 = arith.constant 0 : index
    %c0_139 = arith.constant 0 : index
    %394 = vector.load %arg7[%c0_138, %c0_139] : memref<1x768xf32, #tpu.memory_space<vmem>>, vector<1x768xf32>
    %395 = vector.broadcast %394 : vector<1x768xf32> to vector<32x768xf32>
    %396 = arith.addf %393, %395 : vector<32x768xf32>
    %397 = vector.extract_strided_slice %391 {offsets = [0, 0], sizes = [32, 256], strides = [1, 1]} : vector<32x768xf32> to vector<32x256xf32>
    %398 = vector.extract_strided_slice %396 {offsets = [0, 0], sizes = [32, 256], strides = [1, 1]} : vector<32x768xf32> to vector<32x256xf32>
    %399 = arith.addf %397, %398 : vector<32x256xf32>
    %400 = arith.negf %399 : vector<32x256xf32>
    %401 = math.exp %400 : vector<32x256xf32>
    %cst_140 = arith.constant 1.000000e+00 : f32
    %402 = vector.broadcast %cst_140 : f32 to vector<32x256xf32>
    %403 = arith.addf %402, %401 : vector<32x256xf32>
    %404 = arith.divf %402, %403 : vector<32x256xf32>
    %405 = vector.extract_strided_slice %391 {offsets = [0, 256], sizes = [32, 256], strides = [1, 1]} : vector<32x768xf32> to vector<32x256xf32>
    %406 = vector.extract_strided_slice %396 {offsets = [0, 256], sizes = [32, 256], strides = [1, 1]} : vector<32x768xf32> to vector<32x256xf32>
    %407 = arith.addf %405, %406 : vector<32x256xf32>
    %408 = arith.negf %407 : vector<32x256xf32>
    %409 = math.exp %408 : vector<32x256xf32>
    %cst_141 = arith.constant 1.000000e+00 : f32
    %410 = vector.broadcast %cst_141 : f32 to vector<32x256xf32>
    %411 = arith.addf %410, %409 : vector<32x256xf32>
    %412 = arith.divf %410, %411 : vector<32x256xf32>
    %413 = vector.extract_strided_slice %391 {offsets = [0, 512], sizes = [32, 256], strides = [1, 1]} : vector<32x768xf32> to vector<32x256xf32>
    %414 = vector.extract_strided_slice %396 {offsets = [0, 512], sizes = [32, 256], strides = [1, 1]} : vector<32x768xf32> to vector<32x256xf32>
    %415 = arith.mulf %404, %414 : vector<32x256xf32>
    %416 = arith.addf %413, %415 : vector<32x256xf32>
    %417 = math.tanh %416 : vector<32x256xf32>
    %cst_142 = arith.constant 1.000000e+00 : f32
    %418 = vector.broadcast %cst_142 : f32 to vector<32x256xf32>
    %419 = arith.subf %418, %412 : vector<32x256xf32>
    %420 = arith.mulf %419, %417 : vector<32x256xf32>
    %421 = arith.mulf %412, %354 : vector<32x256xf32>
    %422 = arith.addf %420, %421 : vector<32x256xf32>
    %c0_143 = arith.constant 0 : index
    %c0_144 = arith.constant 0 : index
    %423 = vector.load %arg9[%c0_143, %c0_144] : memref<256x128xf32, #tpu.memory_space<vmem>>, vector<256x128xf32>
    %cst_145 = arith.constant dense<0.000000e+00> : vector<32x128xf32>
    %424 = tpu.matmul %422, %423, %cst_145 {dimension_numbers = #tpu.dot_dimension_numbers<[1], [0], [0], [1], [0, 0, 1, 1], [], []>} : vector<32x256xf32>, vector<256x128xf32>, vector<32x128xf32> -> vector<32x128xf32>
    %c0_146 = arith.constant 0 : index
    %c0_147 = arith.constant 0 : index
    %425 = vector.load %arg10[%c0_146, %c0_147] : memref<1x128xf32, #tpu.memory_space<vmem>>, vector<1x128xf32>
    %426 = vector.broadcast %425 : vector<1x128xf32> to vector<32x128xf32>
    %427 = arith.addf %424, %426 : vector<32x128xf32>
    %c1_i32_148 = arith.constant 1 : i32
    %428 = arith.addi %c3_i32_131, %c1_i32_148 : i32
    %429 = arith.index_cast %428 : i32 to index
    %c0_149 = arith.constant 0 : index
    %c0_150 = arith.constant 0 : index
    %430 = vector.load %arg11[%429, %c0_149, %c0_150] : memref<7x32x128xf32, #tpu.memory_space<vmem>>, vector<1x32x128xf32>
    %431 = vector.shape_cast %430 : vector<1x32x128xf32> to vector<32x128xf32>
    %432 = vector.shape_cast %427 : vector<32x128xf32> to vector<1x32x128xf32>
    tpu.vector_store %arg11[%429, %c0_149, %c0_150], %432 {strides = array<i32>} : memref<7x32x128xf32, #tpu.memory_space<vmem>>, vector<1x32x128xf32>,
    %cst_151 = arith.constant dense<0xFF800000> : vector<32xf32>
    %433 = vector.multi_reduction <maximumf>, %427, %cst_151 [1] : vector<32x128xf32> to vector<32xf32>
    %434 = vector.shape_cast %433 : vector<32xf32> to vector<32x1xf32>
    %435 = tpu.iota {dimensions = array<i32: 1>} : vector<32x128xi32>
    %436 = vector.broadcast %434 : vector<32x1xf32> to vector<32x128xf32>
    %437 = arith.cmpf oge, %427, %436 : vector<32x128xf32>
    %c2147483647_i32_152 = arith.constant 2147483647 : i32
    %438 = vector.broadcast %c2147483647_i32_152 : i32 to vector<32x128xi32>
    %439 = arith.select %437, %435, %438 : vector<32x128xi1>, vector<32x128xi32>
    %cst_153 = arith.constant dense<2147483647> : vector<32xi32>
    %440 = vector.multi_reduction <minsi>, %439, %cst_153 [1] : vector<32x128xi32> to vector<32xi32>
    %441 = vector.shape_cast %440 : vector<32xi32> to vector<32x1xi32>
    %442 = vector.broadcast %441 : vector<32x1xi32> to vector<32x128xi32>
    %443 = arith.cmpi eq, %435, %442 : vector<32x128xi32>
    %444 = arith.extui %443 : vector<32x128xi1> to vector<32x128xi32>
    %445 = arith.sitofp %444 : vector<32x128xi32> to vector<32x128xf32>
    %c0_154 = arith.constant 0 : index
    %c0_155 = arith.constant 0 : index
    %446 = vector.load %arg8[%c0_154, %c0_155] : memref<128x768xf32, #tpu.memory_space<vmem>>, vector<128x768xf32>
    %cst_156 = arith.constant dense<0.000000e+00> : vector<32x768xf32>
    %447 = tpu.matmul %445, %446, %cst_156 {dimension_numbers = #tpu.dot_dimension_numbers<[1], [0], [0], [1], [0, 0, 1, 1], [], []>} : vector<32x128xf32>, vector<128x768xf32>, vector<32x768xf32> -> vector<32x768xf32>
    %c4_i32_157 = arith.constant 4 : i32
    %448 = arith.index_cast %c4_i32_157 : i32 to index
    %449 = memref.load %arg1[%448] : memref<6xi32, #tpu.memory_space<smem>>
    %450 = arith.sitofp %449 : i32 to f32
    %451 = arith.index_cast %c4_i32_157 : i32 to index
    %c0_158 = arith.constant 0 : index
    %c0_159 = arith.constant 0 : index
    %452 = vector.load %arg3[%451, %c0_158, %c0_159] : memref<6x32x768xf32, #tpu.memory_space<vmem>>, vector<1x32x768xf32>
    %453 = vector.shape_cast %452 : vector<1x32x768xf32> to vector<32x768xf32>
    %454 = vector.broadcast %450 : f32 to vector<32x768xf32>
    %455 = arith.mulf %454, %453 : vector<32x768xf32>
    %cst_160 = arith.constant 1.000000e+00 : f32
    %456 = arith.subf %cst_160, %450 : f32
    %457 = vector.broadcast %456 : f32 to vector<32x768xf32>
    %458 = arith.mulf %457, %447 : vector<32x768xf32>
    %459 = arith.addf %455, %458 : vector<32x768xf32>
    %c0_161 = arith.constant 0 : index
    %c0_162 = arith.constant 0 : index
    %460 = vector.load %arg6[%c0_161, %c0_162] : memref<256x768xf32, #tpu.memory_space<vmem>>, vector<256x768xf32>
    %cst_163 = arith.constant dense<0.000000e+00> : vector<32x768xf32>
    %461 = tpu.matmul %422, %460, %cst_163 {dimension_numbers = #tpu.dot_dimension_numbers<[1], [0], [0], [1], [0, 0, 1, 1], [], []>} : vector<32x256xf32>, vector<256x768xf32>, vector<32x768xf32> -> vector<32x768xf32>
    %c0_164 = arith.constant 0 : index
    %c0_165 = arith.constant 0 : index
    %462 = vector.load %arg7[%c0_164, %c0_165] : memref<1x768xf32, #tpu.memory_space<vmem>>, vector<1x768xf32>
    %463 = vector.broadcast %462 : vector<1x768xf32> to vector<32x768xf32>
    %464 = arith.addf %461, %463 : vector<32x768xf32>
    %465 = vector.extract_strided_slice %459 {offsets = [0, 0], sizes = [32, 256], strides = [1, 1]} : vector<32x768xf32> to vector<32x256xf32>
    %466 = vector.extract_strided_slice %464 {offsets = [0, 0], sizes = [32, 256], strides = [1, 1]} : vector<32x768xf32> to vector<32x256xf32>
    %467 = arith.addf %465, %466 : vector<32x256xf32>
    %468 = arith.negf %467 : vector<32x256xf32>
    %469 = math.exp %468 : vector<32x256xf32>
    %cst_166 = arith.constant 1.000000e+00 : f32
    %470 = vector.broadcast %cst_166 : f32 to vector<32x256xf32>
    %471 = arith.addf %470, %469 : vector<32x256xf32>
    %472 = arith.divf %470, %471 : vector<32x256xf32>
    %473 = vector.extract_strided_slice %459 {offsets = [0, 256], sizes = [32, 256], strides = [1, 1]} : vector<32x768xf32> to vector<32x256xf32>
    %474 = vector.extract_strided_slice %464 {offsets = [0, 256], sizes = [32, 256], strides = [1, 1]} : vector<32x768xf32> to vector<32x256xf32>
    %475 = arith.addf %473, %474 : vector<32x256xf32>
    %476 = arith.negf %475 : vector<32x256xf32>
    %477 = math.exp %476 : vector<32x256xf32>
    %cst_167 = arith.constant 1.000000e+00 : f32
    %478 = vector.broadcast %cst_167 : f32 to vector<32x256xf32>
    %479 = arith.addf %478, %477 : vector<32x256xf32>
    %480 = arith.divf %478, %479 : vector<32x256xf32>
    %481 = vector.extract_strided_slice %459 {offsets = [0, 512], sizes = [32, 256], strides = [1, 1]} : vector<32x768xf32> to vector<32x256xf32>
    %482 = vector.extract_strided_slice %464 {offsets = [0, 512], sizes = [32, 256], strides = [1, 1]} : vector<32x768xf32> to vector<32x256xf32>
    %483 = arith.mulf %472, %482 : vector<32x256xf32>
    %484 = arith.addf %481, %483 : vector<32x256xf32>
    %485 = math.tanh %484 : vector<32x256xf32>
    %cst_168 = arith.constant 1.000000e+00 : f32
    %486 = vector.broadcast %cst_168 : f32 to vector<32x256xf32>
    %487 = arith.subf %486, %480 : vector<32x256xf32>
    %488 = arith.mulf %487, %485 : vector<32x256xf32>
    %489 = arith.mulf %480, %422 : vector<32x256xf32>
    %490 = arith.addf %488, %489 : vector<32x256xf32>
    %c0_169 = arith.constant 0 : index
    %c0_170 = arith.constant 0 : index
    %491 = vector.load %arg9[%c0_169, %c0_170] : memref<256x128xf32, #tpu.memory_space<vmem>>, vector<256x128xf32>
    %cst_171 = arith.constant dense<0.000000e+00> : vector<32x128xf32>
    %492 = tpu.matmul %490, %491, %cst_171 {dimension_numbers = #tpu.dot_dimension_numbers<[1], [0], [0], [1], [0, 0, 1, 1], [], []>} : vector<32x256xf32>, vector<256x128xf32>, vector<32x128xf32> -> vector<32x128xf32>
    %c0_172 = arith.constant 0 : index
    %c0_173 = arith.constant 0 : index
    %493 = vector.load %arg10[%c0_172, %c0_173] : memref<1x128xf32, #tpu.memory_space<vmem>>, vector<1x128xf32>
    %494 = vector.broadcast %493 : vector<1x128xf32> to vector<32x128xf32>
    %495 = arith.addf %492, %494 : vector<32x128xf32>
    %c1_i32_174 = arith.constant 1 : i32
    %496 = arith.addi %c4_i32_157, %c1_i32_174 : i32
    %497 = arith.index_cast %496 : i32 to index
    %c0_175 = arith.constant 0 : index
    %c0_176 = arith.constant 0 : index
    %498 = vector.load %arg11[%497, %c0_175, %c0_176] : memref<7x32x128xf32, #tpu.memory_space<vmem>>, vector<1x32x128xf32>
    %499 = vector.shape_cast %498 : vector<1x32x128xf32> to vector<32x128xf32>
    %500 = vector.shape_cast %495 : vector<32x128xf32> to vector<1x32x128xf32>
    tpu.vector_store %arg11[%497, %c0_175, %c0_176], %500 {strides = array<i32>} : memref<7x32x128xf32, #tpu.memory_space<vmem>>, vector<1x32x128xf32>,
    %cst_177 = arith.constant dense<0xFF800000> : vector<32xf32>
    %501 = vector.multi_reduction <maximumf>, %495, %cst_177 [1] : vector<32x128xf32> to vector<32xf32>
    %502 = vector.shape_cast %501 : vector<32xf32> to vector<32x1xf32>
    %503 = tpu.iota {dimensions = array<i32: 1>} : vector<32x128xi32>
    %504 = vector.broadcast %502 : vector<32x1xf32> to vector<32x128xf32>
    %505 = arith.cmpf oge, %495, %504 : vector<32x128xf32>
    %c2147483647_i32_178 = arith.constant 2147483647 : i32
    %506 = vector.broadcast %c2147483647_i32_178 : i32 to vector<32x128xi32>
    %507 = arith.select %505, %503, %506 : vector<32x128xi1>, vector<32x128xi32>
    %cst_179 = arith.constant dense<2147483647> : vector<32xi32>
    %508 = vector.multi_reduction <minsi>, %507, %cst_179 [1] : vector<32x128xi32> to vector<32xi32>
    %509 = vector.shape_cast %508 : vector<32xi32> to vector<32x1xi32>
    %510 = vector.broadcast %509 : vector<32x1xi32> to vector<32x128xi32>
    %511 = arith.cmpi eq, %503, %510 : vector<32x128xi32>
    %512 = arith.extui %511 : vector<32x128xi1> to vector<32x128xi32>
    %513 = arith.sitofp %512 : vector<32x128xi32> to vector<32x128xf32>
    %c0_180 = arith.constant 0 : index
    %c0_181 = arith.constant 0 : index
    %514 = vector.load %arg8[%c0_180, %c0_181] : memref<128x768xf32, #tpu.memory_space<vmem>>, vector<128x768xf32>
    %cst_182 = arith.constant dense<0.000000e+00> : vector<32x768xf32>
    %515 = tpu.matmul %513, %514, %cst_182 {dimension_numbers = #tpu.dot_dimension_numbers<[1], [0], [0], [1], [0, 0, 1, 1], [], []>} : vector<32x128xf32>, vector<128x768xf32>, vector<32x768xf32> -> vector<32x768xf32>
    %c5_i32_183 = arith.constant 5 : i32
    %516 = arith.index_cast %c5_i32_183 : i32 to index
    %517 = memref.load %arg1[%516] : memref<6xi32, #tpu.memory_space<smem>>
    %518 = arith.sitofp %517 : i32 to f32
    %519 = arith.index_cast %c5_i32_183 : i32 to index
    %c0_184 = arith.constant 0 : index
    %c0_185 = arith.constant 0 : index
    %520 = vector.load %arg3[%519, %c0_184, %c0_185] : memref<6x32x768xf32, #tpu.memory_space<vmem>>, vector<1x32x768xf32>
    %521 = vector.shape_cast %520 : vector<1x32x768xf32> to vector<32x768xf32>
    %522 = vector.broadcast %518 : f32 to vector<32x768xf32>
    %523 = arith.mulf %522, %521 : vector<32x768xf32>
    %cst_186 = arith.constant 1.000000e+00 : f32
    %524 = arith.subf %cst_186, %518 : f32
    %525 = vector.broadcast %524 : f32 to vector<32x768xf32>
    %526 = arith.mulf %525, %515 : vector<32x768xf32>
    %527 = arith.addf %523, %526 : vector<32x768xf32>
    %c0_187 = arith.constant 0 : index
    %c0_188 = arith.constant 0 : index
    %528 = vector.load %arg6[%c0_187, %c0_188] : memref<256x768xf32, #tpu.memory_space<vmem>>, vector<256x768xf32>
    %cst_189 = arith.constant dense<0.000000e+00> : vector<32x768xf32>
    %529 = tpu.matmul %490, %528, %cst_189 {dimension_numbers = #tpu.dot_dimension_numbers<[1], [0], [0], [1], [0, 0, 1, 1], [], []>} : vector<32x256xf32>, vector<256x768xf32>, vector<32x768xf32> -> vector<32x768xf32>
    %c0_190 = arith.constant 0 : index
    %c0_191 = arith.constant 0 : index
    %530 = vector.load %arg7[%c0_190, %c0_191] : memref<1x768xf32, #tpu.memory_space<vmem>>, vector<1x768xf32>
    %531 = vector.broadcast %530 : vector<1x768xf32> to vector<32x768xf32>
    %532 = arith.addf %529, %531 : vector<32x768xf32>
    %533 = vector.extract_strided_slice %527 {offsets = [0, 0], sizes = [32, 256], strides = [1, 1]} : vector<32x768xf32> to vector<32x256xf32>
    %534 = vector.extract_strided_slice %532 {offsets = [0, 0], sizes = [32, 256], strides = [1, 1]} : vector<32x768xf32> to vector<32x256xf32>
    %535 = arith.addf %533, %534 : vector<32x256xf32>
    %536 = arith.negf %535 : vector<32x256xf32>
    %537 = math.exp %536 : vector<32x256xf32>
    %cst_192 = arith.constant 1.000000e+00 : f32
    %538 = vector.broadcast %cst_192 : f32 to vector<32x256xf32>
    %539 = arith.addf %538, %537 : vector<32x256xf32>
    %540 = arith.divf %538, %539 : vector<32x256xf32>
    %541 = vector.extract_strided_slice %527 {offsets = [0, 256], sizes = [32, 256], strides = [1, 1]} : vector<32x768xf32> to vector<32x256xf32>
    %542 = vector.extract_strided_slice %532 {offsets = [0, 256], sizes = [32, 256], strides = [1, 1]} : vector<32x768xf32> to vector<32x256xf32>
    %543 = arith.addf %541, %542 : vector<32x256xf32>
    %544 = arith.negf %543 : vector<32x256xf32>
    %545 = math.exp %544 : vector<32x256xf32>
    %cst_193 = arith.constant 1.000000e+00 : f32
    %546 = vector.broadcast %cst_193 : f32 to vector<32x256xf32>
    %547 = arith.addf %546, %545 : vector<32x256xf32>
    %548 = arith.divf %546, %547 : vector<32x256xf32>
    %549 = vector.extract_strided_slice %527 {offsets = [0, 512], sizes = [32, 256], strides = [1, 1]} : vector<32x768xf32> to vector<32x256xf32>
    %550 = vector.extract_strided_slice %532 {offsets = [0, 512], sizes = [32, 256], strides = [1, 1]} : vector<32x768xf32> to vector<32x256xf32>
    %551 = arith.mulf %540, %550 : vector<32x256xf32>
    %552 = arith.addf %549, %551 : vector<32x256xf32>
    %553 = math.tanh %552 : vector<32x256xf32>
    %cst_194 = arith.constant 1.000000e+00 : f32
    %554 = vector.broadcast %cst_194 : f32 to vector<32x256xf32>
    %555 = arith.subf %554, %548 : vector<32x256xf32>
    %556 = arith.mulf %555, %553 : vector<32x256xf32>
    %557 = arith.mulf %548, %490 : vector<32x256xf32>
    %558 = arith.addf %556, %557 : vector<32x256xf32>
    %c0_195 = arith.constant 0 : index
    %c0_196 = arith.constant 0 : index
    %559 = vector.load %arg9[%c0_195, %c0_196] : memref<256x128xf32, #tpu.memory_space<vmem>>, vector<256x128xf32>
    %cst_197 = arith.constant dense<0.000000e+00> : vector<32x128xf32>
    %560 = tpu.matmul %558, %559, %cst_197 {dimension_numbers = #tpu.dot_dimension_numbers<[1], [0], [0], [1], [0, 0, 1, 1], [], []>} : vector<32x256xf32>, vector<256x128xf32>, vector<32x128xf32> -> vector<32x128xf32>
    %c0_198 = arith.constant 0 : index
    %c0_199 = arith.constant 0 : index
    %561 = vector.load %arg10[%c0_198, %c0_199] : memref<1x128xf32, #tpu.memory_space<vmem>>, vector<1x128xf32>
    %562 = vector.broadcast %561 : vector<1x128xf32> to vector<32x128xf32>
    %563 = arith.addf %560, %562 : vector<32x128xf32>
    %c1_i32_200 = arith.constant 1 : i32
    %564 = arith.addi %c5_i32_183, %c1_i32_200 : i32
    %565 = arith.index_cast %564 : i32 to index
    %c0_201 = arith.constant 0 : index
    %c0_202 = arith.constant 0 : index
    %566 = vector.load %arg11[%565, %c0_201, %c0_202] : memref<7x32x128xf32, #tpu.memory_space<vmem>>, vector<1x32x128xf32>
    %567 = vector.shape_cast %566 : vector<1x32x128xf32> to vector<32x128xf32>
    %568 = vector.shape_cast %563 : vector<32x128xf32> to vector<1x32x128xf32>
    tpu.vector_store %arg11[%565, %c0_201, %c0_202], %568 {strides = array<i32>} : memref<7x32x128xf32, #tpu.memory_space<vmem>>, vector<1x32x128xf32>,
    %cst_203 = arith.constant dense<0xFF800000> : vector<32xf32>
    %569 = vector.multi_reduction <maximumf>, %563, %cst_203 [1] : vector<32x128xf32> to vector<32xf32>
    %570 = vector.shape_cast %569 : vector<32xf32> to vector<32x1xf32>
    %571 = tpu.iota {dimensions = array<i32: 1>} : vector<32x128xi32>
    %572 = vector.broadcast %570 : vector<32x1xf32> to vector<32x128xf32>
    %573 = arith.cmpf oge, %563, %572 : vector<32x128xf32>
    %c2147483647_i32_204 = arith.constant 2147483647 : i32
    %574 = vector.broadcast %c2147483647_i32_204 : i32 to vector<32x128xi32>
    %575 = arith.select %573, %571, %574 : vector<32x128xi1>, vector<32x128xi32>
    %cst_205 = arith.constant dense<2147483647> : vector<32xi32>
    %576 = vector.multi_reduction <minsi>, %575, %cst_205 [1] : vector<32x128xi32> to vector<32xi32>
    %577 = vector.shape_cast %576 : vector<32xi32> to vector<32x1xi32>
    %578 = vector.broadcast %577 : vector<32x1xi32> to vector<32x128xi32>
    %579 = arith.cmpi eq, %571, %578 : vector<32x128xi32>
    %580 = arith.extui %579 : vector<32x128xi1> to vector<32x128xi32>
    %581 = arith.sitofp %580 : vector<32x128xi32> to vector<32x128xf32>
    %c0_206 = arith.constant 0 : index
    %c0_207 = arith.constant 0 : index
    %582 = vector.load %arg8[%c0_206, %c0_207] : memref<128x768xf32, #tpu.memory_space<vmem>>, vector<128x768xf32>
    %cst_208 = arith.constant dense<0.000000e+00> : vector<32x768xf32>
    %583 = tpu.matmul %581, %582, %cst_208 {dimension_numbers = #tpu.dot_dimension_numbers<[1], [0], [0], [1], [0, 0, 1, 1], [], []>} : vector<32x128xf32>, vector<128x768xf32>, vector<32x768xf32> -> vector<32x768xf32>
    %c6_i32 = arith.constant 6 : i32
    return
  }
  func.func @transform_0(%arg0: i32, %arg1: memref<6xi32, #tpu.memory_space<smem>>) -> (i32, i32, i32) {
    %c0_i32 = arith.constant 0 : i32
    %c0_i32_0 = arith.constant 0 : i32
    %c0_i32_1 = arith.constant 0 : i32
    %c0_i32_2 = arith.constant 0 : i32
    return %c0_i32, %c0_i32_0, %c0_i32_1 : i32, i32, i32
  }
  func.func @transform_1(%arg0: i32, %arg1: memref<6xi32, #tpu.memory_space<smem>>) -> (i32, i32, i32) {
    %c0_i32 = arith.constant 0 : i32
    %c0_i32_0 = arith.constant 0 : i32
    %c0_i32_1 = arith.constant 0 : i32
    %c0_i32_2 = arith.constant 0 : i32
    return %c0_i32, %c0_i32_0, %c0_i32_1 : i32, i32, i32
  }
  func.func @transform_2(%arg0: i32, %arg1: memref<6xi32, #tpu.memory_space<smem>>) -> (i32, i32) {
    %c0_i32 = arith.constant 0 : i32
    %c0_i32_0 = arith.constant 0 : i32
    %c0_i32_1 = arith.constant 0 : i32
    return %c0_i32, %c0_i32_0 : i32, i32
  }
  func.func @transform_3(%arg0: i32, %arg1: memref<6xi32, #tpu.memory_space<smem>>) -> (i32, i32) {
    %c0_i32 = arith.constant 0 : i32
    %c0_i32_0 = arith.constant 0 : i32
    %c0_i32_1 = arith.constant 0 : i32
    return %c0_i32, %c0_i32_0 : i32, i32
  }
  func.func @transform_4(%arg0: i32, %arg1: memref<6xi32, #tpu.memory_space<smem>>) -> (i32, i32) {
    %c0_i32 = arith.constant 0 : i32
    %c0_i32_0 = arith.constant 0 : i32
    %c0_i32_1 = arith.constant 0 : i32
    return %c0_i32, %c0_i32_0 : i32, i32
  }
  func.func @transform_5(%arg0: i32, %arg1: memref<6xi32, #tpu.memory_space<smem>>) -> (i32, i32) {
    %c0_i32 = arith.constant 0 : i32
    %c0_i32_0 = arith.constant 0 : i32
    %c0_i32_1 = arith.constant 0 : i32
    return %c0_i32, %c0_i32_0 : i32, i32
  }
  func.func @transform_6(%arg0: i32, %arg1: memref<6xi32, #tpu.memory_space<smem>>) -> (i32, i32) {
    %c0_i32 = arith.constant 0 : i32
    %c0_i32_0 = arith.constant 0 : i32
    %c0_i32_1 = arith.constant 0 : i32
    return %c0_i32, %c0_i32_0 : i32, i32
  }
  func.func @transform_7(%arg0: i32, %arg1: memref<6xi32, #tpu.memory_space<smem>>) -> (i32, i32) {
    %c0_i32 = arith.constant 0 : i32
    %c0_i32_0 = arith.constant 0 : i32
    %c0_i32_1 = arith.constant 0 : i32
    return %c0_i32, %c0_i32_0 : i32, i32
  }
  func.func @transform_8(%arg0: i32, %arg1: memref<6xi32, #tpu.memory_space<smem>>) -> (i32, i32) {
    %c0_i32 = arith.constant 0 : i32
    %c0_i32_0 = arith.constant 0 : i32
    %c0_i32_1 = arith.constant 0 : i32
    return %c0_i32, %c0_i32_0 : i32, i32
  }
  func.func @transform_9(%arg0: i32, %arg1: memref<6xi32, #tpu.memory_space<smem>>) -> (i32, i32, i32) {
    %c0_i32 = arith.constant 0 : i32
    %c0_i32_0 = arith.constant 0 : i32
    %c0_i32_1 = arith.constant 0 : i32
    %c0_i32_2 = arith.constant 0 : i32
    return %c0_i32, %c0_i32_0, %c0_i32_1 : i32, i32, i32
  }
}

</mosaic_0001>

<llo_original>
// kernel: seq2seq_forward.1
$region0: #{seq2seq_forward.1}
  #allocation0 [shape = 'u32[]', space=smem, size = 0x4, offset = 0x4, fixed_abs, tag = 'smem constant byte address 0x4 - core index']
  #allocation1 [shape = 'u32[144,128]{1,0:T(1,128)}', space=vmem, size = 0x12000, scoped, tag = 'internal scratch']
  #allocation2 [shape = 's32[1]{0}', space=sflag, size = 0x4, scoped, tag = 'scoped memory for seq2seq_forward.1']
  #allocation3 [shape = 'u8[512]{0}', space=smem, size = 0x200, scoped, tag = 'prefetched SMEM operand 0']
  %s0 = inlined_call_operand.vmem [shape: s32[6], index: 0, kind: input, shape index: {}]
  %s1 = inlined_call_operand.vmem [shape: f32[5,32,768], index: 1, kind: input, shape index: {}]
  %s2 = inlined_call_operand.vmem [shape: f32[6,32,768], index: 2, kind: input, shape index: {}]
  %s3 = inlined_call_operand.vmem [shape: f32[256,768], index: 3, kind: input, shape index: {}]
  %s4 = inlined_call_operand.vmem [shape: f32[1,768], index: 4, kind: input, shape index: {}]
  %s5 = inlined_call_operand.vmem [shape: f32[256,768], index: 5, kind: input, shape index: {}]
  %s6 = inlined_call_operand.vmem [shape: f32[1,768], index: 6, kind: input, shape index: {}]
  %s7 = inlined_call_operand.vmem [shape: f32[128,768], index: 7, kind: input, shape index: {}]
  %s8 = inlined_call_operand.vmem [shape: f32[256,128], index: 8, kind: input, shape index: {}]
  %s9 = inlined_call_operand.vmem [shape: f32[1,128], index: 9, kind: input, shape index: {}]
  %s10 = inlined_call_operand.vmem [shape: f32[7,32,128], index: 10, kind: output, shape index: {}]
  %s11 = sld [smem:[#allocation0]]
  $region46: #{seq2seq_forward.1} parent=0
    _
  %s13 = ssub.s32 1, %s11
  %s14 = scalar_select 0, %s13, %s11
  %s15 = sshll.u32 %s0, 4
  %s16 = int_to_ptr.vmem [resolvable:$true] %s15
  %18 = dma.vmem_to_smem %s16, 16, [#allocation3], [#allocation2]
  %19 = dma.done [#allocation2], 16
  %20 = sfence
  // Predicated region
  $region2: #{seq2seq_forward.1} parent=0 // pred_check
    _
  $region3: #{seq2seq_forward.1} parent=0 // pred_check_branch
    %22 = sbr.rel (0) target = $region5
  $region4: #{seq2seq_forward.1} parent=0 // pred_region
    _
  $region5: #{seq2seq_forward.1} parent=0 // pred_fallthru
    _
  // Predicated region
  $region6: #{seq2seq_forward.1} parent=0 // pred_check
    _
  $region7: #{seq2seq_forward.1} parent=0 // pred_check_branch
    %24 = sbr.rel (0) target = $region9
  $region8: #{seq2seq_forward.1} parent=0 // pred_region
    _
  $region9: #{seq2seq_forward.1} parent=0 // pred_fallthru
    _
  // Predicated region
  $region10: #{seq2seq_forward.1} parent=0 // pred_check
    _
  $region11: #{seq2seq_forward.1} parent=0 // pred_check_branch
    %26 = sbr.rel (0) target = $region13
  $region12: #{seq2seq_forward.1} parent=0 // pred_region
    _
  $region13: #{seq2seq_forward.1} parent=0 // pred_fallthru
    _
  // Predicated region
  $region14: #{seq2seq_forward.1} parent=0 // pred_check
    _
  $region15: #{seq2seq_forward.1} parent=0 // pred_check_branch
    %28 = sbr.rel (0) target = $region17
  $region16: #{seq2seq_forward.1} parent=0 // pred_region
    _
  $region17: #{seq2seq_forward.1} parent=0 // pred_fallthru
    _
  // Predicated region
  $region18: #{seq2seq_forward.1} parent=0 // pred_check
    _
  $region19: #{seq2seq_forward.1} parent=0 // pred_check_branch
    %30 = sbr.rel (0) target = $region21
  $region20: #{seq2seq_forward.1} parent=0 // pred_region
    _
  $region21: #{seq2seq_forward.1} parent=0 // pred_fallthru
    _
  // Predicated region
  $region22: #{seq2seq_forward.1} parent=0 // pred_check
    _
  $region23: #{seq2seq_forward.1} parent=0 // pred_check_branch
    %32 = sbr.rel (0) target = $region25
  $region24: #{seq2seq_forward.1} parent=0 // pred_region
    _
  $region25: #{seq2seq_forward.1} parent=0 // pred_fallthru
    _
  // Predicated region
  $region26: #{seq2seq_forward.1} parent=0 // pred_check
    _
  $region27: #{seq2seq_forward.1} parent=0 // pred_check_branch
    %34 = sbr.rel (0) target = $region29
  $region28: #{seq2seq_forward.1} parent=0 // pred_region
    _
  $region29: #{seq2seq_forward.1} parent=0 // pred_fallthru
    _
  // Predicated region
  $region30: #{seq2seq_forward.1} parent=0 // pred_check
    _
  $region31: #{seq2seq_forward.1} parent=0 // pred_check_branch
    %36 = sbr.rel (0) target = $region33
  $region32: #{seq2seq_forward.1} parent=0 // pred_region
    _
  $region33: #{seq2seq_forward.1} parent=0 // pred_fallthru
    _
  // Predicated region
  $region34: #{seq2seq_forward.1} parent=0 // pred_check
    _
  $region35: #{seq2seq_forward.1} parent=0 // pred_check_branch
    %38 = sbr.rel (0) target = $region37
  $region36: #{seq2seq_forward.1} parent=0 // pred_region
    _
  $region37: #{seq2seq_forward.1} parent=0 // pred_fallthru
    _
  %v39 = vld [vmem:[%s1] sm:$0xff]
  %v40 = vld [vmem:[%s1 + $0x8] sm:$0xff]
  %v41 = vld [vmem:[%s1 + $0x10] sm:$0xff]
  %v42 = vld [vmem:[%s1 + $0x18] sm:$0xff]
  %v43 = vld [vmem:[%s1 + $0x20] sm:$0xff]
  %v44 = vld [vmem:[%s1 + $0x28] sm:$0xff]
  %v45 = vld [vmem:[%s1 + $0x30] sm:$0xff]
  %v46 = vld [vmem:[%s1 + $0x38] sm:$0xff]
  %v47 = vld [vmem:[%s1 + $0x40] sm:$0xff]
  %v48 = vld [vmem:[%s1 + $0x48] sm:$0xff]
  %v49 = vld [vmem:[%s1 + $0x50] sm:$0xff]
  %v50 = vld [vmem:[%s1 + $0x58] sm:$0xff]
  %v51 = vld [vmem:[%s1 + $0x60] sm:$0xff]
  %v52 = vld [vmem:[%s1 + $0x68] sm:$0xff]
  %v53 = vld [vmem:[%s1 + $0x70] sm:$0xff]
  %v54 = vld [vmem:[%s1 + $0x78] sm:$0xff]
  %v55 = vld [vmem:[%s1 + $0x80] sm:$0xff]
  %v56 = vld [vmem:[%s1 + $0x88] sm:$0xff]
  %v57 = vld [vmem:[%s1 + $0x90] sm:$0xff]
  %v58 = vld [vmem:[%s1 + $0x98] sm:$0xff]
  %v59 = vld [vmem:[%s1 + $0xa0] sm:$0xff]
  %v60 = vld [vmem:[%s1 + $0xa8] sm:$0xff]
  %v61 = vld [vmem:[%s1 + $0xb0] sm:$0xff]
  %v62 = vld [vmem:[%s1 + $0xb8] sm:$0xff]
  %v63 = vld [vmem:[%s3] sm:$0xff]
  %v64 = vld [vmem:[%s3 + $0x8] sm:$0xff]
  %v65 = vld [vmem:[%s3 + $0x10] sm:$0xff]
  %v66 = vld [vmem:[%s3 + $0x18] sm:$0xff]
  %v67 = vld [vmem:[%s3 + $0x20] sm:$0xff]
  %v68 = vld [vmem:[%s3 + $0x28] sm:$0xff]
  %v69 = vld [vmem:[%s3 + $0x30] sm:$0xff]
  %v70 = vld [vmem:[%s3 + $0x38] sm:$0xff]
  %v71 = vld [vmem:[%s3 + $0x40] sm:$0xff]
  %v72 = vld [vmem:[%s3 + $0x48] sm:$0xff]
  %v73 = vld [vmem:[%s3 + $0x50] sm:$0xff]
  %v74 = vld [vmem:[%s3 + $0x58] sm:$0xff]
  %v75 = vld [vmem:[%s3 + $0x60] sm:$0xff]
  %v76 = vld [vmem:[%s3 + $0x68] sm:$0xff]
  %v77 = vld [vmem:[%s3 + $0x70] sm:$0xff]
  %v78 = vld [vmem:[%s3 + $0x78] sm:$0xff]
  %v79 = vld [vmem:[%s3 + $0x80] sm:$0xff]
  %v80 = vld [vmem:[%s3 + $0x88] sm:$0xff]
  %v81 = vld [vmem:[%s3 + $0x90] sm:$0xff]
  %v82 = vld [vmem:[%s3 + $0x98] sm:$0xff]
  %v83 = vld [vmem:[%s3 + $0xa0] sm:$0xff]
  %v84 = vld [vmem:[%s3 + $0xa8] sm:$0xff]
  %v85 = vld [vmem:[%s3 + $0xb0] sm:$0xff]
  %v86 = vld [vmem:[%s3 + $0xb8] sm:$0xff]
  %v87 = vld [vmem:[%s3 + $0xc0] sm:$0xff]
  %v88 = vld [vmem:[%s3 + $0xc8] sm:$0xff]
  %v89 = vld [vmem:[%s3 + $0xd0] sm:$0xff]
  %v90 = vld [vmem:[%s3 + $0xd8] sm:$0xff]
  %v91 = vld [vmem:[%s3 + $0xe0] sm:$0xff]
  %v92 = vld [vmem:[%s3 + $0xe8] sm:$0xff]
  %v93 = vld [vmem:[%s3 + $0xf0] sm:$0xff]
  %v94 = vld [vmem:[%s3 + $0xf8] sm:$0xff]
  %v95 = vld [vmem:[%s3 + $0x100] sm:$0xff]
  %v96 = vld [vmem:[%s3 + $0x108] sm:$0xff]
  %v97 = vld [vmem:[%s3 + $0x110] sm:$0xff]
  %v98 = vld [vmem:[%s3 + $0x118] sm:$0xff]
  %v99 = vld [vmem:[%s3 + $0x120] sm:$0xff]
  %v100 = vld [vmem:[%s3 + $0x128] sm:$0xff]
  %v101 = vld [vmem:[%s3 + $0x130] sm:$0xff]
  %v102 = vld [vmem:[%s3 + $0x138] sm:$0xff]
  %v103 = vld [vmem:[%s3 + $0x140] sm:$0xff]
  %v104 = vld [vmem:[%s3 + $0x148] sm:$0xff]
  %v105 = vld [vmem:[%s3 + $0x150] sm:$0xff]
  %v106 = vld [vmem:[%s3 + $0x158] sm:$0xff]
  %v107 = vld [vmem:[%s3 + $0x160] sm:$0xff]
  %v108 = vld [vmem:[%s3 + $0x168] sm:$0xff]
  %v109 = vld [vmem:[%s3 + $0x170] sm:$0xff]
  %v110 = vld [vmem:[%s3 + $0x178] sm:$0xff]
  %v111 = vld [vmem:[%s3 + $0x180] sm:$0xff]
  %v112 = vld [vmem:[%s3 + $0x188] sm:$0xff]
  %v113 = vld [vmem:[%s3 + $0x190] sm:$0xff]
  %v114 = vld [vmem:[%s3 + $0x198] sm:$0xff]
  %v115 = vld [vmem:[%s3 + $0x1a0] sm:$0xff]
  %v116 = vld [vmem:[%s3 + $0x1a8] sm:$0xff]
  %v117 = vld [vmem:[%s3 + $0x1b0] sm:$0xff]
  %v118 = vld [vmem:[%s3 + $0x1b8] sm:$0xff]
  %v119 = vld [vmem:[%s3 + $0x1c0] sm:$0xff]
  %v120 = vld [vmem:[%s3 + $0x1c8] sm:$0xff]
  %v121 = vld [vmem:[%s3 + $0x1d0] sm:$0xff]
  %v122 = vld [vmem:[%s3 + $0x1d8] sm:$0xff]
  %v123 = vld [vmem:[%s3 + $0x1e0] sm:$0xff]
  %v124 = vld [vmem:[%s3 + $0x1e8] sm:$0xff]
  %v125 = vld [vmem:[%s3 + $0x1f0] sm:$0xff]
  %v126 = vld [vmem:[%s3 + $0x1f8] sm:$0xff]
  %v127 = vld [vmem:[%s3 + $0x200] sm:$0xff]
  %v128 = vld [vmem:[%s3 + $0x208] sm:$0xff]
  %v129 = vld [vmem:[%s3 + $0x210] sm:$0xff]
  %v130 = vld [vmem:[%s3 + $0x218] sm:$0xff]
  %v131 = vld [vmem:[%s3 + $0x220] sm:$0xff]
  %v132 = vld [vmem:[%s3 + $0x228] sm:$0xff]
  %v133 = vld [vmem:[%s3 + $0x230] sm:$0xff]
  %v134 = vld [vmem:[%s3 + $0x238] sm:$0xff]
  %v135 = vld [vmem:[%s3 + $0x240] sm:$0xff]
  %v136 = vld [vmem:[%s3 + $0x248] sm:$0xff]
  %v137 = vld [vmem:[%s3 + $0x250] sm:$0xff]
  %v138 = vld [vmem:[%s3 + $0x258] sm:$0xff]
  %v139 = vld [vmem:[%s3 + $0x260] sm:$0xff]
  %v140 = vld [vmem:[%s3 + $0x268] sm:$0xff]
  %v141 = vld [vmem:[%s3 + $0x270] sm:$0xff]
  %v142 = vld [vmem:[%s3 + $0x278] sm:$0xff]
  %v143 = vld [vmem:[%s3 + $0x280] sm:$0xff]
  %v144 = vld [vmem:[%s3 + $0x288] sm:$0xff]
  %v145 = vld [vmem:[%s3 + $0x290] sm:$0xff]
  %v146 = vld [vmem:[%s3 + $0x298] sm:$0xff]
  %v147 = vld [vmem:[%s3 + $0x2a0] sm:$0xff]
  %v148 = vld [vmem:[%s3 + $0x2a8] sm:$0xff]
  %v149 = vld [vmem:[%s3 + $0x2b0] sm:$0xff]
  %v150 = vld [vmem:[%s3 + $0x2b8] sm:$0xff]
  %v151 = vld [vmem:[%s3 + $0x2c0] sm:$0xff]
  %v152 = vld [vmem:[%s3 + $0x2c8] sm:$0xff]
  %v153 = vld [vmem:[%s3 + $0x2d0] sm:$0xff]
  %v154 = vld [vmem:[%s3 + $0x2d8] sm:$0xff]
  %v155 = vld [vmem:[%s3 + $0x2e0] sm:$0xff]
  %v156 = vld [vmem:[%s3 + $0x2e8] sm:$0xff]
  %v157 = vld [vmem:[%s3 + $0x2f0] sm:$0xff]
  %v158 = vld [vmem:[%s3 + $0x2f8] sm:$0xff]
  %v159 = vld [vmem:[%s3 + $0x300] sm:$0xff]
  %v160 = vld [vmem:[%s3 + $0x308] sm:$0xff]
  %v161 = vld [vmem:[%s3 + $0x310] sm:$0xff]
  %v162 = vld [vmem:[%s3 + $0x318] sm:$0xff]
  %v163 = vld [vmem:[%s3 + $0x320] sm:$0xff]
  %v164 = vld [vmem:[%s3 + $0x328] sm:$0xff]
  %v165 = vld [vmem:[%s3 + $0x330] sm:$0xff]
  %v166 = vld [vmem:[%s3 + $0x338] sm:$0xff]
  %v167 = vld [vmem:[%s3 + $0x340] sm:$0xff]
  %v168 = vld [vmem:[%s3 + $0x348] sm:$0xff]
  %v169 = vld [vmem:[%s3 + $0x350] sm:$0xff]
  %v170 = vld [vmem:[%s3 + $0x358] sm:$0xff]
  %v171 = vld [vmem:[%s3 + $0x360] sm:$0xff]
  %v172 = vld [vmem:[%s3 + $0x368] sm:$0xff]
  %v173 = vld [vmem:[%s3 + $0x370] sm:$0xff]
  %v174 = vld [vmem:[%s3 + $0x378] sm:$0xff]
  %v175 = vld [vmem:[%s3 + $0x380] sm:$0xff]
  %v176 = vld [vmem:[%s3 + $0x388] sm:$0xff]
  %v177 = vld [vmem:[%s3 + $0x390] sm:$0xff]
  %v178 = vld [vmem:[%s3 + $0x398] sm:$0xff]
  %v179 = vld [vmem:[%s3 + $0x3a0] sm:$0xff]
  %v180 = vld [vmem:[%s3 + $0x3a8] sm:$0xff]
  %v181 = vld [vmem:[%s3 + $0x3b0] sm:$0xff]
  %v182 = vld [vmem:[%s3 + $0x3b8] sm:$0xff]
  %v183 = vld [vmem:[%s3 + $0x3c0] sm:$0xff]
  %v184 = vld [vmem:[%s3 + $0x3c8] sm:$0xff]
  %v185 = vld [vmem:[%s3 + $0x3d0] sm:$0xff]
  %v186 = vld [vmem:[%s3 + $0x3d8] sm:$0xff]
  %v187 = vld [vmem:[%s3 + $0x3e0] sm:$0xff]
  %v188 = vld [vmem:[%s3 + $0x3e8] sm:$0xff]
  %v189 = vld [vmem:[%s3 + $0x3f0] sm:$0xff]
  %v190 = vld [vmem:[%s3 + $0x3f8] sm:$0xff]
  %v191 = vld [vmem:[%s3 + $0x400] sm:$0xff]
  %v192 = vld [vmem:[%s3 + $0x408] sm:$0xff]
  %v193 = vld [vmem:[%s3 + $0x410] sm:$0xff]
  %v194 = vld [vmem:[%s3 + $0x418] sm:$0xff]
  %v195 = vld [vmem:[%s3 + $0x420] sm:$0xff]
  %v196 = vld [vmem:[%s3 + $0x428] sm:$0xff]
  %v197 = vld [vmem:[%s3 + $0x430] sm:$0xff]
  %v198 = vld [vmem:[%s3 + $0x438] sm:$0xff]
  %v199 = vld [vmem:[%s3 + $0x440] sm:$0xff]
  %v200 = vld [vmem:[%s3 + $0x448] sm:$0xff]
  %v201 = vld [vmem:[%s3 + $0x450] sm:$0xff]
  %v202 = vld [vmem:[%s3 + $0x458] sm:$0xff]
  %v203 = vld [vmem:[%s3 + $0x460] sm:$0xff]
  %v204 = vld [vmem:[%s3 + $0x468] sm:$0xff]
  %v205 = vld [vmem:[%s3 + $0x470] sm:$0xff]
  %v206 = vld [vmem:[%s3 + $0x478] sm:$0xff]
  %v207 = vld [vmem:[%s3 + $0x480] sm:$0xff]
  %v208 = vld [vmem:[%s3 + $0x488] sm:$0xff]
  %v209 = vld [vmem:[%s3 + $0x490] sm:$0xff]
  %v210 = vld [vmem:[%s3 + $0x498] sm:$0xff]
  %v211 = vld [vmem:[%s3 + $0x4a0] sm:$0xff]
  %v212 = vld [vmem:[%s3 + $0x4a8] sm:$0xff]
  %v213 = vld [vmem:[%s3 + $0x4b0] sm:$0xff]
  %v214 = vld [vmem:[%s3 + $0x4b8] sm:$0xff]
  %v215 = vld [vmem:[%s3 + $0x4c0] sm:$0xff]
  %v216 = vld [vmem:[%s3 + $0x4c8] sm:$0xff]
  %v217 = vld [vmem:[%s3 + $0x4d0] sm:$0xff]
  %v218 = vld [vmem:[%s3 + $0x4d8] sm:$0xff]
  %v219 = vld [vmem:[%s3 + $0x4e0] sm:$0xff]
  %v220 = vld [vmem:[%s3 + $0x4e8] sm:$0xff]
  %v221 = vld [vmem:[%s3 + $0x4f0] sm:$0xff]
  %v222 = vld [vmem:[%s3 + $0x4f8] sm:$0xff]
  %v223 = vld [vmem:[%s3 + $0x500] sm:$0xff]
  %v224 = vld [vmem:[%s3 + $0x508] sm:$0xff]
  %v225 = vld [vmem:[%s3 + $0x510] sm:$0xff]
  %v226 = vld [vmem:[%s3 + $0x518] sm:$0xff]
  %v227 = vld [vmem:[%s3 + $0x520] sm:$0xff]
  %v228 = vld [vmem:[%s3 + $0x528] sm:$0xff]
  %v229 = vld [vmem:[%s3 + $0x530] sm:$0xff]
  %v230 = vld [vmem:[%s3 + $0x538] sm:$0xff]
  %v231 = vld [vmem:[%s3 + $0x540] sm:$0xff]
  %v232 = vld [vmem:[%s3 + $0x548] sm:$0xff]
  %v233 = vld [vmem:[%s3 + $0x550] sm:$0xff]
  %v234 = vld [vmem:[%s3 + $0x558] sm:$0xff]
  %v235 = vld [vmem:[%s3 + $0x560] sm:$0xff]
  %v236 = vld [vmem:[%s3 + $0x568] sm:$0xff]
  %v237 = vld [vmem:[%s3 + $0x570] sm:$0xff]
  %v238 = vld [vmem:[%s3 + $0x578] sm:$0xff]
  %v239 = vld [vmem:[%s3 + $0x580] sm:$0xff]
  %v240 = vld [vmem:[%s3 + $0x588] sm:$0xff]
  %v241 = vld [vmem:[%s3 + $0x590] sm:$0xff]
  %v242 = vld [vmem:[%s3 + $0x598] sm:$0xff]
  %v243 = vld [vmem:[%s3 + $0x5a0] sm:$0xff]
  %v244 = vld [vmem:[%s3 + $0x5a8] sm:$0xff]
  %v245 = vld [vmem:[%s3 + $0x5b0] sm:$0xff]
  %v246 = vld [vmem:[%s3 + $0x5b8] sm:$0xff]
  %v247 = vld [vmem:[%s3 + $0x5c0] sm:$0xff]
  %v248 = vld [vmem:[%s3 + $0x5c8] sm:$0xff]
  %v249 = vld [vmem:[%s3 + $0x5d0] sm:$0xff]
  %v250 = vld [vmem:[%s3 + $0x5d8] sm:$0xff]
  %v251 = vld [vmem:[%s3 + $0x5e0] sm:$0xff]
  %v252 = vld [vmem:[%s3 + $0x5e8] sm:$0xff]
  %v253 = vld [vmem:[%s3 + $0x5f0] sm:$0xff]
  %v254 = vld [vmem:[%s3 + $0x5f8] sm:$0xff]
  %v255 = vld [vmem:[%s4] sm:$0x3f]
  %v257 = vlaneseq
  %v258 = vshrl.u32 %v257, 7
  %v259 = vsub.s32 0, %v258
  %v260 = vrot.slane %v255, %v259
  %v261 = vlaneseq
  %v262 = vshrl.u32 %v261, 7
  %v263 = vsub.s32 1, %v262
  %v264 = vrot.slane %v255, %v263
  %v265 = vlaneseq
  %v266 = vshrl.u32 %v265, 7
  %v267 = vsub.s32 2, %v266
  %v268 = vrot.slane %v255, %v267
  %v269 = vlaneseq
  %v270 = vshrl.u32 %v269, 7
  %v271 = vsub.s32 3, %v270
  %v272 = vrot.slane %v255, %v271
  %v273 = vlaneseq
  %v274 = vshrl.u32 %v273, 7
  %v275 = vsub.s32 4, %v274
  %v276 = vrot.slane %v255, %v275
  %v277 = vlaneseq
  %v278 = vshrl.u32 %v277, 7
  %v279 = vsub.s32 5, %v278
  %v280 = vrot.slane %v255, %v279
  %287 = vmatprep.subr.mxu0 %v64
  %288 = vmatpush1.msra.mxu0 %v63
  %289 = vmatprep.subr.mxu0 %v70
  %290 = vmatpush1.msra.mxu0 %v69
  %291 = vmatprep.subr.mxu0 %v76
  %292 = vmatpush1.msra.mxu0 %v75
  %293 = vmatprep.subr.mxu0 %v82
  %294 = vmatpush1.msra.mxu0 %v81
  %295 = vmatprep.subr.mxu0 %v88
  %296 = vmatpush1.msra.mxu0 %v87
  %297 = vmatprep.subr.mxu0 %v94
  %298 = vmatpush1.msra.mxu0 %v93
  %299 = vmatprep.subr.mxu0 %v100
  %300 = vmatpush1.msra.mxu0 %v99
  %301 = vmatprep.subr.mxu0 %v106
  %302 = vmatpush1.msra.mxu0 %v105
  %303 = vmatprep.subr.mxu0 %v112
  %304 = vmatpush1.msra.mxu0 %v111
  %305 = vmatprep.subr.mxu0 %v118
  %306 = vmatpush1.msra.mxu0 %v117
  %307 = vmatprep.subr.mxu0 %v124
  %308 = vmatpush1.msra.mxu0 %v123
  %309 = vmatprep.subr.mxu0 %v130
  %310 = vmatpush1.msra.mxu0 %v129
  %311 = vmatprep.subr.mxu0 %v136
  %312 = vmatpush1.msra.mxu0 %v135
  %313 = vmatprep.subr.mxu0 %v142
  %314 = vmatpush1.msra.mxu0 %v141
  %315 = vmatprep.subr.mxu0 %v148
  %316 = vmatpush1.msra.mxu0 %v147
  %317 = vmatprep.subr.mxu0 %v154
  %318 = vmatpush1.msra.mxu0 %v153
  %319 = vmatprep.subr.mxu0 %v160
  %320 = vmatpush1.msra.mxu0 %v159
  %321 = vmatprep.subr.mxu0 %v166
  %322 = vmatpush1.msra.mxu0 %v165
  %323 = vmatprep.subr.mxu0 %v172
  %324 = vmatpush1.msra.mxu0 %v171
  %325 = vmatprep.subr.mxu0 %v178
  %326 = vmatpush1.msra.mxu0 %v177
  %327 = vmatprep.subr.mxu0 %v184
  %328 = vmatpush1.msra.mxu0 %v183
  %329 = vmatprep.subr.mxu0 %v190
  %330 = vmatpush1.msra.mxu0 %v189
  %331 = vmatprep.subr.mxu0 %v196
  %332 = vmatpush1.msra.mxu0 %v195
  %333 = vmatprep.subr.mxu0 %v202
  %334 = vmatpush1.msra.mxu0 %v201
  %335 = vmatprep.subr.mxu0 %v208
  %336 = vmatpush1.msra.mxu0 %v207
  %337 = vmatprep.subr.mxu0 %v214
  %338 = vmatpush1.msra.mxu0 %v213
  %339 = vmatprep.subr.mxu0 %v220
  %340 = vmatpush1.msra.mxu0 %v219
  %341 = vmatprep.subr.mxu0 %v226
  %342 = vmatpush1.msra.mxu0 %v225
  %343 = vmatprep.subr.mxu0 %v232
  %344 = vmatpush1.msra.mxu0 %v231
  %345 = vmatprep.subr.mxu0 %v238
  %346 = vmatpush1.msra.mxu0 %v237
  %347 = vmatprep.subr.mxu0 %v244
  %348 = vmatpush1.msra.mxu0 %v243
  %349 = vmatprep.subr.mxu0 %v250
  %350 = vmatpush1.msra.mxu0 %v249
  %351 = vmatprep.mubr.f32.mxu0 0.0
  %352 = vmatmul.mubr.f32.gmra.mrb[0].mxu0 0.0
  %v353 = vpop.f32.mrb[0].mxu0
  %v354 = vadd.f32 %v260, %v353
  %v355 = vpop.f32.mrb[0].mxu0
  %v356 = vadd.f32 %v264, %v355
  %357 = vmatprep.mubr.f32.mxu0 0.0
  %358 = vmatmul.mubr.f32.gmra.mrb[0].mxu0 0.0
  %v359 = vpop.f32.mrb[0].mxu0
  %v360 = vadd.f32 %v260, %v359
  %v361 = vpop.f32.mrb[0].mxu0
  %v362 = vadd.f32 %v264, %v361
  %363 = vmatprep.mubr.f32.mxu0 0.0
  %364 = vmatmul.mubr.f32.gmra.mrb[0].mxu0 0.0
  %v365 = vpop.f32.mrb[0].mxu0
  %v366 = vadd.f32 %v260, %v365
  %v367 = vpop.f32.mrb[0].mxu0
  %v368 = vadd.f32 %v264, %v367
  %369 = vmatprep.mubr.f32.mxu0 0.0
  %370 = vmatmul.mubr.f32.gmra.mrb[0].mxu0 0.0
  %v371 = vpop.f32.mrb[0].mxu0
  %v372 = vadd.f32 %v260, %v371
  %v373 = vpop.f32.mrb[0].mxu0
  %v374 = vadd.f32 %v264, %v373
  %375 = vdwg.mxu0
  %376 = vmatprep.subr.mxu0 %v66
  %377 = vmatpush1.msra.mxu0 %v65
  %378 = vmatprep.subr.mxu0 %v72
  %379 = vmatpush1.msra.mxu0 %v71
  %380 = vmatprep.subr.mxu0 %v78
  %381 = vmatpush1.msra.mxu0 %v77
  %382 = vmatprep.subr.mxu0 %v84
  %383 = vmatpush1.msra.mxu0 %v83
  %384 = vmatprep.subr.mxu0 %v90
  %385 = vmatpush1.msra.mxu0 %v89
  %386 = vmatprep.subr.mxu0 %v96
  %387 = vmatpush1.msra.mxu0 %v95
  %388 = vmatprep.subr.mxu0 %v102
  %389 = vmatpush1.msra.mxu0 %v101
  %390 = vmatprep.subr.mxu0 %v108
  %391 = vmatpush1.msra.mxu0 %v107
  %392 = vmatprep.subr.mxu0 %v114
  %393 = vmatpush1.msra.mxu0 %v113
  %394 = vmatprep.subr.mxu0 %v120
  %395 = vmatpush1.msra.mxu0 %v119
  %396 = vmatprep.subr.mxu0 %v126
  %397 = vmatpush1.msra.mxu0 %v125
  %398 = vmatprep.subr.mxu0 %v132
  %399 = vmatpush1.msra.mxu0 %v131
  %400 = vmatprep.subr.mxu0 %v138
  %401 = vmatpush1.msra.mxu0 %v137
  %402 = vmatprep.subr.mxu0 %v144
  %403 = vmatpush1.msra.mxu0 %v143
  %404 = vmatprep.subr.mxu0 %v150
  %405 = vmatpush1.msra.mxu0 %v149
  %406 = vmatprep.subr.mxu0 %v156
  %407 = vmatpush1.msra.mxu0 %v155
  %408 = vmatprep.subr.mxu0 %v162
  %409 = vmatpush1.msra.mxu0 %v161
  %410 = vmatprep.subr.mxu0 %v168
  %411 = vmatpush1.msra.mxu0 %v167
  %412 = vmatprep.subr.mxu0 %v174
  %413 = vmatpush1.msra.mxu0 %v173
  %414 = vmatprep.subr.mxu0 %v180
  %415 = vmatpush1.msra.mxu0 %v179
  %416 = vmatprep.subr.mxu0 %v186
  %417 = vmatpush1.msra.mxu0 %v185
  %418 = vmatprep.subr.mxu0 %v192
  %419 = vmatpush1.msra.mxu0 %v191
  %420 = vmatprep.subr.mxu0 %v198
  %421 = vmatpush1.msra.mxu0 %v197
  %422 = vmatprep.subr.mxu0 %v204
  %423 = vmatpush1.msra.mxu0 %v203
  %424 = vmatprep.subr.mxu0 %v210
  %425 = vmatpush1.msra.mxu0 %v209
  %426 = vmatprep.subr.mxu0 %v216
  %427 = vmatpush1.msra.mxu0 %v215
  %428 = vmatprep.subr.mxu0 %v222
  %429 = vmatpush1.msra.mxu0 %v221
  %430 = vmatprep.subr.mxu0 %v228
  %431 = vmatpush1.msra.mxu0 %v227
  %432 = vmatprep.subr.mxu0 %v234
  %433 = vmatpush1.msra.mxu0 %v233
  %434 = vmatprep.subr.mxu0 %v240
  %435 = vmatpush1.msra.mxu0 %v239
  %436 = vmatprep.subr.mxu0 %v246
  %437 = vmatpush1.msra.mxu0 %v245
  %438 = vmatprep.subr.mxu0 %v252
  %439 = vmatpush1.msra.mxu0 %v251
  %440 = vmatprep.mubr.f32.mxu0 0.0
  %441 = vmatmul.mubr.f32.gmra.mrb[0].mxu0 0.0
  %v442 = vpop.f32.mrb[0].mxu0
  %v443 = vadd.f32 %v268, %v442
  %v444 = vpop.f32.mrb[0].mxu0
  %v445 = vadd.f32 %v272, %v444
  %446 = vmatprep.mubr.f32.mxu0 0.0
  %447 = vmatmul.mubr.f32.gmra.mrb[0].mxu0 0.0
  %v448 = vpop.f32.mrb[0].mxu0
  %v449 = vadd.f32 %v268, %v448
  %v450 = vpop.f32.mrb[0].mxu0
  %v451 = vadd.f32 %v272, %v450
  %452 = vmatprep.mubr.f32.mxu0 0.0
  %453 = vmatmul.mubr.f32.gmra.mrb[0].mxu0 0.0
  %v454 = vpop.f32.mrb[0].mxu0
  %v455 = vadd.f32 %v268, %v454
  %v456 = vpop.f32.mrb[0].mxu0
  %v457 = vadd.f32 %v272, %v456
  %458 = vmatprep.mubr.f32.mxu0 0.0
  %459 = vmatmul.mubr.f32.gmra.mrb[0].mxu0 0.0
  %v460 = vpop.f32.mrb[0].mxu0
  %v461 = vadd.f32 %v268, %v460
  %v462 = vpop.f32.mrb[0].mxu0
  %v463 = vadd.f32 %v272, %v462
  %464 = vdwg.mxu0
  %465 = vmatprep.subr.mxu0 %v68
  %466 = vmatpush1.msra.mxu0 %v67
  %467 = vmatprep.subr.mxu0 %v74
  %468 = vmatpush1.msra.mxu0 %v73
  %469 = vmatprep.subr.mxu0 %v80
  %470 = vmatpush1.msra.mxu0 %v79
  %471 = vmatprep.subr.mxu0 %v86
  %472 = vmatpush1.msra.mxu0 %v85
  %473 = vmatprep.subr.mxu0 %v92
  %474 = vmatpush1.msra.mxu0 %v91
  %475 = vmatprep.subr.mxu0 %v98
  %476 = vmatpush1.msra.mxu0 %v97
  %477 = vmatprep.subr.mxu0 %v104
  %478 = vmatpush1.msra.mxu0 %v103
  %479 = vmatprep.subr.mxu0 %v110
  %480 = vmatpush1.msra.mxu0 %v109
  %481 = vmatprep.subr.mxu0 %v116
  %482 = vmatpush1.msra.mxu0 %v115
  %483 = vmatprep.subr.mxu0 %v122
  %484 = vmatpush1.msra.mxu0 %v121
  %485 = vmatprep.subr.mxu0 %v128
  %486 = vmatpush1.msra.mxu0 %v127
  %487 = vmatprep.subr.mxu0 %v134
  %488 = vmatpush1.msra.mxu0 %v133
  %489 = vmatprep.subr.mxu0 %v140
  %490 = vmatpush1.msra.mxu0 %v139
  %491 = vmatprep.subr.mxu0 %v146
  %492 = vmatpush1.msra.mxu0 %v145
  %493 = vmatprep.subr.mxu0 %v152
  %494 = vmatpush1.msra.mxu0 %v151
  %495 = vmatprep.subr.mxu0 %v158
  %496 = vmatpush1.msra.mxu0 %v157
  %497 = vmatprep.subr.mxu0 %v164
  %498 = vmatpush1.msra.mxu0 %v163
  %499 = vmatprep.subr.mxu0 %v170
  %500 = vmatpush1.msra.mxu0 %v169
  %501 = vmatprep.subr.mxu0 %v176
  %502 = vmatpush1.msra.mxu0 %v175
  %503 = vmatprep.subr.mxu0 %v182
  %504 = vmatpush1.msra.mxu0 %v181
  %505 = vmatprep.subr.mxu0 %v188
  %506 = vmatpush1.msra.mxu0 %v187
  %507 = vmatprep.subr.mxu0 %v194
  %508 = vmatpush1.msra.mxu0 %v193
  %509 = vmatprep.subr.mxu0 %v200
  %510 = vmatpush1.msra.mxu0 %v199
  %511 = vmatprep.subr.mxu0 %v206
  %512 = vmatpush1.msra.mxu0 %v205
  %513 = vmatprep.subr.mxu0 %v212
  %514 = vmatpush1.msra.mxu0 %v211
  %515 = vmatprep.subr.mxu0 %v218
  %516 = vmatpush1.msra.mxu0 %v217
  %517 = vmatprep.subr.mxu0 %v224
  %518 = vmatpush1.msra.mxu0 %v223
  %519 = vmatprep.subr.mxu0 %v230
  %520 = vmatpush1.msra.mxu0 %v229
  %521 = vmatprep.subr.mxu0 %v236
  %522 = vmatpush1.msra.mxu0 %v235
  %523 = vmatprep.subr.mxu0 %v242
  %524 = vmatpush1.msra.mxu0 %v241
  %525 = vmatprep.subr.mxu0 %v248
  %526 = vmatpush1.msra.mxu0 %v247
  %527 = vmatprep.subr.mxu0 %v254
  %528 = vmatpush1.msra.mxu0 %v253
  %529 = vmatprep.mubr.f32.mxu0 0.0
  %530 = vmatmul.mubr.f32.gmra.mrb[0].mxu0 0.0
  %v531 = vpop.f32.mrb[0].mxu0
  %v532 = vadd.f32 %v276, %v531
  %v533 = vpop.f32.mrb[0].mxu0
  %v534 = vadd.f32 %v280, %v533
  %535 = vmatprep.mubr.f32.mxu0 0.0
  %536 = vmatmul.mubr.f32.gmra.mrb[0].mxu0 0.0
  %v537 = vpop.f32.mrb[0].mxu0
  %v538 = vadd.f32 %v276, %v537
  %v539 = vpop.f32.mrb[0].mxu0
  %v540 = vadd.f32 %v280, %v539
  %541 = vmatprep.mubr.f32.mxu0 0.0
  %542 = vmatmul.mubr.f32.gmra.mrb[0].mxu0 0.0
  %v543 = vpop.f32.mrb[0].mxu0
  %v544 = vadd.f32 %v276, %v543
  %v545 = vpop.f32.mrb[0].mxu0
  %v546 = vadd.f32 %v280, %v545
  %547 = vmatprep.mubr.f32.mxu0 0.0
  %548 = vmatmul.mubr.f32.gmra.mrb[0].mxu0 0.0
  %v549 = vpop.f32.mrb[0].mxu0
  %v550 = vadd.f32 %v276, %v549
  %v551 = vpop.f32.mrb[0].mxu0
  %v552 = vadd.f32 %v280, %v551
  %553 = vdwg.mxu0
  %v554 = vadd.f32 %v39, %v354
  %v555 = vadd.f32 %v40, %v356
  %v556 = vadd.f32 %v45, %v360
  %v557 = vadd.f32 %v46, %v362
  %v558 = vadd.f32 %v51, %v366
  %v559 = vadd.f32 %v52, %v368
  %v560 = vadd.f32 %v57, %v372
  %v561 = vadd.f32 %v58, %v374
  %v562 = vxor.u32 %v554, 2147483648
  %v563 = vxor.u32 %v555, 2147483648
  %v564 = vxor.u32 %v556, 2147483648
  %v565 = vxor.u32 %v557, 2147483648
  %v566 = vxor.u32 %v558, 2147483648
  %v567 = vxor.u32 %v559, 2147483648
  %v568 = vxor.u32 %v560, 2147483648
  %v569 = vxor.u32 %v561, 2147483648
  %v570 = vmul.f32 %v562, 1.442695
  %v571 = vpow.pop %v570
  %v572 = vmul.f32 %v563, 1.442695
  %v573 = vpow.pop %v572
  %v574 = vmul.f32 %v564, 1.442695
  %v575 = vpow.pop %v574
  %v576 = vmul.f32 %v565, 1.442695
  %v577 = vpow.pop %v576
  %v578 = vmul.f32 %v566, 1.442695
  %v579 = vpow.pop %v578
  %v580 = vmul.f32 %v567, 1.442695
  %v581 = vpow.pop %v580
  %v582 = vmul.f32 %v568, 1.442695
  %v583 = vpow.pop %v582
  %v584 = vmul.f32 %v569, 1.442695
  %v585 = vpow.pop %v584
  %v586 = vadd.f32 %v571, 1.0
  %v587 = vadd.f32 %v573, 1.0
  %v588 = vadd.f32 %v575, 1.0
  %v589 = vadd.f32 %v577, 1.0
  %v590 = vadd.f32 %v579, 1.0
  %v591 = vadd.f32 %v581, 1.0
  %v592 = vadd.f32 %v583, 1.0
  %v593 = vadd.f32 %v585, 1.0
  %v594 = vrcp.pop %v586
  %v595 = vmul.f32 1.0, %v594
  %v596 = vrcp.pop %v587
  %v597 = vmul.f32 1.0, %v596
  %v598 = vrcp.pop %v588
  %v599 = vmul.f32 1.0, %v598
  %v600 = vrcp.pop %v589
  %v601 = vmul.f32 1.0, %v600
  %v602 = vrcp.pop %v590
  %v603 = vmul.f32 1.0, %v602
  %v604 = vrcp.pop %v591
  %v605 = vmul.f32 1.0, %v604
  %v606 = vrcp.pop %v592
  %v607 = vmul.f32 1.0, %v606
  %v608 = vrcp.pop %v593
  %v609 = vmul.f32 1.0, %v608
  %v610 = vadd.f32 %v41, %v443
  %v611 = vadd.f32 %v42, %v445
  %v612 = vadd.f32 %v47, %v449
  %v613 = vadd.f32 %v48, %v451
  %v614 = vadd.f32 %v53, %v455
  %v615 = vadd.f32 %v54, %v457
  %v616 = vadd.f32 %v59, %v461
  %v617 = vadd.f32 %v60, %v463
  %v618 = vxor.u32 %v610, 2147483648
  %v619 = vxor.u32 %v611, 2147483648
  %v620 = vxor.u32 %v612, 2147483648
  %v621 = vxor.u32 %v613, 2147483648
  %v622 = vxor.u32 %v614, 2147483648
  %v623 = vxor.u32 %v615, 2147483648
  %v624 = vxor.u32 %v616, 2147483648
  %v625 = vxor.u32 %v617, 2147483648
  %v626 = vmul.f32 %v618, 1.442695
  %v627 = vpow.pop %v626
  %v628 = vmul.f32 %v619, 1.442695
  %v629 = vpow.pop %v628
  %v630 = vmul.f32 %v620, 1.442695
  %v631 = vpow.pop %v630
  %v632 = vmul.f32 %v621, 1.442695
  %v633 = vpow.pop %v632
  %v634 = vmul.f32 %v622, 1.442695
  %v635 = vpow.pop %v634
  %v636 = vmul.f32 %v623, 1.442695
  %v637 = vpow.pop %v636
  %v638 = vmul.f32 %v624, 1.442695
  %v639 = vpow.pop %v638
  %v640 = vmul.f32 %v625, 1.442695
  %v641 = vpow.pop %v640
  %v642 = vadd.f32 %v627, 1.0
  %v643 = vadd.f32 %v629, 1.0
  %v644 = vadd.f32 %v631, 1.0
  %v645 = vadd.f32 %v633, 1.0
  %v646 = vadd.f32 %v635, 1.0
  %v647 = vadd.f32 %v637, 1.0
  %v648 = vadd.f32 %v639, 1.0
  %v649 = vadd.f32 %v641, 1.0
  %v650 = vrcp.pop %v642
  %v651 = vmul.f32 1.0, %v650
  %v652 = vrcp.pop %v643
  %v653 = vmul.f32 1.0, %v652
  %v654 = vrcp.pop %v644
  %v655 = vmul.f32 1.0, %v654
  %v656 = vrcp.pop %v645
  %v657 = vmul.f32 1.0, %v656
  %v658 = vrcp.pop %v646
  %v659 = vmul.f32 1.0, %v658
  %v660 = vrcp.pop %v647
  %v661 = vmul.f32 1.0, %v660
  %v662 = vrcp.pop %v648
  %v663 = vmul.f32 1.0, %v662
  %v664 = vrcp.pop %v649
  %v665 = vmul.f32 1.0, %v664
  %v666 = vmul.f32 %v595, %v532
  %v667 = vmul.f32 %v597, %v534
  %v668 = vmul.f32 %v599, %v538
  %v669 = vmul.f32 %v601, %v540
  %v670 = vmul.f32 %v603, %v544
  %v671 = vmul.f32 %v605, %v546
  %v672 = vmul.f32 %v607, %v550
  %v673 = vmul.f32 %v609, %v552
  %v674 = vadd.f32 %v43, %v666
  %v675 = vadd.f32 %v44, %v667
  %v676 = vadd.f32 %v49, %v668
  %v677 = vadd.f32 %v50, %v669
  %v678 = vadd.f32 %v55, %v670
  %v679 = vadd.f32 %v56, %v671
  %v680 = vadd.f32 %v61, %v672
  %v681 = vadd.f32 %v62, %v673
  %v682 = vtanh.pop %v674
  %v683 = vtanh.pop %v675
  %v684 = vtanh.pop %v676
  %v685 = vtanh.pop %v677
  %v686 = vtanh.pop %v678
  %v687 = vtanh.pop %v679
  %v688 = vtanh.pop %v680
  %v689 = vtanh.pop %v681
  %v690 = vsub.f32 1.0, %v651
  %v691 = vsub.f32 1.0, %v653
  %v692 = vsub.f32 1.0, %v655
  %v693 = vsub.f32 1.0, %v657
  %v694 = vsub.f32 1.0, %v659
  %v695 = vsub.f32 1.0, %v661
  %v696 = vsub.f32 1.0, %v663
  %v697 = vsub.f32 1.0, %v665
  %v698 = vmul.f32 %v690, %v682
  %v699 = vmul.f32 %v691, %v683
  %v700 = vmul.f32 %v692, %v684
  %v701 = vmul.f32 %v693, %v685
  %v702 = vmul.f32 %v694, %v686
  %v703 = vmul.f32 %v695, %v687
  %v704 = vmul.f32 %v696, %v688
  %v705 = vmul.f32 %v697, %v689
  %v706 = vmul.f32 %v651, 0.0
  %v707 = vmul.f32 %v653, 0.0
  %v708 = vmul.f32 %v655, 0.0
  %v709 = vmul.f32 %v657, 0.0
  %v710 = vmul.f32 %v659, 0.0
  %v711 = vmul.f32 %v661, 0.0
  %v712 = vmul.f32 %v663, 0.0
  %v713 = vmul.f32 %v665, 0.0
  %v714 = vadd.f32 %v698, %v706
  %v715 = vadd.f32 %v699, %v707
  %v716 = vadd.f32 %v700, %v708
  %v717 = vadd.f32 %v701, %v709
  %v718 = vadd.f32 %v702, %v710
  %v719 = vadd.f32 %v703, %v711
  %v720 = vadd.f32 %v704, %v712
  %v721 = vadd.f32 %v705, %v713
  %s722 = scalar_lea.vmem %s1, 192
  %v723 = vld [vmem:[%s722] sm:$0xff]
  %v724 = vld [vmem:[%s722 + $0x8] sm:$0xff]
  %v725 = vld [vmem:[%s722 + $0x10] sm:$0xff]
  %v726 = vld [vmem:[%s722 + $0x18] sm:$0xff]
  %v727 = vld [vmem:[%s722 + $0x20] sm:$0xff]
  %v728 = vld [vmem:[%s722 + $0x28] sm:$0xff]
  %v729 = vld [vmem:[%s722 + $0x30] sm:$0xff]
  %v730 = vld [vmem:[%s722 + $0x38] sm:$0xff]
  %v731 = vld [vmem:[%s722 + $0x40] sm:$0xff]
  %v732 = vld [vmem:[%s722 + $0x48] sm:$0xff]
  %v733 = vld [vmem:[%s722 + $0x50] sm:$0xff]
  %v734 = vld [vmem:[%s722 + $0x58] sm:$0xff]
  %v735 = vld [vmem:[%s722 + $0x60] sm:$0xff]
  %v736 = vld [vmem:[%s722 + $0x68] sm:$0xff]
  %v737 = vld [vmem:[%s722 + $0x70] sm:$0xff]
  %v738 = vld [vmem:[%s722 + $0x78] sm:$0xff]
  %v739 = vld [vmem:[%s722 + $0x80] sm:$0xff]
  %v740 = vld [vmem:[%s722 + $0x88] sm:$0xff]
  %v741 = vld [vmem:[%s722 + $0x90] sm:$0xff]
  %v742 = vld [vmem:[%s722 + $0x98] sm:$0xff]
  %v743 = vld [vmem:[%s722 + $0xa0] sm:$0xff]
  %v744 = vld [vmem:[%s722 + $0xa8] sm:$0xff]
  %v745 = vld [vmem:[%s722 + $0xb0] sm:$0xff]
  %v746 = vld [vmem:[%s722 + $0xb8] sm:$0xff]
  %747 = vmatprep.subr.mxu0 %v64
  %748 = vmatpush1.msra.mxu0 %v63
  %749 = vmatprep.subr.mxu0 %v70
  %750 = vmatpush1.msra.mxu0 %v69
  %751 = vmatprep.subr.mxu0 %v76
  %752 = vmatpush1.msra.mxu0 %v75
  %753 = vmatprep.subr.mxu0 %v82
  %754 = vmatpush1.msra.mxu0 %v81
  %755 = vmatprep.subr.mxu0 %v88
  %756 = vmatpush1.msra.mxu0 %v87
  %757 = vmatprep.subr.mxu0 %v94
  %758 = vmatpush1.msra.mxu0 %v93
  %759 = vmatprep.subr.mxu0 %v100
  %760 = vmatpush1.msra.mxu0 %v99
  %761 = vmatprep.subr.mxu0 %v106
  %762 = vmatpush1.msra.mxu0 %v105
  %763 = vmatprep.subr.mxu0 %v112
  %764 = vmatpush1.msra.mxu0 %v111
  %765 = vmatprep.subr.mxu0 %v118
  %766 = vmatpush1.msra.mxu0 %v117
  %767 = vmatprep.subr.mxu0 %v124
  %768 = vmatpush1.msra.mxu0 %v123
  %769 = vmatprep.subr.mxu0 %v130
  %770 = vmatpush1.msra.mxu0 %v129
  %771 = vmatprep.subr.mxu0 %v136
  %772 = vmatpush1.msra.mxu0 %v135
  %773 = vmatprep.subr.mxu0 %v142
  %774 = vmatpush1.msra.mxu0 %v141
  %775 = vmatprep.subr.mxu0 %v148
  %776 = vmatpush1.msra.mxu0 %v147
  %777 = vmatprep.subr.mxu0 %v154
  %778 = vmatpush1.msra.mxu0 %v153
  %779 = vmatprep.subr.mxu0 %v160
  %780 = vmatpush1.msra.mxu0 %v159
  %781 = vmatprep.subr.mxu0 %v166
  %782 = vmatpush1.msra.mxu0 %v165
  %783 = vmatprep.subr.mxu0 %v172
  %784 = vmatpush1.msra.mxu0 %v171
  %785 = vmatprep.subr.mxu0 %v178
  %786 = vmatpush1.msra.mxu0 %v177
  %787 = vmatprep.subr.mxu0 %v184
  %788 = vmatpush1.msra.mxu0 %v183
  %789 = vmatprep.subr.mxu0 %v190
  %790 = vmatpush1.msra.mxu0 %v189
  %791 = vmatprep.subr.mxu0 %v196
  %792 = vmatpush1.msra.mxu0 %v195
  %793 = vmatprep.subr.mxu0 %v202
  %794 = vmatpush1.msra.mxu0 %v201
  %795 = vmatprep.subr.mxu0 %v208
  %796 = vmatpush1.msra.mxu0 %v207
  %797 = vmatprep.subr.mxu0 %v214
  %798 = vmatpush1.msra.mxu0 %v213
  %799 = vmatprep.subr.mxu0 %v220
  %800 = vmatpush1.msra.mxu0 %v219
  %801 = vmatprep.subr.mxu0 %v226
  %802 = vmatpush1.msra.mxu0 %v225
  %803 = vmatprep.subr.mxu0 %v232
  %804 = vmatpush1.msra.mxu0 %v231
  %805 = vmatprep.subr.mxu0 %v238
  %806 = vmatpush1.msra.mxu0 %v237
  %807 = vmatprep.subr.mxu0 %v244
  %808 = vmatpush1.msra.mxu0 %v243
  %809 = vmatprep.subr.mxu0 %v250
  %810 = vmatpush1.msra.mxu0 %v249
  %811 = vmatprep.mubr.f32.mxu0 %v715
  %812 = vmatmul.mubr.f32.gmra.mrb[0].mxu0 %v714
  %v813 = vpop.f32.mrb[0].mxu0
  %v814 = vadd.f32 %v260, %v813
  %v815 = vpop.f32.mrb[0].mxu0
  %v816 = vadd.f32 %v264, %v815
  %817 = vmatprep.mubr.f32.mxu0 %v717
  %818 = vmatmul.mubr.f32.gmra.mrb[0].mxu0 %v716
  %v819 = vpop.f32.mrb[0].mxu0
  %v820 = vadd.f32 %v260, %v819
  %v821 = vpop.f32.mrb[0].mxu0
  %v822 = vadd.f32 %v264, %v821
  %823 = vmatprep.mubr.f32.mxu0 %v719
  %824 = vmatmul.mubr.f32.gmra.mrb[0].mxu0 %v718
  %v825 = vpop.f32.mrb[0].mxu0
  %v826 = vadd.f32 %v260, %v825
  %v827 = vpop.f32.mrb[0].mxu0
  %v828 = vadd.f32 %v264, %v827
  %829 = vmatprep.mubr.f32.mxu0 %v721
  %830 = vmatmul.mubr.f32.gmra.mrb[0].mxu0 %v720
  %v831 = vpop.f32.mrb[0].mxu0
  %v832 = vadd.f32 %v260, %v831
  %v833 = vpop.f32.mrb[0].mxu0
  %v834 = vadd.f32 %v264, %v833
  %835 = vdwg.mxu0
  %836 = vmatprep.subr.mxu0 %v66
  %837 = vmatpush1.msra.mxu0 %v65
  %838 = vmatprep.subr.mxu0 %v72
  %839 = vmatpush1.msra.mxu0 %v71
  %840 = vmatprep.subr.mxu0 %v78
  %841 = vmatpush1.msra.mxu0 %v77
  %842 = vmatprep.subr.mxu0 %v84
  %843 = vmatpush1.msra.mxu0 %v83
  %844 = vmatprep.subr.mxu0 %v90
  %845 = vmatpush1.msra.mxu0 %v89
  %846 = vmatprep.subr.mxu0 %v96
  %847 = vmatpush1.msra.mxu0 %v95
  %848 = vmatprep.subr.mxu0 %v102
  %849 = vmatpush1.msra.mxu0 %v101
  %850 = vmatprep.subr.mxu0 %v108
  %851 = vmatpush1.msra.mxu0 %v107
  %852 = vmatprep.subr.mxu0 %v114
  %853 = vmatpush1.msra.mxu0 %v113
  %854 = vmatprep.subr.mxu0 %v120
  %855 = vmatpush1.msra.mxu0 %v119
  %856 = vmatprep.subr.mxu0 %v126
  %857 = vmatpush1.msra.mxu0 %v125
  %858 = vmatprep.subr.mxu0 %v132
  %859 = vmatpush1.msra.mxu0 %v131
  %860 = vmatprep.subr.mxu0 %v138
  %861 = vmatpush1.msra.mxu0 %v137
  %862 = vmatprep.subr.mxu0 %v144
  %863 = vmatpush1.msra.mxu0 %v143
  %864 = vmatprep.subr.mxu0 %v150
  %865 = vmatpush1.msra.mxu0 %v149
  %866 = vmatprep.subr.mxu0 %v156
  %867 = vmatpush1.msra.mxu0 %v155
  %868 = vmatprep.subr.mxu0 %v162
  %869 = vmatpush1.msra.mxu0 %v161
  %870 = vmatprep.subr.mxu0 %v168
  %871 = vmatpush1.msra.mxu0 %v167
  %872 = vmatprep.subr.mxu0 %v174
  %873 = vmatpush1.msra.mxu0 %v173
  %874 = vmatprep.subr.mxu0 %v180
  %875 = vmatpush1.msra.mxu0 %v179
  %876 = vmatprep.subr.mxu0 %v186
  %877 = vmatpush1.msra.mxu0 %v185
  %878 = vmatprep.subr.mxu0 %v192
  %879 = vmatpush1.msra.mxu0 %v191
  %880 = vmatprep.subr.mxu0 %v198
  %881 = vmatpush1.msra.mxu0 %v197
  %882 = vmatprep.subr.mxu0 %v204
  %883 = vmatpush1.msra.mxu0 %v203
  %884 = vmatprep.subr.mxu0 %v210
  %885 = vmatpush1.msra.mxu0 %v209
  %886 = vmatprep.subr.mxu0 %v216
  %887 = vmatpush1.msra.mxu0 %v215
  %888 = vmatprep.subr.mxu0 %v222
  %889 = vmatpush1.msra.mxu0 %v221
  %890 = vmatprep.subr.mxu0 %v228
  %891 = vmatpush1.msra.mxu0 %v227
  %892 = vmatprep.subr.mxu0 %v234
  %893 = vmatpush1.msra.mxu0 %v233
  %894 = vmatprep.subr.mxu0 %v240
  %895 = vmatpush1.msra.mxu0 %v239
  %896 = vmatprep.subr.mxu0 %v246
  %897 = vmatpush1.msra.mxu0 %v245
  %898 = vmatprep.subr.mxu0 %v252
  %899 = vmatpush1.msra.mxu0 %v251
  %900 = vmatprep.mubr.f32.mxu0 %v715
  %901 = vmatmul.mubr.f32.gmra.mrb[0].mxu0 %v714
  %v902 = vpop.f32.mrb[0].mxu0
  %v903 = vadd.f32 %v268, %v902
  %v904 = vpop.f32.mrb[0].mxu0
  %v905 = vadd.f32 %v272, %v904
  %906 = vmatprep.mubr.f32.mxu0 %v717
  %907 = vmatmul.mubr.f32.gmra.mrb[0].mxu0 %v716
  %v908 = vpop.f32.mrb[0].mxu0
  %v909 = vadd.f32 %v268, %v908
  %v910 = vpop.f32.mrb[0].mxu0
  %v911 = vadd.f32 %v272, %v910
  %912 = vmatprep.mubr.f32.mxu0 %v719
  %913 = vmatmul.mubr.f32.gmra.mrb[0].mxu0 %v718
  %v914 = vpop.f32.mrb[0].mxu0
  %v915 = vadd.f32 %v268, %v914
  %v916 = vpop.f32.mrb[0].mxu0
  %v917 = vadd.f32 %v272, %v916
  %918 = vmatprep.mubr.f32.mxu0 %v721
  %919 = vmatmul.mubr.f32.gmra.mrb[0].mxu0 %v720
  %v920 = vpop.f32.mrb[0].mxu0
  %v921 = vadd.f32 %v268, %v920
  %v922 = vpop.f32.mrb[0].mxu0
  %v923 = vadd.f32 %v272, %v922
  %924 = vdwg.mxu0
  %925 = vmatprep.subr.mxu0 %v68
  %926 = vmatpush1.msra.mxu0 %v67
  %927 = vmatprep.subr.mxu0 %v74
  %928 = vmatpush1.msra.mxu0 %v73
  %929 = vmatprep.subr.mxu0 %v80
  %930 = vmatpush1.msra.mxu0 %v79
  %931 = vmatprep.subr.mxu0 %v86
  %932 = vmatpush1.msra.mxu0 %v85
  %933 = vmatprep.subr.mxu0 %v92
  %934 = vmatpush1.msra.mxu0 %v91
  %935 = vmatprep.subr.mxu0 %v98
  %936 = vmatpush1.msra.mxu0 %v97
  %937 = vmatprep.subr.mxu0 %v104
  %938 = vmatpush1.msra.mxu0 %v103
  %939 = vmatprep.subr.mxu0 %v110
  %940 = vmatpush1.msra.mxu0 %v109
  %941 = vmatprep.subr.mxu0 %v116
  %942 = vmatpush1.msra.mxu0 %v115
  %943 = vmatprep.subr.mxu0 %v122
  %944 = vmatpush1.msra.mxu0 %v121
  %945 = vmatprep.subr.mxu0 %v128
  %946 = vmatpush1.msra.mxu0 %v127
  %947 = vmatprep.subr.mxu0 %v134
  %948 = vmatpush1.msra.mxu0 %v133
  %949 = vmatprep.subr.mxu0 %v140
  %950 = vmatpush1.msra.mxu0 %v139
  %951 = vmatprep.subr.mxu0 %v146
  %952 = vmatpush1.msra.mxu0 %v145
  %953 = vmatprep.subr.mxu0 %v152
  %954 = vmatpush1.msra.mxu0 %v151
  %955 = vmatprep.subr.mxu0 %v158
  %956 = vmatpush1.msra.mxu0 %v157
  %957 = vmatprep.subr.mxu0 %v164
  %958 = vmatpush1.msra.mxu0 %v163
  %959 = vmatprep.subr.mxu0 %v170
  %960 = vmatpush1.msra.mxu0 %v169
  %961 = vmatprep.subr.mxu0 %v176
  %962 = vmatpush1.msra.mxu0 %v175
  %963 = vmatprep.subr.mxu0 %v182
  %964 = vmatpush1.msra.mxu0 %v181
  %965 = vmatprep.subr.mxu0 %v188
  %966 = vmatpush1.msra.mxu0 %v187
  %967 = vmatprep.subr.mxu0 %v194
  %968 = vmatpush1.msra.mxu0 %v193
  %969 = vmatprep.subr.mxu0 %v200
  %970 = vmatpush1.msra.mxu0 %v199
  %971 = vmatprep.subr.mxu0 %v206
  %972 = vmatpush1.msra.mxu0 %v205
  %973 = vmatprep.subr.mxu0 %v212
  %974 = vmatpush1.msra.mxu0 %v211
  %975 = vmatprep.subr.mxu0 %v218
  %976 = vmatpush1.msra.mxu0 %v217
  %977 = vmatprep.subr.mxu0 %v224
  %978 = vmatpush1.msra.mxu0 %v223
  %979 = vmatprep.subr.mxu0 %v230
  %980 = vmatpush1.msra.mxu0 %v229
  %981 = vmatprep.subr.mxu0 %v236
  %982 = vmatpush1.msra.mxu0 %v235
  %983 = vmatprep.subr.mxu0 %v242
  %984 = vmatpush1.msra.mxu0 %v241
  %985 = vmatprep.subr.mxu0 %v248
  %986 = vmatpush1.msra.mxu0 %v247
  %987 = vmatprep.subr.mxu0 %v254
  %988 = vmatpush1.msra.mxu0 %v253
  %989 = vmatprep.mubr.f32.mxu0 %v715
  %990 = vmatmul.mubr.f32.gmra.mrb[0].mxu0 %v714
  %v991 = vpop.f32.mrb[0].mxu0
  %v992 = vadd.f32 %v276, %v991
  %v993 = vpop.f32.mrb[0].mxu0
  %v994 = vadd.f32 %v280, %v993
  %995 = vmatprep.mubr.f32.mxu0 %v717
  %996 = vmatmul.mubr.f32.gmra.mrb[0].mxu0 %v716
  %v997 = vpop.f32.mrb[0].mxu0
  %v998 = vadd.f32 %v276, %v997
  %v999 = vpop.f32.mrb[0].mxu0
  %v1000 = vadd.f32 %v280, %v999
  %1001 = vmatprep.mubr.f32.mxu0 %v719
  %1002 = vmatmul.mubr.f32.gmra.mrb[0].mxu0 %v718
  %v1003 = vpop.f32.mrb[0].mxu0
  %v1004 = vadd.f32 %v276, %v1003
  %v1005 = vpop.f32.mrb[0].mxu0
  %v1006 = vadd.f32 %v280, %v1005
  %1007 = vmatprep.mubr.f32.mxu0 %v721
  %1008 = vmatmul.mubr.f32.gmra.mrb[0].mxu0 %v720
  %v1009 = vpop.f32.mrb[0].mxu0
  %v1010 = vadd.f32 %v276, %v1009
  %v1011 = vpop.f32.mrb[0].mxu0
  %v1012 = vadd.f32 %v280, %v1011
  %1013 = vdwg.mxu0
  %v1014 = vadd.f32 %v723, %v814
  %v1015 = vadd.f32 %v724, %v816
  %v1016 = vadd.f32 %v729, %v820
  %v1017 = vadd.f32 %v730, %v822
  %v1018 = vadd.f32 %v735, %v826
  %v1019 = vadd.f32 %v736, %v828
  %v1020 = vadd.f32 %v741, %v832
  %v1021 = vadd.f32 %v742, %v834
  %v1022 = vxor.u32 %v1014, 2147483648
  %v1023 = vxor.u32 %v1015, 2147483648
  %v1024 = vxor.u32 %v1016, 2147483648
  %v1025 = vxor.u32 %v1017, 2147483648
  %v1026 = vxor.u32 %v1018, 2147483648
  %v1027 = vxor.u32 %v1019, 2147483648
  %v1028 = vxor.u32 %v1020, 2147483648
  %v1029 = vxor.u32 %v1021, 2147483648
  %v1030 = vmul.f32 %v1022, 1.442695
  %v1031 = vpow.pop %v1030
  %v1032 = vmul.f32 %v1023, 1.442695
  %v1033 = vpow.pop %v1032
  %v1034 = vmul.f32 %v1024, 1.442695
  %v1035 = vpow.pop %v1034
  %v1036 = vmul.f32 %v1025, 1.442695
  %v1037 = vpow.pop %v1036
  %v1038 = vmul.f32 %v1026, 1.442695
  %v1039 = vpow.pop %v1038
  %v1040 = vmul.f32 %v1027, 1.442695
  %v1041 = vpow.pop %v1040
  %v1042 = vmul.f32 %v1028, 1.442695
  %v1043 = vpow.pop %v1042
  %v1044 = vmul.f32 %v1029, 1.442695
  %v1045 = vpow.pop %v1044
  %v1046 = vadd.f32 %v1031, 1.0
  %v1047 = vadd.f32 %v1033, 1.0
  %v1048 = vadd.f32 %v1035, 1.0
  %v1049 = vadd.f32 %v1037, 1.0
  %v1050 = vadd.f32 %v1039, 1.0
  %v1051 = vadd.f32 %v1041, 1.0
  %v1052 = vadd.f32 %v1043, 1.0
  %v1053 = vadd.f32 %v1045, 1.0
  %v1054 = vrcp.pop %v1046
  %v1055 = vmul.f32 1.0, %v1054
  %v1056 = vrcp.pop %v1047
  %v1057 = vmul.f32 1.0, %v1056
  %v1058 = vrcp.pop %v1048
  %v1059 = vmul.f32 1.0, %v1058
  %v1060 = vrcp.pop %v1049
  %v1061 = vmul.f32 1.0, %v1060
  %v1062 = vrcp.pop %v1050
  %v1063 = vmul.f32 1.0, %v1062
  %v1064 = vrcp.pop %v1051
  %v1065 = vmul.f32 1.0, %v1064
  %v1066 = vrcp.pop %v1052
  %v1067 = vmul.f32 1.0, %v1066
  %v1068 = vrcp.pop %v1053
  %v1069 = vmul.f32 1.0, %v1068
  %v1070 = vadd.f32 %v725, %v903
  %v1071 = vadd.f32 %v726, %v905
  %v1072 = vadd.f32 %v731, %v909
  %v1073 = vadd.f32 %v732, %v911
  %v1074 = vadd.f32 %v737, %v915
  %v1075 = vadd.f32 %v738, %v917
  %v1076 = vadd.f32 %v743, %v921
  %v1077 = vadd.f32 %v744, %v923
  %v1078 = vxor.u32 %v1070, 2147483648
  %v1079 = vxor.u32 %v1071, 2147483648
  %v1080 = vxor.u32 %v1072, 2147483648
  %v1081 = vxor.u32 %v1073, 2147483648
  %v1082 = vxor.u32 %v1074, 2147483648
  %v1083 = vxor.u32 %v1075, 2147483648
  %v1084 = vxor.u32 %v1076, 2147483648
  %v1085 = vxor.u32 %v1077, 2147483648
  %v1086 = vmul.f32 %v1078, 1.442695
  %v1087 = vpow.pop %v1086
  %v1088 = vmul.f32 %v1079, 1.442695
  %v1089 = vpow.pop %v1088
  %v1090 = vmul.f32 %v1080, 1.442695
  %v1091 = vpow.pop %v1090
  %v1092 = vmul.f32 %v1081, 1.442695
  %v1093 = vpow.pop %v1092
  %v1094 = vmul.f32 %v1082, 1.442695
  %v1095 = vpow.pop %v1094
  %v1096 = vmul.f32 %v1083, 1.442695
  %v1097 = vpow.pop %v1096
  %v1098 = vmul.f32 %v1084, 1.442695
  %v1099 = vpow.pop %v1098
  %v1100 = vmul.f32 %v1085, 1.442695
  %v1101 = vpow.pop %v1100
  %v1102 = vadd.f32 %v1087, 1.0
  %v1103 = vadd.f32 %v1089, 1.0
  %v1104 = vadd.f32 %v1091, 1.0
  %v1105 = vadd.f32 %v1093, 1.0
  %v1106 = vadd.f32 %v1095, 1.0
  %v1107 = vadd.f32 %v1097, 1.0
  %v1108 = vadd.f32 %v1099, 1.0
  %v1109 = vadd.f32 %v1101, 1.0
  %v1110 = vrcp.pop %v1102
  %v1111 = vmul.f32 1.0, %v1110
  %v1112 = vrcp.pop %v1103
  %v1113 = vmul.f32 1.0, %v1112
  %v1114 = vrcp.pop %v1104
  %v1115 = vmul.f32 1.0, %v1114
  %v1116 = vrcp.pop %v1105
  %v1117 = vmul.f32 1.0, %v1116
  %v1118 = vrcp.pop %v1106
  %v1119 = vmul.f32 1.0, %v1118
  %v1120 = vrcp.pop %v1107
  %v1121 = vmul.f32 1.0, %v1120
  %v1122 = vrcp.pop %v1108
  %v1123 = vmul.f32 1.0, %v1122
  %v1124 = vrcp.pop %v1109
  %v1125 = vmul.f32 1.0, %v1124
  %v1126 = vmul.f32 %v1055, %v992
  %v1127 = vmul.f32 %v1057, %v994
  %v1128 = vmul.f32 %v1059, %v998
  %v1129 = vmul.f32 %v1061, %v1000
  %v1130 = vmul.f32 %v1063, %v1004
  %v1131 = vmul.f32 %v1065, %v1006
  %v1132 = vmul.f32 %v1067, %v1010
  %v1133 = vmul.f32 %v1069, %v1012
  %v1134 = vadd.f32 %v727, %v1126
  %v1135 = vadd.f32 %v728, %v1127
  %v1136 = vadd.f32 %v733, %v1128
  %v1137 = vadd.f32 %v734, %v1129
  %v1138 = vadd.f32 %v739, %v1130
  %v1139 = vadd.f32 %v740, %v1131
  %v1140 = vadd.f32 %v745, %v1132
  %v1141 = vadd.f32 %v746, %v1133
  %v1142 = vtanh.pop %v1134
  %v1143 = vtanh.pop %v1135
  %v1144 = vtanh.pop %v1136
  %v1145 = vtanh.pop %v1137
  %v1146 = vtanh.pop %v1138
  %v1147 = vtanh.pop %v1139
  %v1148 = vtanh.pop %v1140
  %v1149 = vtanh.pop %v1141
  %v1150 = vsub.f32 1.0, %v1111
  %v1151 = vsub.f32 1.0, %v1113
  %v1152 = vsub.f32 1.0, %v1115
  %v1153 = vsub.f32 1.0, %v1117
  %v1154 = vsub.f32 1.0, %v1119
  %v1155 = vsub.f32 1.0, %v1121
  %v1156 = vsub.f32 1.0, %v1123
  %v1157 = vsub.f32 1.0, %v1125
  %v1158 = vmul.f32 %v1150, %v1142
  %v1159 = vmul.f32 %v1151, %v1143
  %v1160 = vmul.f32 %v1152, %v1144
  %v1161 = vmul.f32 %v1153, %v1145
  %v1162 = vmul.f32 %v1154, %v1146
  %v1163 = vmul.f32 %v1155, %v1147
  %v1164 = vmul.f32 %v1156, %v1148
  %v1165 = vmul.f32 %v1157, %v1149
  %v1166 = vmul.f32 %v1111, %v714
  %v1167 = vmul.f32 %v1113, %v715
  %v1168 = vmul.f32 %v1115, %v716
  %v1169 = vmul.f32 %v1117, %v717
  %v1170 = vmul.f32 %v1119, %v718
  %v1171 = vmul.f32 %v1121, %v719
  %v1172 = vmul.f32 %v1123, %v720
  %v1173 = vmul.f32 %v1125, %v721
  %v1174 = vadd.f32 %v1158, %v1166
  %v1175 = vadd.f32 %v1159, %v1167
  %v1176 = vadd.f32 %v1160, %v1168
  %v1177 = vadd.f32 %v1161, %v1169
  %v1178 = vadd.f32 %v1162, %v1170
  %v1179 = vadd.f32 %v1163, %v1171
  %v1180 = vadd.f32 %v1164, %v1172
  %v1181 = vadd.f32 %v1165, %v1173
  %s1182 = scalar_lea.vmem %s1, 384
  %v1183 = vld [vmem:[%s1182] sm:$0xff]
  %v1184 = vld [vmem:[%s1182 + $0x8] sm:$0xff]
  %v1185 = vld [vmem:[%s1182 + $0x10] sm:$0xff]
  %v1186 = vld [vmem:[%s1182 + $0x18] sm:$0xff]
  %v1187 = vld [vmem:[%s1182 + $0x20] sm:$0xff]
  %v1188 = vld [vmem:[%s1182 + $0x28] sm:$0xff]
  %v1189 = vld [vmem:[%s1182 + $0x30] sm:$0xff]
  %v1190 = vld [vmem:[%s1182 + $0x38] sm:$0xff]
  %v1191 = vld [vmem:[%s1182 + $0x40] sm:$0xff]
  %v1192 = vld [vmem:[%s1182 + $0x48] sm:$0xff]
  %v1193 = vld [vmem:[%s1182 + $0x50] sm:$0xff]
  %v1194 = vld [vmem:[%s1182 + $0x58] sm:$0xff]
  %v1195 = vld [vmem:[%s1182 + $0x60] sm:$0xff]
  %v1196 = vld [vmem:[%s1182 + $0x68] sm:$0xff]
  %v1197 = vld [vmem:[%s1182 + $0x70] sm:$0xff]
  %v1198 = vld [vmem:[%s1182 + $0x78] sm:$0xff]
  %v1199 = vld [vmem:[%s1182 + $0x80] sm:$0xff]
  %v1200 = vld [vmem:[%s1182 + $0x88] sm:$0xff]
  %v1201 = vld [vmem:[%s1182 + $0x90] sm:$0xff]
  %v1202 = vld [vmem:[%s1182 + $0x98] sm:$0xff]
  %v1203 = vld [vmem:[%s1182 + $0xa0] sm:$0xff]
  %v1204 = vld [vmem:[%s1182 + $0xa8] sm:$0xff]
  %v1205 = vld [vmem:[%s1182 + $0xb0] sm:$0xff]
  %v1206 = vld [vmem:[%s1182 + $0xb8] sm:$0xff]
  %1207 = vmatprep.subr.mxu0 %v64
  %1208 = vmatpush1.msra.mxu0 %v63
  %1209 = vmatprep.subr.mxu0 %v70
  %1210 = vmatpush1.msra.mxu0 %v69
  %1211 = vmatprep.subr.mxu0 %v76
  %1212 = vmatpush1.msra.mxu0 %v75
  %1213 = vmatprep.subr.mxu0 %v82
  %1214 = vmatpush1.msra.mxu0 %v81
  %1215 = vmatprep.subr.mxu0 %v88
  %1216 = vmatpush1.msra.mxu0 %v87
  %1217 = vmatprep.subr.mxu0 %v94
  %1218 = vmatpush1.msra.mxu0 %v93
  %1219 = vmatprep.subr.mxu0 %v100
  %1220 = vmatpush1.msra.mxu0 %v99
  %1221 = vmatprep.subr.mxu0 %v106
  %1222 = vmatpush1.msra.mxu0 %v105
  %1223 = vmatprep.subr.mxu0 %v112
  %1224 = vmatpush1.msra.mxu0 %v111
  %1225 = vmatprep.subr.mxu0 %v118
  %1226 = vmatpush1.msra.mxu0 %v117
  %1227 = vmatprep.subr.mxu0 %v124
  %1228 = vmatpush1.msra.mxu0 %v123
  %1229 = vmatprep.subr.mxu0 %v130
  %1230 = vmatpush1.msra.mxu0 %v129
  %1231 = vmatprep.subr.mxu0 %v136
  %1232 = vmatpush1.msra.mxu0 %v135
  %1233 = vmatprep.subr.mxu0 %v142
  %1234 = vmatpush1.msra.mxu0 %v141
  %1235 = vmatprep.subr.mxu0 %v148
  %1236 = vmatpush1.msra.mxu0 %v147
  %1237 = vmatprep.subr.mxu0 %v154
  %1238 = vmatpush1.msra.mxu0 %v153
  %1239 = vmatprep.subr.mxu0 %v160
  %1240 = vmatpush1.msra.mxu0 %v159
  %1241 = vmatprep.subr.mxu0 %v166
  %1242 = vmatpush1.msra.mxu0 %v165
  %1243 = vmatprep.subr.mxu0 %v172
  %1244 = vmatpush1.msra.mxu0 %v171
  %1245 = vmatprep.subr.mxu0 %v178
  %1246 = vmatpush1.msra.mxu0 %v177
  %1247 = vmatprep.subr.mxu0 %v184
  %1248 = vmatpush1.msra.mxu0 %v183
  %1249 = vmatprep.subr.mxu0 %v190
  %1250 = vmatpush1.msra.mxu0 %v189
  %1251 = vmatprep.subr.mxu0 %v196
  %1252 = vmatpush1.msra.mxu0 %v195
  %1253 = vmatprep.subr.mxu0 %v202
  %1254 = vmatpush1.msra.mxu0 %v201
  %1255 = vmatprep.subr.mxu0 %v208
  %1256 = vmatpush1.msra.mxu0 %v207
  %1257 = vmatprep.subr.mxu0 %v214
  %1258 = vmatpush1.msra.mxu0 %v213
  %1259 = vmatprep.subr.mxu0 %v220
  %1260 = vmatpush1.msra.mxu0 %v219
  %1261 = vmatprep.subr.mxu0 %v226
  %1262 = vmatpush1.msra.mxu0 %v225
  %1263 = vmatprep.subr.mxu0 %v232
  %1264 = vmatpush1.msra.mxu0 %v231
  %1265 = vmatprep.subr.mxu0 %v238
  %1266 = vmatpush1.msra.mxu0 %v237
  %1267 = vmatprep.subr.mxu0 %v244
  %1268 = vmatpush1.msra.mxu0 %v243
  %1269 = vmatprep.subr.mxu0 %v250
  %1270 = vmatpush1.msra.mxu0 %v249
  %1271 = vmatprep.mubr.f32.mxu0 %v1175
  %1272 = vmatmul.mubr.f32.gmra.mrb[0].mxu0 %v1174
  %v1273 = vpop.f32.mrb[0].mxu0
  %v1274 = vadd.f32 %v260, %v1273
  %v1275 = vpop.f32.mrb[0].mxu0
  %v1276 = vadd.f32 %v264, %v1275
  %1277 = vmatprep.mubr.f32.mxu0 %v1177
  %1278 = vmatmul.mubr.f32.gmra.mrb[0].mxu0 %v1176
  %v1279 = vpop.f32.mrb[0].mxu0
  %v1280 = vadd.f32 %v260, %v1279
  %v1281 = vpop.f32.mrb[0].mxu0
  %v1282 = vadd.f32 %v264, %v1281
  %1283 = vmatprep.mubr.f32.mxu0 %v1179
  %1284 = vmatmul.mubr.f32.gmra.mrb[0].mxu0 %v1178
  %v1285 = vpop.f32.mrb[0].mxu0
  %v1286 = vadd.f32 %v260, %v1285
  %v1287 = vpop.f32.mrb[0].mxu0
  %v1288 = vadd.f32 %v264, %v1287
  %1289 = vmatprep.mubr.f32.mxu0 %v1181
  %1290 = vmatmul.mubr.f32.gmra.mrb[0].mxu0 %v1180
  %v1291 = vpop.f32.mrb[0].mxu0
  %v1292 = vadd.f32 %v260, %v1291
  %v1293 = vpop.f32.mrb[0].mxu0
  %v1294 = vadd.f32 %v264, %v1293
  %1295 = vdwg.mxu0
  %1296 = vmatprep.subr.mxu0 %v66
  %1297 = vmatpush1.msra.mxu0 %v65
  %1298 = vmatprep.subr.mxu0 %v72
  %1299 = vmatpush1.msra.mxu0 %v71
  %1300 = vmatprep.subr.mxu0 %v78
  %1301 = vmatpush1.msra.mxu0 %v77
  %1302 = vmatprep.subr.mxu0 %v84
  %1303 = vmatpush1.msra.mxu0 %v83
  %1304 = vmatprep.subr.mxu0 %v90
  %1305 = vmatpush1.msra.mxu0 %v89
  %1306 = vmatprep.subr.mxu0 %v96
  %1307 = vmatpush1.msra.mxu0 %v95
  %1308 = vmatprep.subr.mxu0 %v102
  %1309 = vmatpush1.msra.mxu0 %v101
  %1310 = vmatprep.subr.mxu0 %v108
  %1311 = vmatpush1.msra.mxu0 %v107
  %1312 = vmatprep.subr.mxu0 %v114
  %1313 = vmatpush1.msra.mxu0 %v113
  %1314 = vmatprep.subr.mxu0 %v120
  %1315 = vmatpush1.msra.mxu0 %v119
  %1316 = vmatprep.subr.mxu0 %v126
  %1317 = vmatpush1.msra.mxu0 %v125
  %1318 = vmatprep.subr.mxu0 %v132
  %1319 = vmatpush1.msra.mxu0 %v131
  %1320 = vmatprep.subr.mxu0 %v138
  %1321 = vmatpush1.msra.mxu0 %v137
  %1322 = vmatprep.subr.mxu0 %v144
  %1323 = vmatpush1.msra.mxu0 %v143
  %1324 = vmatprep.subr.mxu0 %v150
  %1325 = vmatpush1.msra.mxu0 %v149
  %1326 = vmatprep.subr.mxu0 %v156
  %1327 = vmatpush1.msra.mxu0 %v155
  %1328 = vmatprep.subr.mxu0 %v162
  %1329 = vmatpush1.msra.mxu0 %v161
  %1330 = vmatprep.subr.mxu0 %v168
  %1331 = vmatpush1.msra.mxu0 %v167
  %1332 = vmatprep.subr.mxu0 %v174
  %1333 = vmatpush1.msra.mxu0 %v173
  %1334 = vmatprep.subr.mxu0 %v180
  %1335 = vmatpush1.msra.mxu0 %v179
  %1336 = vmatprep.subr.mxu0 %v186
  %1337 = vmatpush1.msra.mxu0 %v185
  %1338 = vmatprep.subr.mxu0 %v192
  %1339 = vmatpush1.msra.mxu0 %v191
  %1340 = vmatprep.subr.mxu0 %v198
  %1341 = vmatpush1.msra.mxu0 %v197
  %1342 = vmatprep.subr.mxu0 %v204
  %1343 = vmatpush1.msra.mxu0 %v203
  %1344 = vmatprep.subr.mxu0 %v210
  %1345 = vmatpush1.msra.mxu0 %v209
  %1346 = vmatprep.subr.mxu0 %v216
  %1347 = vmatpush1.msra.mxu0 %v215
  %1348 = vmatprep.subr.mxu0 %v222
  %1349 = vmatpush1.msra.mxu0 %v221
  %1350 = vmatprep.subr.mxu0 %v228
  %1351 = vmatpush1.msra.mxu0 %v227
  %1352 = vmatprep.subr.mxu0 %v234
  %1353 = vmatpush1.msra.mxu0 %v233
  %1354 = vmatprep.subr.mxu0 %v240
  %1355 = vmatpush1.msra.mxu0 %v239
  %1356 = vmatprep.subr.mxu0 %v246
  %1357 = vmatpush1.msra.mxu0 %v245
  %1358 = vmatprep.subr.mxu0 %v252
  %1359 = vmatpush1.msra.mxu0 %v251
  %1360 = vmatprep.mubr.f32.mxu0 %v1175
  %1361 = vmatmul.mubr.f32.gmra.mrb[0].mxu0 %v1174
  %v1362 = vpop.f32.mrb[0].mxu0
  %v1363 = vadd.f32 %v268, %v1362
  %v1364 = vpop.f32.mrb[0].mxu0
  %v1365 = vadd.f32 %v272, %v1364
  %1366 = vmatprep.mubr.f32.mxu0 %v1177
  %1367 = vmatmul.mubr.f32.gmra.mrb[0].mxu0 %v1176
  %v1368 = vpop.f32.mrb[0].mxu0
  %v1369 = vadd.f32 %v268, %v1368
  %v1370 = vpop.f32.mrb[0].mxu0
  %v1371 = vadd.f32 %v272, %v1370
  %1372 = vmatprep.mubr.f32.mxu0 %v1179
  %1373 = vmatmul.mubr.f32.gmra.mrb[0].mxu0 %v1178
  %v1374 = vpop.f32.mrb[0].mxu0
  %v1375 = vadd.f32 %v268, %v1374
  %v1376 = vpop.f32.mrb[0].mxu0
  %v1377 = vadd.f32 %v272, %v1376
  %1378 = vmatprep.mubr.f32.mxu0 %v1181
  %1379 = vmatmul.mubr.f32.gmra.mrb[0].mxu0 %v1180
  %v1380 = vpop.f32.mrb[0].mxu0
  %v1381 = vadd.f32 %v268, %v1380
  %v1382 = vpop.f32.mrb[0].mxu0
  %v1383 = vadd.f32 %v272, %v1382
  %1384 = vdwg.mxu0
  %1385 = vmatprep.subr.mxu0 %v68
  %1386 = vmatpush1.msra.mxu0 %v67
  %1387 = vmatprep.subr.mxu0 %v74
  %1388 = vmatpush1.msra.mxu0 %v73
  %1389 = vmatprep.subr.mxu0 %v80
  %1390 = vmatpush1.msra.mxu0 %v79
  %1391 = vmatprep.subr.mxu0 %v86
  %1392 = vmatpush1.msra.mxu0 %v85
  %1393 = vmatprep.subr.mxu0 %v92
  %1394 = vmatpush1.msra.mxu0 %v91
  %1395 = vmatprep.subr.mxu0 %v98
  %1396 = vmatpush1.msra.mxu0 %v97
  %1397 = vmatprep.subr.mxu0 %v104
  %1398 = vmatpush1.msra.mxu0 %v103
  %1399 = vmatprep.subr.mxu0 %v110
  %1400 = vmatpush1.msra.mxu0 %v109
  %1401 = vmatprep.subr.mxu0 %v116
  %1402 = vmatpush1.msra.mxu0 %v115
  %1403 = vmatprep.subr.mxu0 %v122
  %1404 = vmatpush1.msra.mxu0 %v121
  %1405 = vmatprep.subr.mxu0 %v128
  %1406 = vmatpush1.msra.mxu0 %v127
  %1407 = vmatprep.subr.mxu0 %v134
  %1408 = vmatpush1.msra.mxu0 %v133
  %1409 = vmatprep.subr.mxu0 %v140
  %1410 = vmatpush1.msra.mxu0 %v139
  %1411 = vmatprep.subr.mxu0 %v146
  %1412 = vmatpush1.msra.mxu0 %v145
  %1413 = vmatprep.subr.mxu0 %v152
  %1414 = vmatpush1.msra.mxu0 %v151
  %1415 = vmatprep.subr.mxu0 %v158
  %1416 = vmatpush1.msra.mxu0 %v157
  %1417 = vmatprep.subr.mxu0 %v164
  %1418 = vmatpush1.msra.mxu0 %v163
  %1419 = vmatprep.subr.mxu0 %v170
  %1420 = vmatpush1.msra.mxu0 %v169
  %1421 = vmatprep.subr.mxu0 %v176
  %1422 = vmatpush1.msra.mxu0 %v175
  %1423 = vmatprep.subr.mxu0 %v182
  %1424 = vmatpush1.msra.mxu0 %v181
  %1425 = vmatprep.subr.mxu0 %v188
  %1426 = vmatpush1.msra.mxu0 %v187
  %1427 = vmatprep.subr.mxu0 %v194
  %1428 = vmatpush1.msra.mxu0 %v193
  %1429 = vmatprep.subr.mxu0 %v200
  %1430 = vmatpush1.msra.mxu0 %v199
  %1431 = vmatprep.subr.mxu0 %v206
  %1432 = vmatpush1.msra.mxu0 %v205
  %1433 = vmatprep.subr.mxu0 %v212
  %1434 = vmatpush1.msra.mxu0 %v211
  %1435 = vmatprep.subr.mxu0 %v218
  %1436 = vmatpush1.msra.mxu0 %v217
  %1437 = vmatprep.subr.mxu0 %v224
  %1438 = vmatpush1.msra.mxu0 %v223
  %1439 = vmatprep.subr.mxu0 %v230
  %1440 = vmatpush1.msra.mxu0 %v229
  %1441 = vmatprep.subr.mxu0 %v236
  %1442 = vmatpush1.msra.mxu0 %v235
  %1443 = vmatprep.subr.mxu0 %v242
  %1444 = vmatpush1.msra.mxu0 %v241
  %1445 = vmatprep.subr.mxu0 %v248
  %1446 = vmatpush1.msra.mxu0 %v247
  %1447 = vmatprep.subr.mxu0 %v254
  %1448 = vmatpush1.msra.mxu0 %v253
  %1449 = vmatprep.mubr.f32.mxu0 %v1175
  %1450 = vmatmul.mubr.f32.gmra.mrb[0].mxu0 %v1174
  %v1451 = vpop.f32.mrb[0].mxu0
  %v1452 = vadd.f32 %v276, %v1451
  %v1453 = vpop.f32.mrb[0].mxu0
  %v1454 = vadd.f32 %v280, %v1453
  %1455 = vmatprep.mubr.f32.mxu0 %v1177
  %1456 = vmatmul.mubr.f32.gmra.mrb[0].mxu0 %v1176
  %v1457 = vpop.f32.mrb[0].mxu0
  %v1458 = vadd.f32 %v276, %v1457
  %v1459 = vpop.f32.mrb[0].mxu0
  %v1460 = vadd.f32 %v280, %v1459
  %1461 = vmatprep.mubr.f32.mxu0 %v1179
  %1462 = vmatmul.mubr.f32.gmra.mrb[0].mxu0 %v1178
  %v1463 = vpop.f32.mrb[0].mxu0
  %v1464 = vadd.f32 %v276, %v1463
  %v1465 = vpop.f32.mrb[0].mxu0
  %v1466 = vadd.f32 %v280, %v1465
  %1467 = vmatprep.mubr.f32.mxu0 %v1181
  %1468 = vmatmul.mubr.f32.gmra.mrb[0].mxu0 %v1180
  %v1469 = vpop.f32.mrb[0].mxu0
  %v1470 = vadd.f32 %v276, %v1469
  %v1471 = vpop.f32.mrb[0].mxu0
  %v1472 = vadd.f32 %v280, %v1471
  %1473 = vdwg.mxu0
  %v1474 = vadd.f32 %v1183, %v1274
  %v1475 = vadd.f32 %v1184, %v1276
  %v1476 = vadd.f32 %v1189, %v1280
  %v1477 = vadd.f32 %v1190, %v1282
  %v1478 = vadd.f32 %v1195, %v1286
  %v1479 = vadd.f32 %v1196, %v1288
  %v1480 = vadd.f32 %v1201, %v1292
  %v1481 = vadd.f32 %v1202, %v1294
  %v1482 = vxor.u32 %v1474, 2147483648
  %v1483 = vxor.u32 %v1475, 2147483648
  %v1484 = vxor.u32 %v1476, 2147483648
  %v1485 = vxor.u32 %v1477, 2147483648
  %v1486 = vxor.u32 %v1478, 2147483648
  %v1487 = vxor.u32 %v1479, 2147483648
  %v1488 = vxor.u32 %v1480, 2147483648
  %v1489 = vxor.u32 %v1481, 2147483648
  %v1490 = vmul.f32 %v1482, 1.442695
  %v1491 = vpow.pop %v1490
  %v1492 = vmul.f32 %v1483, 1.442695
  %v1493 = vpow.pop %v1492
  %v1494 = vmul.f32 %v1484, 1.442695
  %v1495 = vpow.pop %v1494
  %v1496 = vmul.f32 %v1485, 1.442695
  %v1497 = vpow.pop %v1496
  %v1498 = vmul.f32 %v1486, 1.442695
  %v1499 = vpow.pop %v1498
  %v1500 = vmul.f32 %v1487, 1.442695
  %v1501 = vpow.pop %v1500
  %v1502 = vmul.f32 %v1488, 1.442695
  %v1503 = vpow.pop %v1502
  %v1504 = vmul.f32 %v1489, 1.442695
  %v1505 = vpow.pop %v1504
  %v1506 = vadd.f32 %v1491, 1.0
  %v1507 = vadd.f32 %v1493, 1.0
  %v1508 = vadd.f32 %v1495, 1.0
  %v1509 = vadd.f32 %v1497, 1.0
  %v1510 = vadd.f32 %v1499, 1.0
  %v1511 = vadd.f32 %v1501, 1.0
  %v1512 = vadd.f32 %v1503, 1.0
  %v1513 = vadd.f32 %v1505, 1.0
  %v1514 = vrcp.pop %v1506
  %v1515 = vmul.f32 1.0, %v1514
  %v1516 = vrcp.pop %v1507
  %v1517 = vmul.f32 1.0, %v1516
  %v1518 = vrcp.pop %v1508
  %v1519 = vmul.f32 1.0, %v1518
  %v1520 = vrcp.pop %v1509
  %v1521 = vmul.f32 1.0, %v1520
  %v1522 = vrcp.pop %v1510
  %v1523 = vmul.f32 1.0, %v1522
  %v1524 = vrcp.pop %v1511
  %v1525 = vmul.f32 1.0, %v1524
  %v1526 = vrcp.pop %v1512
  %v1527 = vmul.f32 1.0, %v1526
  %v1528 = vrcp.pop %v1513
  %v1529 = vmul.f32 1.0, %v1528
  %v1530 = vadd.f32 %v1185, %v1363
  %v1531 = vadd.f32 %v1186, %v1365
  %v1532 = vadd.f32 %v1191, %v1369
  %v1533 = vadd.f32 %v1192, %v1371
  %v1534 = vadd.f32 %v1197, %v1375
  %v1535 = vadd.f32 %v1198, %v1377
  %v1536 = vadd.f32 %v1203, %v1381
  %v1537 = vadd.f32 %v1204, %v1383
  %v1538 = vxor.u32 %v1530, 2147483648
  %v1539 = vxor.u32 %v1531, 2147483648
  %v1540 = vxor.u32 %v1532, 2147483648
  %v1541 = vxor.u32 %v1533, 2147483648
  %v1542 = vxor.u32 %v1534, 2147483648
  %v1543 = vxor.u32 %v1535, 2147483648
  %v1544 = vxor.u32 %v1536, 2147483648
  %v1545 = vxor.u32 %v1537, 2147483648
  %v1546 = vmul.f32 %v1538, 1.442695
  %v1547 = vpow.pop %v1546
  %v1548 = vmul.f32 %v1539, 1.442695
  %v1549 = vpow.pop %v1548
  %v1550 = vmul.f32 %v1540, 1.442695
  %v1551 = vpow.pop %v1550
  %v1552 = vmul.f32 %v1541, 1.442695
  %v1553 = vpow.pop %v1552
  %v1554 = vmul.f32 %v1542, 1.442695
  %v1555 = vpow.pop %v1554
  %v1556 = vmul.f32 %v1543, 1.442695
  %v1557 = vpow.pop %v1556
  %v1558 = vmul.f32 %v1544, 1.442695
  %v1559 = vpow.pop %v1558
  %v1560 = vmul.f32 %v1545, 1.442695
  %v1561 = vpow.pop %v1560
  %v1562 = vadd.f32 %v1547, 1.0
  %v1563 = vadd.f32 %v1549, 1.0
  %v1564 = vadd.f32 %v1551, 1.0
  %v1565 = vadd.f32 %v1553, 1.0
  %v1566 = vadd.f32 %v1555, 1.0
  %v1567 = vadd.f32 %v1557, 1.0
  %v1568 = vadd.f32 %v1559, 1.0
  %v1569 = vadd.f32 %v1561, 1.0
  %v1570 = vrcp.pop %v1562
  %v1571 = vmul.f32 1.0, %v1570
  %v1572 = vrcp.pop %v1563
  %v1573 = vmul.f32 1.0, %v1572
  %v1574 = vrcp.pop %v1564
  %v1575 = vmul.f32 1.0, %v1574
  %v1576 = vrcp.pop %v1565
  %v1577 = vmul.f32 1.0, %v1576
  %v1578 = vrcp.pop %v1566
  %v1579 = vmul.f32 1.0, %v1578
  %v1580 = vrcp.pop %v1567
  %v1581 = vmul.f32 1.0, %v1580
  %v1582 = vrcp.pop %v1568
  %v1583 = vmul.f32 1.0, %v1582
  %v1584 = vrcp.pop %v1569
  %v1585 = vmul.f32 1.0, %v1584
  %v1586 = vmul.f32 %v1515, %v1452
  %v1587 = vmul.f32 %v1517, %v1454
  %v1588 = vmul.f32 %v1519, %v1458
  %v1589 = vmul.f32 %v1521, %v1460
  %v1590 = vmul.f32 %v1523, %v1464
  %v1591 = vmul.f32 %v1525, %v1466
  %v1592 = vmul.f32 %v1527, %v1470
  %v1593 = vmul.f32 %v1529, %v1472
  %v1594 = vadd.f32 %v1187, %v1586
  %v1595 = vadd.f32 %v1188, %v1587
  %v1596 = vadd.f32 %v1193, %v1588
  %v1597 = vadd.f32 %v1194, %v1589
  %v1598 = vadd.f32 %v1199, %v1590
  %v1599 = vadd.f32 %v1200, %v1591
  %v1600 = vadd.f32 %v1205, %v1592
  %v1601 = vadd.f32 %v1206, %v1593
  %v1602 = vtanh.pop %v1594
  %v1603 = vtanh.pop %v1595
  %v1604 = vtanh.pop %v1596
  %v1605 = vtanh.pop %v1597
  %v1606 = vtanh.pop %v1598
  %v1607 = vtanh.pop %v1599
  %v1608 = vtanh.pop %v1600
  %v1609 = vtanh.pop %v1601
  %v1610 = vsub.f32 1.0, %v1571
  %v1611 = vsub.f32 1.0, %v1573
  %v1612 = vsub.f32 1.0, %v1575
  %v1613 = vsub.f32 1.0, %v1577
  %v1614 = vsub.f32 1.0, %v1579
  %v1615 = vsub.f32 1.0, %v1581
  %v1616 = vsub.f32 1.0, %v1583
  %v1617 = vsub.f32 1.0, %v1585
  %v1618 = vmul.f32 %v1610, %v1602
  %v1619 = vmul.f32 %v1611, %v1603
  %v1620 = vmul.f32 %v1612, %v1604
  %v1621 = vmul.f32 %v1613, %v1605
  %v1622 = vmul.f32 %v1614, %v1606
  %v1623 = vmul.f32 %v1615, %v1607
  %v1624 = vmul.f32 %v1616, %v1608
  %v1625 = vmul.f32 %v1617, %v1609
  %v1626 = vmul.f32 %v1571, %v1174
  %v1627 = vmul.f32 %v1573, %v1175
  %v1628 = vmul.f32 %v1575, %v1176
  %v1629 = vmul.f32 %v1577, %v1177
  %v1630 = vmul.f32 %v1579, %v1178
  %v1631 = vmul.f32 %v1581, %v1179
  %v1632 = vmul.f32 %v1583, %v1180
  %v1633 = vmul.f32 %v1585, %v1181
  %v1634 = vadd.f32 %v1618, %v1626
  %v1635 = vadd.f32 %v1619, %v1627
  %v1636 = vadd.f32 %v1620, %v1628
  %v1637 = vadd.f32 %v1621, %v1629
  %v1638 = vadd.f32 %v1622, %v1630
  %v1639 = vadd.f32 %v1623, %v1631
  %v1640 = vadd.f32 %v1624, %v1632
  %v1641 = vadd.f32 %v1625, %v1633
  %s1642 = scalar_lea.vmem %s1, 576
  %v1643 = vld [vmem:[%s1642] sm:$0xff]
  %v1644 = vld [vmem:[%s1642 + $0x8] sm:$0xff]
  %v1645 = vld [vmem:[%s1642 + $0x10] sm:$0xff]
  %v1646 = vld [vmem:[%s1642 + $0x18] sm:$0xff]
  %v1647 = vld [vmem:[%s1642 + $0x20] sm:$0xff]
  %v1648 = vld [vmem:[%s1642 + $0x28] sm:$0xff]
  %v1649 = vld [vmem:[%s1642 + $0x30] sm:$0xff]
  %v1650 = vld [vmem:[%s1642 + $0x38] sm:$0xff]
  %v1651 = vld [vmem:[%s1642 + $0x40] sm:$0xff]
  %v1652 = vld [vmem:[%s1642 + $0x48] sm:$0xff]
  %v1653 = vld [vmem:[%s1642 + $0x50] sm:$0xff]
  %v1654 = vld [vmem:[%s1642 + $0x58] sm:$0xff]
  %v1655 = vld [vmem:[%s1642 + $0x60] sm:$0xff]
  %v1656 = vld [vmem:[%s1642 + $0x68] sm:$0xff]
  %v1657 = vld [vmem:[%s1642 + $0x70] sm:$0xff]
  %v1658 = vld [vmem:[%s1642 + $0x78] sm:$0xff]
  %v1659 = vld [vmem:[%s1642 + $0x80] sm:$0xff]
  %v1660 = vld [vmem:[%s1642 + $0x88] sm:$0xff]
  %v1661 = vld [vmem:[%s1642 + $0x90] sm:$0xff]
  %v1662 = vld [vmem:[%s1642 + $0x98] sm:$0xff]
  %v1663 = vld [vmem:[%s1642 + $0xa0] sm:$0xff]
  %v1664 = vld [vmem:[%s1642 + $0xa8] sm:$0xff]
  %v1665 = vld [vmem:[%s1642 + $0xb0] sm:$0xff]
  %v1666 = vld [vmem:[%s1642 + $0xb8] sm:$0xff]
  %1667 = vmatprep.subr.mxu0 %v64
  %1668 = vmatpush1.msra.mxu0 %v63
  %1669 = vmatprep.subr.mxu0 %v70
  %1670 = vmatpush1.msra.mxu0 %v69
  %1671 = vmatprep.subr.mxu0 %v76
  %1672 = vmatpush1.msra.mxu0 %v75
  %1673 = vmatprep.subr.mxu0 %v82
  %1674 = vmatpush1.msra.mxu0 %v81
  %1675 = vmatprep.subr.mxu0 %v88
  %1676 = vmatpush1.msra.mxu0 %v87
  %1677 = vmatprep.subr.mxu0 %v94
  %1678 = vmatpush1.msra.mxu0 %v93
  %1679 = vmatprep.subr.mxu0 %v100
  %1680 = vmatpush1.msra.mxu0 %v99
  %1681 = vmatprep.subr.mxu0 %v106
  %1682 = vmatpush1.msra.mxu0 %v105
  %1683 = vmatprep.subr.mxu0 %v112
  %1684 = vmatpush1.msra.mxu0 %v111
  %1685 = vmatprep.subr.mxu0 %v118
  %1686 = vmatpush1.msra.mxu0 %v117
  %1687 = vmatprep.subr.mxu0 %v124
  %1688 = vmatpush1.msra.mxu0 %v123
  %1689 = vmatprep.subr.mxu0 %v130
  %1690 = vmatpush1.msra.mxu0 %v129
  %1691 = vmatprep.subr.mxu0 %v136
  %1692 = vmatpush1.msra.mxu0 %v135
  %1693 = vmatprep.subr.mxu0 %v142
  %1694 = vmatpush1.msra.mxu0 %v141
  %1695 = vmatprep.subr.mxu0 %v148
  %1696 = vmatpush1.msra.mxu0 %v147
  %1697 = vmatprep.subr.mxu0 %v154
  %1698 = vmatpush1.msra.mxu0 %v153
  %1699 = vmatprep.subr.mxu0 %v160
  %1700 = vmatpush1.msra.mxu0 %v159
  %1701 = vmatprep.subr.mxu0 %v166
  %1702 = vmatpush1.msra.mxu0 %v165
  %1703 = vmatprep.subr.mxu0 %v172
  %1704 = vmatpush1.msra.mxu0 %v171
  %1705 = vmatprep.subr.mxu0 %v178
  %1706 = vmatpush1.msra.mxu0 %v177
  %1707 = vmatprep.subr.mxu0 %v184
  %1708 = vmatpush1.msra.mxu0 %v183
  %1709 = vmatprep.subr.mxu0 %v190
  %1710 = vmatpush1.msra.mxu0 %v189
  %1711 = vmatprep.subr.mxu0 %v196
  %1712 = vmatpush1.msra.mxu0 %v195
  %1713 = vmatprep.subr.mxu0 %v202
  %1714 = vmatpush1.msra.mxu0 %v201
  %1715 = vmatprep.subr.mxu0 %v208
  %1716 = vmatpush1.msra.mxu0 %v207
  %1717 = vmatprep.subr.mxu0 %v214
  %1718 = vmatpush1.msra.mxu0 %v213
  %1719 = vmatprep.subr.mxu0 %v220
  %1720 = vmatpush1.msra.mxu0 %v219
  %1721 = vmatprep.subr.mxu0 %v226
  %1722 = vmatpush1.msra.mxu0 %v225
  %1723 = vmatprep.subr.mxu0 %v232
  %1724 = vmatpush1.msra.mxu0 %v231
  %1725 = vmatprep.subr.mxu0 %v238
  %1726 = vmatpush1.msra.mxu0 %v237
  %1727 = vmatprep.subr.mxu0 %v244
  %1728 = vmatpush1.msra.mxu0 %v243
  %1729 = vmatprep.subr.mxu0 %v250
  %1730 = vmatpush1.msra.mxu0 %v249
  %1731 = vmatprep.mubr.f32.mxu0 %v1635
  %1732 = vmatmul.mubr.f32.gmra.mrb[0].mxu0 %v1634
  %v1733 = vpop.f32.mrb[0].mxu0
  %v1734 = vadd.f32 %v260, %v1733
  %v1735 = vpop.f32.mrb[0].mxu0
  %v1736 = vadd.f32 %v264, %v1735
  %1737 = vmatprep.mubr.f32.mxu0 %v1637
  %1738 = vmatmul.mubr.f32.gmra.mrb[0].mxu0 %v1636
  %v1739 = vpop.f32.mrb[0].mxu0
  %v1740 = vadd.f32 %v260, %v1739
  %v1741 = vpop.f32.mrb[0].mxu0
  %v1742 = vadd.f32 %v264, %v1741
  %1743 = vmatprep.mubr.f32.mxu0 %v1639
  %1744 = vmatmul.mubr.f32.gmra.mrb[0].mxu0 %v1638
  %v1745 = vpop.f32.mrb[0].mxu0
  %v1746 = vadd.f32 %v260, %v1745
  %v1747 = vpop.f32.mrb[0].mxu0
  %v1748 = vadd.f32 %v264, %v1747
  %1749 = vmatprep.mubr.f32.mxu0 %v1641
  %1750 = vmatmul.mubr.f32.gmra.mrb[0].mxu0 %v1640
  %v1751 = vpop.f32.mrb[0].mxu0
  %v1752 = vadd.f32 %v260, %v1751
  %v1753 = vpop.f32.mrb[0].mxu0
  %v1754 = vadd.f32 %v264, %v1753
  %1755 = vdwg.mxu0
  %1756 = vmatprep.subr.mxu0 %v66
  %1757 = vmatpush1.msra.mxu0 %v65
  %1758 = vmatprep.subr.mxu0 %v72
  %1759 = vmatpush1.msra.mxu0 %v71
  %1760 = vmatprep.subr.mxu0 %v78
  %1761 = vmatpush1.msra.mxu0 %v77
  %1762 = vmatprep.subr.mxu0 %v84
  %1763 = vmatpush1.msra.mxu0 %v83
  %1764 = vmatprep.subr.mxu0 %v90
  %1765 = vmatpush1.msra.mxu0 %v89
  %1766 = vmatprep.subr.mxu0 %v96
  %1767 = vmatpush1.msra.mxu0 %v95
  %1768 = vmatprep.subr.mxu0 %v102
  %1769 = vmatpush1.msra.mxu0 %v101
  %1770 = vmatprep.subr.mxu0 %v108
  %1771 = vmatpush1.msra.mxu0 %v107
  %1772 = vmatprep.subr.mxu0 %v114
  %1773 = vmatpush1.msra.mxu0 %v113
  %1774 = vmatprep.subr.mxu0 %v120
  %1775 = vmatpush1.msra.mxu0 %v119
  %1776 = vmatprep.subr.mxu0 %v126
  %1777 = vmatpush1.msra.mxu0 %v125
  %1778 = vmatprep.subr.mxu0 %v132
  %1779 = vmatpush1.msra.mxu0 %v131
  %1780 = vmatprep.subr.mxu0 %v138
  %1781 = vmatpush1.msra.mxu0 %v137
  %1782 = vmatprep.subr.mxu0 %v144
  %1783 = vmatpush1.msra.mxu0 %v143
  %1784 = vmatprep.subr.mxu0 %v150
  %1785 = vmatpush1.msra.mxu0 %v149
  %1786 = vmatprep.subr.mxu0 %v156
  %1787 = vmatpush1.msra.mxu0 %v155
  %1788 = vmatprep.subr.mxu0 %v162
  %1789 = vmatpush1.msra.mxu0 %v161
  %1790 = vmatprep.subr.mxu0 %v168
  %1791 = vmatpush1.msra.mxu0 %v167
  %1792 = vmatprep.subr.mxu0 %v174
  %1793 = vmatpush1.msra.mxu0 %v173
  %1794 = vmatprep.subr.mxu0 %v180
  %1795 = vmatpush1.msra.mxu0 %v179
  %1796 = vmatprep.subr.mxu0 %v186
  %1797 = vmatpush1.msra.mxu0 %v185
  %1798 = vmatprep.subr.mxu0 %v192
  %1799 = vmatpush1.msra.mxu0 %v191
  %1800 = vmatprep.subr.mxu0 %v198
  %1801 = vmatpush1.msra.mxu0 %v197
  %1802 = vmatprep.subr.mxu0 %v204
  %1803 = vmatpush1.msra.mxu0 %v203
  %1804 = vmatprep.subr.mxu0 %v210
  %1805 = vmatpush1.msra.mxu0 %v209
  %1806 = vmatprep.subr.mxu0 %v216
  %1807 = vmatpush1.msra.mxu0 %v215
  %1808 = vmatprep.subr.mxu0 %v222
  %1809 = vmatpush1.msra.mxu0 %v221
  %1810 = vmatprep.subr.mxu0 %v228
  %1811 = vmatpush1.msra.mxu0 %v227
  %1812 = vmatprep.subr.mxu0 %v234
  %1813 = vmatpush1.msra.mxu0 %v233
  %1814 = vmatprep.subr.mxu0 %v240
  %1815 = vmatpush1.msra.mxu0 %v239
  %1816 = vmatprep.subr.mxu0 %v246
  %1817 = vmatpush1.msra.mxu0 %v245
  %1818 = vmatprep.subr.mxu0 %v252
  %1819 = vmatpush1.msra.mxu0 %v251
  %1820 = vmatprep.mubr.f32.mxu0 %v1635
  %1821 = vmatmul.mubr.f32.gmra.mrb[0].mxu0 %v1634
  %v1822 = vpop.f32.mrb[0].mxu0
  %v1823 = vadd.f32 %v268, %v1822
  %v1824 = vpop.f32.mrb[0].mxu0
  %v1825 = vadd.f32 %v272, %v1824
  %1826 = vmatprep.mubr.f32.mxu0 %v1637
  %1827 = vmatmul.mubr.f32.gmra.mrb[0].mxu0 %v1636
  %v1828 = vpop.f32.mrb[0].mxu0
  %v1829 = vadd.f32 %v268, %v1828
  %v1830 = vpop.f32.mrb[0].mxu0
  %v1831 = vadd.f32 %v272, %v1830
  %1832 = vmatprep.mubr.f32.mxu0 %v1639
  %1833 = vmatmul.mubr.f32.gmra.mrb[0].mxu0 %v1638
  %v1834 = vpop.f32.mrb[0].mxu0
  %v1835 = vadd.f32 %v268, %v1834
  %v1836 = vpop.f32.mrb[0].mxu0
  %v1837 = vadd.f32 %v272, %v1836
  %1838 = vmatprep.mubr.f32.mxu0 %v1641
  %1839 = vmatmul.mubr.f32.gmra.mrb[0].mxu0 %v1640
  %v1840 = vpop.f32.mrb[0].mxu0
  %v1841 = vadd.f32 %v268, %v1840
  %v1842 = vpop.f32.mrb[0].mxu0
  %v1843 = vadd.f32 %v272, %v1842
  %1844 = vdwg.mxu0
  %1845 = vmatprep.subr.mxu0 %v68
  %1846 = vmatpush1.msra.mxu0 %v67
  %1847 = vmatprep.subr.mxu0 %v74
  %1848 = vmatpush1.msra.mxu0 %v73
  %1849 = vmatprep.subr.mxu0 %v80
  %1850 = vmatpush1.msra.mxu0 %v79
  %1851 = vmatprep.subr.mxu0 %v86
  %1852 = vmatpush1.msra.mxu0 %v85
  %1853 = vmatprep.subr.mxu0 %v92
  %1854 = vmatpush1.msra.mxu0 %v91
  %1855 = vmatprep.subr.mxu0 %v98
  %1856 = vmatpush1.msra.mxu0 %v97
  %1857 = vmatprep.subr.mxu0 %v104
  %1858 = vmatpush1.msra.mxu0 %v103
  %1859 = vmatprep.subr.mxu0 %v110
  %1860 = vmatpush1.msra.mxu0 %v109
  %1861 = vmatprep.subr.mxu0 %v116
  %1862 = vmatpush1.msra.mxu0 %v115
  %1863 = vmatprep.subr.mxu0 %v122
  %1864 = vmatpush1.msra.mxu0 %v121
  %1865 = vmatprep.subr.mxu0 %v128
  %1866 = vmatpush1.msra.mxu0 %v127
  %1867 = vmatprep.subr.mxu0 %v134
  %1868 = vmatpush1.msra.mxu0 %v133
  %1869 = vmatprep.subr.mxu0 %v140
  %1870 = vmatpush1.msra.mxu0 %v139
  %1871 = vmatprep.subr.mxu0 %v146
  %1872 = vmatpush1.msra.mxu0 %v145
  %1873 = vmatprep.subr.mxu0 %v152
  %1874 = vmatpush1.msra.mxu0 %v151
  %1875 = vmatprep.subr.mxu0 %v158
  %1876 = vmatpush1.msra.mxu0 %v157
  %1877 = vmatprep.subr.mxu0 %v164
  %1878 = vmatpush1.msra.mxu0 %v163
  %1879 = vmatprep.subr.mxu0 %v170
  %1880 = vmatpush1.msra.mxu0 %v169
  %1881 = vmatprep.subr.mxu0 %v176
  %1882 = vmatpush1.msra.mxu0 %v175
  %1883 = vmatprep.subr.mxu0 %v182
  %1884 = vmatpush1.msra.mxu0 %v181
  %1885 = vmatprep.subr.mxu0 %v188
  %1886 = vmatpush1.msra.mxu0 %v187
  %1887 = vmatprep.subr.mxu0 %v194
  %1888 = vmatpush1.msra.mxu0 %v193
  %1889 = vmatprep.subr.mxu0 %v200
  %1890 = vmatpush1.msra.mxu0 %v199
  %1891 = vmatprep.subr.mxu0 %v206
  %1892 = vmatpush1.msra.mxu0 %v205
  %1893 = vmatprep.subr.mxu0 %v212
  %1894 = vmatpush1.msra.mxu0 %v211
  %1895 = vmatprep.subr.mxu0 %v218
  %1896 = vmatpush1.msra.mxu0 %v217
  %1897 = vmatprep.subr.mxu0 %v224
  %1898 = vmatpush1.msra.mxu0 %v223
  %1899 = vmatprep.subr.mxu0 %v230
  %1900 = vmatpush1.msra.mxu0 %v229
  %1901 = vmatprep.subr.mxu0 %v236
  %1902 = vmatpush1.msra.mxu0 %v235
  %1903 = vmatprep.subr.mxu0 %v242
  %1904 = vmatpush1.msra.mxu0 %v241
  %1905 = vmatprep.subr.mxu0 %v248
  %1906 = vmatpush1.msra.mxu0 %v247
  %1907 = vmatprep.subr.mxu0 %v254
  %1908 = vmatpush1.msra.mxu0 %v253
  %1909 = vmatprep.mubr.f32.mxu0 %v1635
  %1910 = vmatmul.mubr.f32.gmra.mrb[0].mxu0 %v1634
  %v1911 = vpop.f32.mrb[0].mxu0
  %v1912 = vadd.f32 %v276, %v1911
  %v1913 = vpop.f32.mrb[0].mxu0
  %v1914 = vadd.f32 %v280, %v1913
  %1915 = vmatprep.mubr.f32.mxu0 %v1637
  %1916 = vmatmul.mubr.f32.gmra.mrb[0].mxu0 %v1636
  %v1917 = vpop.f32.mrb[0].mxu0
  %v1918 = vadd.f32 %v276, %v1917
  %v1919 = vpop.f32.mrb[0].mxu0
  %v1920 = vadd.f32 %v280, %v1919
  %1921 = vmatprep.mubr.f32.mxu0 %v1639
  %1922 = vmatmul.mubr.f32.gmra.mrb[0].mxu0 %v1638
  %v1923 = vpop.f32.mrb[0].mxu0
  %v1924 = vadd.f32 %v276, %v1923
  %v1925 = vpop.f32.mrb[0].mxu0
  %v1926 = vadd.f32 %v280, %v1925
  %1927 = vmatprep.mubr.f32.mxu0 %v1641
  %1928 = vmatmul.mubr.f32.gmra.mrb[0].mxu0 %v1640
  %v1929 = vpop.f32.mrb[0].mxu0
  %v1930 = vadd.f32 %v276, %v1929
  %v1931 = vpop.f32.mrb[0].mxu0
  %v1932 = vadd.f32 %v280, %v1931
  %1933 = vdwg.mxu0
  %v1934 = vadd.f32 %v1643, %v1734
  %v1935 = vadd.f32 %v1644, %v1736
  %v1936 = vadd.f32 %v1649, %v1740
  %v1937 = vadd.f32 %v1650, %v1742
  %v1938 = vadd.f32 %v1655, %v1746
  %v1939 = vadd.f32 %v1656, %v1748
  %v1940 = vadd.f32 %v1661, %v1752
  %v1941 = vadd.f32 %v1662, %v1754
  %v1942 = vxor.u32 %v1934, 2147483648
  %v1943 = vxor.u32 %v1935, 2147483648
  %v1944 = vxor.u32 %v1936, 2147483648
  %v1945 = vxor.u32 %v1937, 2147483648
  %v1946 = vxor.u32 %v1938, 2147483648
  %v1947 = vxor.u32 %v1939, 2147483648
  %v1948 = vxor.u32 %v1940, 2147483648
  %v1949 = vxor.u32 %v1941, 2147483648
  %v1950 = vmul.f32 %v1942, 1.442695
  %v1951 = vpow.pop %v1950
  %v1952 = vmul.f32 %v1943, 1.442695
  %v1953 = vpow.pop %v1952
  %v1954 = vmul.f32 %v1944, 1.442695
  %v1955 = vpow.pop %v1954
  %v1956 = vmul.f32 %v1945, 1.442695
  %v1957 = vpow.pop %v1956
  %v1958 = vmul.f32 %v1946, 1.442695
  %v1959 = vpow.pop %v1958
  %v1960 = vmul.f32 %v1947, 1.442695
  %v1961 = vpow.pop %v1960
  %v1962 = vmul.f32 %v1948, 1.442695
  %v1963 = vpow.pop %v1962
  %v1964 = vmul.f32 %v1949, 1.442695
  %v1965 = vpow.pop %v1964
  %v1966 = vadd.f32 %v1951, 1.0
  %v1967 = vadd.f32 %v1953, 1.0
  %v1968 = vadd.f32 %v1955, 1.0
  %v1969 = vadd.f32 %v1957, 1.0
  %v1970 = vadd.f32 %v1959, 1.0
  %v1971 = vadd.f32 %v1961, 1.0
  %v1972 = vadd.f32 %v1963, 1.0
  %v1973 = vadd.f32 %v1965, 1.0
  %v1974 = vrcp.pop %v1966
  %v1975 = vmul.f32 1.0, %v1974
  %v1976 = vrcp.pop %v1967
  %v1977 = vmul.f32 1.0, %v1976
  %v1978 = vrcp.pop %v1968
  %v1979 = vmul.f32 1.0, %v1978
  %v1980 = vrcp.pop %v1969
  %v1981 = vmul.f32 1.0, %v1980
  %v1982 = vrcp.pop %v1970
  %v1983 = vmul.f32 1.0, %v1982
  %v1984 = vrcp.pop %v1971
  %v1985 = vmul.f32 1.0, %v1984
  %v1986 = vrcp.pop %v1972
  %v1987 = vmul.f32 1.0, %v1986
  %v1988 = vrcp.pop %v1973
  %v1989 = vmul.f32 1.0, %v1988
  %v1990 = vadd.f32 %v1645, %v1823
  %v1991 = vadd.f32 %v1646, %v1825
  %v1992 = vadd.f32 %v1651, %v1829
  %v1993 = vadd.f32 %v1652, %v1831
  %v1994 = vadd.f32 %v1657, %v1835
  %v1995 = vadd.f32 %v1658, %v1837
  %v1996 = vadd.f32 %v1663, %v1841
  %v1997 = vadd.f32 %v1664, %v1843
  %v1998 = vxor.u32 %v1990, 2147483648
  %v1999 = vxor.u32 %v1991, 2147483648
  %v2000 = vxor.u32 %v1992, 2147483648
  %v2001 = vxor.u32 %v1993, 2147483648
  %v2002 = vxor.u32 %v1994, 2147483648
  %v2003 = vxor.u32 %v1995, 2147483648
  %v2004 = vxor.u32 %v1996, 2147483648
  %v2005 = vxor.u32 %v1997, 2147483648
  %v2006 = vmul.f32 %v1998, 1.442695
  %v2007 = vpow.pop %v2006
  %v2008 = vmul.f32 %v1999, 1.442695
  %v2009 = vpow.pop %v2008
  %v2010 = vmul.f32 %v2000, 1.442695
  %v2011 = vpow.pop %v2010
  %v2012 = vmul.f32 %v2001, 1.442695
  %v2013 = vpow.pop %v2012
  %v2014 = vmul.f32 %v2002, 1.442695
  %v2015 = vpow.pop %v2014
  %v2016 = vmul.f32 %v2003, 1.442695
  %v2017 = vpow.pop %v2016
  %v2018 = vmul.f32 %v2004, 1.442695
  %v2019 = vpow.pop %v2018
  %v2020 = vmul.f32 %v2005, 1.442695
  %v2021 = vpow.pop %v2020
  %v2022 = vadd.f32 %v2007, 1.0
  %v2023 = vadd.f32 %v2009, 1.0
  %v2024 = vadd.f32 %v2011, 1.0
  %v2025 = vadd.f32 %v2013, 1.0
  %v2026 = vadd.f32 %v2015, 1.0
  %v2027 = vadd.f32 %v2017, 1.0
  %v2028 = vadd.f32 %v2019, 1.0
  %v2029 = vadd.f32 %v2021, 1.0
  %v2030 = vrcp.pop %v2022
  %v2031 = vmul.f32 1.0, %v2030
  %v2032 = vrcp.pop %v2023
  %v2033 = vmul.f32 1.0, %v2032
  %v2034 = vrcp.pop %v2024
  %v2035 = vmul.f32 1.0, %v2034
  %v2036 = vrcp.pop %v2025
  %v2037 = vmul.f32 1.0, %v2036
  %v2038 = vrcp.pop %v2026
  %v2039 = vmul.f32 1.0, %v2038
  %v2040 = vrcp.pop %v2027
  %v2041 = vmul.f32 1.0, %v2040
  %v2042 = vrcp.pop %v2028
  %v2043 = vmul.f32 1.0, %v2042
  %v2044 = vrcp.pop %v2029
  %v2045 = vmul.f32 1.0, %v2044
  %v2046 = vmul.f32 %v1975, %v1912
  %v2047 = vmul.f32 %v1977, %v1914
  %v2048 = vmul.f32 %v1979, %v1918
  %v2049 = vmul.f32 %v1981, %v1920
  %v2050 = vmul.f32 %v1983, %v1924
  %v2051 = vmul.f32 %v1985, %v1926
  %v2052 = vmul.f32 %v1987, %v1930
  %v2053 = vmul.f32 %v1989, %v1932
  %v2054 = vadd.f32 %v1647, %v2046
  %v2055 = vadd.f32 %v1648, %v2047
  %v2056 = vadd.f32 %v1653, %v2048
  %v2057 = vadd.f32 %v1654, %v2049
  %v2058 = vadd.f32 %v1659, %v2050
  %v2059 = vadd.f32 %v1660, %v2051
  %v2060 = vadd.f32 %v1665, %v2052
  %v2061 = vadd.f32 %v1666, %v2053
  %v2062 = vtanh.pop %v2054
  %v2063 = vtanh.pop %v2055
  %v2064 = vtanh.pop %v2056
  %v2065 = vtanh.pop %v2057
  %v2066 = vtanh.pop %v2058
  %v2067 = vtanh.pop %v2059
  %v2068 = vtanh.pop %v2060
  %v2069 = vtanh.pop %v2061
  %v2070 = vsub.f32 1.0, %v2031
  %v2071 = vsub.f32 1.0, %v2033
  %v2072 = vsub.f32 1.0, %v2035
  %v2073 = vsub.f32 1.0, %v2037
  %v2074 = vsub.f32 1.0, %v2039
  %v2075 = vsub.f32 1.0, %v2041
  %v2076 = vsub.f32 1.0, %v2043
  %v2077 = vsub.f32 1.0, %v2045
  %v2078 = vmul.f32 %v2070, %v2062
  %v2079 = vmul.f32 %v2071, %v2063
  %v2080 = vmul.f32 %v2072, %v2064
  %v2081 = vmul.f32 %v2073, %v2065
  %v2082 = vmul.f32 %v2074, %v2066
  %v2083 = vmul.f32 %v2075, %v2067
  %v2084 = vmul.f32 %v2076, %v2068
  %v2085 = vmul.f32 %v2077, %v2069
  %v2086 = vmul.f32 %v2031, %v1634
  %v2087 = vmul.f32 %v2033, %v1635
  %v2088 = vmul.f32 %v2035, %v1636
  %v2089 = vmul.f32 %v2037, %v1637
  %v2090 = vmul.f32 %v2039, %v1638
  %v2091 = vmul.f32 %v2041, %v1639
  %v2092 = vmul.f32 %v2043, %v1640
  %v2093 = vmul.f32 %v2045, %v1641
  %v2094 = vadd.f32 %v2078, %v2086
  %v2095 = vadd.f32 %v2079, %v2087
  %v2096 = vadd.f32 %v2080, %v2088
  %v2097 = vadd.f32 %v2081, %v2089
  %v2098 = vadd.f32 %v2082, %v2090
  %v2099 = vadd.f32 %v2083, %v2091
  %v2100 = vadd.f32 %v2084, %v2092
  %v2101 = vadd.f32 %v2085, %v2093
  %s2102 = scalar_lea.vmem %s1, 768
  %v2103 = vld [vmem:[%s2102] sm:$0xff]
  %v2104 = vld [vmem:[%s2102 + $0x8] sm:$0xff]
  %v2105 = vld [vmem:[%s2102 + $0x10] sm:$0xff]
  %v2106 = vld [vmem:[%s2102 + $0x18] sm:$0xff]
  %v2107 = vld [vmem:[%s2102 + $0x20] sm:$0xff]
  %v2108 = vld [vmem:[%s2102 + $0x28] sm:$0xff]
  %v2109 = vld [vmem:[%s2102 + $0x30] sm:$0xff]
  %v2110 = vld [vmem:[%s2102 + $0x38] sm:$0xff]
  %v2111 = vld [vmem:[%s2102 + $0x40] sm:$0xff]
  %v2112 = vld [vmem:[%s2102 + $0x48] sm:$0xff]
  %v2113 = vld [vmem:[%s2102 + $0x50] sm:$0xff]
  %v2114 = vld [vmem:[%s2102 + $0x58] sm:$0xff]
  %v2115 = vld [vmem:[%s2102 + $0x60] sm:$0xff]
  %v2116 = vld [vmem:[%s2102 + $0x68] sm:$0xff]
  %v2117 = vld [vmem:[%s2102 + $0x70] sm:$0xff]
  %v2118 = vld [vmem:[%s2102 + $0x78] sm:$0xff]
  %v2119 = vld [vmem:[%s2102 + $0x80] sm:$0xff]
  %v2120 = vld [vmem:[%s2102 + $0x88] sm:$0xff]
  %v2121 = vld [vmem:[%s2102 + $0x90] sm:$0xff]
  %v2122 = vld [vmem:[%s2102 + $0x98] sm:$0xff]
  %v2123 = vld [vmem:[%s2102 + $0xa0] sm:$0xff]
  %v2124 = vld [vmem:[%s2102 + $0xa8] sm:$0xff]
  %v2125 = vld [vmem:[%s2102 + $0xb0] sm:$0xff]
  %v2126 = vld [vmem:[%s2102 + $0xb8] sm:$0xff]
  %2127 = vmatprep.subr.mxu0 %v64
  %2128 = vmatpush1.msra.mxu0 %v63
  %2129 = vmatprep.subr.mxu0 %v70
  %2130 = vmatpush1.msra.mxu0 %v69
  %2131 = vmatprep.subr.mxu0 %v76
  %2132 = vmatpush1.msra.mxu0 %v75
  %2133 = vmatprep.subr.mxu0 %v82
  %2134 = vmatpush1.msra.mxu0 %v81
  %2135 = vmatprep.subr.mxu0 %v88
  %2136 = vmatpush1.msra.mxu0 %v87
  %2137 = vmatprep.subr.mxu0 %v94
  %2138 = vmatpush1.msra.mxu0 %v93
  %2139 = vmatprep.subr.mxu0 %v100
  %2140 = vmatpush1.msra.mxu0 %v99
  %2141 = vmatprep.subr.mxu0 %v106
  %2142 = vmatpush1.msra.mxu0 %v105
  %2143 = vmatprep.subr.mxu0 %v112
  %2144 = vmatpush1.msra.mxu0 %v111
  %2145 = vmatprep.subr.mxu0 %v118
  %2146 = vmatpush1.msra.mxu0 %v117
  %2147 = vmatprep.subr.mxu0 %v124
  %2148 = vmatpush1.msra.mxu0 %v123
  %2149 = vmatprep.subr.mxu0 %v130
  %2150 = vmatpush1.msra.mxu0 %v129
  %2151 = vmatprep.subr.mxu0 %v136
  %2152 = vmatpush1.msra.mxu0 %v135
  %2153 = vmatprep.subr.mxu0 %v142
  %2154 = vmatpush1.msra.mxu0 %v141
  %2155 = vmatprep.subr.mxu0 %v148
  %2156 = vmatpush1.msra.mxu0 %v147
  %2157 = vmatprep.subr.mxu0 %v154
  %2158 = vmatpush1.msra.mxu0 %v153
  %2159 = vmatprep.subr.mxu0 %v160
  %2160 = vmatpush1.msra.mxu0 %v159
  %2161 = vmatprep.subr.mxu0 %v166
  %2162 = vmatpush1.msra.mxu0 %v165
  %2163 = vmatprep.subr.mxu0 %v172
  %2164 = vmatpush1.msra.mxu0 %v171
  %2165 = vmatprep.subr.mxu0 %v178
  %2166 = vmatpush1.msra.mxu0 %v177
  %2167 = vmatprep.subr.mxu0 %v184
  %2168 = vmatpush1.msra.mxu0 %v183
  %2169 = vmatprep.subr.mxu0 %v190
  %2170 = vmatpush1.msra.mxu0 %v189
  %2171 = vmatprep.subr.mxu0 %v196
  %2172 = vmatpush1.msra.mxu0 %v195
  %2173 = vmatprep.subr.mxu0 %v202
  %2174 = vmatpush1.msra.mxu0 %v201
  %2175 = vmatprep.subr.mxu0 %v208
  %2176 = vmatpush1.msra.mxu0 %v207
  %2177 = vmatprep.subr.mxu0 %v214
  %2178 = vmatpush1.msra.mxu0 %v213
  %2179 = vmatprep.subr.mxu0 %v220
  %2180 = vmatpush1.msra.mxu0 %v219
  %2181 = vmatprep.subr.mxu0 %v226
  %2182 = vmatpush1.msra.mxu0 %v225
  %2183 = vmatprep.subr.mxu0 %v232
  %2184 = vmatpush1.msra.mxu0 %v231
  %2185 = vmatprep.subr.mxu0 %v238
  %2186 = vmatpush1.msra.mxu0 %v237
  %2187 = vmatprep.subr.mxu0 %v244
  %2188 = vmatpush1.msra.mxu0 %v243
  %2189 = vmatprep.subr.mxu0 %v250
  %2190 = vmatpush1.msra.mxu0 %v249
  %2191 = vmatprep.mubr.f32.mxu0 %v2095
  %2192 = vmatmul.mubr.f32.gmra.mrb[0].mxu0 %v2094
  %v2193 = vpop.f32.mrb[0].mxu0
  %v2194 = vadd.f32 %v260, %v2193
  %v2195 = vpop.f32.mrb[0].mxu0
  %v2196 = vadd.f32 %v264, %v2195
  %2197 = vmatprep.mubr.f32.mxu0 %v2097
  %2198 = vmatmul.mubr.f32.gmra.mrb[0].mxu0 %v2096
  %v2199 = vpop.f32.mrb[0].mxu0
  %v2200 = vadd.f32 %v260, %v2199
  %v2201 = vpop.f32.mrb[0].mxu0
  %v2202 = vadd.f32 %v264, %v2201
  %2203 = vmatprep.mubr.f32.mxu0 %v2099
  %2204 = vmatmul.mubr.f32.gmra.mrb[0].mxu0 %v2098
  %v2205 = vpop.f32.mrb[0].mxu0
  %v2206 = vadd.f32 %v260, %v2205
  %v2207 = vpop.f32.mrb[0].mxu0
  %v2208 = vadd.f32 %v264, %v2207
  %2209 = vmatprep.mubr.f32.mxu0 %v2101
  %2210 = vmatmul.mubr.f32.gmra.mrb[0].mxu0 %v2100
  %v2211 = vpop.f32.mrb[0].mxu0
  %v2212 = vadd.f32 %v260, %v2211
  %v2213 = vpop.f32.mrb[0].mxu0
  %v2214 = vadd.f32 %v264, %v2213
  %2215 = vdwg.mxu0
  %2216 = vmatprep.subr.mxu0 %v66
  %2217 = vmatpush1.msra.mxu0 %v65
  %2218 = vmatprep.subr.mxu0 %v72
  %2219 = vmatpush1.msra.mxu0 %v71
  %2220 = vmatprep.subr.mxu0 %v78
  %2221 = vmatpush1.msra.mxu0 %v77
  %2222 = vmatprep.subr.mxu0 %v84
  %2223 = vmatpush1.msra.mxu0 %v83
  %2224 = vmatprep.subr.mxu0 %v90
  %2225 = vmatpush1.msra.mxu0 %v89
  %2226 = vmatprep.subr.mxu0 %v96
  %2227 = vmatpush1.msra.mxu0 %v95
  %2228 = vmatprep.subr.mxu0 %v102
  %2229 = vmatpush1.msra.mxu0 %v101
  %2230 = vmatprep.subr.mxu0 %v108
  %2231 = vmatpush1.msra.mxu0 %v107
  %2232 = vmatprep.subr.mxu0 %v114
  %2233 = vmatpush1.msra.mxu0 %v113
  %2234 = vmatprep.subr.mxu0 %v120
  %2235 = vmatpush1.msra.mxu0 %v119
  %2236 = vmatprep.subr.mxu0 %v126
  %2237 = vmatpush1.msra.mxu0 %v125
  %2238 = vmatprep.subr.mxu0 %v132
  %2239 = vmatpush1.msra.mxu0 %v131
  %2240 = vmatprep.subr.mxu0 %v138
  %2241 = vmatpush1.msra.mxu0 %v137
  %2242 = vmatprep.subr.mxu0 %v144
  %2243 = vmatpush1.msra.mxu0 %v143
  %2244 = vmatprep.subr.mxu0 %v150
  %2245 = vmatpush1.msra.mxu0 %v149
  %2246 = vmatprep.subr.mxu0 %v156
  %2247 = vmatpush1.msra.mxu0 %v155
  %2248 = vmatprep.subr.mxu0 %v162
  %2249 = vmatpush1.msra.mxu0 %v161
  %2250 = vmatprep.subr.mxu0 %v168
  %2251 = vmatpush1.msra.mxu0 %v167
  %2252 = vmatprep.subr.mxu0 %v174
  %2253 = vmatpush1.msra.mxu0 %v173
  %2254 = vmatprep.subr.mxu0 %v180
  %2255 = vmatpush1.msra.mxu0 %v179
  %2256 = vmatprep.subr.mxu0 %v186
  %2257 = vmatpush1.msra.mxu0 %v185
  %2258 = vmatprep.subr.mxu0 %v192
  %2259 = vmatpush1.msra.mxu0 %v191
  %2260 = vmatprep.subr.mxu0 %v198
  %2261 = vmatpush1.msra.mxu0 %v197
  %2262 = vmatprep.subr.mxu0 %v204
  %2263 = vmatpush1.msra.mxu0 %v203
  %2264 = vmatprep.subr.mxu0 %v210
  %2265 = vmatpush1.msra.mxu0 %v209
  %2266 = vmatprep.subr.mxu0 %v216
  %2267 = vmatpush1.msra.mxu0 %v215
  %2268 = vmatprep.subr.mxu0 %v222
  %2269 = vmatpush1.msra.mxu0 %v221
  %2270 = vmatprep.subr.mxu0 %v228
  %2271 = vmatpush1.msra.mxu0 %v227
  %2272 = vmatprep.subr.mxu0 %v234
  %2273 = vmatpush1.msra.mxu0 %v233
  %2274 = vmatprep.subr.mxu0 %v240
  %2275 = vmatpush1.msra.mxu0 %v239
  %2276 = vmatprep.subr.mxu0 %v246
  %2277 = vmatpush1.msra.mxu0 %v245
  %2278 = vmatprep.subr.mxu0 %v252
  %2279 = vmatpush1.msra.mxu0 %v251
  %2280 = vmatprep.mubr.f32.mxu0 %v2095
  %2281 = vmatmul.mubr.f32.gmra.mrb[0].mxu0 %v2094
  %v2282 = vpop.f32.mrb[0].mxu0
  %v2283 = vadd.f32 %v268, %v2282
  %v2284 = vpop.f32.mrb[0].mxu0
  %v2285 = vadd.f32 %v272, %v2284
  %2286 = vmatprep.mubr.f32.mxu0 %v2097
  %2287 = vmatmul.mubr.f32.gmra.mrb[0].mxu0 %v2096
  %v2288 = vpop.f32.mrb[0].mxu0
  %v2289 = vadd.f32 %v268, %v2288
  %v2290 = vpop.f32.mrb[0].mxu0
  %v2291 = vadd.f32 %v272, %v2290
  %2292 = vmatprep.mubr.f32.mxu0 %v2099
  %2293 = vmatmul.mubr.f32.gmra.mrb[0].mxu0 %v2098
  %v2294 = vpop.f32.mrb[0].mxu0
  %v2295 = vadd.f32 %v268, %v2294
  %v2296 = vpop.f32.mrb[0].mxu0
  %v2297 = vadd.f32 %v272, %v2296
  %2298 = vmatprep.mubr.f32.mxu0 %v2101
  %2299 = vmatmul.mubr.f32.gmra.mrb[0].mxu0 %v2100
  %v2300 = vpop.f32.mrb[0].mxu0
  %v2301 = vadd.f32 %v268, %v2300
  %v2302 = vpop.f32.mrb[0].mxu0
  %v2303 = vadd.f32 %v272, %v2302
  %2304 = vdwg.mxu0
  %2305 = vmatprep.subr.mxu0 %v68
  %2306 = vmatpush1.msra.mxu0 %v67
  %2307 = vmatprep.subr.mxu0 %v74
  %2308 = vmatpush1.msra.mxu0 %v73
  %2309 = vmatprep.subr.mxu0 %v80
  %2310 = vmatpush1.msra.mxu0 %v79
  %2311 = vmatprep.subr.mxu0 %v86
  %2312 = vmatpush1.msra.mxu0 %v85
  %2313 = vmatprep.subr.mxu0 %v92
  %2314 = vmatpush1.msra.mxu0 %v91
  %2315 = vmatprep.subr.mxu0 %v98
  %2316 = vmatpush1.msra.mxu0 %v97
  %2317 = vmatprep.subr.mxu0 %v104
  %2318 = vmatpush1.msra.mxu0 %v103
  %2319 = vmatprep.subr.mxu0 %v110
  %2320 = vmatpush1.msra.mxu0 %v109
  %2321 = vmatprep.subr.mxu0 %v116
  %2322 = vmatpush1.msra.mxu0 %v115
  %2323 = vmatprep.subr.mxu0 %v122
  %2324 = vmatpush1.msra.mxu0 %v121
  %2325 = vmatprep.subr.mxu0 %v128
  %2326 = vmatpush1.msra.mxu0 %v127
  %2327 = vmatprep.subr.mxu0 %v134
  %2328 = vmatpush1.msra.mxu0 %v133
  %2329 = vmatprep.subr.mxu0 %v140
  %2330 = vmatpush1.msra.mxu0 %v139
  %2331 = vmatprep.subr.mxu0 %v146
  %2332 = vmatpush1.msra.mxu0 %v145
  %2333 = vmatprep.subr.mxu0 %v152
  %2334 = vmatpush1.msra.mxu0 %v151
  %2335 = vmatprep.subr.mxu0 %v158
  %2336 = vmatpush1.msra.mxu0 %v157
  %2337 = vmatprep.subr.mxu0 %v164
  %2338 = vmatpush1.msra.mxu0 %v163
  %2339 = vmatprep.subr.mxu0 %v170
  %2340 = vmatpush1.msra.mxu0 %v169
  %2341 = vmatprep.subr.mxu0 %v176
  %2342 = vmatpush1.msra.mxu0 %v175
  %2343 = vmatprep.subr.mxu0 %v182
  %2344 = vmatpush1.msra.mxu0 %v181
  %2345 = vmatprep.subr.mxu0 %v188
  %2346 = vmatpush1.msra.mxu0 %v187
  %2347 = vmatprep.subr.mxu0 %v194
  %2348 = vmatpush1.msra.mxu0 %v193
  %2349 = vmatprep.subr.mxu0 %v200
  %2350 = vmatpush1.msra.mxu0 %v199
  %2351 = vmatprep.subr.mxu0 %v206
  %2352 = vmatpush1.msra.mxu0 %v205
  %2353 = vmatprep.subr.mxu0 %v212
  %2354 = vmatpush1.msra.mxu0 %v211
  %2355 = vmatprep.subr.mxu0 %v218
  %2356 = vmatpush1.msra.mxu0 %v217
  %2357 = vmatprep.subr.mxu0 %v224
  %2358 = vmatpush1.msra.mxu0 %v223
  %2359 = vmatprep.subr.mxu0 %v230
  %2360 = vmatpush1.msra.mxu0 %v229
  %2361 = vmatprep.subr.mxu0 %v236
  %2362 = vmatpush1.msra.mxu0 %v235
  %2363 = vmatprep.subr.mxu0 %v242
  %2364 = vmatpush1.msra.mxu0 %v241
  %2365 = vmatprep.subr.mxu0 %v248
  %2366 = vmatpush1.msra.mxu0 %v247
  %2367 = vmatprep.subr.mxu0 %v254
  %2368 = vmatpush1.msra.mxu0 %v253
  %2369 = vmatprep.mubr.f32.mxu0 %v2095
  %2370 = vmatmul.mubr.f32.gmra.mrb[0].mxu0 %v2094
  %v2371 = vpop.f32.mrb[0].mxu0
  %v2372 = vadd.f32 %v276, %v2371
  %v2373 = vpop.f32.mrb[0].mxu0
  %v2374 = vadd.f32 %v280, %v2373
  %2375 = vmatprep.mubr.f32.mxu0 %v2097
  %2376 = vmatmul.mubr.f32.gmra.mrb[0].mxu0 %v2096
  %v2377 = vpop.f32.mrb[0].mxu0
  %v2378 = vadd.f32 %v276, %v2377
  %v2379 = vpop.f32.mrb[0].mxu0
  %v2380 = vadd.f32 %v280, %v2379
  %2381 = vmatprep.mubr.f32.mxu0 %v2099
  %2382 = vmatmul.mubr.f32.gmra.mrb[0].mxu0 %v2098
  %v2383 = vpop.f32.mrb[0].mxu0
  %v2384 = vadd.f32 %v276, %v2383
  %v2385 = vpop.f32.mrb[0].mxu0
  %v2386 = vadd.f32 %v280, %v2385
  %2387 = vmatprep.mubr.f32.mxu0 %v2101
  %2388 = vmatmul.mubr.f32.gmra.mrb[0].mxu0 %v2100
  %v2389 = vpop.f32.mrb[0].mxu0
  %v2390 = vadd.f32 %v276, %v2389
  %v2391 = vpop.f32.mrb[0].mxu0
  %v2392 = vadd.f32 %v280, %v2391
  %2393 = vdwg.mxu0
  %v2394 = vadd.f32 %v2103, %v2194
  %v2395 = vadd.f32 %v2104, %v2196
  %v2396 = vadd.f32 %v2109, %v2200
  %v2397 = vadd.f32 %v2110, %v2202
  %v2398 = vadd.f32 %v2115, %v2206
  %v2399 = vadd.f32 %v2116, %v2208
  %v2400 = vadd.f32 %v2121, %v2212
  %v2401 = vadd.f32 %v2122, %v2214
  %v2402 = vxor.u32 %v2394, 2147483648
  %v2403 = vxor.u32 %v2395, 2147483648
  %v2404 = vxor.u32 %v2396, 2147483648
  %v2405 = vxor.u32 %v2397, 2147483648
  %v2406 = vxor.u32 %v2398, 2147483648
  %v2407 = vxor.u32 %v2399, 2147483648
  %v2408 = vxor.u32 %v2400, 2147483648
  %v2409 = vxor.u32 %v2401, 2147483648
  %v2410 = vmul.f32 %v2402, 1.442695
  %v2411 = vpow.pop %v2410
  %v2412 = vmul.f32 %v2403, 1.442695
  %v2413 = vpow.pop %v2412
  %v2414 = vmul.f32 %v2404, 1.442695
  %v2415 = vpow.pop %v2414
  %v2416 = vmul.f32 %v2405, 1.442695
  %v2417 = vpow.pop %v2416
  %v2418 = vmul.f32 %v2406, 1.442695
  %v2419 = vpow.pop %v2418
  %v2420 = vmul.f32 %v2407, 1.442695
  %v2421 = vpow.pop %v2420
  %v2422 = vmul.f32 %v2408, 1.442695
  %v2423 = vpow.pop %v2422
  %v2424 = vmul.f32 %v2409, 1.442695
  %v2425 = vpow.pop %v2424
  %v2426 = vadd.f32 %v2411, 1.0
  %v2427 = vadd.f32 %v2413, 1.0
  %v2428 = vadd.f32 %v2415, 1.0
  %v2429 = vadd.f32 %v2417, 1.0
  %v2430 = vadd.f32 %v2419, 1.0
  %v2431 = vadd.f32 %v2421, 1.0
  %v2432 = vadd.f32 %v2423, 1.0
  %v2433 = vadd.f32 %v2425, 1.0
  %v2434 = vrcp.pop %v2426
  %v2435 = vmul.f32 1.0, %v2434
  %v2436 = vrcp.pop %v2427
  %v2437 = vmul.f32 1.0, %v2436
  %v2438 = vrcp.pop %v2428
  %v2439 = vmul.f32 1.0, %v2438
  %v2440 = vrcp.pop %v2429
  %v2441 = vmul.f32 1.0, %v2440
  %v2442 = vrcp.pop %v2430
  %v2443 = vmul.f32 1.0, %v2442
  %v2444 = vrcp.pop %v2431
  %v2445 = vmul.f32 1.0, %v2444
  %v2446 = vrcp.pop %v2432
  %v2447 = vmul.f32 1.0, %v2446
  %v2448 = vrcp.pop %v2433
  %v2449 = vmul.f32 1.0, %v2448
  %v2450 = vadd.f32 %v2105, %v2283
  %v2451 = vadd.f32 %v2106, %v2285
  %v2452 = vadd.f32 %v2111, %v2289
  %v2453 = vadd.f32 %v2112, %v2291
  %v2454 = vadd.f32 %v2117, %v2295
  %v2455 = vadd.f32 %v2118, %v2297
  %v2456 = vadd.f32 %v2123, %v2301
  %v2457 = vadd.f32 %v2124, %v2303
  %v2458 = vxor.u32 %v2450, 2147483648
  %v2459 = vxor.u32 %v2451, 2147483648
  %v2460 = vxor.u32 %v2452, 2147483648
  %v2461 = vxor.u32 %v2453, 2147483648
  %v2462 = vxor.u32 %v2454, 2147483648
  %v2463 = vxor.u32 %v2455, 2147483648
  %v2464 = vxor.u32 %v2456, 2147483648
  %v2465 = vxor.u32 %v2457, 2147483648
  %v2466 = vmul.f32 %v2458, 1.442695
  %v2467 = vpow.pop %v2466
  %v2468 = vmul.f32 %v2459, 1.442695
  %v2469 = vpow.pop %v2468
  %v2470 = vmul.f32 %v2460, 1.442695
  %v2471 = vpow.pop %v2470
  %v2472 = vmul.f32 %v2461, 1.442695
  %v2473 = vpow.pop %v2472
  %v2474 = vmul.f32 %v2462, 1.442695
  %v2475 = vpow.pop %v2474
  %v2476 = vmul.f32 %v2463, 1.442695
  %v2477 = vpow.pop %v2476
  %v2478 = vmul.f32 %v2464, 1.442695
  %v2479 = vpow.pop %v2478
  %v2480 = vmul.f32 %v2465, 1.442695
  %v2481 = vpow.pop %v2480
  %v2482 = vadd.f32 %v2467, 1.0
  %v2483 = vadd.f32 %v2469, 1.0
  %v2484 = vadd.f32 %v2471, 1.0
  %v2485 = vadd.f32 %v2473, 1.0
  %v2486 = vadd.f32 %v2475, 1.0
  %v2487 = vadd.f32 %v2477, 1.0
  %v2488 = vadd.f32 %v2479, 1.0
  %v2489 = vadd.f32 %v2481, 1.0
  %v2490 = vrcp.pop %v2482
  %v2491 = vmul.f32 1.0, %v2490
  %v2492 = vrcp.pop %v2483
  %v2493 = vmul.f32 1.0, %v2492
  %v2494 = vrcp.pop %v2484
  %v2495 = vmul.f32 1.0, %v2494
  %v2496 = vrcp.pop %v2485
  %v2497 = vmul.f32 1.0, %v2496
  %v2498 = vrcp.pop %v2486
  %v2499 = vmul.f32 1.0, %v2498
  %v2500 = vrcp.pop %v2487
  %v2501 = vmul.f32 1.0, %v2500
  %v2502 = vrcp.pop %v2488
  %v2503 = vmul.f32 1.0, %v2502
  %v2504 = vrcp.pop %v2489
  %v2505 = vmul.f32 1.0, %v2504
  %v2506 = vmul.f32 %v2435, %v2372
  %v2507 = vmul.f32 %v2437, %v2374
  %v2508 = vmul.f32 %v2439, %v2378
  %v2509 = vmul.f32 %v2441, %v2380
  %v2510 = vmul.f32 %v2443, %v2384
  %v2511 = vmul.f32 %v2445, %v2386
  %v2512 = vmul.f32 %v2447, %v2390
  %v2513 = vmul.f32 %v2449, %v2392
  %v2514 = vadd.f32 %v2107, %v2506
  %v2515 = vadd.f32 %v2108, %v2507
  %v2516 = vadd.f32 %v2113, %v2508
  %v2517 = vadd.f32 %v2114, %v2509
  %v2518 = vadd.f32 %v2119, %v2510
  %v2519 = vadd.f32 %v2120, %v2511
  %v2520 = vadd.f32 %v2125, %v2512
  %v2521 = vadd.f32 %v2126, %v2513
  %v2522 = vtanh.pop %v2514
  %v2523 = vtanh.pop %v2515
  %v2524 = vtanh.pop %v2516
  %v2525 = vtanh.pop %v2517
  %v2526 = vtanh.pop %v2518
  %v2527 = vtanh.pop %v2519
  %v2528 = vtanh.pop %v2520
  %v2529 = vtanh.pop %v2521
  %v2530 = vsub.f32 1.0, %v2491
  %v2531 = vsub.f32 1.0, %v2493
  %v2532 = vsub.f32 1.0, %v2495
  %v2533 = vsub.f32 1.0, %v2497
  %v2534 = vsub.f32 1.0, %v2499
  %v2535 = vsub.f32 1.0, %v2501
  %v2536 = vsub.f32 1.0, %v2503
  %v2537 = vsub.f32 1.0, %v2505
  %v2538 = vmul.f32 %v2530, %v2522
  %v2539 = vmul.f32 %v2531, %v2523
  %v2540 = vmul.f32 %v2532, %v2524
  %v2541 = vmul.f32 %v2533, %v2525
  %v2542 = vmul.f32 %v2534, %v2526
  %v2543 = vmul.f32 %v2535, %v2527
  %v2544 = vmul.f32 %v2536, %v2528
  %v2545 = vmul.f32 %v2537, %v2529
  %v2546 = vmul.f32 %v2491, %v2094
  %v2547 = vmul.f32 %v2493, %v2095
  %v2548 = vmul.f32 %v2495, %v2096
  %v2549 = vmul.f32 %v2497, %v2097
  %v2550 = vmul.f32 %v2499, %v2098
  %v2551 = vmul.f32 %v2501, %v2099
  %v2552 = vmul.f32 %v2503, %v2100
  %v2553 = vmul.f32 %v2505, %v2101
  %v2554 = vadd.f32 %v2538, %v2546
  %v2555 = vadd.f32 %v2539, %v2547
  %v2556 = vadd.f32 %v2540, %v2548
  %v2557 = vadd.f32 %v2541, %v2549
  %v2558 = vadd.f32 %v2542, %v2550
  %v2559 = vadd.f32 %v2543, %v2551
  %v2560 = vadd.f32 %v2544, %v2552
  %v2561 = vadd.f32 %v2545, %v2553
  %2562 = vst [vmem:[%s10] sm:$0xff] 0.0
  %2563 = vst [vmem:[%s10 + $0x8] sm:$0xff] 0.0
  %2564 = vst [vmem:[%s10 + $0x10] sm:$0xff] 0.0
  %2565 = vst [vmem:[%s10 + $0x18] sm:$0xff] 0.0
  %s2566 = sld [smem:[#allocation3]]
  %s2567 = scvt.s32.f32 %s2566
  %v2568 = vld [vmem:[%s2] sm:$0xff]
  %v2569 = vld [vmem:[%s2 + $0x8] sm:$0xff]
  %v2570 = vld [vmem:[%s2 + $0x10] sm:$0xff]
  %v2571 = vld [vmem:[%s2 + $0x18] sm:$0xff]
  %v2572 = vld [vmem:[%s2 + $0x20] sm:$0xff]
  %v2573 = vld [vmem:[%s2 + $0x28] sm:$0xff]
  %v2574 = vld [vmem:[%s2 + $0x30] sm:$0xff]
  %v2575 = vld [vmem:[%s2 + $0x38] sm:$0xff]
  %v2576 = vld [vmem:[%s2 + $0x40] sm:$0xff]
  %v2577 = vld [vmem:[%s2 + $0x48] sm:$0xff]
  %v2578 = vld [vmem:[%s2 + $0x50] sm:$0xff]
  %v2579 = vld [vmem:[%s2 + $0x58] sm:$0xff]
  %v2580 = vld [vmem:[%s2 + $0x60] sm:$0xff]
  %v2581 = vld [vmem:[%s2 + $0x68] sm:$0xff]
  %v2582 = vld [vmem:[%s2 + $0x70] sm:$0xff]
  %v2583 = vld [vmem:[%s2 + $0x78] sm:$0xff]
  %v2584 = vld [vmem:[%s2 + $0x80] sm:$0xff]
  %v2585 = vld [vmem:[%s2 + $0x88] sm:$0xff]
  %v2586 = vld [vmem:[%s2 + $0x90] sm:$0xff]
  %v2587 = vld [vmem:[%s2 + $0x98] sm:$0xff]
  %v2588 = vld [vmem:[%s2 + $0xa0] sm:$0xff]
  %v2589 = vld [vmem:[%s2 + $0xa8] sm:$0xff]
  %v2590 = vld [vmem:[%s2 + $0xb0] sm:$0xff]
  %v2591 = vld [vmem:[%s2 + $0xb8] sm:$0xff]
  %v2592 = vstv %s2567
  %v2593 = vmul.f32 %v2592, %v2568
  %v2594 = vmul.f32 %v2592, %v2569
  %v2595 = vmul.f32 %v2592, %v2570
  %v2596 = vmul.f32 %v2592, %v2571
  %v2597 = vmul.f32 %v2592, %v2572
  %v2598 = vmul.f32 %v2592, %v2573
  %v2599 = vmul.f32 %v2592, %v2574
  %v2600 = vmul.f32 %v2592, %v2575
  %v2601 = vmul.f32 %v2592, %v2576
  %v2602 = vmul.f32 %v2592, %v2577
  %v2603 = vmul.f32 %v2592, %v2578
  %v2604 = vmul.f32 %v2592, %v2579
  %v2605 = vmul.f32 %v2592, %v2580
  %v2606 = vmul.f32 %v2592, %v2581
  %v2607 = vmul.f32 %v2592, %v2582
  %v2608 = vmul.f32 %v2592, %v2583
  %v2609 = vmul.f32 %v2592, %v2584
  %v2610 = vmul.f32 %v2592, %v2585
  %v2611 = vmul.f32 %v2592, %v2586
  %v2612 = vmul.f32 %v2592, %v2587
  %v2613 = vmul.f32 %v2592, %v2588
  %v2614 = vmul.f32 %v2592, %v2589
  %v2615 = vmul.f32 %v2592, %v2590
  %v2616 = vmul.f32 %v2592, %v2591
  %s2617 = ssub.f32 1.0, %s2567
  %v2618 = vstv %s2617
  %v2619 = vmul.f32 %v2618, 0.0
  %v2620 = vadd.f32 %v2593, %v2619
  %v2621 = vadd.f32 %v2594, %v2619
  %v2622 = vadd.f32 %v2595, %v2619
  %v2623 = vadd.f32 %v2596, %v2619
  %v2624 = vadd.f32 %v2597, %v2619
  %v2625 = vadd.f32 %v2598, %v2619
  %v2626 = vadd.f32 %v2599, %v2619
  %v2627 = vadd.f32 %v2600, %v2619
  %v2628 = vadd.f32 %v2601, %v2619
  %v2629 = vadd.f32 %v2602, %v2619
  %v2630 = vadd.f32 %v2603, %v2619
  %v2631 = vadd.f32 %v2604, %v2619
  %v2632 = vadd.f32 %v2605, %v2619
  %v2633 = vadd.f32 %v2606, %v2619
  %v2634 = vadd.f32 %v2607, %v2619
  %v2635 = vadd.f32 %v2608, %v2619
  %v2636 = vadd.f32 %v2609, %v2619
  %v2637 = vadd.f32 %v2610, %v2619
  %v2638 = vadd.f32 %v2611, %v2619
  %v2639 = vadd.f32 %v2612, %v2619
  %v2640 = vadd.f32 %v2613, %v2619
  %v2641 = vadd.f32 %v2614, %v2619
  %v2642 = vadd.f32 %v2615, %v2619
  %v2643 = vadd.f32 %v2616, %v2619
  %v2644 = vld [vmem:[%s5] sm:$0xff]
  %v2645 = vld [vmem:[%s5 + $0x8] sm:$0xff]
  %v2646 = vld [vmem:[%s5 + $0x10] sm:$0xff]
  %v2647 = vld [vmem:[%s5 + $0x18] sm:$0xff]
  %v2648 = vld [vmem:[%s5 + $0x20] sm:$0xff]
  %v2649 = vld [vmem:[%s5 + $0x28] sm:$0xff]
  %v2650 = vld [vmem:[%s5 + $0x30] sm:$0xff]
  %v2651 = vld [vmem:[%s5 + $0x38] sm:$0xff]
  %v2652 = vld [vmem:[%s5 + $0x40] sm:$0xff]
  %v2653 = vld [vmem:[%s5 + $0x48] sm:$0xff]
  %v2654 = vld [vmem:[%s5 + $0x50] sm:$0xff]
  %v2655 = vld [vmem:[%s5 + $0x58] sm:$0xff]
  %v2656 = vld [vmem:[%s5 + $0x60] sm:$0xff]
  %v2657 = vld [vmem:[%s5 + $0x68] sm:$0xff]
  %v2658 = vld [vmem:[%s5 + $0x70] sm:$0xff]
  %v2659 = vld [vmem:[%s5 + $0x78] sm:$0xff]
  %v2660 = vld [vmem:[%s5 + $0x80] sm:$0xff]
  %v2661 = vld [vmem:[%s5 + $0x88] sm:$0xff]
  %v2662 = vld [vmem:[%s5 + $0x90] sm:$0xff]
  %v2663 = vld [vmem:[%s5 + $0x98] sm:$0xff]
  %v2664 = vld [vmem:[%s5 + $0xa0] sm:$0xff]
  %v2665 = vld [vmem:[%s5 + $0xa8] sm:$0xff]
  %v2666 = vld [vmem:[%s5 + $0xb0] sm:$0xff]
  %v2667 = vld [vmem:[%s5 + $0xb8] sm:$0xff]
  %v2668 = vld [vmem:[%s5 + $0xc0] sm:$0xff]
  %v2669 = vld [vmem:[%s5 + $0xc8] sm:$0xff]
  %v2670 = vld [vmem:[%s5 + $0xd0] sm:$0xff]
  %v2671 = vld [vmem:[%s5 + $0xd8] sm:$0xff]
  %v2672 = vld [vmem:[%s5 + $0xe0] sm:$0xff]
  %v2673 = vld [vmem:[%s5 + $0xe8] sm:$0xff]
  %v2674 = vld [vmem:[%s5 + $0xf0] sm:$0xff]
  %v2675 = vld [vmem:[%s5 + $0xf8] sm:$0xff]
  %v2676 = vld [vmem:[%s5 + $0x100] sm:$0xff]
  %v2677 = vld [vmem:[%s5 + $0x108] sm:$0xff]
  %v2678 = vld [vmem:[%s5 + $0x110] sm:$0xff]
  %v2679 = vld [vmem:[%s5 + $0x118] sm:$0xff]
  %v2680 = vld [vmem:[%s5 + $0x120] sm:$0xff]
  %v2681 = vld [vmem:[%s5 + $0x128] sm:$0xff]
  %v2682 = vld [vmem:[%s5 + $0x130] sm:$0xff]
  %v2683 = vld [vmem:[%s5 + $0x138] sm:$0xff]
  %v2684 = vld [vmem:[%s5 + $0x140] sm:$0xff]
  %v2685 = vld [vmem:[%s5 + $0x148] sm:$0xff]
  %v2686 = vld [vmem:[%s5 + $0x150] sm:$0xff]
  %v2687 = vld [vmem:[%s5 + $0x158] sm:$0xff]
  %v2688 = vld [vmem:[%s5 + $0x160] sm:$0xff]
  %v2689 = vld [vmem:[%s5 + $0x168] sm:$0xff]
  %v2690 = vld [vmem:[%s5 + $0x170] sm:$0xff]
  %v2691 = vld [vmem:[%s5 + $0x178] sm:$0xff]
  %v2692 = vld [vmem:[%s5 + $0x180] sm:$0xff]
  %v2693 = vld [vmem:[%s5 + $0x188] sm:$0xff]
  %v2694 = vld [vmem:[%s5 + $0x190] sm:$0xff]
  %v2695 = vld [vmem:[%s5 + $0x198] sm:$0xff]
  %v2696 = vld [vmem:[%s5 + $0x1a0] sm:$0xff]
  %v2697 = vld [vmem:[%s5 + $0x1a8] sm:$0xff]
  %v2698 = vld [vmem:[%s5 + $0x1b0] sm:$0xff]
  %v2699 = vld [vmem:[%s5 + $0x1b8] sm:$0xff]
  %v2700 = vld [vmem:[%s5 + $0x1c0] sm:$0xff]
  %v2701 = vld [vmem:[%s5 + $0x1c8] sm:$0xff]
  %v2702 = vld [vmem:[%s5 + $0x1d0] sm:$0xff]
  %v2703 = vld [vmem:[%s5 + $0x1d8] sm:$0xff]
  %v2704 = vld [vmem:[%s5 + $0x1e0] sm:$0xff]
  %v2705 = vld [vmem:[%s5 + $0x1e8] sm:$0xff]
  %v2706 = vld [vmem:[%s5 + $0x1f0] sm:$0xff]
  %v2707 = vld [vmem:[%s5 + $0x1f8] sm:$0xff]
  %v2708 = vld [vmem:[%s5 + $0x200] sm:$0xff]
  %v2709 = vld [vmem:[%s5 + $0x208] sm:$0xff]
  %v2710 = vld [vmem:[%s5 + $0x210] sm:$0xff]
  %v2711 = vld [vmem:[%s5 + $0x218] sm:$0xff]
  %v2712 = vld [vmem:[%s5 + $0x220] sm:$0xff]
  %v2713 = vld [vmem:[%s5 + $0x228] sm:$0xff]
  %v2714 = vld [vmem:[%s5 + $0x230] sm:$0xff]
  %v2715 = vld [vmem:[%s5 + $0x238] sm:$0xff]
  %v2716 = vld [vmem:[%s5 + $0x240] sm:$0xff]
  %v2717 = vld [vmem:[%s5 + $0x248] sm:$0xff]
  %v2718 = vld [vmem:[%s5 + $0x250] sm:$0xff]
  %v2719 = vld [vmem:[%s5 + $0x258] sm:$0xff]
  %v2720 = vld [vmem:[%s5 + $0x260] sm:$0xff]
  %v2721 = vld [vmem:[%s5 + $0x268] sm:$0xff]
  %v2722 = vld [vmem:[%s5 + $0x270] sm:$0xff]
  %v2723 = vld [vmem:[%s5 + $0x278] sm:$0xff]
  %v2724 = vld [vmem:[%s5 + $0x280] sm:$0xff]
  %v2725 = vld [vmem:[%s5 + $0x288] sm:$0xff]
  %v2726 = vld [vmem:[%s5 + $0x290] sm:$0xff]
  %v2727 = vld [vmem:[%s5 + $0x298] sm:$0xff]
  %v2728 = vld [vmem:[%s5 + $0x2a0] sm:$0xff]
  %v2729 = vld [vmem:[%s5 + $0x2a8] sm:$0xff]
  %v2730 = vld [vmem:[%s5 + $0x2b0] sm:$0xff]
  %v2731 = vld [vmem:[%s5 + $0x2b8] sm:$0xff]
  %v2732 = vld [vmem:[%s5 + $0x2c0] sm:$0xff]
  %v2733 = vld [vmem:[%s5 + $0x2c8] sm:$0xff]
  %v2734 = vld [vmem:[%s5 + $0x2d0] sm:$0xff]
  %v2735 = vld [vmem:[%s5 + $0x2d8] sm:$0xff]
  %v2736 = vld [vmem:[%s5 + $0x2e0] sm:$0xff]
  %v2737 = vld [vmem:[%s5 + $0x2e8] sm:$0xff]
  %v2738 = vld [vmem:[%s5 + $0x2f0] sm:$0xff]
  %v2739 = vld [vmem:[%s5 + $0x2f8] sm:$0xff]
  %v2740 = vld [vmem:[%s5 + $0x300] sm:$0xff]
  %v2741 = vld [vmem:[%s5 + $0x308] sm:$0xff]
  %v2742 = vld [vmem:[%s5 + $0x310] sm:$0xff]
  %v2743 = vld [vmem:[%s5 + $0x318] sm:$0xff]
  %v2744 = vld [vmem:[%s5 + $0x320] sm:$0xff]
  %v2745 = vld [vmem:[%s5 + $0x328] sm:$0xff]
  %v2746 = vld [vmem:[%s5 + $0x330] sm:$0xff]
  %v2747 = vld [vmem:[%s5 + $0x338] sm:$0xff]
  %v2748 = vld [vmem:[%s5 + $0x340] sm:$0xff]
  %v2749 = vld [vmem:[%s5 + $0x348] sm:$0xff]
  %v2750 = vld [vmem:[%s5 + $0x350] sm:$0xff]
  %v2751 = vld [vmem:[%s5 + $0x358] sm:$0xff]
  %v2752 = vld [vmem:[%s5 + $0x360] sm:$0xff]
  %v2753 = vld [vmem:[%s5 + $0x368] sm:$0xff]
  %v2754 = vld [vmem:[%s5 + $0x370] sm:$0xff]
  %v2755 = vld [vmem:[%s5 + $0x378] sm:$0xff]
  %v2756 = vld [vmem:[%s5 + $0x380] sm:$0xff]
  %v2757 = vld [vmem:[%s5 + $0x388] sm:$0xff]
  %v2758 = vld [vmem:[%s5 + $0x390] sm:$0xff]
  %v2759 = vld [vmem:[%s5 + $0x398] sm:$0xff]
  %v2760 = vld [vmem:[%s5 + $0x3a0] sm:$0xff]
  %v2761 = vld [vmem:[%s5 + $0x3a8] sm:$0xff]
  %v2762 = vld [vmem:[%s5 + $0x3b0] sm:$0xff]
  %v2763 = vld [vmem:[%s5 + $0x3b8] sm:$0xff]
  %v2764 = vld [vmem:[%s5 + $0x3c0] sm:$0xff]
  %v2765 = vld [vmem:[%s5 + $0x3c8] sm:$0xff]
  %v2766 = vld [vmem:[%s5 + $0x3d0] sm:$0xff]
  %v2767 = vld [vmem:[%s5 + $0x3d8] sm:$0xff]
  %v2768 = vld [vmem:[%s5 + $0x3e0] sm:$0xff]
  %v2769 = vld [vmem:[%s5 + $0x3e8] sm:$0xff]
  %v2770 = vld [vmem:[%s5 + $0x3f0] sm:$0xff]
  %v2771 = vld [vmem:[%s5 + $0x3f8] sm:$0xff]
  %v2772 = vld [vmem:[%s5 + $0x400] sm:$0xff]
  %v2773 = vld [vmem:[%s5 + $0x408] sm:$0xff]
  %v2774 = vld [vmem:[%s5 + $0x410] sm:$0xff]
  %v2775 = vld [vmem:[%s5 + $0x418] sm:$0xff]
  %v2776 = vld [vmem:[%s5 + $0x420] sm:$0xff]
  %v2777 = vld [vmem:[%s5 + $0x428] sm:$0xff]
  %v2778 = vld [vmem:[%s5 + $0x430] sm:$0xff]
  %v2779 = vld [vmem:[%s5 + $0x438] sm:$0xff]
  %v2780 = vld [vmem:[%s5 + $0x440] sm:$0xff]
  %v2781 = vld [vmem:[%s5 + $0x448] sm:$0xff]
  %v2782 = vld [vmem:[%s5 + $0x450] sm:$0xff]
  %v2783 = vld [vmem:[%s5 + $0x458] sm:$0xff]
  %v2784 = vld [vmem:[%s5 + $0x460] sm:$0xff]
  %v2785 = vld [vmem:[%s5 + $0x468] sm:$0xff]
  %v2786 = vld [vmem:[%s5 + $0x470] sm:$0xff]
  %v2787 = vld [vmem:[%s5 + $0x478] sm:$0xff]
  %v2788 = vld [vmem:[%s5 + $0x480] sm:$0xff]
  %v2789 = vld [vmem:[%s5 + $0x488] sm:$0xff]
  %v2790 = vld [vmem:[%s5 + $0x490] sm:$0xff]
  %v2791 = vld [vmem:[%s5 + $0x498] sm:$0xff]
  %v2792 = vld [vmem:[%s5 + $0x4a0] sm:$0xff]
  %v2793 = vld [vmem:[%s5 + $0x4a8] sm:$0xff]
  %v2794 = vld [vmem:[%s5 + $0x4b0] sm:$0xff]
  %v2795 = vld [vmem:[%s5 + $0x4b8] sm:$0xff]
  %v2796 = vld [vmem:[%s5 + $0x4c0] sm:$0xff]
  %v2797 = vld [vmem:[%s5 + $0x4c8] sm:$0xff]
  %v2798 = vld [vmem:[%s5 + $0x4d0] sm:$0xff]
  %v2799 = vld [vmem:[%s5 + $0x4d8] sm:$0xff]
  %v2800 = vld [vmem:[%s5 + $0x4e0] sm:$0xff]
  %v2801 = vld [vmem:[%s5 + $0x4e8] sm:$0xff]
  %v2802 = vld [vmem:[%s5 + $0x4f0] sm:$0xff]
  %v2803 = vld [vmem:[%s5 + $0x4f8] sm:$0xff]
  %v2804 = vld [vmem:[%s5 + $0x500] sm:$0xff]
  %v2805 = vld [vmem:[%s5 + $0x508] sm:$0xff]
  %v2806 = vld [vmem:[%s5 + $0x510] sm:$0xff]
  %v2807 = vld [vmem:[%s5 + $0x518] sm:$0xff]
  %v2808 = vld [vmem:[%s5 + $0x520] sm:$0xff]
  %v2809 = vld [vmem:[%s5 + $0x528] sm:$0xff]
  %v2810 = vld [vmem:[%s5 + $0x530] sm:$0xff]
  %v2811 = vld [vmem:[%s5 + $0x538] sm:$0xff]
  %v2812 = vld [vmem:[%s5 + $0x540] sm:$0xff]
  %v2813 = vld [vmem:[%s5 + $0x548] sm:$0xff]
  %v2814 = vld [vmem:[%s5 + $0x550] sm:$0xff]
  %v2815 = vld [vmem:[%s5 + $0x558] sm:$0xff]
  %v2816 = vld [vmem:[%s5 + $0x560] sm:$0xff]
  %v2817 = vld [vmem:[%s5 + $0x568] sm:$0xff]
  %v2818 = vld [vmem:[%s5 + $0x570] sm:$0xff]
  %v2819 = vld [vmem:[%s5 + $0x578] sm:$0xff]
  %v2820 = vld [vmem:[%s5 + $0x580] sm:$0xff]
  %v2821 = vld [vmem:[%s5 + $0x588] sm:$0xff]
  %v2822 = vld [vmem:[%s5 + $0x590] sm:$0xff]
  %v2823 = vld [vmem:[%s5 + $0x598] sm:$0xff]
  %v2824 = vld [vmem:[%s5 + $0x5a0] sm:$0xff]
  %v2825 = vld [vmem:[%s5 + $0x5a8] sm:$0xff]
  %v2826 = vld [vmem:[%s5 + $0x5b0] sm:$0xff]
  %v2827 = vld [vmem:[%s5 + $0x5b8] sm:$0xff]
  %v2828 = vld [vmem:[%s5 + $0x5c0] sm:$0xff]
  %v2829 = vld [vmem:[%s5 + $0x5c8] sm:$0xff]
  %v2830 = vld [vmem:[%s5 + $0x5d0] sm:$0xff]
  %v2831 = vld [vmem:[%s5 + $0x5d8] sm:$0xff]
  %v2832 = vld [vmem:[%s5 + $0x5e0] sm:$0xff]
  %v2833 = vld [vmem:[%s5 + $0x5e8] sm:$0xff]
  %v2834 = vld [vmem:[%s5 + $0x5f0] sm:$0xff]
  %v2835 = vld [vmem:[%s5 + $0x5f8] sm:$0xff]
  %v2836 = vld [vmem:[%s6] sm:$0x3f]
  %v2838 = vlaneseq
  %v2839 = vshrl.u32 %v2838, 7
  %v2840 = vsub.s32 0, %v2839
  %v2841 = vrot.slane %v2836, %v2840
  %v2842 = vlaneseq
  %v2843 = vshrl.u32 %v2842, 7
  %v2844 = vsub.s32 1, %v2843
  %v2845 = vrot.slane %v2836, %v2844
  %v2846 = vlaneseq
  %v2847 = vshrl.u32 %v2846, 7
  %v2848 = vsub.s32 2, %v2847
  %v2849 = vrot.slane %v2836, %v2848
  %v2850 = vlaneseq
  %v2851 = vshrl.u32 %v2850, 7
  %v2852 = vsub.s32 3, %v2851
  %v2853 = vrot.slane %v2836, %v2852
  %v2854 = vlaneseq
  %v2855 = vshrl.u32 %v2854, 7
  %v2856 = vsub.s32 4, %v2855
  %v2857 = vrot.slane %v2836, %v2856
  %v2858 = vlaneseq
  %v2859 = vshrl.u32 %v2858, 7
  %v2860 = vsub.s32 5, %v2859
  %v2861 = vrot.slane %v2836, %v2860
  %2868 = vmatprep.subr.mxu0 %v2645
  %2869 = vmatpush1.msra.mxu0 %v2644
  %2870 = vmatprep.subr.mxu0 %v2651
  %2871 = vmatpush1.msra.mxu0 %v2650
  %2872 = vmatprep.subr.mxu0 %v2657
  %2873 = vmatpush1.msra.mxu0 %v2656
  %2874 = vmatprep.subr.mxu0 %v2663
  %2875 = vmatpush1.msra.mxu0 %v2662
  %2876 = vmatprep.subr.mxu0 %v2669
  %2877 = vmatpush1.msra.mxu0 %v2668
  %2878 = vmatprep.subr.mxu0 %v2675
  %2879 = vmatpush1.msra.mxu0 %v2674
  %2880 = vmatprep.subr.mxu0 %v2681
  %2881 = vmatpush1.msra.mxu0 %v2680
  %2882 = vmatprep.subr.mxu0 %v2687
  %2883 = vmatpush1.msra.mxu0 %v2686
  %2884 = vmatprep.subr.mxu0 %v2693
  %2885 = vmatpush1.msra.mxu0 %v2692
  %2886 = vmatprep.subr.mxu0 %v2699
  %2887 = vmatpush1.msra.mxu0 %v2698
  %2888 = vmatprep.subr.mxu0 %v2705
  %2889 = vmatpush1.msra.mxu0 %v2704
  %2890 = vmatprep.subr.mxu0 %v2711
  %2891 = vmatpush1.msra.mxu0 %v2710
  %2892 = vmatprep.subr.mxu0 %v2717
  %2893 = vmatpush1.msra.mxu0 %v2716
  %2894 = vmatprep.subr.mxu0 %v2723
  %2895 = vmatpush1.msra.mxu0 %v2722
  %2896 = vmatprep.subr.mxu0 %v2729
  %2897 = vmatpush1.msra.mxu0 %v2728
  %2898 = vmatprep.subr.mxu0 %v2735
  %2899 = vmatpush1.msra.mxu0 %v2734
  %2900 = vmatprep.subr.mxu0 %v2741
  %2901 = vmatpush1.msra.mxu0 %v2740
  %2902 = vmatprep.subr.mxu0 %v2747
  %2903 = vmatpush1.msra.mxu0 %v2746
  %2904 = vmatprep.subr.mxu0 %v2753
  %2905 = vmatpush1.msra.mxu0 %v2752
  %2906 = vmatprep.subr.mxu0 %v2759
  %2907 = vmatpush1.msra.mxu0 %v2758
  %2908 = vmatprep.subr.mxu0 %v2765
  %2909 = vmatpush1.msra.mxu0 %v2764
  %2910 = vmatprep.subr.mxu0 %v2771
  %2911 = vmatpush1.msra.mxu0 %v2770
  %2912 = vmatprep.subr.mxu0 %v2777
  %2913 = vmatpush1.msra.mxu0 %v2776
  %2914 = vmatprep.subr.mxu0 %v2783
  %2915 = vmatpush1.msra.mxu0 %v2782
  %2916 = vmatprep.subr.mxu0 %v2789
  %2917 = vmatpush1.msra.mxu0 %v2788
  %2918 = vmatprep.subr.mxu0 %v2795
  %2919 = vmatpush1.msra.mxu0 %v2794
  %2920 = vmatprep.subr.mxu0 %v2801
  %2921 = vmatpush1.msra.mxu0 %v2800
  %2922 = vmatprep.subr.mxu0 %v2807
  %2923 = vmatpush1.msra.mxu0 %v2806
  %2924 = vmatprep.subr.mxu0 %v2813
  %2925 = vmatpush1.msra.mxu0 %v2812
  %2926 = vmatprep.subr.mxu0 %v2819
  %2927 = vmatpush1.msra.mxu0 %v2818
  %2928 = vmatprep.subr.mxu0 %v2825
  %2929 = vmatpush1.msra.mxu0 %v2824
  %2930 = vmatprep.subr.mxu0 %v2831
  %2931 = vmatpush1.msra.mxu0 %v2830
  %2932 = vmatprep.mubr.f32.mxu0 %v2555
  %2933 = vmatmul.mubr.f32.gmra.mrb[0].mxu0 %v2554
  %v2934 = vpop.f32.mrb[0].mxu0
  %v2935 = vadd.f32 %v2841, %v2934
  %v2936 = vpop.f32.mrb[0].mxu0
  %v2937 = vadd.f32 %v2845, %v2936
  %2938 = vmatprep.mubr.f32.mxu0 %v2557
  %2939 = vmatmul.mubr.f32.gmra.mrb[0].mxu0 %v2556
  %v2940 = vpop.f32.mrb[0].mxu0
  %v2941 = vadd.f32 %v2841, %v2940
  %v2942 = vpop.f32.mrb[0].mxu0
  %v2943 = vadd.f32 %v2845, %v2942
  %2944 = vmatprep.mubr.f32.mxu0 %v2559
  %2945 = vmatmul.mubr.f32.gmra.mrb[0].mxu0 %v2558
  %v2946 = vpop.f32.mrb[0].mxu0
  %v2947 = vadd.f32 %v2841, %v2946
  %v2948 = vpop.f32.mrb[0].mxu0
  %v2949 = vadd.f32 %v2845, %v2948
  %2950 = vmatprep.mubr.f32.mxu0 %v2561
  %2951 = vmatmul.mubr.f32.gmra.mrb[0].mxu0 %v2560
  %v2952 = vpop.f32.mrb[0].mxu0
  %v2953 = vadd.f32 %v2841, %v2952
  %v2954 = vpop.f32.mrb[0].mxu0
  %v2955 = vadd.f32 %v2845, %v2954
  %2956 = vdwg.mxu0
  %2957 = vmatprep.subr.mxu0 %v2647
  %2958 = vmatpush1.msra.mxu0 %v2646
  %2959 = vmatprep.subr.mxu0 %v2653
  %2960 = vmatpush1.msra.mxu0 %v2652
  %2961 = vmatprep.subr.mxu0 %v2659
  %2962 = vmatpush1.msra.mxu0 %v2658
  %2963 = vmatprep.subr.mxu0 %v2665
  %2964 = vmatpush1.msra.mxu0 %v2664
  %2965 = vmatprep.subr.mxu0 %v2671
  %2966 = vmatpush1.msra.mxu0 %v2670
  %2967 = vmatprep.subr.mxu0 %v2677
  %2968 = vmatpush1.msra.mxu0 %v2676
  %2969 = vmatprep.subr.mxu0 %v2683
  %2970 = vmatpush1.msra.mxu0 %v2682
  %2971 = vmatprep.subr.mxu0 %v2689
  %2972 = vmatpush1.msra.mxu0 %v2688
  %2973 = vmatprep.subr.mxu0 %v2695
  %2974 = vmatpush1.msra.mxu0 %v2694
  %2975 = vmatprep.subr.mxu0 %v2701
  %2976 = vmatpush1.msra.mxu0 %v2700
  %2977 = vmatprep.subr.mxu0 %v2707
  %2978 = vmatpush1.msra.mxu0 %v2706
  %2979 = vmatprep.subr.mxu0 %v2713
  %2980 = vmatpush1.msra.mxu0 %v2712
  %2981 = vmatprep.subr.mxu0 %v2719
  %2982 = vmatpush1.msra.mxu0 %v2718
  %2983 = vmatprep.subr.mxu0 %v2725
  %2984 = vmatpush1.msra.mxu0 %v2724
  %2985 = vmatprep.subr.mxu0 %v2731
  %2986 = vmatpush1.msra.mxu0 %v2730
  %2987 = vmatprep.subr.mxu0 %v2737
  %2988 = vmatpush1.msra.mxu0 %v2736
  %2989 = vmatprep.subr.mxu0 %v2743
  %2990 = vmatpush1.msra.mxu0 %v2742
  %2991 = vmatprep.subr.mxu0 %v2749
  %2992 = vmatpush1.msra.mxu0 %v2748
  %2993 = vmatprep.subr.mxu0 %v2755
  %2994 = vmatpush1.msra.mxu0 %v2754
  %2995 = vmatprep.subr.mxu0 %v2761
  %2996 = vmatpush1.msra.mxu0 %v2760
  %2997 = vmatprep.subr.mxu0 %v2767
  %2998 = vmatpush1.msra.mxu0 %v2766
  %2999 = vmatprep.subr.mxu0 %v2773
  %3000 = vmatpush1.msra.mxu0 %v2772
  %3001 = vmatprep.subr.mxu0 %v2779
  %3002 = vmatpush1.msra.mxu0 %v2778
  %3003 = vmatprep.subr.mxu0 %v2785
  %3004 = vmatpush1.msra.mxu0 %v2784
  %3005 = vmatprep.subr.mxu0 %v2791
  %3006 = vmatpush1.msra.mxu0 %v2790
  %3007 = vmatprep.subr.mxu0 %v2797
  %3008 = vmatpush1.msra.mxu0 %v2796
  %3009 = vmatprep.subr.mxu0 %v2803
  %3010 = vmatpush1.msra.mxu0 %v2802
  %3011 = vmatprep.subr.mxu0 %v2809
  %3012 = vmatpush1.msra.mxu0 %v2808
  %3013 = vmatprep.subr.mxu0 %v2815
  %3014 = vmatpush1.msra.mxu0 %v2814
  %3015 = vmatprep.subr.mxu0 %v2821
  %3016 = vmatpush1.msra.mxu0 %v2820
  %3017 = vmatprep.subr.mxu0 %v2827
  %3018 = vmatpush1.msra.mxu0 %v2826
  %3019 = vmatprep.subr.mxu0 %v2833
  %3020 = vmatpush1.msra.mxu0 %v2832
  %3021 = vmatprep.mubr.f32.mxu0 %v2555
  %3022 = vmatmul.mubr.f32.gmra.mrb[0].mxu0 %v2554
  %v3023 = vpop.f32.mrb[0].mxu0
  %v3024 = vadd.f32 %v2849, %v3023
  %v3025 = vpop.f32.mrb[0].mxu0
  %v3026 = vadd.f32 %v2853, %v3025
  %3027 = vmatprep.mubr.f32.mxu0 %v2557
  %3028 = vmatmul.mubr.f32.gmra.mrb[0].mxu0 %v2556
  %v3029 = vpop.f32.mrb[0].mxu0
  %v3030 = vadd.f32 %v2849, %v3029
  %v3031 = vpop.f32.mrb[0].mxu0
  %v3032 = vadd.f32 %v2853, %v3031
  %3033 = vmatprep.mubr.f32.mxu0 %v2559
  %3034 = vmatmul.mubr.f32.gmra.mrb[0].mxu0 %v2558
  %v3035 = vpop.f32.mrb[0].mxu0
  %v3036 = vadd.f32 %v2849, %v3035
  %v3037 = vpop.f32.mrb[0].mxu0
  %v3038 = vadd.f32 %v2853, %v3037
  %3039 = vmatprep.mubr.f32.mxu0 %v2561
  %3040 = vmatmul.mubr.f32.gmra.mrb[0].mxu0 %v2560
  %v3041 = vpop.f32.mrb[0].mxu0
  %v3042 = vadd.f32 %v2849, %v3041
  %v3043 = vpop.f32.mrb[0].mxu0
  %v3044 = vadd.f32 %v2853, %v3043
  %3045 = vdwg.mxu0
  %3046 = vmatprep.subr.mxu0 %v2649
  %3047 = vmatpush1.msra.mxu0 %v2648
  %3048 = vmatprep.subr.mxu0 %v2655
  %3049 = vmatpush1.msra.mxu0 %v2654
  %3050 = vmatprep.subr.mxu0 %v2661
  %3051 = vmatpush1.msra.mxu0 %v2660
  %3052 = vmatprep.subr.mxu0 %v2667
  %3053 = vmatpush1.msra.mxu0 %v2666
  %3054 = vmatprep.subr.mxu0 %v2673
  %3055 = vmatpush1.msra.mxu0 %v2672
  %3056 = vmatprep.subr.mxu0 %v2679
  %3057 = vmatpush1.msra.mxu0 %v2678
  %3058 = vmatprep.subr.mxu0 %v2685
  %3059 = vmatpush1.msra.mxu0 %v2684
  %3060 = vmatprep.subr.mxu0 %v2691
  %3061 = vmatpush1.msra.mxu0 %v2690
  %3062 = vmatprep.subr.mxu0 %v2697
  %3063 = vmatpush1.msra.mxu0 %v2696
  %3064 = vmatprep.subr.mxu0 %v2703
  %3065 = vmatpush1.msra.mxu0 %v2702
  %3066 = vmatprep.subr.mxu0 %v2709
  %3067 = vmatpush1.msra.mxu0 %v2708
  %3068 = vmatprep.subr.mxu0 %v2715
  %3069 = vmatpush1.msra.mxu0 %v2714
  %3070 = vmatprep.subr.mxu0 %v2721
  %3071 = vmatpush1.msra.mxu0 %v2720
  %3072 = vmatprep.subr.mxu0 %v2727
  %3073 = vmatpush1.msra.mxu0 %v2726
  %3074 = vmatprep.subr.mxu0 %v2733
  %3075 = vmatpush1.msra.mxu0 %v2732
  %3076 = vmatprep.subr.mxu0 %v2739
  %3077 = vmatpush1.msra.mxu0 %v2738
  %3078 = vmatprep.subr.mxu0 %v2745
  %3079 = vmatpush1.msra.mxu0 %v2744
  %3080 = vmatprep.subr.mxu0 %v2751
  %3081 = vmatpush1.msra.mxu0 %v2750
  %3082 = vmatprep.subr.mxu0 %v2757
  %3083 = vmatpush1.msra.mxu0 %v2756
  %3084 = vmatprep.subr.mxu0 %v2763
  %3085 = vmatpush1.msra.mxu0 %v2762
  %3086 = vmatprep.subr.mxu0 %v2769
  %3087 = vmatpush1.msra.mxu0 %v2768
  %3088 = vmatprep.subr.mxu0 %v2775
  %3089 = vmatpush1.msra.mxu0 %v2774
  %3090 = vmatprep.subr.mxu0 %v2781
  %3091 = vmatpush1.msra.mxu0 %v2780
  %3092 = vmatprep.subr.mxu0 %v2787
  %3093 = vmatpush1.msra.mxu0 %v2786
  %3094 = vmatprep.subr.mxu0 %v2793
  %3095 = vmatpush1.msra.mxu0 %v2792
  %3096 = vmatprep.subr.mxu0 %v2799
  %3097 = vmatpush1.msra.mxu0 %v2798
  %3098 = vmatprep.subr.mxu0 %v2805
  %3099 = vmatpush1.msra.mxu0 %v2804
  %3100 = vmatprep.subr.mxu0 %v2811
  %3101 = vmatpush1.msra.mxu0 %v2810
  %3102 = vmatprep.subr.mxu0 %v2817
  %3103 = vmatpush1.msra.mxu0 %v2816
  %3104 = vmatprep.subr.mxu0 %v2823
  %3105 = vmatpush1.msra.mxu0 %v2822
  %3106 = vmatprep.subr.mxu0 %v2829
  %3107 = vmatpush1.msra.mxu0 %v2828
  %3108 = vmatprep.subr.mxu0 %v2835
  %3109 = vmatpush1.msra.mxu0 %v2834
  %3110 = vmatprep.mubr.f32.mxu0 %v2555
  %3111 = vmatmul.mubr.f32.gmra.mrb[0].mxu0 %v2554
  %v3112 = vpop.f32.mrb[0].mxu0
  %v3113 = vadd.f32 %v2857, %v3112
  %v3114 = vpop.f32.mrb[0].mxu0
  %v3115 = vadd.f32 %v2861, %v3114
  %3116 = vmatprep.mubr.f32.mxu0 %v2557
  %3117 = vmatmul.mubr.f32.gmra.mrb[0].mxu0 %v2556
  %v3118 = vpop.f32.mrb[0].mxu0
  %v3119 = vadd.f32 %v2857, %v3118
  %v3120 = vpop.f32.mrb[0].mxu0
  %v3121 = vadd.f32 %v2861, %v3120
  %3122 = vmatprep.mubr.f32.mxu0 %v2559
  %3123 = vmatmul.mubr.f32.gmra.mrb[0].mxu0 %v2558
  %v3124 = vpop.f32.mrb[0].mxu0
  %v3125 = vadd.f32 %v2857, %v3124
  %v3126 = vpop.f32.mrb[0].mxu0
  %v3127 = vadd.f32 %v2861, %v3126
  %3128 = vmatprep.mubr.f32.mxu0 %v2561
  %3129 = vmatmul.mubr.f32.gmra.mrb[0].mxu0 %v2560
  %v3130 = vpop.f32.mrb[0].mxu0
  %v3131 = vadd.f32 %v2857, %v3130
  %v3132 = vpop.f32.mrb[0].mxu0
  %v3133 = vadd.f32 %v2861, %v3132
  %3134 = vdwg.mxu0
  %v3135 = vadd.f32 %v2620, %v2935
  %v3136 = vadd.f32 %v2621, %v2937
  %v3137 = vadd.f32 %v2626, %v2941
  %v3138 = vadd.f32 %v2627, %v2943
  %v3139 = vadd.f32 %v2632, %v2947
  %v3140 = vadd.f32 %v2633, %v2949
  %v3141 = vadd.f32 %v2638, %v2953
  %v3142 = vadd.f32 %v2639, %v2955
  %v3143 = vxor.u32 %v3135, 2147483648
  %v3144 = vxor.u32 %v3136, 2147483648
  %v3145 = vxor.u32 %v3137, 2147483648
  %v3146 = vxor.u32 %v3138, 2147483648
  %v3147 = vxor.u32 %v3139, 2147483648
  %v3148 = vxor.u32 %v3140, 2147483648
  %v3149 = vxor.u32 %v3141, 2147483648
  %v3150 = vxor.u32 %v3142, 2147483648
  %v3151 = vmul.f32 %v3143, 1.442695
  %v3152 = vpow.pop %v3151
  %v3153 = vmul.f32 %v3144, 1.442695
  %v3154 = vpow.pop %v3153
  %v3155 = vmul.f32 %v3145, 1.442695
  %v3156 = vpow.pop %v3155
  %v3157 = vmul.f32 %v3146, 1.442695
  %v3158 = vpow.pop %v3157
  %v3159 = vmul.f32 %v3147, 1.442695
  %v3160 = vpow.pop %v3159
  %v3161 = vmul.f32 %v3148, 1.442695
  %v3162 = vpow.pop %v3161
  %v3163 = vmul.f32 %v3149, 1.442695
  %v3164 = vpow.pop %v3163
  %v3165 = vmul.f32 %v3150, 1.442695
  %v3166 = vpow.pop %v3165
  %v3167 = vadd.f32 %v3152, 1.0
  %v3168 = vadd.f32 %v3154, 1.0
  %v3169 = vadd.f32 %v3156, 1.0
  %v3170 = vadd.f32 %v3158, 1.0
  %v3171 = vadd.f32 %v3160, 1.0
  %v3172 = vadd.f32 %v3162, 1.0
  %v3173 = vadd.f32 %v3164, 1.0
  %v3174 = vadd.f32 %v3166, 1.0
  %v3175 = vrcp.pop %v3167
  %v3176 = vmul.f32 1.0, %v3175
  %v3177 = vrcp.pop %v3168
  %v3178 = vmul.f32 1.0, %v3177
  %v3179 = vrcp.pop %v3169
  %v3180 = vmul.f32 1.0, %v3179
  %v3181 = vrcp.pop %v3170
  %v3182 = vmul.f32 1.0, %v3181
  %v3183 = vrcp.pop %v3171
  %v3184 = vmul.f32 1.0, %v3183
  %v3185 = vrcp.pop %v3172
  %v3186 = vmul.f32 1.0, %v3185
  %v3187 = vrcp.pop %v3173
  %v3188 = vmul.f32 1.0, %v3187
  %v3189 = vrcp.pop %v3174
  %v3190 = vmul.f32 1.0, %v3189
  %v3191 = vadd.f32 %v2622, %v3024
  %v3192 = vadd.f32 %v2623, %v3026
  %v3193 = vadd.f32 %v2628, %v3030
  %v3194 = vadd.f32 %v2629, %v3032
  %v3195 = vadd.f32 %v2634, %v3036
  %v3196 = vadd.f32 %v2635, %v3038
  %v3197 = vadd.f32 %v2640, %v3042
  %v3198 = vadd.f32 %v2641, %v3044
  %v3199 = vxor.u32 %v3191, 2147483648
  %v3200 = vxor.u32 %v3192, 2147483648
  %v3201 = vxor.u32 %v3193, 2147483648
  %v3202 = vxor.u32 %v3194, 2147483648
  %v3203 = vxor.u32 %v3195, 2147483648
  %v3204 = vxor.u32 %v3196, 2147483648
  %v3205 = vxor.u32 %v3197, 2147483648
  %v3206 = vxor.u32 %v3198, 2147483648
  %v3207 = vmul.f32 %v3199, 1.442695
  %v3208 = vpow.pop %v3207
  %v3209 = vmul.f32 %v3200, 1.442695
  %v3210 = vpow.pop %v3209
  %v3211 = vmul.f32 %v3201, 1.442695
  %v3212 = vpow.pop %v3211
  %v3213 = vmul.f32 %v3202, 1.442695
  %v3214 = vpow.pop %v3213
  %v3215 = vmul.f32 %v3203, 1.442695
  %v3216 = vpow.pop %v3215
  %v3217 = vmul.f32 %v3204, 1.442695
  %v3218 = vpow.pop %v3217
  %v3219 = vmul.f32 %v3205, 1.442695
  %v3220 = vpow.pop %v3219
  %v3221 = vmul.f32 %v3206, 1.442695
  %v3222 = vpow.pop %v3221
  %v3223 = vadd.f32 %v3208, 1.0
  %v3224 = vadd.f32 %v3210, 1.0
  %v3225 = vadd.f32 %v3212, 1.0
  %v3226 = vadd.f32 %v3214, 1.0
  %v3227 = vadd.f32 %v3216, 1.0
  %v3228 = vadd.f32 %v3218, 1.0
  %v3229 = vadd.f32 %v3220, 1.0
  %v3230 = vadd.f32 %v3222, 1.0
  %v3231 = vrcp.pop %v3223
  %v3232 = vmul.f32 1.0, %v3231
  %v3233 = vrcp.pop %v3224
  %v3234 = vmul.f32 1.0, %v3233
  %v3235 = vrcp.pop %v3225
  %v3236 = vmul.f32 1.0, %v3235
  %v3237 = vrcp.pop %v3226
  %v3238 = vmul.f32 1.0, %v3237
  %v3239 = vrcp.pop %v3227
  %v3240 = vmul.f32 1.0, %v3239
  %v3241 = vrcp.pop %v3228
  %v3242 = vmul.f32 1.0, %v3241
  %v3243 = vrcp.pop %v3229
  %v3244 = vmul.f32 1.0, %v3243
  %v3245 = vrcp.pop %v3230
  %v3246 = vmul.f32 1.0, %v3245
  %v3247 = vmul.f32 %v3176, %v3113
  %v3248 = vmul.f32 %v3178, %v3115
  %v3249 = vmul.f32 %v3180, %v3119
  %v3250 = vmul.f32 %v3182, %v3121
  %v3251 = vmul.f32 %v3184, %v3125
  %v3252 = vmul.f32 %v3186, %v3127
  %v3253 = vmul.f32 %v3188, %v3131
  %v3254 = vmul.f32 %v3190, %v3133
  %v3255 = vadd.f32 %v2624, %v3247
  %v3256 = vadd.f32 %v2625, %v3248
  %v3257 = vadd.f32 %v2630, %v3249
  %v3258 = vadd.f32 %v2631, %v3250
  %v3259 = vadd.f32 %v2636, %v3251
  %v3260 = vadd.f32 %v2637, %v3252
  %v3261 = vadd.f32 %v2642, %v3253
  %v3262 = vadd.f32 %v2643, %v3254
  %v3263 = vtanh.pop %v3255
  %v3264 = vtanh.pop %v3256
  %v3265 = vtanh.pop %v3257
  %v3266 = vtanh.pop %v3258
  %v3267 = vtanh.pop %v3259
  %v3268 = vtanh.pop %v3260
  %v3269 = vtanh.pop %v3261
  %v3270 = vtanh.pop %v3262
  %v3271 = vsub.f32 1.0, %v3232
  %v3272 = vsub.f32 1.0, %v3234
  %v3273 = vsub.f32 1.0, %v3236
  %v3274 = vsub.f32 1.0, %v3238
  %v3275 = vsub.f32 1.0, %v3240
  %v3276 = vsub.f32 1.0, %v3242
  %v3277 = vsub.f32 1.0, %v3244
  %v3278 = vsub.f32 1.0, %v3246
  %v3279 = vmul.f32 %v3271, %v3263
  %v3280 = vmul.f32 %v3272, %v3264
  %v3281 = vmul.f32 %v3273, %v3265
  %v3282 = vmul.f32 %v3274, %v3266
  %v3283 = vmul.f32 %v3275, %v3267
  %v3284 = vmul.f32 %v3276, %v3268
  %v3285 = vmul.f32 %v3277, %v3269
  %v3286 = vmul.f32 %v3278, %v3270
  %v3287 = vmul.f32 %v3232, %v2554
  %v3288 = vmul.f32 %v3234, %v2555
  %v3289 = vmul.f32 %v3236, %v2556
  %v3290 = vmul.f32 %v3238, %v2557
  %v3291 = vmul.f32 %v3240, %v2558
  %v3292 = vmul.f32 %v3242, %v2559
  %v3293 = vmul.f32 %v3244, %v2560
  %v3294 = vmul.f32 %v3246, %v2561
  %v3295 = vadd.f32 %v3279, %v3287
  %v3296 = vadd.f32 %v3280, %v3288
  %v3297 = vadd.f32 %v3281, %v3289
  %v3298 = vadd.f32 %v3282, %v3290
  %v3299 = vadd.f32 %v3283, %v3291
  %v3300 = vadd.f32 %v3284, %v3292
  %v3301 = vadd.f32 %v3285, %v3293
  %v3302 = vadd.f32 %v3286, %v3294
  %v3303 = vld [vmem:[%s8] sm:$0xff]
  %v3304 = vld [vmem:[%s8 + $0x8] sm:$0xff]
  %v3305 = vld [vmem:[%s8 + $0x10] sm:$0xff]
  %v3306 = vld [vmem:[%s8 + $0x18] sm:$0xff]
  %v3307 = vld [vmem:[%s8 + $0x20] sm:$0xff]
  %v3308 = vld [vmem:[%s8 + $0x28] sm:$0xff]
  %v3309 = vld [vmem:[%s8 + $0x30] sm:$0xff]
  %v3310 = vld [vmem:[%s8 + $0x38] sm:$0xff]
  %v3311 = vld [vmem:[%s8 + $0x40] sm:$0xff]
  %v3312 = vld [vmem:[%s8 + $0x48] sm:$0xff]
  %v3313 = vld [vmem:[%s8 + $0x50] sm:$0xff]
  %v3314 = vld [vmem:[%s8 + $0x58] sm:$0xff]
  %v3315 = vld [vmem:[%s8 + $0x60] sm:$0xff]
  %v3316 = vld [vmem:[%s8 + $0x68] sm:$0xff]
  %v3317 = vld [vmem:[%s8 + $0x70] sm:$0xff]
  %v3318 = vld [vmem:[%s8 + $0x78] sm:$0xff]
  %v3319 = vld [vmem:[%s8 + $0x80] sm:$0xff]
  %v3320 = vld [vmem:[%s8 + $0x88] sm:$0xff]
  %v3321 = vld [vmem:[%s8 + $0x90] sm:$0xff]
  %v3322 = vld [vmem:[%s8 + $0x98] sm:$0xff]
  %v3323 = vld [vmem:[%s8 + $0xa0] sm:$0xff]
  %v3324 = vld [vmem:[%s8 + $0xa8] sm:$0xff]
  %v3325 = vld [vmem:[%s8 + $0xb0] sm:$0xff]
  %v3326 = vld [vmem:[%s8 + $0xb8] sm:$0xff]
  %v3327 = vld [vmem:[%s8 + $0xc0] sm:$0xff]
  %v3328 = vld [vmem:[%s8 + $0xc8] sm:$0xff]
  %v3329 = vld [vmem:[%s8 + $0xd0] sm:$0xff]
  %v3330 = vld [vmem:[%s8 + $0xd8] sm:$0xff]
  %v3331 = vld [vmem:[%s8 + $0xe0] sm:$0xff]
  %v3332 = vld [vmem:[%s8 + $0xe8] sm:$0xff]
  %v3333 = vld [vmem:[%s8 + $0xf0] sm:$0xff]
  %v3334 = vld [vmem:[%s8 + $0xf8] sm:$0xff]
  %v3335 = vld [vmem:[%s9] sm:$0x1]
  %v3337 = vlaneseq
  %v3338 = vshrl.u32 %v3337, 7
  %v3339 = vsub.s32 0, %v3338
  %v3340 = vrot.slane %v3335, %v3339
  %3342 = vmatprep.subr.mxu0 0.0
  %3343 = vmatpush1.msra.mxu0 %v3303
  %3344 = vmatprep.subr.mxu0 0.0
  %3345 = vmatpush1.msra.mxu0 %v3304
  %3346 = vmatprep.subr.mxu0 0.0
  %3347 = vmatpush1.msra.mxu0 %v3305
  %3348 = vmatprep.subr.mxu0 0.0
  %3349 = vmatpush1.msra.mxu0 %v3306
  %3350 = vmatprep.subr.mxu0 0.0
  %3351 = vmatpush1.msra.mxu0 %v3307
  %3352 = vmatprep.subr.mxu0 0.0
  %3353 = vmatpush1.msra.mxu0 %v3308
  %3354 = vmatprep.subr.mxu0 0.0
  %3355 = vmatpush1.msra.mxu0 %v3309
  %3356 = vmatprep.subr.mxu0 0.0
  %3357 = vmatpush1.msra.mxu0 %v3310
  %3358 = vmatprep.subr.mxu0 0.0
  %3359 = vmatpush1.msra.mxu0 %v3311
  %3360 = vmatprep.subr.mxu0 0.0
  %3361 = vmatpush1.msra.mxu0 %v3312
  %3362 = vmatprep.subr.mxu0 0.0
  %3363 = vmatpush1.msra.mxu0 %v3313
  %3364 = vmatprep.subr.mxu0 0.0
  %3365 = vmatpush1.msra.mxu0 %v3314
  %3366 = vmatprep.subr.mxu0 0.0
  %3367 = vmatpush1.msra.mxu0 %v3315
  %3368 = vmatprep.subr.mxu0 0.0
  %3369 = vmatpush1.msra.mxu0 %v3316
  %3370 = vmatprep.subr.mxu0 0.0
  %3371 = vmatpush1.msra.mxu0 %v3317
  %3372 = vmatprep.subr.mxu0 0.0
  %3373 = vmatpush1.msra.mxu0 %v3318
  %3374 = vmatprep.subr.mxu0 0.0
  %3375 = vmatpush1.msra.mxu0 %v3319
  %3376 = vmatprep.subr.mxu0 0.0
  %3377 = vmatpush1.msra.mxu0 %v3320
  %3378 = vmatprep.subr.mxu0 0.0
  %3379 = vmatpush1.msra.mxu0 %v3321
  %3380 = vmatprep.subr.mxu0 0.0
  %3381 = vmatpush1.msra.mxu0 %v3322
  %3382 = vmatprep.subr.mxu0 0.0
  %3383 = vmatpush1.msra.mxu0 %v3323
  %3384 = vmatprep.subr.mxu0 0.0
  %3385 = vmatpush1.msra.mxu0 %v3324
  %3386 = vmatprep.subr.mxu0 0.0
  %3387 = vmatpush1.msra.mxu0 %v3325
  %3388 = vmatprep.subr.mxu0 0.0
  %3389 = vmatpush1.msra.mxu0 %v3326
  %3390 = vmatprep.subr.mxu0 0.0
  %3391 = vmatpush1.msra.mxu0 %v3327
  %3392 = vmatprep.subr.mxu0 0.0
  %3393 = vmatpush1.msra.mxu0 %v3328
  %3394 = vmatprep.subr.mxu0 0.0
  %3395 = vmatpush1.msra.mxu0 %v3329
  %3396 = vmatprep.subr.mxu0 0.0
  %3397 = vmatpush1.msra.mxu0 %v3330
  %3398 = vmatprep.subr.mxu0 0.0
  %3399 = vmatpush1.msra.mxu0 %v3331
  %3400 = vmatprep.subr.mxu0 0.0
  %3401 = vmatpush1.msra.mxu0 %v3332
  %3402 = vmatprep.subr.mxu0 0.0
  %3403 = vmatpush1.msra.mxu0 %v3333
  %3404 = vmatprep.subr.mxu0 0.0
  %3405 = vmatpush1.msra.mxu0 %v3334
  %3406 = vmatprep.mubr.f32.mxu0 %v3296
  %3407 = vmatmul.mubr.f32.gmra.mrb[0].mxu0 %v3295
  %v3408 = vpop.f32.mrb[0].mxu0
  %v3409 = vadd.f32 %v3340, %v3408
  %v3410 = vpop.f32.mrb[0].mxu0
  %3411 = vmatprep.mubr.f32.mxu0 %v3298
  %3412 = vmatmul.mubr.f32.gmra.mrb[0].mxu0 %v3297
  %v3413 = vpop.f32.mrb[0].mxu0
  %v3414 = vadd.f32 %v3340, %v3413
  %v3415 = vpop.f32.mrb[0].mxu0
  %3416 = vmatprep.mubr.f32.mxu0 %v3300
  %3417 = vmatmul.mubr.f32.gmra.mrb[0].mxu0 %v3299
  %v3418 = vpop.f32.mrb[0].mxu0
  %v3419 = vadd.f32 %v3340, %v3418
  %v3420 = vpop.f32.mrb[0].mxu0
  %3421 = vmatprep.mubr.f32.mxu0 %v3302
  %3422 = vmatmul.mubr.f32.gmra.mrb[0].mxu0 %v3301
  %v3423 = vpop.f32.mrb[0].mxu0
  %v3424 = vadd.f32 %v3340, %v3423
  %v3425 = vpop.f32.mrb[0].mxu0
  %3426 = vdwg.mxu0
  %s3427 = scalar_lea.vmem %s10, 32
  %3428 = vst [vmem:[%s3427] sm:$0xff] %v3409
  %3429 = vst [vmem:[%s3427 + $0x8] sm:$0xff] %v3414
  %3430 = vst [vmem:[%s3427 + $0x10] sm:$0xff] %v3419
  %3431 = vst [vmem:[%s3427 + $0x18] sm:$0xff] %v3424
  %3432 = vmax.xlane.f32.xlu0 %v3409
  %v3433 = vpop.xlane.xlu0 %3432
  %3434 = vmax.xlane.f32.xlu0 %v3414
  %v3435 = vpop.xlane.xlu0 %3434
  %3436 = vmax.xlane.f32.xlu0 %v3419
  %v3437 = vpop.xlane.xlu0 %3436
  %3438 = vmax.xlane.f32.xlu0 %v3424
  %v3439 = vpop.xlane.xlu0 %3438
  %v3440 = vlaneseq
  %v3441 = vand.u32 %v3440, 127
  %vm3442 = vcmp.ge.f32.partialorder %v3409, %v3433
  %vm3443 = vcmp.ge.f32.partialorder %v3414, %v3435
  %vm3444 = vcmp.ge.f32.partialorder %v3419, %v3437
  %vm3445 = vcmp.ge.f32.partialorder %v3424, %v3439
  %v3446 = vsel %vm3442, %v3441, 2147483647
  %v3447 = vsel %vm3443, %v3441, 2147483647
  %v3448 = vsel %vm3444, %v3441, 2147483647
  %v3449 = vsel %vm3445, %v3441, 2147483647
  %v3450 = vand.u32 %v3446, 65535
  %v3451 = vshra.s32 %v3446, 16
  %v3452 = vcvt.s32.f32 %v3450
  %v3453 = vcvt.s32.f32 %v3451
  %3454 = vmin.xlane.f32.xlu0 %v3453
  %v3455 = vpop.xlane.xlu0 %3454
  %vm3456 = vcmp.eq.f32.partialorder %v3453, %v3455
  %v3457 = vsel %vm3456, %v3452, inf
  %3458 = vmin.xlane.f32.xlu0 %v3457
  %v3459 = vpop.xlane.xlu0 %3458
  %v3460 = vcvt.f32.s32 %v3459
  %v3461 = vcvt.f32.s32 %v3455
  %v3462 = vshll.u32 %v3461, 16
  %v3463 = vadd.s32 %v3462, %v3460
  %v3464 = vand.u32 %v3447, 65535
  %v3465 = vshra.s32 %v3447, 16
  %v3466 = vcvt.s32.f32 %v3464
  %v3467 = vcvt.s32.f32 %v3465
  %3468 = vmin.xlane.f32.xlu0 %v3467
  %v3469 = vpop.xlane.xlu0 %3468
  %vm3470 = vcmp.eq.f32.partialorder %v3467, %v3469
  %v3471 = vsel %vm3470, %v3466, inf
  %3472 = vmin.xlane.f32.xlu0 %v3471
  %v3473 = vpop.xlane.xlu0 %3472
  %v3474 = vcvt.f32.s32 %v3473
  %v3475 = vcvt.f32.s32 %v3469
  %v3476 = vshll.u32 %v3475, 16
  %v3477 = vadd.s32 %v3476, %v3474
  %v3478 = vand.u32 %v3448, 65535
  %v3479 = vshra.s32 %v3448, 16
  %v3480 = vcvt.s32.f32 %v3478
  %v3481 = vcvt.s32.f32 %v3479
  %3482 = vmin.xlane.f32.xlu0 %v3481
  %v3483 = vpop.xlane.xlu0 %3482
  %vm3484 = vcmp.eq.f32.partialorder %v3481, %v3483
  %v3485 = vsel %vm3484, %v3480, inf
  %3486 = vmin.xlane.f32.xlu0 %v3485
  %v3487 = vpop.xlane.xlu0 %3486
  %v3488 = vcvt.f32.s32 %v3487
  %v3489 = vcvt.f32.s32 %v3483
  %v3490 = vshll.u32 %v3489, 16
  %v3491 = vadd.s32 %v3490, %v3488
  %v3492 = vand.u32 %v3449, 65535
  %v3493 = vshra.s32 %v3449, 16
  %v3494 = vcvt.s32.f32 %v3492
  %v3495 = vcvt.s32.f32 %v3493
  %3496 = vmin.xlane.f32.xlu0 %v3495
  %v3497 = vpop.xlane.xlu0 %3496
  %vm3498 = vcmp.eq.f32.partialorder %v3495, %v3497
  %v3499 = vsel %vm3498, %v3494, inf
  %3500 = vmin.xlane.f32.xlu0 %v3499
  %v3501 = vpop.xlane.xlu0 %3500
  %v3502 = vcvt.f32.s32 %v3501
  %v3503 = vcvt.f32.s32 %v3497
  %v3504 = vshll.u32 %v3503, 16
  %v3505 = vadd.s32 %v3504, %v3502
  %vm3506 = vcmp.eq.s32.totalorder %v3441, %v3463
  %vm3507 = vcmp.eq.s32.totalorder %v3441, %v3477
  %vm3508 = vcmp.eq.s32.totalorder %v3441, %v3491
  %vm3509 = vcmp.eq.s32.totalorder %v3441, %v3505
  %v3510 = vsel %vm3506, 1, 0
  %v3511 = vsel %vm3507, 1, 0
  %v3512 = vsel %vm3508, 1, 0
  %v3513 = vsel %vm3509, 1, 0
  %v3514 = vcvt.s32.f32 %v3510
  %v3515 = vcvt.s32.f32 %v3511
  %v3516 = vcvt.s32.f32 %v3512
  %v3517 = vcvt.s32.f32 %v3513
  %v3518 = vld [vmem:[%s7] sm:$0xff]
  %v3519 = vld [vmem:[%s7 + $0x8] sm:$0xff]
  %v3520 = vld [vmem:[%s7 + $0x10] sm:$0xff]
  %v3521 = vld [vmem:[%s7 + $0x18] sm:$0xff]
  %v3522 = vld [vmem:[%s7 + $0x20] sm:$0xff]
  %v3523 = vld [vmem:[%s7 + $0x28] sm:$0xff]
  %v3524 = vld [vmem:[%s7 + $0x30] sm:$0xff]
  %v3525 = vld [vmem:[%s7 + $0x38] sm:$0xff]
  %v3526 = vld [vmem:[%s7 + $0x40] sm:$0xff]
  %v3527 = vld [vmem:[%s7 + $0x48] sm:$0xff]
  %v3528 = vld [vmem:[%s7 + $0x50] sm:$0xff]
  %v3529 = vld [vmem:[%s7 + $0x58] sm:$0xff]
  %v3530 = vld [vmem:[%s7 + $0x60] sm:$0xff]
  %v3531 = vld [vmem:[%s7 + $0x68] sm:$0xff]
  %v3532 = vld [vmem:[%s7 + $0x70] sm:$0xff]
  %v3533 = vld [vmem:[%s7 + $0x78] sm:$0xff]
  %v3534 = vld [vmem:[%s7 + $0x80] sm:$0xff]
  %v3535 = vld [vmem:[%s7 + $0x88] sm:$0xff]
  %v3536 = vld [vmem:[%s7 + $0x90] sm:$0xff]
  %v3537 = vld [vmem:[%s7 + $0x98] sm:$0xff]
  %v3538 = vld [vmem:[%s7 + $0xa0] sm:$0xff]
  %v3539 = vld [vmem:[%s7 + $0xa8] sm:$0xff]
  %v3540 = vld [vmem:[%s7 + $0xb0] sm:$0xff]
  %v3541 = vld [vmem:[%s7 + $0xb8] sm:$0xff]
  %v3542 = vld [vmem:[%s7 + $0xc0] sm:$0xff]
  %v3543 = vld [vmem:[%s7 + $0xc8] sm:$0xff]
  %v3544 = vld [vmem:[%s7 + $0xd0] sm:$0xff]
  %v3545 = vld [vmem:[%s7 + $0xd8] sm:$0xff]
  %v3546 = vld [vmem:[%s7 + $0xe0] sm:$0xff]
  %v3547 = vld [vmem:[%s7 + $0xe8] sm:$0xff]
  %v3548 = vld [vmem:[%s7 + $0xf0] sm:$0xff]
  %v3549 = vld [vmem:[%s7 + $0xf8] sm:$0xff]
  %v3550 = vld [vmem:[%s7 + $0x100] sm:$0xff]
  %v3551 = vld [vmem:[%s7 + $0x108] sm:$0xff]
  %v3552 = vld [vmem:[%s7 + $0x110] sm:$0xff]
  %v3553 = vld [vmem:[%s7 + $0x118] sm:$0xff]
  %v3554 = vld [vmem:[%s7 + $0x120] sm:$0xff]
  %v3555 = vld [vmem:[%s7 + $0x128] sm:$0xff]
  %v3556 = vld [vmem:[%s7 + $0x130] sm:$0xff]
  %v3557 = vld [vmem:[%s7 + $0x138] sm:$0xff]
  %v3558 = vld [vmem:[%s7 + $0x140] sm:$0xff]
  %v3559 = vld [vmem:[%s7 + $0x148] sm:$0xff]
  %v3560 = vld [vmem:[%s7 + $0x150] sm:$0xff]
  %v3561 = vld [vmem:[%s7 + $0x158] sm:$0xff]
  %v3562 = vld [vmem:[%s7 + $0x160] sm:$0xff]
  %v3563 = vld [vmem:[%s7 + $0x168] sm:$0xff]
  %v3564 = vld [vmem:[%s7 + $0x170] sm:$0xff]
  %v3565 = vld [vmem:[%s7 + $0x178] sm:$0xff]
  %v3566 = vld [vmem:[%s7 + $0x180] sm:$0xff]
  %v3567 = vld [vmem:[%s7 + $0x188] sm:$0xff]
  %v3568 = vld [vmem:[%s7 + $0x190] sm:$0xff]
  %v3569 = vld [vmem:[%s7 + $0x198] sm:$0xff]
  %v3570 = vld [vmem:[%s7 + $0x1a0] sm:$0xff]
  %v3571 = vld [vmem:[%s7 + $0x1a8] sm:$0xff]
  %v3572 = vld [vmem:[%s7 + $0x1b0] sm:$0xff]
  %v3573 = vld [vmem:[%s7 + $0x1b8] sm:$0xff]
  %v3574 = vld [vmem:[%s7 + $0x1c0] sm:$0xff]
  %v3575 = vld [vmem:[%s7 + $0x1c8] sm:$0xff]
  %v3576 = vld [vmem:[%s7 + $0x1d0] sm:$0xff]
  %v3577 = vld [vmem:[%s7 + $0x1d8] sm:$0xff]
  %v3578 = vld [vmem:[%s7 + $0x1e0] sm:$0xff]
  %v3579 = vld [vmem:[%s7 + $0x1e8] sm:$0xff]
  %v3580 = vld [vmem:[%s7 + $0x1f0] sm:$0xff]
  %v3581 = vld [vmem:[%s7 + $0x1f8] sm:$0xff]
  %v3582 = vld [vmem:[%s7 + $0x200] sm:$0xff]
  %v3583 = vld [vmem:[%s7 + $0x208] sm:$0xff]
  %v3584 = vld [vmem:[%s7 + $0x210] sm:$0xff]
  %v3585 = vld [vmem:[%s7 + $0x218] sm:$0xff]
  %v3586 = vld [vmem:[%s7 + $0x220] sm:$0xff]
  %v3587 = vld [vmem:[%s7 + $0x228] sm:$0xff]
  %v3588 = vld [vmem:[%s7 + $0x230] sm:$0xff]
  %v3589 = vld [vmem:[%s7 + $0x238] sm:$0xff]
  %v3590 = vld [vmem:[%s7 + $0x240] sm:$0xff]
  %v3591 = vld [vmem:[%s7 + $0x248] sm:$0xff]
  %v3592 = vld [vmem:[%s7 + $0x250] sm:$0xff]
  %v3593 = vld [vmem:[%s7 + $0x258] sm:$0xff]
  %v3594 = vld [vmem:[%s7 + $0x260] sm:$0xff]
  %v3595 = vld [vmem:[%s7 + $0x268] sm:$0xff]
  %v3596 = vld [vmem:[%s7 + $0x270] sm:$0xff]
  %v3597 = vld [vmem:[%s7 + $0x278] sm:$0xff]
  %v3598 = vld [vmem:[%s7 + $0x280] sm:$0xff]
  %v3599 = vld [vmem:[%s7 + $0x288] sm:$0xff]
  %v3600 = vld [vmem:[%s7 + $0x290] sm:$0xff]
  %v3601 = vld [vmem:[%s7 + $0x298] sm:$0xff]
  %v3602 = vld [vmem:[%s7 + $0x2a0] sm:$0xff]
  %v3603 = vld [vmem:[%s7 + $0x2a8] sm:$0xff]
  %v3604 = vld [vmem:[%s7 + $0x2b0] sm:$0xff]
  %v3605 = vld [vmem:[%s7 + $0x2b8] sm:$0xff]
  %v3606 = vld [vmem:[%s7 + $0x2c0] sm:$0xff]
  %v3607 = vld [vmem:[%s7 + $0x2c8] sm:$0xff]
  %v3608 = vld [vmem:[%s7 + $0x2d0] sm:$0xff]
  %v3609 = vld [vmem:[%s7 + $0x2d8] sm:$0xff]
  %v3610 = vld [vmem:[%s7 + $0x2e0] sm:$0xff]
  %v3611 = vld [vmem:[%s7 + $0x2e8] sm:$0xff]
  %v3612 = vld [vmem:[%s7 + $0x2f0] sm:$0xff]
  %v3613 = vld [vmem:[%s7 + $0x2f8] sm:$0xff]
  %3614 = vmatprep.subr.mxu0 %v3519
  %3615 = vmatpush1.msra.mxu0 %v3518
  %3616 = vmatprep.subr.mxu0 %v3525
  %3617 = vmatpush1.msra.mxu0 %v3524
  %3618 = vmatprep.subr.mxu0 %v3531
  %3619 = vmatpush1.msra.mxu0 %v3530
  %3620 = vmatprep.subr.mxu0 %v3537
  %3621 = vmatpush1.msra.mxu0 %v3536
  %3622 = vmatprep.subr.mxu0 %v3543
  %3623 = vmatpush1.msra.mxu0 %v3542
  %3624 = vmatprep.subr.mxu0 %v3549
  %3625 = vmatpush1.msra.mxu0 %v3548
  %3626 = vmatprep.subr.mxu0 %v3555
  %3627 = vmatpush1.msra.mxu0 %v3554
  %3628 = vmatprep.subr.mxu0 %v3561
  %3629 = vmatpush1.msra.mxu0 %v3560
  %3630 = vmatprep.subr.mxu0 %v3567
  %3631 = vmatpush1.msra.mxu0 %v3566
  %3632 = vmatprep.subr.mxu0 %v3573
  %3633 = vmatpush1.msra.mxu0 %v3572
  %3634 = vmatprep.subr.mxu0 %v3579
  %3635 = vmatpush1.msra.mxu0 %v3578
  %3636 = vmatprep.subr.mxu0 %v3585
  %3637 = vmatpush1.msra.mxu0 %v3584
  %3638 = vmatprep.subr.mxu0 %v3591
  %3639 = vmatpush1.msra.mxu0 %v3590
  %3640 = vmatprep.subr.mxu0 %v3597
  %3641 = vmatpush1.msra.mxu0 %v3596
  %3642 = vmatprep.subr.mxu0 %v3603
  %3643 = vmatpush1.msra.mxu0 %v3602
  %3644 = vmatprep.subr.mxu0 %v3609
  %3645 = vmatpush1.msra.mxu0 %v3608
  %3646 = vmatprep.subr.mxu0 0.0
  %3647 = vmatpush1.msra.mxu0 0.0
  %3648 = vmatprep.subr.mxu0 0.0
  %3649 = vmatpush1.msra.mxu0 0.0
  %3650 = vmatprep.subr.mxu0 0.0
  %3651 = vmatpush1.msra.mxu0 0.0
  %3652 = vmatprep.subr.mxu0 0.0
  %3653 = vmatpush1.msra.mxu0 0.0
  %3654 = vmatprep.subr.mxu0 0.0
  %3655 = vmatpush1.msra.mxu0 0.0
  %3656 = vmatprep.subr.mxu0 0.0
  %3657 = vmatpush1.msra.mxu0 0.0
  %3658 = vmatprep.subr.mxu0 0.0
  %3659 = vmatpush1.msra.mxu0 0.0
  %3660 = vmatprep.subr.mxu0 0.0
  %3661 = vmatpush1.msra.mxu0 0.0
  %3662 = vmatprep.subr.mxu0 0.0
  %3663 = vmatpush1.msra.mxu0 0.0
  %3664 = vmatprep.subr.mxu0 0.0
  %3665 = vmatpush1.msra.mxu0 0.0
  %3666 = vmatprep.subr.mxu0 0.0
  %3667 = vmatpush1.msra.mxu0 0.0
  %3668 = vmatprep.subr.mxu0 0.0
  %3669 = vmatpush1.msra.mxu0 0.0
  %3670 = vmatprep.subr.mxu0 0.0
  %3671 = vmatpush1.msra.mxu0 0.0
  %3672 = vmatprep.subr.mxu0 0.0
  %3673 = vmatpush1.msra.mxu0 0.0
  %3674 = vmatprep.subr.mxu0 0.0
  %3675 = vmatpush1.msra.mxu0 0.0
  %3676 = vmatprep.subr.mxu0 0.0
  %3677 = vmatpush1.msra.mxu0 0.0
  %3678 = vmatprep.mubr.f32.mxu0 0.0
  %3679 = vmatmul.mubr.f32.gmra.mrb[0].mxu0 %v3514
  %v3680 = vpop.f32.mrb[0].mxu0
  %v3681 = vadd.f32 0.0, %v3680
  %v3682 = vpop.f32.mrb[0].mxu0
  %v3683 = vadd.f32 0.0, %v3682
  %3684 = vmatprep.mubr.f32.mxu0 0.0
  %3685 = vmatmul.mubr.f32.gmra.mrb[0].mxu0 %v3515
  %v3686 = vpop.f32.mrb[0].mxu0
  %v3687 = vadd.f32 0.0, %v3686
  %v3688 = vpop.f32.mrb[0].mxu0
  %v3689 = vadd.f32 0.0, %v3688
  %3690 = vmatprep.mubr.f32.mxu0 0.0
  %3691 = vmatmul.mubr.f32.gmra.mrb[0].mxu0 %v3516
  %v3692 = vpop.f32.mrb[0].mxu0
  %v3693 = vadd.f32 0.0, %v3692
  %v3694 = vpop.f32.mrb[0].mxu0
  %v3695 = vadd.f32 0.0, %v3694
  %3696 = vmatprep.mubr.f32.mxu0 0.0
  %3697 = vmatmul.mubr.f32.gmra.mrb[0].mxu0 %v3517
  %v3698 = vpop.f32.mrb[0].mxu0
  %v3699 = vadd.f32 0.0, %v3698
  %v3700 = vpop.f32.mrb[0].mxu0
  %v3701 = vadd.f32 0.0, %v3700
  %3702 = vdwg.mxu0
  %3703 = vmatprep.subr.mxu0 %v3521
  %3704 = vmatpush1.msra.mxu0 %v3520
  %3705 = vmatprep.subr.mxu0 %v3527
  %3706 = vmatpush1.msra.mxu0 %v3526
  %3707 = vmatprep.subr.mxu0 %v3533
  %3708 = vmatpush1.msra.mxu0 %v3532
  %3709 = vmatprep.subr.mxu0 %v3539
  %3710 = vmatpush1.msra.mxu0 %v3538
  %3711 = vmatprep.subr.mxu0 %v3545
  %3712 = vmatpush1.msra.mxu0 %v3544
  %3713 = vmatprep.subr.mxu0 %v3551
  %3714 = vmatpush1.msra.mxu0 %v3550
  %3715 = vmatprep.subr.mxu0 %v3557
  %3716 = vmatpush1.msra.mxu0 %v3556
  %3717 = vmatprep.subr.mxu0 %v3563
  %3718 = vmatpush1.msra.mxu0 %v3562
  %3719 = vmatprep.subr.mxu0 %v3569
  %3720 = vmatpush1.msra.mxu0 %v3568
  %3721 = vmatprep.subr.mxu0 %v3575
  %3722 = vmatpush1.msra.mxu0 %v3574
  %3723 = vmatprep.subr.mxu0 %v3581
  %3724 = vmatpush1.msra.mxu0 %v3580
  %3725 = vmatprep.subr.mxu0 %v3587
  %3726 = vmatpush1.msra.mxu0 %v3586
  %3727 = vmatprep.subr.mxu0 %v3593
  %3728 = vmatpush1.msra.mxu0 %v3592
  %3729 = vmatprep.subr.mxu0 %v3599
  %3730 = vmatpush1.msra.mxu0 %v3598
  %3731 = vmatprep.subr.mxu0 %v3605
  %3732 = vmatpush1.msra.mxu0 %v3604
  %3733 = vmatprep.subr.mxu0 %v3611
  %3734 = vmatpush1.msra.mxu0 %v3610
  %3735 = vmatprep.subr.mxu0 0.0
  %3736 = vmatpush1.msra.mxu0 0.0
  %3737 = vmatprep.subr.mxu0 0.0
  %3738 = vmatpush1.msra.mxu0 0.0
  %3739 = vmatprep.subr.mxu0 0.0
  %3740 = vmatpush1.msra.mxu0 0.0
  %3741 = vmatprep.subr.mxu0 0.0
  %3742 = vmatpush1.msra.mxu0 0.0
  %3743 = vmatprep.subr.mxu0 0.0
  %3744 = vmatpush1.msra.mxu0 0.0
  %3745 = vmatprep.subr.mxu0 0.0
  %3746 = vmatpush1.msra.mxu0 0.0
  %3747 = vmatprep.subr.mxu0 0.0
  %3748 = vmatpush1.msra.mxu0 0.0
  %3749 = vmatprep.subr.mxu0 0.0
  %3750 = vmatpush1.msra.mxu0 0.0
  %3751 = vmatprep.subr.mxu0 0.0
  %3752 = vmatpush1.msra.mxu0 0.0
  %3753 = vmatprep.subr.mxu0 0.0
  %3754 = vmatpush1.msra.mxu0 0.0
  %3755 = vmatprep.subr.mxu0 0.0
  %3756 = vmatpush1.msra.mxu0 0.0
  %3757 = vmatprep.subr.mxu0 0.0
  %3758 = vmatpush1.msra.mxu0 0.0
  %3759 = vmatprep.subr.mxu0 0.0
  %3760 = vmatpush1.msra.mxu0 0.0
  %3761 = vmatprep.subr.mxu0 0.0
  %3762 = vmatpush1.msra.mxu0 0.0
  %3763 = vmatprep.subr.mxu0 0.0
  %3764 = vmatpush1.msra.mxu0 0.0
  %3765 = vmatprep.subr.mxu0 0.0
  %3766 = vmatpush1.msra.mxu0 0.0
  %3767 = vmatprep.mubr.f32.mxu0 0.0
  %3768 = vmatmul.mubr.f32.gmra.mrb[0].mxu0 %v3514
  %v3769 = vpop.f32.mrb[0].mxu0
  %v3770 = vadd.f32 0.0, %v3769
  %v3771 = vpop.f32.mrb[0].mxu0
  %v3772 = vadd.f32 0.0, %v3771
  %3773 = vmatprep.mubr.f32.mxu0 0.0
  %3774 = vmatmul.mubr.f32.gmra.mrb[0].mxu0 %v3515
  %v3775 = vpop.f32.mrb[0].mxu0
  %v3776 = vadd.f32 0.0, %v3775
  %v3777 = vpop.f32.mrb[0].mxu0
  %v3778 = vadd.f32 0.0, %v3777
  %3779 = vmatprep.mubr.f32.mxu0 0.0
  %3780 = vmatmul.mubr.f32.gmra.mrb[0].mxu0 %v3516
  %v3781 = vpop.f32.mrb[0].mxu0
  %v3782 = vadd.f32 0.0, %v3781
  %v3783 = vpop.f32.mrb[0].mxu0
  %v3784 = vadd.f32 0.0, %v3783
  %3785 = vmatprep.mubr.f32.mxu0 0.0
  %3786 = vmatmul.mubr.f32.gmra.mrb[0].mxu0 %v3517
  %v3787 = vpop.f32.mrb[0].mxu0
  %v3788 = vadd.f32 0.0, %v3787
  %v3789 = vpop.f32.mrb[0].mxu0
  %v3790 = vadd.f32 0.0, %v3789
  %3791 = vdwg.mxu0
  %3792 = vmatprep.subr.mxu0 %v3523
  %3793 = vmatpush1.msra.mxu0 %v3522
  %3794 = vmatprep.subr.mxu0 %v3529
  %3795 = vmatpush1.msra.mxu0 %v3528
  %3796 = vmatprep.subr.mxu0 %v3535
  %3797 = vmatpush1.msra.mxu0 %v3534
  %3798 = vmatprep.subr.mxu0 %v3541
  %3799 = vmatpush1.msra.mxu0 %v3540
  %3800 = vmatprep.subr.mxu0 %v3547
  %3801 = vmatpush1.msra.mxu0 %v3546
  %3802 = vmatprep.subr.mxu0 %v3553
  %3803 = vmatpush1.msra.mxu0 %v3552
  %3804 = vmatprep.subr.mxu0 %v3559
  %3805 = vmatpush1.msra.mxu0 %v3558
  %3806 = vmatprep.subr.mxu0 %v3565
  %3807 = vmatpush1.msra.mxu0 %v3564
  %3808 = vmatprep.subr.mxu0 %v3571
  %3809 = vmatpush1.msra.mxu0 %v3570
  %3810 = vmatprep.subr.mxu0 %v3577
  %3811 = vmatpush1.msra.mxu0 %v3576
  %3812 = vmatprep.subr.mxu0 %v3583
  %3813 = vmatpush1.msra.mxu0 %v3582
  %3814 = vmatprep.subr.mxu0 %v3589
  %3815 = vmatpush1.msra.mxu0 %v3588
  %3816 = vmatprep.subr.mxu0 %v3595
  %3817 = vmatpush1.msra.mxu0 %v3594
  %3818 = vmatprep.subr.mxu0 %v3601
  %3819 = vmatpush1.msra.mxu0 %v3600
  %3820 = vmatprep.subr.mxu0 %v3607
  %3821 = vmatpush1.msra.mxu0 %v3606
  %3822 = vmatprep.subr.mxu0 %v3613
  %3823 = vmatpush1.msra.mxu0 %v3612
  %3824 = vmatprep.subr.mxu0 0.0
  %3825 = vmatpush1.msra.mxu0 0.0
  %3826 = vmatprep.subr.mxu0 0.0
  %3827 = vmatpush1.msra.mxu0 0.0
  %3828 = vmatprep.subr.mxu0 0.0
  %3829 = vmatpush1.msra.mxu0 0.0
  %3830 = vmatprep.subr.mxu0 0.0
  %3831 = vmatpush1.msra.mxu0 0.0
  %3832 = vmatprep.subr.mxu0 0.0
  %3833 = vmatpush1.msra.mxu0 0.0
  %3834 = vmatprep.subr.mxu0 0.0
  %3835 = vmatpush1.msra.mxu0 0.0
  %3836 = vmatprep.subr.mxu0 0.0
  %3837 = vmatpush1.msra.mxu0 0.0
  %3838 = vmatprep.subr.mxu0 0.0
  %3839 = vmatpush1.msra.mxu0 0.0
  %3840 = vmatprep.subr.mxu0 0.0
  %3841 = vmatpush1.msra.mxu0 0.0
  %3842 = vmatprep.subr.mxu0 0.0
  %3843 = vmatpush1.msra.mxu0 0.0
  %3844 = vmatprep.subr.mxu0 0.0
  %3845 = vmatpush1.msra.mxu0 0.0
  %3846 = vmatprep.subr.mxu0 0.0
  %3847 = vmatpush1.msra.mxu0 0.0
  %3848 = vmatprep.subr.mxu0 0.0
  %3849 = vmatpush1.msra.mxu0 0.0
  %3850 = vmatprep.subr.mxu0 0.0
  %3851 = vmatpush1.msra.mxu0 0.0
  %3852 = vmatprep.subr.mxu0 0.0
  %3853 = vmatpush1.msra.mxu0 0.0
  %3854 = vmatprep.subr.mxu0 0.0
  %3855 = vmatpush1.msra.mxu0 0.0
  %3856 = vmatprep.mubr.f32.mxu0 0.0
  %3857 = vmatmul.mubr.f32.gmra.mrb[0].mxu0 %v3514
  %v3858 = vpop.f32.mrb[0].mxu0
  %v3859 = vadd.f32 0.0, %v3858
  %v3860 = vpop.f32.mrb[0].mxu0
  %v3861 = vadd.f32 0.0, %v3860
  %3862 = vmatprep.mubr.f32.mxu0 0.0
  %3863 = vmatmul.mubr.f32.gmra.mrb[0].mxu0 %v3515
  %v3864 = vpop.f32.mrb[0].mxu0
  %v3865 = vadd.f32 0.0, %v3864
  %v3866 = vpop.f32.mrb[0].mxu0
  %v3867 = vadd.f32 0.0, %v3866
  %3868 = vmatprep.mubr.f32.mxu0 0.0
  %3869 = vmatmul.mubr.f32.gmra.mrb[0].mxu0 %v3516
  %v3870 = vpop.f32.mrb[0].mxu0
  %v3871 = vadd.f32 0.0, %v3870
  %v3872 = vpop.f32.mrb[0].mxu0
  %v3873 = vadd.f32 0.0, %v3872
  %3874 = vmatprep.mubr.f32.mxu0 0.0
  %3875 = vmatmul.mubr.f32.gmra.mrb[0].mxu0 %v3517
  %v3876 = vpop.f32.mrb[0].mxu0
  %v3877 = vadd.f32 0.0, %v3876
  %v3878 = vpop.f32.mrb[0].mxu0
  %v3879 = vadd.f32 0.0, %v3878
  %3880 = vdwg.mxu0
  %s3881 = sld [smem:[#allocation3 + $0x1]]
  %s3882 = scvt.s32.f32 %s3881
  %s3883 = scalar_lea.vmem %s2, 192
  %v3884 = vld [vmem:[%s3883] sm:$0xff]
  %v3885 = vld [vmem:[%s3883 + $0x8] sm:$0xff]
  %v3886 = vld [vmem:[%s3883 + $0x10] sm:$0xff]
  %v3887 = vld [vmem:[%s3883 + $0x18] sm:$0xff]
  %v3888 = vld [vmem:[%s3883 + $0x20] sm:$0xff]
  %v3889 = vld [vmem:[%s3883 + $0x28] sm:$0xff]
  %v3890 = vld [vmem:[%s3883 + $0x30] sm:$0xff]
  %v3891 = vld [vmem:[%s3883 + $0x38] sm:$0xff]
  %v3892 = vld [vmem:[%s3883 + $0x40] sm:$0xff]
  %v3893 = vld [vmem:[%s3883 + $0x48] sm:$0xff]
  %v3894 = vld [vmem:[%s3883 + $0x50] sm:$0xff]
  %v3895 = vld [vmem:[%s3883 + $0x58] sm:$0xff]
  %v3896 = vld [vmem:[%s3883 + $0x60] sm:$0xff]
  %v3897 = vld [vmem:[%s3883 + $0x68] sm:$0xff]
  %v3898 = vld [vmem:[%s3883 + $0x70] sm:$0xff]
  %v3899 = vld [vmem:[%s3883 + $0x78] sm:$0xff]
  %v3900 = vld [vmem:[%s3883 + $0x80] sm:$0xff]
  %v3901 = vld [vmem:[%s3883 + $0x88] sm:$0xff]
  %v3902 = vld [vmem:[%s3883 + $0x90] sm:$0xff]
  %v3903 = vld [vmem:[%s3883 + $0x98] sm:$0xff]
  %v3904 = vld [vmem:[%s3883 + $0xa0] sm:$0xff]
  %v3905 = vld [vmem:[%s3883 + $0xa8] sm:$0xff]
  %v3906 = vld [vmem:[%s3883 + $0xb0] sm:$0xff]
  %v3907 = vld [vmem:[%s3883 + $0xb8] sm:$0xff]
  %v3908 = vstv %s3882
  %v3909 = vmul.f32 %v3908, %v3884
  %v3910 = vmul.f32 %v3908, %v3885
  %v3911 = vmul.f32 %v3908, %v3886
  %v3912 = vmul.f32 %v3908, %v3887
  %v3913 = vmul.f32 %v3908, %v3888
  %v3914 = vmul.f32 %v3908, %v3889
  %v3915 = vmul.f32 %v3908, %v3890
  %v3916 = vmul.f32 %v3908, %v3891
  %v3917 = vmul.f32 %v3908, %v3892
  %v3918 = vmul.f32 %v3908, %v3893
  %v3919 = vmul.f32 %v3908, %v3894
  %v3920 = vmul.f32 %v3908, %v3895
  %v3921 = vmul.f32 %v3908, %v3896
  %v3922 = vmul.f32 %v3908, %v3897
  %v3923 = vmul.f32 %v3908, %v3898
  %v3924 = vmul.f32 %v3908, %v3899
  %v3925 = vmul.f32 %v3908, %v3900
  %v3926 = vmul.f32 %v3908, %v3901
  %v3927 = vmul.f32 %v3908, %v3902
  %v3928 = vmul.f32 %v3908, %v3903
  %v3929 = vmul.f32 %v3908, %v3904
  %v3930 = vmul.f32 %v3908, %v3905
  %v3931 = vmul.f32 %v3908, %v3906
  %v3932 = vmul.f32 %v3908, %v3907
  %s3933 = ssub.f32 1.0, %s3882
  %v3934 = vstv %s3933
  %v3935 = vmul.f32 %v3934, %v3681
  %v3936 = vmul.f32 %v3934, %v3683
  %v3937 = vmul.f32 %v3934, %v3770
  %v3938 = vmul.f32 %v3934, %v3772
  %v3939 = vmul.f32 %v3934, %v3859
  %v3940 = vmul.f32 %v3934, %v3861
  %v3941 = vmul.f32 %v3934, %v3687
  %v3942 = vmul.f32 %v3934, %v3689
  %v3943 = vmul.f32 %v3934, %v3776
  %v3944 = vmul.f32 %v3934, %v3778
  %v3945 = vmul.f32 %v3934, %v3865
  %v3946 = vmul.f32 %v3934, %v3867
  %v3947 = vmul.f32 %v3934, %v3693
  %v3948 = vmul.f32 %v3934, %v3695
  %v3949 = vmul.f32 %v3934, %v3782
  %v3950 = vmul.f32 %v3934, %v3784
  %v3951 = vmul.f32 %v3934, %v3871
  %v3952 = vmul.f32 %v3934, %v3873
  %v3953 = vmul.f32 %v3934, %v3699
  %v3954 = vmul.f32 %v3934, %v3701
  %v3955 = vmul.f32 %v3934, %v3788
  %v3956 = vmul.f32 %v3934, %v3790
  %v3957 = vmul.f32 %v3934, %v3877
  %v3958 = vmul.f32 %v3934, %v3879
  %v3959 = vadd.f32 %v3909, %v3935
  %v3960 = vadd.f32 %v3910, %v3936
  %v3961 = vadd.f32 %v3911, %v3937
  %v3962 = vadd.f32 %v3912, %v3938
  %v3963 = vadd.f32 %v3913, %v3939
  %v3964 = vadd.f32 %v3914, %v3940
  %v3965 = vadd.f32 %v3915, %v3941
  %v3966 = vadd.f32 %v3916, %v3942
  %v3967 = vadd.f32 %v3917, %v3943
  %v3968 = vadd.f32 %v3918, %v3944
  %v3969 = vadd.f32 %v3919, %v3945
  %v3970 = vadd.f32 %v3920, %v3946
  %v3971 = vadd.f32 %v3921, %v3947
  %v3972 = vadd.f32 %v3922, %v3948
  %v3973 = vadd.f32 %v3923, %v3949
  %v3974 = vadd.f32 %v3924, %v3950
  %v3975 = vadd.f32 %v3925, %v3951
  %v3976 = vadd.f32 %v3926, %v3952
  %v3977 = vadd.f32 %v3927, %v3953
  %v3978 = vadd.f32 %v3928, %v3954
  %v3979 = vadd.f32 %v3929, %v3955
  %v3980 = vadd.f32 %v3930, %v3956
  %v3981 = vadd.f32 %v3931, %v3957
  %v3982 = vadd.f32 %v3932, %v3958
  %v3983 = vld [vmem:[%s5] sm:$0xff]
  %v3984 = vld [vmem:[%s5 + $0x8] sm:$0xff]
  %v3985 = vld [vmem:[%s5 + $0x10] sm:$0xff]
  %v3986 = vld [vmem:[%s5 + $0x18] sm:$0xff]
  %v3987 = vld [vmem:[%s5 + $0x20] sm:$0xff]
  %v3988 = vld [vmem:[%s5 + $0x28] sm:$0xff]
  %v3989 = vld [vmem:[%s5 + $0x30] sm:$0xff]
  %v3990 = vld [vmem:[%s5 + $0x38] sm:$0xff]
  %v3991 = vld [vmem:[%s5 + $0x40] sm:$0xff]
  %v3992 = vld [vmem:[%s5 + $0x48] sm:$0xff]
  %v3993 = vld [vmem:[%s5 + $0x50] sm:$0xff]
  %v3994 = vld [vmem:[%s5 + $0x58] sm:$0xff]
  %v3995 = vld [vmem:[%s5 + $0x60] sm:$0xff]
  %v3996 = vld [vmem:[%s5 + $0x68] sm:$0xff]
  %v3997 = vld [vmem:[%s5 + $0x70] sm:$0xff]
  %v3998 = vld [vmem:[%s5 + $0x78] sm:$0xff]
  %v3999 = vld [vmem:[%s5 + $0x80] sm:$0xff]
  %v4000 = vld [vmem:[%s5 + $0x88] sm:$0xff]
  %v4001 = vld [vmem:[%s5 + $0x90] sm:$0xff]
  %v4002 = vld [vmem:[%s5 + $0x98] sm:$0xff]
  %v4003 = vld [vmem:[%s5 + $0xa0] sm:$0xff]
  %v4004 = vld [vmem:[%s5 + $0xa8] sm:$0xff]
  %v4005 = vld [vmem:[%s5 + $0xb0] sm:$0xff]
  %v4006 = vld [vmem:[%s5 + $0xb8] sm:$0xff]
  %v4007 = vld [vmem:[%s5 + $0xc0] sm:$0xff]
  %v4008 = vld [vmem:[%s5 + $0xc8] sm:$0xff]
  %v4009 = vld [vmem:[%s5 + $0xd0] sm:$0xff]
  %v4010 = vld [vmem:[%s5 + $0xd8] sm:$0xff]
  %v4011 = vld [vmem:[%s5 + $0xe0] sm:$0xff]
  %v4012 = vld [vmem:[%s5 + $0xe8] sm:$0xff]
  %v4013 = vld [vmem:[%s5 + $0xf0] sm:$0xff]
  %v4014 = vld [vmem:[%s5 + $0xf8] sm:$0xff]
  %v4015 = vld [vmem:[%s5 + $0x100] sm:$0xff]
  %v4016 = vld [vmem:[%s5 + $0x108] sm:$0xff]
  %v4017 = vld [vmem:[%s5 + $0x110] sm:$0xff]
  %v4018 = vld [vmem:[%s5 + $0x118] sm:$0xff]
  %v4019 = vld [vmem:[%s5 + $0x120] sm:$0xff]
  %v4020 = vld [vmem:[%s5 + $0x128] sm:$0xff]
  %v4021 = vld [vmem:[%s5 + $0x130] sm:$0xff]
  %v4022 = vld [vmem:[%s5 + $0x138] sm:$0xff]
  %v4023 = vld [vmem:[%s5 + $0x140] sm:$0xff]
  %v4024 = vld [vmem:[%s5 + $0x148] sm:$0xff]
  %v4025 = vld [vmem:[%s5 + $0x150] sm:$0xff]
  %v4026 = vld [vmem:[%s5 + $0x158] sm:$0xff]
  %v4027 = vld [vmem:[%s5 + $0x160] sm:$0xff]
  %v4028 = vld [vmem:[%s5 + $0x168] sm:$0xff]
  %v4029 = vld [vmem:[%s5 + $0x170] sm:$0xff]
  %v4030 = vld [vmem:[%s5 + $0x178] sm:$0xff]
  %v4031 = vld [vmem:[%s5 + $0x180] sm:$0xff]
  %v4032 = vld [vmem:[%s5 + $0x188] sm:$0xff]
  %v4033 = vld [vmem:[%s5 + $0x190] sm:$0xff]
  %v4034 = vld [vmem:[%s5 + $0x198] sm:$0xff]
  %v4035 = vld [vmem:[%s5 + $0x1a0] sm:$0xff]
  %v4036 = vld [vmem:[%s5 + $0x1a8] sm:$0xff]
  %v4037 = vld [vmem:[%s5 + $0x1b0] sm:$0xff]
  %v4038 = vld [vmem:[%s5 + $0x1b8] sm:$0xff]
  %v4039 = vld [vmem:[%s5 + $0x1c0] sm:$0xff]
  %v4040 = vld [vmem:[%s5 + $0x1c8] sm:$0xff]
  %v4041 = vld [vmem:[%s5 + $0x1d0] sm:$0xff]
  %v4042 = vld [vmem:[%s5 + $0x1d8] sm:$0xff]
  %v4043 = vld [vmem:[%s5 + $0x1e0] sm:$0xff]
  %v4044 = vld [vmem:[%s5 + $0x1e8] sm:$0xff]
  %v4045 = vld [vmem:[%s5 + $0x1f0] sm:$0xff]
  %v4046 = vld [vmem:[%s5 + $0x1f8] sm:$0xff]
  %v4047 = vld [vmem:[%s5 + $0x200] sm:$0xff]
  %v4048 = vld [vmem:[%s5 + $0x208] sm:$0xff]
  %v4049 = vld [vmem:[%s5 + $0x210] sm:$0xff]
  %v4050 = vld [vmem:[%s5 + $0x218] sm:$0xff]
  %v4051 = vld [vmem:[%s5 + $0x220] sm:$0xff]
  %v4052 = vld [vmem:[%s5 + $0x228] sm:$0xff]
  %v4053 = vld [vmem:[%s5 + $0x230] sm:$0xff]
  %v4054 = vld [vmem:[%s5 + $0x238] sm:$0xff]
  %v4055 = vld [vmem:[%s5 + $0x240] sm:$0xff]
  %v4056 = vld [vmem:[%s5 + $0x248] sm:$0xff]
  %v4057 = vld [vmem:[%s5 + $0x250] sm:$0xff]
  %v4058 = vld [vmem:[%s5 + $0x258] sm:$0xff]
  %v4059 = vld [vmem:[%s5 + $0x260] sm:$0xff]
  %v4060 = vld [vmem:[%s5 + $0x268] sm:$0xff]
  %v4061 = vld [vmem:[%s5 + $0x270] sm:$0xff]
  %v4062 = vld [vmem:[%s5 + $0x278] sm:$0xff]
  %v4063 = vld [vmem:[%s5 + $0x280] sm:$0xff]
  %v4064 = vld [vmem:[%s5 + $0x288] sm:$0xff]
  %v4065 = vld [vmem:[%s5 + $0x290] sm:$0xff]
  %v4066 = vld [vmem:[%s5 + $0x298] sm:$0xff]
  %v4067 = vld [vmem:[%s5 + $0x2a0] sm:$0xff]
  %v4068 = vld [vmem:[%s5 + $0x2a8] sm:$0xff]
  %v4069 = vld [vmem:[%s5 + $0x2b0] sm:$0xff]
  %v4070 = vld [vmem:[%s5 + $0x2b8] sm:$0xff]
  %v4071 = vld [vmem:[%s5 + $0x2c0] sm:$0xff]
  %v4072 = vld [vmem:[%s5 + $0x2c8] sm:$0xff]
  %v4073 = vld [vmem:[%s5 + $0x2d0] sm:$0xff]
  %v4074 = vld [vmem:[%s5 + $0x2d8] sm:$0xff]
  %v4075 = vld [vmem:[%s5 + $0x2e0] sm:$0xff]
  %v4076 = vld [vmem:[%s5 + $0x2e8] sm:$0xff]
  %v4077 = vld [vmem:[%s5 + $0x2f0] sm:$0xff]
  %v4078 = vld [vmem:[%s5 + $0x2f8] sm:$0xff]
  %v4079 = vld [vmem:[%s5 + $0x300] sm:$0xff]
  %v4080 = vld [vmem:[%s5 + $0x308] sm:$0xff]
  %v4081 = vld [vmem:[%s5 + $0x310] sm:$0xff]
  %v4082 = vld [vmem:[%s5 + $0x318] sm:$0xff]
  %v4083 = vld [vmem:[%s5 + $0x320] sm:$0xff]
  %v4084 = vld [vmem:[%s5 + $0x328] sm:$0xff]
  %v4085 = vld [vmem:[%s5 + $0x330] sm:$0xff]
  %v4086 = vld [vmem:[%s5 + $0x338] sm:$0xff]
  %v4087 = vld [vmem:[%s5 + $0x340] sm:$0xff]
  %v4088 = vld [vmem:[%s5 + $0x348] sm:$0xff]
  %v4089 = vld [vmem:[%s5 + $0x350] sm:$0xff]
  %v4090 = vld [vmem:[%s5 + $0x358] sm:$0xff]
  %v4091 = vld [vmem:[%s5 + $0x360] sm:$0xff]
  %v4092 = vld [vmem:[%s5 + $0x368] sm:$0xff]
  %v4093 = vld [vmem:[%s5 + $0x370] sm:$0xff]
  %v4094 = vld [vmem:[%s5 + $0x378] sm:$0xff]
  %v4095 = vld [vmem:[%s5 + $0x380] sm:$0xff]
  %v4096 = vld [vmem:[%s5 + $0x388] sm:$0xff]
  %v4097 = vld [vmem:[%s5 + $0x390] sm:$0xff]
  %v4098 = vld [vmem:[%s5 + $0x398] sm:$0xff]
  %v4099 = vld [vmem:[%s5 + $0x3a0] sm:$0xff]
  %v4100 = vld [vmem:[%s5 + $0x3a8] sm:$0xff]
  %v4101 = vld [vmem:[%s5 + $0x3b0] sm:$0xff]
  %v4102 = vld [vmem:[%s5 + $0x3b8] sm:$0xff]
  %v4103 = vld [vmem:[%s5 + $0x3c0] sm:$0xff]
  %v4104 = vld [vmem:[%s5 + $0x3c8] sm:$0xff]
  %v4105 = vld [vmem:[%s5 + $0x3d0] sm:$0xff]
  %v4106 = vld [vmem:[%s5 + $0x3d8] sm:$0xff]
  %v4107 = vld [vmem:[%s5 + $0x3e0] sm:$0xff]
  %v4108 = vld [vmem:[%s5 + $0x3e8] sm:$0xff]
  %v4109 = vld [vmem:[%s5 + $0x3f0] sm:$0xff]
  %v4110 = vld [vmem:[%s5 + $0x3f8] sm:$0xff]
  %v4111 = vld [vmem:[%s5 + $0x400] sm:$0xff]
  %v4112 = vld [vmem:[%s5 + $0x408] sm:$0xff]
  %v4113 = vld [vmem:[%s5 + $0x410] sm:$0xff]
  %v4114 = vld [vmem:[%s5 + $0x418] sm:$0xff]
  %v4115 = vld [vmem:[%s5 + $0x420] sm:$0xff]
  %v4116 = vld [vmem:[%s5 + $0x428] sm:$0xff]
  %v4117 = vld [vmem:[%s5 + $0x430] sm:$0xff]
  %v4118 = vld [vmem:[%s5 + $0x438] sm:$0xff]
  %v4119 = vld [vmem:[%s5 + $0x440] sm:$0xff]
  %v4120 = vld [vmem:[%s5 + $0x448] sm:$0xff]
  %v4121 = vld [vmem:[%s5 + $0x450] sm:$0xff]
  %v4122 = vld [vmem:[%s5 + $0x458] sm:$0xff]
  %v4123 = vld [vmem:[%s5 + $0x460] sm:$0xff]
  %v4124 = vld [vmem:[%s5 + $0x468] sm:$0xff]
  %v4125 = vld [vmem:[%s5 + $0x470] sm:$0xff]
  %v4126 = vld [vmem:[%s5 + $0x478] sm:$0xff]
  %v4127 = vld [vmem:[%s5 + $0x480] sm:$0xff]
  %v4128 = vld [vmem:[%s5 + $0x488] sm:$0xff]
  %v4129 = vld [vmem:[%s5 + $0x490] sm:$0xff]
  %v4130 = vld [vmem:[%s5 + $0x498] sm:$0xff]
  %v4131 = vld [vmem:[%s5 + $0x4a0] sm:$0xff]
  %v4132 = vld [vmem:[%s5 + $0x4a8] sm:$0xff]
  %v4133 = vld [vmem:[%s5 + $0x4b0] sm:$0xff]
  %v4134 = vld [vmem:[%s5 + $0x4b8] sm:$0xff]
  %v4135 = vld [vmem:[%s5 + $0x4c0] sm:$0xff]
  %v4136 = vld [vmem:[%s5 + $0x4c8] sm:$0xff]
  %v4137 = vld [vmem:[%s5 + $0x4d0] sm:$0xff]
  %v4138 = vld [vmem:[%s5 + $0x4d8] sm:$0xff]
  %v4139 = vld [vmem:[%s5 + $0x4e0] sm:$0xff]
  %v4140 = vld [vmem:[%s5 + $0x4e8] sm:$0xff]
  %v4141 = vld [vmem:[%s5 + $0x4f0] sm:$0xff]
  %v4142 = vld [vmem:[%s5 + $0x4f8] sm:$0xff]
  %v4143 = vld [vmem:[%s5 + $0x500] sm:$0xff]
  %v4144 = vld [vmem:[%s5 + $0x508] sm:$0xff]
  %v4145 = vld [vmem:[%s5 + $0x510] sm:$0xff]
  %v4146 = vld [vmem:[%s5 + $0x518] sm:$0xff]
  %v4147 = vld [vmem:[%s5 + $0x520] sm:$0xff]
  %v4148 = vld [vmem:[%s5 + $0x528] sm:$0xff]
  %v4149 = vld [vmem:[%s5 + $0x530] sm:$0xff]
  %v4150 = vld [vmem:[%s5 + $0x538] sm:$0xff]
  %v4151 = vld [vmem:[%s5 + $0x540] sm:$0xff]
  %v4152 = vld [vmem:[%s5 + $0x548] sm:$0xff]
  %v4153 = vld [vmem:[%s5 + $0x550] sm:$0xff]
  %v4154 = vld [vmem:[%s5 + $0x558] sm:$0xff]
  %v4155 = vld [vmem:[%s5 + $0x560] sm:$0xff]
  %v4156 = vld [vmem:[%s5 + $0x568] sm:$0xff]
  %v4157 = vld [vmem:[%s5 + $0x570] sm:$0xff]
  %v4158 = vld [vmem:[%s5 + $0x578] sm:$0xff]
  %v4159 = vld [vmem:[%s5 + $0x580] sm:$0xff]
  %v4160 = vld [vmem:[%s5 + $0x588] sm:$0xff]
  %v4161 = vld [vmem:[%s5 + $0x590] sm:$0xff]
  %v4162 = vld [vmem:[%s5 + $0x598] sm:$0xff]
  %v4163 = vld [vmem:[%s5 + $0x5a0] sm:$0xff]
  %v4164 = vld [vmem:[%s5 + $0x5a8] sm:$0xff]
  %v4165 = vld [vmem:[%s5 + $0x5b0] sm:$0xff]
  %v4166 = vld [vmem:[%s5 + $0x5b8] sm:$0xff]
  %v4167 = vld [vmem:[%s5 + $0x5c0] sm:$0xff]
  %v4168 = vld [vmem:[%s5 + $0x5c8] sm:$0xff]
  %v4169 = vld [vmem:[%s5 + $0x5d0] sm:$0xff]
  %v4170 = vld [vmem:[%s5 + $0x5d8] sm:$0xff]
  %v4171 = vld [vmem:[%s5 + $0x5e0] sm:$0xff]
  %v4172 = vld [vmem:[%s5 + $0x5e8] sm:$0xff]
  %v4173 = vld [vmem:[%s5 + $0x5f0] sm:$0xff]
  %v4174 = vld [vmem:[%s5 + $0x5f8] sm:$0xff]
  %v4175 = vld [vmem:[%s6] sm:$0x3f]
  %v4177 = vlaneseq
  %v4178 = vshrl.u32 %v4177, 7
  %v4179 = vsub.s32 0, %v4178
  %v4180 = vrot.slane %v4175, %v4179
  %v4181 = vlaneseq
  %v4182 = vshrl.u32 %v4181, 7
  %v4183 = vsub.s32 1, %v4182
  %v4184 = vrot.slane %v4175, %v4183
  %v4185 = vlaneseq
  %v4186 = vshrl.u32 %v4185, 7
  %v4187 = vsub.s32 2, %v4186
  %v4188 = vrot.slane %v4175, %v4187
  %v4189 = vlaneseq
  %v4190 = vshrl.u32 %v4189, 7
  %v4191 = vsub.s32 3, %v4190
  %v4192 = vrot.slane %v4175, %v4191
  %v4193 = vlaneseq
  %v4194 = vshrl.u32 %v4193, 7
  %v4195 = vsub.s32 4, %v4194
  %v4196 = vrot.slane %v4175, %v4195
  %v4197 = vlaneseq
  %v4198 = vshrl.u32 %v4197, 7
  %v4199 = vsub.s32 5, %v4198
  %v4200 = vrot.slane %v4175, %v4199
  %4207 = vmatprep.subr.mxu0 %v3984
  %4208 = vmatpush1.msra.mxu0 %v3983
  %4209 = vmatprep.subr.mxu0 %v3990
  %4210 = vmatpush1.msra.mxu0 %v3989
  %4211 = vmatprep.subr.mxu0 %v3996
  %4212 = vmatpush1.msra.mxu0 %v3995
  %4213 = vmatprep.subr.mxu0 %v4002
  %4214 = vmatpush1.msra.mxu0 %v4001
  %4215 = vmatprep.subr.mxu0 %v4008
  %4216 = vmatpush1.msra.mxu0 %v4007
  %4217 = vmatprep.subr.mxu0 %v4014
  %4218 = vmatpush1.msra.mxu0 %v4013
  %4219 = vmatprep.subr.mxu0 %v4020
  %4220 = vmatpush1.msra.mxu0 %v4019
  %4221 = vmatprep.subr.mxu0 %v4026
  %4222 = vmatpush1.msra.mxu0 %v4025
  %4223 = vmatprep.subr.mxu0 %v4032
  %4224 = vmatpush1.msra.mxu0 %v4031
  %4225 = vmatprep.subr.mxu0 %v4038
  %4226 = vmatpush1.msra.mxu0 %v4037
  %4227 = vmatprep.subr.mxu0 %v4044
  %4228 = vmatpush1.msra.mxu0 %v4043
  %4229 = vmatprep.subr.mxu0 %v4050
  %4230 = vmatpush1.msra.mxu0 %v4049
  %4231 = vmatprep.subr.mxu0 %v4056
  %4232 = vmatpush1.msra.mxu0 %v4055
  %4233 = vmatprep.subr.mxu0 %v4062
  %4234 = vmatpush1.msra.mxu0 %v4061
  %4235 = vmatprep.subr.mxu0 %v4068
  %4236 = vmatpush1.msra.mxu0 %v4067
  %4237 = vmatprep.subr.mxu0 %v4074
  %4238 = vmatpush1.msra.mxu0 %v4073
  %4239 = vmatprep.subr.mxu0 %v4080
  %4240 = vmatpush1.msra.mxu0 %v4079
  %4241 = vmatprep.subr.mxu0 %v4086
  %4242 = vmatpush1.msra.mxu0 %v4085
  %4243 = vmatprep.subr.mxu0 %v4092
  %4244 = vmatpush1.msra.mxu0 %v4091
  %4245 = vmatprep.subr.mxu0 %v4098
  %4246 = vmatpush1.msra.mxu0 %v4097
  %4247 = vmatprep.subr.mxu0 %v4104
  %4248 = vmatpush1.msra.mxu0 %v4103
  %4249 = vmatprep.subr.mxu0 %v4110
  %4250 = vmatpush1.msra.mxu0 %v4109
  %4251 = vmatprep.subr.mxu0 %v4116
  %4252 = vmatpush1.msra.mxu0 %v4115
  %4253 = vmatprep.subr.mxu0 %v4122
  %4254 = vmatpush1.msra.mxu0 %v4121
  %4255 = vmatprep.subr.mxu0 %v4128
  %4256 = vmatpush1.msra.mxu0 %v4127
  %4257 = vmatprep.subr.mxu0 %v4134
  %4258 = vmatpush1.msra.mxu0 %v4133
  %4259 = vmatprep.subr.mxu0 %v4140
  %4260 = vmatpush1.msra.mxu0 %v4139
  %4261 = vmatprep.subr.mxu0 %v4146
  %4262 = vmatpush1.msra.mxu0 %v4145
  %4263 = vmatprep.subr.mxu0 %v4152
  %4264 = vmatpush1.msra.mxu0 %v4151
  %4265 = vmatprep.subr.mxu0 %v4158
  %4266 = vmatpush1.msra.mxu0 %v4157
  %4267 = vmatprep.subr.mxu0 %v4164
  %4268 = vmatpush1.msra.mxu0 %v4163
  %4269 = vmatprep.subr.mxu0 %v4170
  %4270 = vmatpush1.msra.mxu0 %v4169
  %4271 = vmatprep.mubr.f32.mxu0 %v3296
  %4272 = vmatmul.mubr.f32.gmra.mrb[0].mxu0 %v3295
  %v4273 = vpop.f32.mrb[0].mxu0
  %v4274 = vadd.f32 %v4180, %v4273
  %v4275 = vpop.f32.mrb[0].mxu0
  %v4276 = vadd.f32 %v4184, %v4275
  %4277 = vmatprep.mubr.f32.mxu0 %v3298
  %4278 = vmatmul.mubr.f32.gmra.mrb[0].mxu0 %v3297
  %v4279 = vpop.f32.mrb[0].mxu0
  %v4280 = vadd.f32 %v4180, %v4279
  %v4281 = vpop.f32.mrb[0].mxu0
  %v4282 = vadd.f32 %v4184, %v4281
  %4283 = vmatprep.mubr.f32.mxu0 %v3300
  %4284 = vmatmul.mubr.f32.gmra.mrb[0].mxu0 %v3299
  %v4285 = vpop.f32.mrb[0].mxu0
  %v4286 = vadd.f32 %v4180, %v4285
  %v4287 = vpop.f32.mrb[0].mxu0
  %v4288 = vadd.f32 %v4184, %v4287
  %4289 = vmatprep.mubr.f32.mxu0 %v3302
  %4290 = vmatmul.mubr.f32.gmra.mrb[0].mxu0 %v3301
  %v4291 = vpop.f32.mrb[0].mxu0
  %v4292 = vadd.f32 %v4180, %v4291
  %v4293 = vpop.f32.mrb[0].mxu0
  %v4294 = vadd.f32 %v4184, %v4293
  %4295 = vdwg.mxu0
  %4296 = vmatprep.subr.mxu0 %v3986
  %4297 = vmatpush1.msra.mxu0 %v3985
  %4298 = vmatprep.subr.mxu0 %v3992
  %4299 = vmatpush1.msra.mxu0 %v3991
  %4300 = vmatprep.subr.mxu0 %v3998
  %4301 = vmatpush1.msra.mxu0 %v3997
  %4302 = vmatprep.subr.mxu0 %v4004
  %4303 = vmatpush1.msra.mxu0 %v4003
  %4304 = vmatprep.subr.mxu0 %v4010
  %4305 = vmatpush1.msra.mxu0 %v4009
  %4306 = vmatprep.subr.mxu0 %v4016
  %4307 = vmatpush1.msra.mxu0 %v4015
  %4308 = vmatprep.subr.mxu0 %v4022
  %4309 = vmatpush1.msra.mxu0 %v4021
  %4310 = vmatprep.subr.mxu0 %v4028
  %4311 = vmatpush1.msra.mxu0 %v4027
  %4312 = vmatprep.subr.mxu0 %v4034
  %4313 = vmatpush1.msra.mxu0 %v4033
  %4314 = vmatprep.subr.mxu0 %v4040
  %4315 = vmatpush1.msra.mxu0 %v4039
  %4316 = vmatprep.subr.mxu0 %v4046
  %4317 = vmatpush1.msra.mxu0 %v4045
  %4318 = vmatprep.subr.mxu0 %v4052
  %4319 = vmatpush1.msra.mxu0 %v4051
  %4320 = vmatprep.subr.mxu0 %v4058
  %4321 = vmatpush1.msra.mxu0 %v4057
  %4322 = vmatprep.subr.mxu0 %v4064
  %4323 = vmatpush1.msra.mxu0 %v4063
  %4324 = vmatprep.subr.mxu0 %v4070
  %4325 = vmatpush1.msra.mxu0 %v4069
  %4326 = vmatprep.subr.mxu0 %v4076
  %4327 = vmatpush1.msra.mxu0 %v4075
  %4328 = vmatprep.subr.mxu0 %v4082
  %4329 = vmatpush1.msra.mxu0 %v4081
  %4330 = vmatprep.subr.mxu0 %v4088
  %4331 = vmatpush1.msra.mxu0 %v4087
  %4332 = vmatprep.subr.mxu0 %v4094
  %4333 = vmatpush1.msra.mxu0 %v4093
  %4334 = vmatprep.subr.mxu0 %v4100
  %4335 = vmatpush1.msra.mxu0 %v4099
  %4336 = vmatprep.subr.mxu0 %v4106
  %4337 = vmatpush1.msra.mxu0 %v4105
  %4338 = vmatprep.subr.mxu0 %v4112
  %4339 = vmatpush1.msra.mxu0 %v4111
  %4340 = vmatprep.subr.mxu0 %v4118
  %4341 = vmatpush1.msra.mxu0 %v4117
  %4342 = vmatprep.subr.mxu0 %v4124
  %4343 = vmatpush1.msra.mxu0 %v4123
  %4344 = vmatprep.subr.mxu0 %v4130
  %4345 = vmatpush1.msra.mxu0 %v4129
  %4346 = vmatprep.subr.mxu0 %v4136
  %4347 = vmatpush1.msra.mxu0 %v4135
  %4348 = vmatprep.subr.mxu0 %v4142
  %4349 = vmatpush1.msra.mxu0 %v4141
  %4350 = vmatprep.subr.mxu0 %v4148
  %4351 = vmatpush1.msra.mxu0 %v4147
  %4352 = vmatprep.subr.mxu0 %v4154
  %4353 = vmatpush1.msra.mxu0 %v4153
  %4354 = vmatprep.subr.mxu0 %v4160
  %4355 = vmatpush1.msra.mxu0 %v4159
  %4356 = vmatprep.subr.mxu0 %v4166
  %4357 = vmatpush1.msra.mxu0 %v4165
  %4358 = vmatprep.subr.mxu0 %v4172
  %4359 = vmatpush1.msra.mxu0 %v4171
  %4360 = vmatprep.mubr.f32.mxu0 %v3296
  %4361 = vmatmul.mubr.f32.gmra.mrb[0].mxu0 %v3295
  %v4362 = vpop.f32.mrb[0].mxu0
  %v4363 = vadd.f32 %v4188, %v4362
  %v4364 = vpop.f32.mrb[0].mxu0
  %v4365 = vadd.f32 %v4192, %v4364
  %4366 = vmatprep.mubr.f32.mxu0 %v3298
  %4367 = vmatmul.mubr.f32.gmra.mrb[0].mxu0 %v3297
  %v4368 = vpop.f32.mrb[0].mxu0
  %v4369 = vadd.f32 %v4188, %v4368
  %v4370 = vpop.f32.mrb[0].mxu0
  %v4371 = vadd.f32 %v4192, %v4370
  %4372 = vmatprep.mubr.f32.mxu0 %v3300
  %4373 = vmatmul.mubr.f32.gmra.mrb[0].mxu0 %v3299
  %v4374 = vpop.f32.mrb[0].mxu0
  %v4375 = vadd.f32 %v4188, %v4374
  %v4376 = vpop.f32.mrb[0].mxu0
  %v4377 = vadd.f32 %v4192, %v4376
  %4378 = vmatprep.mubr.f32.mxu0 %v3302
  %4379 = vmatmul.mubr.f32.gmra.mrb[0].mxu0 %v3301
  %v4380 = vpop.f32.mrb[0].mxu0
  %v4381 = vadd.f32 %v4188, %v4380
  %v4382 = vpop.f32.mrb[0].mxu0
  %v4383 = vadd.f32 %v4192, %v4382
  %4384 = vdwg.mxu0
  %4385 = vmatprep.subr.mxu0 %v3988
  %4386 = vmatpush1.msra.mxu0 %v3987
  %4387 = vmatprep.subr.mxu0 %v3994
  %4388 = vmatpush1.msra.mxu0 %v3993
  %4389 = vmatprep.subr.mxu0 %v4000
  %4390 = vmatpush1.msra.mxu0 %v3999
  %4391 = vmatprep.subr.mxu0 %v4006
  %4392 = vmatpush1.msra.mxu0 %v4005
  %4393 = vmatprep.subr.mxu0 %v4012
  %4394 = vmatpush1.msra.mxu0 %v4011
  %4395 = vmatprep.subr.mxu0 %v4018
  %4396 = vmatpush1.msra.mxu0 %v4017
  %4397 = vmatprep.subr.mxu0 %v4024
  %4398 = vmatpush1.msra.mxu0 %v4023
  %4399 = vmatprep.subr.mxu0 %v4030
  %4400 = vmatpush1.msra.mxu0 %v4029
  %4401 = vmatprep.subr.mxu0 %v4036
  %4402 = vmatpush1.msra.mxu0 %v4035
  %4403 = vmatprep.subr.mxu0 %v4042
  %4404 = vmatpush1.msra.mxu0 %v4041
  %4405 = vmatprep.subr.mxu0 %v4048
  %4406 = vmatpush1.msra.mxu0 %v4047
  %4407 = vmatprep.subr.mxu0 %v4054
  %4408 = vmatpush1.msra.mxu0 %v4053
  %4409 = vmatprep.subr.mxu0 %v4060
  %4410 = vmatpush1.msra.mxu0 %v4059
  %4411 = vmatprep.subr.mxu0 %v4066
  %4412 = vmatpush1.msra.mxu0 %v4065
  %4413 = vmatprep.subr.mxu0 %v4072
  %4414 = vmatpush1.msra.mxu0 %v4071
  %4415 = vmatprep.subr.mxu0 %v4078
  %4416 = vmatpush1.msra.mxu0 %v4077
  %4417 = vmatprep.subr.mxu0 %v4084
  %4418 = vmatpush1.msra.mxu0 %v4083
  %4419 = vmatprep.subr.mxu0 %v4090
  %4420 = vmatpush1.msra.mxu0 %v4089
  %4421 = vmatprep.subr.mxu0 %v4096
  %4422 = vmatpush1.msra.mxu0 %v4095
  %4423 = vmatprep.subr.mxu0 %v4102
  %4424 = vmatpush1.msra.mxu0 %v4101
  %4425 = vmatprep.subr.mxu0 %v4108
  %4426 = vmatpush1.msra.mxu0 %v4107
  %4427 = vmatprep.subr.mxu0 %v4114
  %4428 = vmatpush1.msra.mxu0 %v4113
  %4429 = vmatprep.subr.mxu0 %v4120
  %4430 = vmatpush1.msra.mxu0 %v4119
  %4431 = vmatprep.subr.mxu0 %v4126
  %4432 = vmatpush1.msra.mxu0 %v4125
  %4433 = vmatprep.subr.mxu0 %v4132
  %4434 = vmatpush1.msra.mxu0 %v4131
  %4435 = vmatprep.subr.mxu0 %v4138
  %4436 = vmatpush1.msra.mxu0 %v4137
  %4437 = vmatprep.subr.mxu0 %v4144
  %4438 = vmatpush1.msra.mxu0 %v4143
  %4439 = vmatprep.subr.mxu0 %v4150
  %4440 = vmatpush1.msra.mxu0 %v4149
  %4441 = vmatprep.subr.mxu0 %v4156
  %4442 = vmatpush1.msra.mxu0 %v4155
  %4443 = vmatprep.subr.mxu0 %v4162
  %4444 = vmatpush1.msra.mxu0 %v4161
  %4445 = vmatprep.subr.mxu0 %v4168
  %4446 = vmatpush1.msra.mxu0 %v4167
  %4447 = vmatprep.subr.mxu0 %v4174
  %4448 = vmatpush1.msra.mxu0 %v4173
  %4449 = vmatprep.mubr.f32.mxu0 %v3296
  %4450 = vmatmul.mubr.f32.gmra.mrb[0].mxu0 %v3295
  %v4451 = vpop.f32.mrb[0].mxu0
  %v4452 = vadd.f32 %v4196, %v4451
  %v4453 = vpop.f32.mrb[0].mxu0
  %v4454 = vadd.f32 %v4200, %v4453
  %4455 = vmatprep.mubr.f32.mxu0 %v3298
  %4456 = vmatmul.mubr.f32.gmra.mrb[0].mxu0 %v3297
  %v4457 = vpop.f32.mrb[0].mxu0
  %v4458 = vadd.f32 %v4196, %v4457
  %v4459 = vpop.f32.mrb[0].mxu0
  %v4460 = vadd.f32 %v4200, %v4459
  %4461 = vmatprep.mubr.f32.mxu0 %v3300
  %4462 = vmatmul.mubr.f32.gmra.mrb[0].mxu0 %v3299
  %v4463 = vpop.f32.mrb[0].mxu0
  %v4464 = vadd.f32 %v4196, %v4463
  %v4465 = vpop.f32.mrb[0].mxu0
  %v4466 = vadd.f32 %v4200, %v4465
  %4467 = vmatprep.mubr.f32.mxu0 %v3302
  %4468 = vmatmul.mubr.f32.gmra.mrb[0].mxu0 %v3301
  %v4469 = vpop.f32.mrb[0].mxu0
  %v4470 = vadd.f32 %v4196, %v4469
  %v4471 = vpop.f32.mrb[0].mxu0
  %v4472 = vadd.f32 %v4200, %v4471
  %4473 = vdwg.mxu0
  %v4474 = vadd.f32 %v3959, %v4274
  %v4475 = vadd.f32 %v3960, %v4276
  %v4476 = vadd.f32 %v3965, %v4280
  %v4477 = vadd.f32 %v3966, %v4282
  %v4478 = vadd.f32 %v3971, %v4286
  %v4479 = vadd.f32 %v3972, %v4288
  %v4480 = vadd.f32 %v3977, %v4292
  %v4481 = vadd.f32 %v3978, %v4294
  %v4482 = vxor.u32 %v4474, 2147483648
  %v4483 = vxor.u32 %v4475, 2147483648
  %v4484 = vxor.u32 %v4476, 2147483648
  %v4485 = vxor.u32 %v4477, 2147483648
  %v4486 = vxor.u32 %v4478, 2147483648
  %v4487 = vxor.u32 %v4479, 2147483648
  %v4488 = vxor.u32 %v4480, 2147483648
  %v4489 = vxor.u32 %v4481, 2147483648
  %v4490 = vmul.f32 %v4482, 1.442695
  %v4491 = vpow.pop %v4490
  %v4492 = vmul.f32 %v4483, 1.442695
  %v4493 = vpow.pop %v4492
  %v4494 = vmul.f32 %v4484, 1.442695
  %v4495 = vpow.pop %v4494
  %v4496 = vmul.f32 %v4485, 1.442695
  %v4497 = vpow.pop %v4496
  %v4498 = vmul.f32 %v4486, 1.442695
  %v4499 = vpow.pop %v4498
  %v4500 = vmul.f32 %v4487, 1.442695
  %v4501 = vpow.pop %v4500
  %v4502 = vmul.f32 %v4488, 1.442695
  %v4503 = vpow.pop %v4502
  %v4504 = vmul.f32 %v4489, 1.442695
  %v4505 = vpow.pop %v4504
  %v4506 = vadd.f32 %v4491, 1.0
  %v4507 = vadd.f32 %v4493, 1.0
  %v4508 = vadd.f32 %v4495, 1.0
  %v4509 = vadd.f32 %v4497, 1.0
  %v4510 = vadd.f32 %v4499, 1.0
  %v4511 = vadd.f32 %v4501, 1.0
  %v4512 = vadd.f32 %v4503, 1.0
  %v4513 = vadd.f32 %v4505, 1.0
  %v4514 = vrcp.pop %v4506
  %v4515 = vmul.f32 1.0, %v4514
  %v4516 = vrcp.pop %v4507
  %v4517 = vmul.f32 1.0, %v4516
  %v4518 = vrcp.pop %v4508
  %v4519 = vmul.f32 1.0, %v4518
  %v4520 = vrcp.pop %v4509
  %v4521 = vmul.f32 1.0, %v4520
  %v4522 = vrcp.pop %v4510
  %v4523 = vmul.f32 1.0, %v4522
  %v4524 = vrcp.pop %v4511
  %v4525 = vmul.f32 1.0, %v4524
  %v4526 = vrcp.pop %v4512
  %v4527 = vmul.f32 1.0, %v4526
  %v4528 = vrcp.pop %v4513
  %v4529 = vmul.f32 1.0, %v4528
  %v4530 = vadd.f32 %v3961, %v4363
  %v4531 = vadd.f32 %v3962, %v4365
  %v4532 = vadd.f32 %v3967, %v4369
  %v4533 = vadd.f32 %v3968, %v4371
  %v4534 = vadd.f32 %v3973, %v4375
  %v4535 = vadd.f32 %v3974, %v4377
  %v4536 = vadd.f32 %v3979, %v4381
  %v4537 = vadd.f32 %v3980, %v4383
  %v4538 = vxor.u32 %v4530, 2147483648
  %v4539 = vxor.u32 %v4531, 2147483648
  %v4540 = vxor.u32 %v4532, 2147483648
  %v4541 = vxor.u32 %v4533, 2147483648
  %v4542 = vxor.u32 %v4534, 2147483648
  %v4543 = vxor.u32 %v4535, 2147483648
  %v4544 = vxor.u32 %v4536, 2147483648
  %v4545 = vxor.u32 %v4537, 2147483648
  %v4546 = vmul.f32 %v4538, 1.442695
  %v4547 = vpow.pop %v4546
  %v4548 = vmul.f32 %v4539, 1.442695
  %v4549 = vpow.pop %v4548
  %v4550 = vmul.f32 %v4540, 1.442695
  %v4551 = vpow.pop %v4550
  %v4552 = vmul.f32 %v4541, 1.442695
  %v4553 = vpow.pop %v4552
  %v4554 = vmul.f32 %v4542, 1.442695
  %v4555 = vpow.pop %v4554
  %v4556 = vmul.f32 %v4543, 1.442695
  %v4557 = vpow.pop %v4556
  %v4558 = vmul.f32 %v4544, 1.442695
  %v4559 = vpow.pop %v4558
  %v4560 = vmul.f32 %v4545, 1.442695
  %v4561 = vpow.pop %v4560
  %v4562 = vadd.f32 %v4547, 1.0
  %v4563 = vadd.f32 %v4549, 1.0
  %v4564 = vadd.f32 %v4551, 1.0
  %v4565 = vadd.f32 %v4553, 1.0
  %v4566 = vadd.f32 %v4555, 1.0
  %v4567 = vadd.f32 %v4557, 1.0
  %v4568 = vadd.f32 %v4559, 1.0
  %v4569 = vadd.f32 %v4561, 1.0
  %v4570 = vrcp.pop %v4562
  %v4571 = vmul.f32 1.0, %v4570
  %v4572 = vrcp.pop %v4563
  %v4573 = vmul.f32 1.0, %v4572
  %v4574 = vrcp.pop %v4564
  %v4575 = vmul.f32 1.0, %v4574
  %v4576 = vrcp.pop %v4565
  %v4577 = vmul.f32 1.0, %v4576
  %v4578 = vrcp.pop %v4566
  %v4579 = vmul.f32 1.0, %v4578
  %v4580 = vrcp.pop %v4567
  %v4581 = vmul.f32 1.0, %v4580
  %v4582 = vrcp.pop %v4568
  %v4583 = vmul.f32 1.0, %v4582
  %v4584 = vrcp.pop %v4569
  %v4585 = vmul.f32 1.0, %v4584
  %v4586 = vmul.f32 %v4515, %v4452
  %v4587 = vmul.f32 %v4517, %v4454
  %v4588 = vmul.f32 %v4519, %v4458
  %v4589 = vmul.f32 %v4521, %v4460
  %v4590 = vmul.f32 %v4523, %v4464
  %v4591 = vmul.f32 %v4525, %v4466
  %v4592 = vmul.f32 %v4527, %v4470
  %v4593 = vmul.f32 %v4529, %v4472
  %v4594 = vadd.f32 %v3963, %v4586
  %v4595 = vadd.f32 %v3964, %v4587
  %v4596 = vadd.f32 %v3969, %v4588
  %v4597 = vadd.f32 %v3970, %v4589
  %v4598 = vadd.f32 %v3975, %v4590
  %v4599 = vadd.f32 %v3976, %v4591
  %v4600 = vadd.f32 %v3981, %v4592
  %v4601 = vadd.f32 %v3982, %v4593
  %v4602 = vtanh.pop %v4594
  %v4603 = vtanh.pop %v4595
  %v4604 = vtanh.pop %v4596
  %v4605 = vtanh.pop %v4597
  %v4606 = vtanh.pop %v4598
  %v4607 = vtanh.pop %v4599
  %v4608 = vtanh.pop %v4600
  %v4609 = vtanh.pop %v4601
  %v4610 = vsub.f32 1.0, %v4571
  %v4611 = vsub.f32 1.0, %v4573
  %v4612 = vsub.f32 1.0, %v4575
  %v4613 = vsub.f32 1.0, %v4577
  %v4614 = vsub.f32 1.0, %v4579
  %v4615 = vsub.f32 1.0, %v4581
  %v4616 = vsub.f32 1.0, %v4583
  %v4617 = vsub.f32 1.0, %v4585
  %v4618 = vmul.f32 %v4610, %v4602
  %v4619 = vmul.f32 %v4611, %v4603
  %v4620 = vmul.f32 %v4612, %v4604
  %v4621 = vmul.f32 %v4613, %v4605
  %v4622 = vmul.f32 %v4614, %v4606
  %v4623 = vmul.f32 %v4615, %v4607
  %v4624 = vmul.f32 %v4616, %v4608
  %v4625 = vmul.f32 %v4617, %v4609
  %v4626 = vmul.f32 %v4571, %v3295
  %v4627 = vmul.f32 %v4573, %v3296
  %v4628 = vmul.f32 %v4575, %v3297
  %v4629 = vmul.f32 %v4577, %v3298
  %v4630 = vmul.f32 %v4579, %v3299
  %v4631 = vmul.f32 %v4581, %v3300
  %v4632 = vmul.f32 %v4583, %v3301
  %v4633 = vmul.f32 %v4585, %v3302
  %v4634 = vadd.f32 %v4618, %v4626
  %v4635 = vadd.f32 %v4619, %v4627
  %v4636 = vadd.f32 %v4620, %v4628
  %v4637 = vadd.f32 %v4621, %v4629
  %v4638 = vadd.f32 %v4622, %v4630
  %v4639 = vadd.f32 %v4623, %v4631
  %v4640 = vadd.f32 %v4624, %v4632
  %v4641 = vadd.f32 %v4625, %v4633
  %v4642 = vld [vmem:[%s8] sm:$0xff]
  %v4643 = vld [vmem:[%s8 + $0x8] sm:$0xff]
  %v4644 = vld [vmem:[%s8 + $0x10] sm:$0xff]
  %v4645 = vld [vmem:[%s8 + $0x18] sm:$0xff]
  %v4646 = vld [vmem:[%s8 + $0x20] sm:$0xff]
  %v4647 = vld [vmem:[%s8 + $0x28] sm:$0xff]
  %v4648 = vld [vmem:[%s8 + $0x30] sm:$0xff]
  %v4649 = vld [vmem:[%s8 + $0x38] sm:$0xff]
  %v4650 = vld [vmem:[%s8 + $0x40] sm:$0xff]
  %v4651 = vld [vmem:[%s8 + $0x48] sm:$0xff]
  %v4652 = vld [vmem:[%s8 + $0x50] sm:$0xff]
  %v4653 = vld [vmem:[%s8 + $0x58] sm:$0xff]
  %v4654 = vld [vmem:[%s8 + $0x60] sm:$0xff]
  %v4655 = vld [vmem:[%s8 + $0x68] sm:$0xff]
  %v4656 = vld [vmem:[%s8 + $0x70] sm:$0xff]
  %v4657 = vld [vmem:[%s8 + $0x78] sm:$0xff]
  %v4658 = vld [vmem:[%s8 + $0x80] sm:$0xff]
  %v4659 = vld [vmem:[%s8 + $0x88] sm:$0xff]
  %v4660 = vld [vmem:[%s8 + $0x90] sm:$0xff]
  %v4661 = vld [vmem:[%s8 + $0x98] sm:$0xff]
  %v4662 = vld [vmem:[%s8 + $0xa0] sm:$0xff]
  %v4663 = vld [vmem:[%s8 + $0xa8] sm:$0xff]
  %v4664 = vld [vmem:[%s8 + $0xb0] sm:$0xff]
  %v4665 = vld [vmem:[%s8 + $0xb8] sm:$0xff]
  %v4666 = vld [vmem:[%s8 + $0xc0] sm:$0xff]
  %v4667 = vld [vmem:[%s8 + $0xc8] sm:$0xff]
  %v4668 = vld [vmem:[%s8 + $0xd0] sm:$0xff]
  %v4669 = vld [vmem:[%s8 + $0xd8] sm:$0xff]
  %v4670 = vld [vmem:[%s8 + $0xe0] sm:$0xff]
  %v4671 = vld [vmem:[%s8 + $0xe8] sm:$0xff]
  %v4672 = vld [vmem:[%s8 + $0xf0] sm:$0xff]
  %v4673 = vld [vmem:[%s8 + $0xf8] sm:$0xff]
  %v4674 = vld [vmem:[%s9] sm:$0x1]
  %v4676 = vlaneseq
  %v4677 = vshrl.u32 %v4676, 7
  %v4678 = vsub.s32 0, %v4677
  %v4679 = vrot.slane %v4674, %v4678
  %4681 = vmatprep.subr.mxu0 0.0
  %4682 = vmatpush1.msra.mxu0 %v4642
  %4683 = vmatprep.subr.mxu0 0.0
  %4684 = vmatpush1.msra.mxu0 %v4643
  %4685 = vmatprep.subr.mxu0 0.0
  %4686 = vmatpush1.msra.mxu0 %v4644
  %4687 = vmatprep.subr.mxu0 0.0
  %4688 = vmatpush1.msra.mxu0 %v4645
  %4689 = vmatprep.subr.mxu0 0.0
  %4690 = vmatpush1.msra.mxu0 %v4646
  %4691 = vmatprep.subr.mxu0 0.0
  %4692 = vmatpush1.msra.mxu0 %v4647
  %4693 = vmatprep.subr.mxu0 0.0
  %4694 = vmatpush1.msra.mxu0 %v4648
  %4695 = vmatprep.subr.mxu0 0.0
  %4696 = vmatpush1.msra.mxu0 %v4649
  %4697 = vmatprep.subr.mxu0 0.0
  %4698 = vmatpush1.msra.mxu0 %v4650
  %4699 = vmatprep.subr.mxu0 0.0
  %4700 = vmatpush1.msra.mxu0 %v4651
  %4701 = vmatprep.subr.mxu0 0.0
  %4702 = vmatpush1.msra.mxu0 %v4652
  %4703 = vmatprep.subr.mxu0 0.0
  %4704 = vmatpush1.msra.mxu0 %v4653
  %4705 = vmatprep.subr.mxu0 0.0
  %4706 = vmatpush1.msra.mxu0 %v4654
  %4707 = vmatprep.subr.mxu0 0.0
  %4708 = vmatpush1.msra.mxu0 %v4655
  %4709 = vmatprep.subr.mxu0 0.0
  %4710 = vmatpush1.msra.mxu0 %v4656
  %4711 = vmatprep.subr.mxu0 0.0
  %4712 = vmatpush1.msra.mxu0 %v4657
  %4713 = vmatprep.subr.mxu0 0.0
  %4714 = vmatpush1.msra.mxu0 %v4658
  %4715 = vmatprep.subr.mxu0 0.0
  %4716 = vmatpush1.msra.mxu0 %v4659
  %4717 = vmatprep.subr.mxu0 0.0
  %4718 = vmatpush1.msra.mxu0 %v4660
  %4719 = vmatprep.subr.mxu0 0.0
  %4720 = vmatpush1.msra.mxu0 %v4661
  %4721 = vmatprep.subr.mxu0 0.0
  %4722 = vmatpush1.msra.mxu0 %v4662
  %4723 = vmatprep.subr.mxu0 0.0
  %4724 = vmatpush1.msra.mxu0 %v4663
  %4725 = vmatprep.subr.mxu0 0.0
  %4726 = vmatpush1.msra.mxu0 %v4664
  %4727 = vmatprep.subr.mxu0 0.0
  %4728 = vmatpush1.msra.mxu0 %v4665
  %4729 = vmatprep.subr.mxu0 0.0
  %4730 = vmatpush1.msra.mxu0 %v4666
  %4731 = vmatprep.subr.mxu0 0.0
  %4732 = vmatpush1.msra.mxu0 %v4667
  %4733 = vmatprep.subr.mxu0 0.0
  %4734 = vmatpush1.msra.mxu0 %v4668
  %4735 = vmatprep.subr.mxu0 0.0
  %4736 = vmatpush1.msra.mxu0 %v4669
  %4737 = vmatprep.subr.mxu0 0.0
  %4738 = vmatpush1.msra.mxu0 %v4670
  %4739 = vmatprep.subr.mxu0 0.0
  %4740 = vmatpush1.msra.mxu0 %v4671
  %4741 = vmatprep.subr.mxu0 0.0
  %4742 = vmatpush1.msra.mxu0 %v4672
  %4743 = vmatprep.subr.mxu0 0.0
  %4744 = vmatpush1.msra.mxu0 %v4673
  %4745 = vmatprep.mubr.f32.mxu0 %v4635
  %4746 = vmatmul.mubr.f32.gmra.mrb[0].mxu0 %v4634
  %v4747 = vpop.f32.mrb[0].mxu0
  %v4748 = vadd.f32 %v4679, %v4747
  %v4749 = vpop.f32.mrb[0].mxu0
  %4750 = vmatprep.mubr.f32.mxu0 %v4637
  %4751 = vmatmul.mubr.f32.gmra.mrb[0].mxu0 %v4636
  %v4752 = vpop.f32.mrb[0].mxu0
  %v4753 = vadd.f32 %v4679, %v4752
  %v4754 = vpop.f32.mrb[0].mxu0
  %4755 = vmatprep.mubr.f32.mxu0 %v4639
  %4756 = vmatmul.mubr.f32.gmra.mrb[0].mxu0 %v4638
  %v4757 = vpop.f32.mrb[0].mxu0
  %v4758 = vadd.f32 %v4679, %v4757
  %v4759 = vpop.f32.mrb[0].mxu0
  %4760 = vmatprep.mubr.f32.mxu0 %v4641
  %4761 = vmatmul.mubr.f32.gmra.mrb[0].mxu0 %v4640
  %v4762 = vpop.f32.mrb[0].mxu0
  %v4763 = vadd.f32 %v4679, %v4762
  %v4764 = vpop.f32.mrb[0].mxu0
  %4765 = vdwg.mxu0
  %s4766 = scalar_lea.vmem %s10, 64
  %4767 = vst [vmem:[%s4766] sm:$0xff] %v4748
  %4768 = vst [vmem:[%s4766 + $0x8] sm:$0xff] %v4753
  %4769 = vst [vmem:[%s4766 + $0x10] sm:$0xff] %v4758
  %4770 = vst [vmem:[%s4766 + $0x18] sm:$0xff] %v4763
  %4771 = vmax.xlane.f32.xlu0 %v4748
  %v4772 = vpop.xlane.xlu0 %4771
  %4773 = vmax.xlane.f32.xlu0 %v4753
  %v4774 = vpop.xlane.xlu0 %4773
  %4775 = vmax.xlane.f32.xlu0 %v4758
  %v4776 = vpop.xlane.xlu0 %4775
  %4777 = vmax.xlane.f32.xlu0 %v4763
  %v4778 = vpop.xlane.xlu0 %4777
  %vm4779 = vcmp.ge.f32.partialorder %v4748, %v4772
  %vm4780 = vcmp.ge.f32.partialorder %v4753, %v4774
  %vm4781 = vcmp.ge.f32.partialorder %v4758, %v4776
  %vm4782 = vcmp.ge.f32.partialorder %v4763, %v4778
  %v4783 = vsel %vm4779, %v3441, 2147483647
  %v4784 = vsel %vm4780, %v3441, 2147483647
  %v4785 = vsel %vm4781, %v3441, 2147483647
  %v4786 = vsel %vm4782, %v3441, 2147483647
  %v4787 = vand.u32 %v4783, 65535
  %v4788 = vshra.s32 %v4783, 16
  %v4789 = vcvt.s32.f32 %v4787
  %v4790 = vcvt.s32.f32 %v4788
  %4791 = vmin.xlane.f32.xlu0 %v4790
  %v4792 = vpop.xlane.xlu0 %4791
  %vm4793 = vcmp.eq.f32.partialorder %v4790, %v4792
  %v4794 = vsel %vm4793, %v4789, inf
  %4795 = vmin.xlane.f32.xlu0 %v4794
  %v4796 = vpop.xlane.xlu0 %4795
  %v4797 = vcvt.f32.s32 %v4796
  %v4798 = vcvt.f32.s32 %v4792
  %v4799 = vshll.u32 %v4798, 16
  %v4800 = vadd.s32 %v4799, %v4797
  %v4801 = vand.u32 %v4784, 65535
  %v4802 = vshra.s32 %v4784, 16
  %v4803 = vcvt.s32.f32 %v4801
  %v4804 = vcvt.s32.f32 %v4802
  %4805 = vmin.xlane.f32.xlu0 %v4804
  %v4806 = vpop.xlane.xlu0 %4805
  %vm4807 = vcmp.eq.f32.partialorder %v4804, %v4806
  %v4808 = vsel %vm4807, %v4803, inf
  %4809 = vmin.xlane.f32.xlu0 %v4808
  %v4810 = vpop.xlane.xlu0 %4809
  %v4811 = vcvt.f32.s32 %v4810
  %v4812 = vcvt.f32.s32 %v4806
  %v4813 = vshll.u32 %v4812, 16
  %v4814 = vadd.s32 %v4813, %v4811
  %v4815 = vand.u32 %v4785, 65535
  %v4816 = vshra.s32 %v4785, 16
  %v4817 = vcvt.s32.f32 %v4815
  %v4818 = vcvt.s32.f32 %v4816
  %4819 = vmin.xlane.f32.xlu0 %v4818
  %v4820 = vpop.xlane.xlu0 %4819
  %vm4821 = vcmp.eq.f32.partialorder %v4818, %v4820
  %v4822 = vsel %vm4821, %v4817, inf
  %4823 = vmin.xlane.f32.xlu0 %v4822
  %v4824 = vpop.xlane.xlu0 %4823
  %v4825 = vcvt.f32.s32 %v4824
  %v4826 = vcvt.f32.s32 %v4820
  %v4827 = vshll.u32 %v4826, 16
  %v4828 = vadd.s32 %v4827, %v4825
  %v4829 = vand.u32 %v4786, 65535
  %v4830 = vshra.s32 %v4786, 16
  %v4831 = vcvt.s32.f32 %v4829
  %v4832 = vcvt.s32.f32 %v4830
  %4833 = vmin.xlane.f32.xlu0 %v4832
  %v4834 = vpop.xlane.xlu0 %4833
  %vm4835 = vcmp.eq.f32.partialorder %v4832, %v4834
  %v4836 = vsel %vm4835, %v4831, inf
  %4837 = vmin.xlane.f32.xlu0 %v4836
  %v4838 = vpop.xlane.xlu0 %4837
  %v4839 = vcvt.f32.s32 %v4838
  %v4840 = vcvt.f32.s32 %v4834
  %v4841 = vshll.u32 %v4840, 16
  %v4842 = vadd.s32 %v4841, %v4839
  %vm4843 = vcmp.eq.s32.totalorder %v3441, %v4800
  %vm4844 = vcmp.eq.s32.totalorder %v3441, %v4814
  %vm4845 = vcmp.eq.s32.totalorder %v3441, %v4828
  %vm4846 = vcmp.eq.s32.totalorder %v3441, %v4842
  %v4847 = vsel %vm4843, 1, 0
  %v4848 = vsel %vm4844, 1, 0
  %v4849 = vsel %vm4845, 1, 0
  %v4850 = vsel %vm4846, 1, 0
  %v4851 = vcvt.s32.f32 %v4847
  %v4852 = vcvt.s32.f32 %v4848
  %v4853 = vcvt.s32.f32 %v4849
  %v4854 = vcvt.s32.f32 %v4850
  %v4855 = vld [vmem:[%s7] sm:$0xff]
  %v4856 = vld [vmem:[%s7 + $0x8] sm:$0xff]
  %v4857 = vld [vmem:[%s7 + $0x10] sm:$0xff]
  %v4858 = vld [vmem:[%s7 + $0x18] sm:$0xff]
  %v4859 = vld [vmem:[%s7 + $0x20] sm:$0xff]
  %v4860 = vld [vmem:[%s7 + $0x28] sm:$0xff]
  %v4861 = vld [vmem:[%s7 + $0x30] sm:$0xff]
  %v4862 = vld [vmem:[%s7 + $0x38] sm:$0xff]
  %v4863 = vld [vmem:[%s7 + $0x40] sm:$0xff]
  %v4864 = vld [vmem:[%s7 + $0x48] sm:$0xff]
  %v4865 = vld [vmem:[%s7 + $0x50] sm:$0xff]
  %v4866 = vld [vmem:[%s7 + $0x58] sm:$0xff]
  %v4867 = vld [vmem:[%s7 + $0x60] sm:$0xff]
  %v4868 = vld [vmem:[%s7 + $0x68] sm:$0xff]
  %v4869 = vld [vmem:[%s7 + $0x70] sm:$0xff]
  %v4870 = vld [vmem:[%s7 + $0x78] sm:$0xff]
  %v4871 = vld [vmem:[%s7 + $0x80] sm:$0xff]
  %v4872 = vld [vmem:[%s7 + $0x88] sm:$0xff]
  %v4873 = vld [vmem:[%s7 + $0x90] sm:$0xff]
  %v4874 = vld [vmem:[%s7 + $0x98] sm:$0xff]
  %v4875 = vld [vmem:[%s7 + $0xa0] sm:$0xff]
  %v4876 = vld [vmem:[%s7 + $0xa8] sm:$0xff]
  %v4877 = vld [vmem:[%s7 + $0xb0] sm:$0xff]
  %v4878 = vld [vmem:[%s7 + $0xb8] sm:$0xff]
  %v4879 = vld [vmem:[%s7 + $0xc0] sm:$0xff]
  %v4880 = vld [vmem:[%s7 + $0xc8] sm:$0xff]
  %v4881 = vld [vmem:[%s7 + $0xd0] sm:$0xff]
  %v4882 = vld [vmem:[%s7 + $0xd8] sm:$0xff]
  %v4883 = vld [vmem:[%s7 + $0xe0] sm:$0xff]
  %v4884 = vld [vmem:[%s7 + $0xe8] sm:$0xff]
  %v4885 = vld [vmem:[%s7 + $0xf0] sm:$0xff]
  %v4886 = vld [vmem:[%s7 + $0xf8] sm:$0xff]
  %v4887 = vld [vmem:[%s7 + $0x100] sm:$0xff]
  %v4888 = vld [vmem:[%s7 + $0x108] sm:$0xff]
  %v4889 = vld [vmem:[%s7 + $0x110] sm:$0xff]
  %v4890 = vld [vmem:[%s7 + $0x118] sm:$0xff]
  %v4891 = vld [vmem:[%s7 + $0x120] sm:$0xff]
  %v4892 = vld [vmem:[%s7 + $0x128] sm:$0xff]
  %v4893 = vld [vmem:[%s7 + $0x130] sm:$0xff]
  %v4894 = vld [vmem:[%s7 + $0x138] sm:$0xff]
  %v4895 = vld [vmem:[%s7 + $0x140] sm:$0xff]
  %v4896 = vld [vmem:[%s7 + $0x148] sm:$0xff]
  %v4897 = vld [vmem:[%s7 + $0x150] sm:$0xff]
  %v4898 = vld [vmem:[%s7 + $0x158] sm:$0xff]
  %v4899 = vld [vmem:[%s7 + $0x160] sm:$0xff]
  %v4900 = vld [vmem:[%s7 + $0x168] sm:$0xff]
  %v4901 = vld [vmem:[%s7 + $0x170] sm:$0xff]
  %v4902 = vld [vmem:[%s7 + $0x178] sm:$0xff]
  %v4903 = vld [vmem:[%s7 + $0x180] sm:$0xff]
  %v4904 = vld [vmem:[%s7 + $0x188] sm:$0xff]
  %v4905 = vld [vmem:[%s7 + $0x190] sm:$0xff]
  %v4906 = vld [vmem:[%s7 + $0x198] sm:$0xff]
  %v4907 = vld [vmem:[%s7 + $0x1a0] sm:$0xff]
  %v4908 = vld [vmem:[%s7 + $0x1a8] sm:$0xff]
  %v4909 = vld [vmem:[%s7 + $0x1b0] sm:$0xff]
  %v4910 = vld [vmem:[%s7 + $0x1b8] sm:$0xff]
  %v4911 = vld [vmem:[%s7 + $0x1c0] sm:$0xff]
  %v4912 = vld [vmem:[%s7 + $0x1c8] sm:$0xff]
  %v4913 = vld [vmem:[%s7 + $0x1d0] sm:$0xff]
  %v4914 = vld [vmem:[%s7 + $0x1d8] sm:$0xff]
  %v4915 = vld [vmem:[%s7 + $0x1e0] sm:$0xff]
  %v4916 = vld [vmem:[%s7 + $0x1e8] sm:$0xff]
  %v4917 = vld [vmem:[%s7 + $0x1f0] sm:$0xff]
  %v4918 = vld [vmem:[%s7 + $0x1f8] sm:$0xff]
  %v4919 = vld [vmem:[%s7 + $0x200] sm:$0xff]
  %v4920 = vld [vmem:[%s7 + $0x208] sm:$0xff]
  %v4921 = vld [vmem:[%s7 + $0x210] sm:$0xff]
  %v4922 = vld [vmem:[%s7 + $0x218] sm:$0xff]
  %v4923 = vld [vmem:[%s7 + $0x220] sm:$0xff]
  %v4924 = vld [vmem:[%s7 + $0x228] sm:$0xff]
  %v4925 = vld [vmem:[%s7 + $0x230] sm:$0xff]
  %v4926 = vld [vmem:[%s7 + $0x238] sm:$0xff]
  %v4927 = vld [vmem:[%s7 + $0x240] sm:$0xff]
  %v4928 = vld [vmem:[%s7 + $0x248] sm:$0xff]
  %v4929 = vld [vmem:[%s7 + $0x250] sm:$0xff]
  %v4930 = vld [vmem:[%s7 + $0x258] sm:$0xff]
  %v4931 = vld [vmem:[%s7 + $0x260] sm:$0xff]
  %v4932 = vld [vmem:[%s7 + $0x268] sm:$0xff]
  %v4933 = vld [vmem:[%s7 + $0x270] sm:$0xff]
  %v4934 = vld [vmem:[%s7 + $0x278] sm:$0xff]
  %v4935 = vld [vmem:[%s7 + $0x280] sm:$0xff]
  %v4936 = vld [vmem:[%s7 + $0x288] sm:$0xff]
  %v4937 = vld [vmem:[%s7 + $0x290] sm:$0xff]
  %v4938 = vld [vmem:[%s7 + $0x298] sm:$0xff]
  %v4939 = vld [vmem:[%s7 + $0x2a0] sm:$0xff]
  %v4940 = vld [vmem:[%s7 + $0x2a8] sm:$0xff]
  %v4941 = vld [vmem:[%s7 + $0x2b0] sm:$0xff]
  %v4942 = vld [vmem:[%s7 + $0x2b8] sm:$0xff]
  %v4943 = vld [vmem:[%s7 + $0x2c0] sm:$0xff]
  %v4944 = vld [vmem:[%s7 + $0x2c8] sm:$0xff]
  %v4945 = vld [vmem:[%s7 + $0x2d0] sm:$0xff]
  %v4946 = vld [vmem:[%s7 + $0x2d8] sm:$0xff]
  %v4947 = vld [vmem:[%s7 + $0x2e0] sm:$0xff]
  %v4948 = vld [vmem:[%s7 + $0x2e8] sm:$0xff]
  %v4949 = vld [vmem:[%s7 + $0x2f0] sm:$0xff]
  %v4950 = vld [vmem:[%s7 + $0x2f8] sm:$0xff]
  %4951 = vmatprep.subr.mxu0 %v4856
  %4952 = vmatpush1.msra.mxu0 %v4855
  %4953 = vmatprep.subr.mxu0 %v4862
  %4954 = vmatpush1.msra.mxu0 %v4861
  %4955 = vmatprep.subr.mxu0 %v4868
  %4956 = vmatpush1.msra.mxu0 %v4867
  %4957 = vmatprep.subr.mxu0 %v4874
  %4958 = vmatpush1.msra.mxu0 %v4873
  %4959 = vmatprep.subr.mxu0 %v4880
  %4960 = vmatpush1.msra.mxu0 %v4879
  %4961 = vmatprep.subr.mxu0 %v4886
  %4962 = vmatpush1.msra.mxu0 %v4885
  %4963 = vmatprep.subr.mxu0 %v4892
  %4964 = vmatpush1.msra.mxu0 %v4891
  %4965 = vmatprep.subr.mxu0 %v4898
  %4966 = vmatpush1.msra.mxu0 %v4897
  %4967 = vmatprep.subr.mxu0 %v4904
  %4968 = vmatpush1.msra.mxu0 %v4903
  %4969 = vmatprep.subr.mxu0 %v4910
  %4970 = vmatpush1.msra.mxu0 %v4909
  %4971 = vmatprep.subr.mxu0 %v4916
  %4972 = vmatpush1.msra.mxu0 %v4915
  %4973 = vmatprep.subr.mxu0 %v4922
  %4974 = vmatpush1.msra.mxu0 %v4921
  %4975 = vmatprep.subr.mxu0 %v4928
  %4976 = vmatpush1.msra.mxu0 %v4927
  %4977 = vmatprep.subr.mxu0 %v4934
  %4978 = vmatpush1.msra.mxu0 %v4933
  %4979 = vmatprep.subr.mxu0 %v4940
  %4980 = vmatpush1.msra.mxu0 %v4939
  %4981 = vmatprep.subr.mxu0 %v4946
  %4982 = vmatpush1.msra.mxu0 %v4945
  %4983 = vmatprep.subr.mxu0 0.0
  %4984 = vmatpush1.msra.mxu0 0.0
  %4985 = vmatprep.subr.mxu0 0.0
  %4986 = vmatpush1.msra.mxu0 0.0
  %4987 = vmatprep.subr.mxu0 0.0
  %4988 = vmatpush1.msra.mxu0 0.0
  %4989 = vmatprep.subr.mxu0 0.0
  %4990 = vmatpush1.msra.mxu0 0.0
  %4991 = vmatprep.subr.mxu0 0.0
  %4992 = vmatpush1.msra.mxu0 0.0
  %4993 = vmatprep.subr.mxu0 0.0
  %4994 = vmatpush1.msra.mxu0 0.0
  %4995 = vmatprep.subr.mxu0 0.0
  %4996 = vmatpush1.msra.mxu0 0.0
  %4997 = vmatprep.subr.mxu0 0.0
  %4998 = vmatpush1.msra.mxu0 0.0
  %4999 = vmatprep.subr.mxu0 0.0
  %5000 = vmatpush1.msra.mxu0 0.0
  %5001 = vmatprep.subr.mxu0 0.0
  %5002 = vmatpush1.msra.mxu0 0.0
  %5003 = vmatprep.subr.mxu0 0.0
  %5004 = vmatpush1.msra.mxu0 0.0
  %5005 = vmatprep.subr.mxu0 0.0
  %5006 = vmatpush1.msra.mxu0 0.0
  %5007 = vmatprep.subr.mxu0 0.0
  %5008 = vmatpush1.msra.mxu0 0.0
  %5009 = vmatprep.subr.mxu0 0.0
  %5010 = vmatpush1.msra.mxu0 0.0
  %5011 = vmatprep.subr.mxu0 0.0
  %5012 = vmatpush1.msra.mxu0 0.0
  %5013 = vmatprep.subr.mxu0 0.0
  %5014 = vmatpush1.msra.mxu0 0.0
  %5015 = vmatprep.mubr.f32.mxu0 0.0
  %5016 = vmatmul.mubr.f32.gmra.mrb[0].mxu0 %v4851
  %v5017 = vpop.f32.mrb[0].mxu0
  %v5018 = vadd.f32 0.0, %v5017
  %v5019 = vpop.f32.mrb[0].mxu0
  %v5020 = vadd.f32 0.0, %v5019
  %5021 = vmatprep.mubr.f32.mxu0 0.0
  %5022 = vmatmul.mubr.f32.gmra.mrb[0].mxu0 %v4852
  %v5023 = vpop.f32.mrb[0].mxu0
  %v5024 = vadd.f32 0.0, %v5023
  %v5025 = vpop.f32.mrb[0].mxu0
  %v5026 = vadd.f32 0.0, %v5025
  %5027 = vmatprep.mubr.f32.mxu0 0.0
  %5028 = vmatmul.mubr.f32.gmra.mrb[0].mxu0 %v4853
  %v5029 = vpop.f32.mrb[0].mxu0
  %v5030 = vadd.f32 0.0, %v5029
  %v5031 = vpop.f32.mrb[0].mxu0
  %v5032 = vadd.f32 0.0, %v5031
  %5033 = vmatprep.mubr.f32.mxu0 0.0
  %5034 = vmatmul.mubr.f32.gmra.mrb[0].mxu0 %v4854
  %v5035 = vpop.f32.mrb[0].mxu0
  %v5036 = vadd.f32 0.0, %v5035
  %v5037 = vpop.f32.mrb[0].mxu0
  %v5038 = vadd.f32 0.0, %v5037
  %5039 = vdwg.mxu0
  %5040 = vmatprep.subr.mxu0 %v4858
  %5041 = vmatpush1.msra.mxu0 %v4857
  %5042 = vmatprep.subr.mxu0 %v4864
  %5043 = vmatpush1.msra.mxu0 %v4863
  %5044 = vmatprep.subr.mxu0 %v4870
  %5045 = vmatpush1.msra.mxu0 %v4869
  %5046 = vmatprep.subr.mxu0 %v4876
  %5047 = vmatpush1.msra.mxu0 %v4875
  %5048 = vmatprep.subr.mxu0 %v4882
  %5049 = vmatpush1.msra.mxu0 %v4881
  %5050 = vmatprep.subr.mxu0 %v4888
  %5051 = vmatpush1.msra.mxu0 %v4887
  %5052 = vmatprep.subr.mxu0 %v4894
  %5053 = vmatpush1.msra.mxu0 %v4893
  %5054 = vmatprep.subr.mxu0 %v4900
  %5055 = vmatpush1.msra.mxu0 %v4899
  %5056 = vmatprep.subr.mxu0 %v4906
  %5057 = vmatpush1.msra.mxu0 %v4905
  %5058 = vmatprep.subr.mxu0 %v4912
  %5059 = vmatpush1.msra.mxu0 %v4911
  %5060 = vmatprep.subr.mxu0 %v4918
  %5061 = vmatpush1.msra.mxu0 %v4917
  %5062 = vmatprep.subr.mxu0 %v4924
  %5063 = vmatpush1.msra.mxu0 %v4923
  %5064 = vmatprep.subr.mxu0 %v4930
  %5065 = vmatpush1.msra.mxu0 %v4929
  %5066 = vmatprep.subr.mxu0 %v4936
  %5067 = vmatpush1.msra.mxu0 %v4935
  %5068 = vmatprep.subr.mxu0 %v4942
  %5069 = vmatpush1.msra.mxu0 %v4941
  %5070 = vmatprep.subr.mxu0 %v4948
  %5071 = vmatpush1.msra.mxu0 %v4947
  %5072 = vmatprep.subr.mxu0 0.0
  %5073 = vmatpush1.msra.mxu0 0.0
  %5074 = vmatprep.subr.mxu0 0.0
  %5075 = vmatpush1.msra.mxu0 0.0
  %5076 = vmatprep.subr.mxu0 0.0
  %5077 = vmatpush1.msra.mxu0 0.0
  %5078 = vmatprep.subr.mxu0 0.0
  %5079 = vmatpush1.msra.mxu0 0.0
  %5080 = vmatprep.subr.mxu0 0.0
  %5081 = vmatpush1.msra.mxu0 0.0
  %5082 = vmatprep.subr.mxu0 0.0
  %5083 = vmatpush1.msra.mxu0 0.0
  %5084 = vmatprep.subr.mxu0 0.0
  %5085 = vmatpush1.msra.mxu0 0.0
  %5086 = vmatprep.subr.mxu0 0.0
  %5087 = vmatpush1.msra.mxu0 0.0
  %5088 = vmatprep.subr.mxu0 0.0
  %5089 = vmatpush1.msra.mxu0 0.0
  %5090 = vmatprep.subr.mxu0 0.0
  %5091 = vmatpush1.msra.mxu0 0.0
  %5092 = vmatprep.subr.mxu0 0.0
  %5093 = vmatpush1.msra.mxu0 0.0
  %5094 = vmatprep.subr.mxu0 0.0
  %5095 = vmatpush1.msra.mxu0 0.0
  %5096 = vmatprep.subr.mxu0 0.0
  %5097 = vmatpush1.msra.mxu0 0.0
  %5098 = vmatprep.subr.mxu0 0.0
  %5099 = vmatpush1.msra.mxu0 0.0
  %5100 = vmatprep.subr.mxu0 0.0
  %5101 = vmatpush1.msra.mxu0 0.0
  %5102 = vmatprep.subr.mxu0 0.0
  %5103 = vmatpush1.msra.mxu0 0.0
  %5104 = vmatprep.mubr.f32.mxu0 0.0
  %5105 = vmatmul.mubr.f32.gmra.mrb[0].mxu0 %v4851
  %v5106 = vpop.f32.mrb[0].mxu0
  %v5107 = vadd.f32 0.0, %v5106
  %v5108 = vpop.f32.mrb[0].mxu0
  %v5109 = vadd.f32 0.0, %v5108
  %5110 = vmatprep.mubr.f32.mxu0 0.0
  %5111 = vmatmul.mubr.f32.gmra.mrb[0].mxu0 %v4852
  %v5112 = vpop.f32.mrb[0].mxu0
  %v5113 = vadd.f32 0.0, %v5112
  %v5114 = vpop.f32.mrb[0].mxu0
  %v5115 = vadd.f32 0.0, %v5114
  %5116 = vmatprep.mubr.f32.mxu0 0.0
  %5117 = vmatmul.mubr.f32.gmra.mrb[0].mxu0 %v4853
  %v5118 = vpop.f32.mrb[0].mxu0
  %v5119 = vadd.f32 0.0, %v5118
  %v5120 = vpop.f32.mrb[0].mxu0
  %v5121 = vadd.f32 0.0, %v5120
  %5122 = vmatprep.mubr.f32.mxu0 0.0
  %5123 = vmatmul.mubr.f32.gmra.mrb[0].mxu0 %v4854
  %v5124 = vpop.f32.mrb[0].mxu0
  %v5125 = vadd.f32 0.0, %v5124
  %v5126 = vpop.f32.mrb[0].mxu0
  %v5127 = vadd.f32 0.0, %v5126
  %5128 = vdwg.mxu0
  %5129 = vmatprep.subr.mxu0 %v4860
  %5130 = vmatpush1.msra.mxu0 %v4859
  %5131 = vmatprep.subr.mxu0 %v4866
  %5132 = vmatpush1.msra.mxu0 %v4865
  %5133 = vmatprep.subr.mxu0 %v4872
  %5134 = vmatpush1.msra.mxu0 %v4871
  %5135 = vmatprep.subr.mxu0 %v4878
  %5136 = vmatpush1.msra.mxu0 %v4877
  %5137 = vmatprep.subr.mxu0 %v4884
  %5138 = vmatpush1.msra.mxu0 %v4883
  %5139 = vmatprep.subr.mxu0 %v4890
  %5140 = vmatpush1.msra.mxu0 %v4889
  %5141 = vmatprep.subr.mxu0 %v4896
  %5142 = vmatpush1.msra.mxu0 %v4895
  %5143 = vmatprep.subr.mxu0 %v4902
  %5144 = vmatpush1.msra.mxu0 %v4901
  %5145 = vmatprep.subr.mxu0 %v4908
  %5146 = vmatpush1.msra.mxu0 %v4907
  %5147 = vmatprep.subr.mxu0 %v4914
  %5148 = vmatpush1.msra.mxu0 %v4913
  %5149 = vmatprep.subr.mxu0 %v4920
  %5150 = vmatpush1.msra.mxu0 %v4919
  %5151 = vmatprep.subr.mxu0 %v4926
  %5152 = vmatpush1.msra.mxu0 %v4925
  %5153 = vmatprep.subr.mxu0 %v4932
  %5154 = vmatpush1.msra.mxu0 %v4931
  %5155 = vmatprep.subr.mxu0 %v4938
  %5156 = vmatpush1.msra.mxu0 %v4937
  %5157 = vmatprep.subr.mxu0 %v4944
  %5158 = vmatpush1.msra.mxu0 %v4943
  %5159 = vmatprep.subr.mxu0 %v4950
  %5160 = vmatpush1.msra.mxu0 %v4949
  %5161 = vmatprep.subr.mxu0 0.0
  %5162 = vmatpush1.msra.mxu0 0.0
  %5163 = vmatprep.subr.mxu0 0.0
  %5164 = vmatpush1.msra.mxu0 0.0
  %5165 = vmatprep.subr.mxu0 0.0
  %5166 = vmatpush1.msra.mxu0 0.0
  %5167 = vmatprep.subr.mxu0 0.0
  %5168 = vmatpush1.msra.mxu0 0.0
  %5169 = vmatprep.subr.mxu0 0.0
  %5170 = vmatpush1.msra.mxu0 0.0
  %5171 = vmatprep.subr.mxu0 0.0
  %5172 = vmatpush1.msra.mxu0 0.0
  %5173 = vmatprep.subr.mxu0 0.0
  %5174 = vmatpush1.msra.mxu0 0.0
  %5175 = vmatprep.subr.mxu0 0.0
  %5176 = vmatpush1.msra.mxu0 0.0
  %5177 = vmatprep.subr.mxu0 0.0
  %5178 = vmatpush1.msra.mxu0 0.0
  %5179 = vmatprep.subr.mxu0 0.0
  %5180 = vmatpush1.msra.mxu0 0.0
  %5181 = vmatprep.subr.mxu0 0.0
  %5182 = vmatpush1.msra.mxu0 0.0
  %5183 = vmatprep.subr.mxu0 0.0
  %5184 = vmatpush1.msra.mxu0 0.0
  %5185 = vmatprep.subr.mxu0 0.0
  %5186 = vmatpush1.msra.mxu0 0.0
  %5187 = vmatprep.subr.mxu0 0.0
  %5188 = vmatpush1.msra.mxu0 0.0
  %5189 = vmatprep.subr.mxu0 0.0
  %5190 = vmatpush1.msra.mxu0 0.0
  %5191 = vmatprep.subr.mxu0 0.0
  %5192 = vmatpush1.msra.mxu0 0.0
  %5193 = vmatprep.mubr.f32.mxu0 0.0
  %5194 = vmatmul.mubr.f32.gmra.mrb[0].mxu0 %v4851
  %v5195 = vpop.f32.mrb[0].mxu0
  %v5196 = vadd.f32 0.0, %v5195
  %v5197 = vpop.f32.mrb[0].mxu0
  %v5198 = vadd.f32 0.0, %v5197
  %5199 = vmatprep.mubr.f32.mxu0 0.0
  %5200 = vmatmul.mubr.f32.gmra.mrb[0].mxu0 %v4852
  %v5201 = vpop.f32.mrb[0].mxu0
  %v5202 = vadd.f32 0.0, %v5201
  %v5203 = vpop.f32.mrb[0].mxu0
  %v5204 = vadd.f32 0.0, %v5203
  %5205 = vmatprep.mubr.f32.mxu0 0.0
  %5206 = vmatmul.mubr.f32.gmra.mrb[0].mxu0 %v4853
  %v5207 = vpop.f32.mrb[0].mxu0
  %v5208 = vadd.f32 0.0, %v5207
  %v5209 = vpop.f32.mrb[0].mxu0
  %v5210 = vadd.f32 0.0, %v5209
  %5211 = vmatprep.mubr.f32.mxu0 0.0
  %5212 = vmatmul.mubr.f32.gmra.mrb[0].mxu0 %v4854
  %v5213 = vpop.f32.mrb[0].mxu0
  %v5214 = vadd.f32 0.0, %v5213
  %v5215 = vpop.f32.mrb[0].mxu0
  %v5216 = vadd.f32 0.0, %v5215
  %5217 = vdwg.mxu0
  %s5218 = sld [smem:[#allocation3 + $0x2]]
  %s5219 = scvt.s32.f32 %s5218
  %s5220 = scalar_lea.vmem %s2, 384
  %v5221 = vld [vmem:[%s5220] sm:$0xff]
  %v5222 = vld [vmem:[%s5220 + $0x8] sm:$0xff]
  %v5223 = vld [vmem:[%s5220 + $0x10] sm:$0xff]
  %v5224 = vld [vmem:[%s5220 + $0x18] sm:$0xff]
  %v5225 = vld [vmem:[%s5220 + $0x20] sm:$0xff]
  %v5226 = vld [vmem:[%s5220 + $0x28] sm:$0xff]
  %v5227 = vld [vmem:[%s5220 + $0x30] sm:$0xff]
  %v5228 = vld [vmem:[%s5220 + $0x38] sm:$0xff]
  %v5229 = vld [vmem:[%s5220 + $0x40] sm:$0xff]
  %v5230 = vld [vmem:[%s5220 + $0x48] sm:$0xff]
  %v5231 = vld [vmem:[%s5220 + $0x50] sm:$0xff]
  %v5232 = vld [vmem:[%s5220 + $0x58] sm:$0xff]
  %v5233 = vld [vmem:[%s5220 + $0x60] sm:$0xff]
  %v5234 = vld [vmem:[%s5220 + $0x68] sm:$0xff]
  %v5235 = vld [vmem:[%s5220 + $0x70] sm:$0xff]
  %v5236 = vld [vmem:[%s5220 + $0x78] sm:$0xff]
  %v5237 = vld [vmem:[%s5220 + $0x80] sm:$0xff]
  %v5238 = vld [vmem:[%s5220 + $0x88] sm:$0xff]
  %v5239 = vld [vmem:[%s5220 + $0x90] sm:$0xff]
  %v5240 = vld [vmem:[%s5220 + $0x98] sm:$0xff]
  %v5241 = vld [vmem:[%s5220 + $0xa0] sm:$0xff]
  %v5242 = vld [vmem:[%s5220 + $0xa8] sm:$0xff]
  %v5243 = vld [vmem:[%s5220 + $0xb0] sm:$0xff]
  %v5244 = vld [vmem:[%s5220 + $0xb8] sm:$0xff]
  %v5245 = vstv %s5219
  %v5246 = vmul.f32 %v5245, %v5221
  %v5247 = vmul.f32 %v5245, %v5222
  %v5248 = vmul.f32 %v5245, %v5223
  %v5249 = vmul.f32 %v5245, %v5224
  %v5250 = vmul.f32 %v5245, %v5225
  %v5251 = vmul.f32 %v5245, %v5226
  %v5252 = vmul.f32 %v5245, %v5227
  %v5253 = vmul.f32 %v5245, %v5228
  %v5254 = vmul.f32 %v5245, %v5229
  %v5255 = vmul.f32 %v5245, %v5230
  %v5256 = vmul.f32 %v5245, %v5231
  %v5257 = vmul.f32 %v5245, %v5232
  %v5258 = vmul.f32 %v5245, %v5233
  %v5259 = vmul.f32 %v5245, %v5234
  %v5260 = vmul.f32 %v5245, %v5235
  %v5261 = vmul.f32 %v5245, %v5236
  %v5262 = vmul.f32 %v5245, %v5237
  %v5263 = vmul.f32 %v5245, %v5238
  %v5264 = vmul.f32 %v5245, %v5239
  %v5265 = vmul.f32 %v5245, %v5240
  %v5266 = vmul.f32 %v5245, %v5241
  %v5267 = vmul.f32 %v5245, %v5242
  %v5268 = vmul.f32 %v5245, %v5243
  %v5269 = vmul.f32 %v5245, %v5244
  %s5270 = ssub.f32 1.0, %s5219
  %v5271 = vstv %s5270
  %v5272 = vmul.f32 %v5271, %v5018
  %v5273 = vmul.f32 %v5271, %v5020
  %v5274 = vmul.f32 %v5271, %v5107
  %v5275 = vmul.f32 %v5271, %v5109
  %v5276 = vmul.f32 %v5271, %v5196
  %v5277 = vmul.f32 %v5271, %v5198
  %v5278 = vmul.f32 %v5271, %v5024
  %v5279 = vmul.f32 %v5271, %v5026
  %v5280 = vmul.f32 %v5271, %v5113
  %v5281 = vmul.f32 %v5271, %v5115
  %v5282 = vmul.f32 %v5271, %v5202
  %v5283 = vmul.f32 %v5271, %v5204
  %v5284 = vmul.f32 %v5271, %v5030
  %v5285 = vmul.f32 %v5271, %v5032
  %v5286 = vmul.f32 %v5271, %v5119
  %v5287 = vmul.f32 %v5271, %v5121
  %v5288 = vmul.f32 %v5271, %v5208
  %v5289 = vmul.f32 %v5271, %v5210
  %v5290 = vmul.f32 %v5271, %v5036
  %v5291 = vmul.f32 %v5271, %v5038
  %v5292 = vmul.f32 %v5271, %v5125
  %v5293 = vmul.f32 %v5271, %v5127
  %v5294 = vmul.f32 %v5271, %v5214
  %v5295 = vmul.f32 %v5271, %v5216
  %v5296 = vadd.f32 %v5246, %v5272
  %v5297 = vadd.f32 %v5247, %v5273
  %v5298 = vadd.f32 %v5248, %v5274
  %v5299 = vadd.f32 %v5249, %v5275
  %v5300 = vadd.f32 %v5250, %v5276
  %v5301 = vadd.f32 %v5251, %v5277
  %v5302 = vadd.f32 %v5252, %v5278
  %v5303 = vadd.f32 %v5253, %v5279
  %v5304 = vadd.f32 %v5254, %v5280
  %v5305 = vadd.f32 %v5255, %v5281
  %v5306 = vadd.f32 %v5256, %v5282
  %v5307 = vadd.f32 %v5257, %v5283
  %v5308 = vadd.f32 %v5258, %v5284
  %v5309 = vadd.f32 %v5259, %v5285
  %v5310 = vadd.f32 %v5260, %v5286
  %v5311 = vadd.f32 %v5261, %v5287
  %v5312 = vadd.f32 %v5262, %v5288
  %v5313 = vadd.f32 %v5263, %v5289
  %v5314 = vadd.f32 %v5264, %v5290
  %v5315 = vadd.f32 %v5265, %v5291
  %v5316 = vadd.f32 %v5266, %v5292
  %v5317 = vadd.f32 %v5267, %v5293
  %v5318 = vadd.f32 %v5268, %v5294
  %v5319 = vadd.f32 %v5269, %v5295
  %v5320 = vld [vmem:[%s5] sm:$0xff]
  %v5321 = vld [vmem:[%s5 + $0x8] sm:$0xff]
  %v5322 = vld [vmem:[%s5 + $0x10] sm:$0xff]
  %v5323 = vld [vmem:[%s5 + $0x18] sm:$0xff]
  %v5324 = vld [vmem:[%s5 + $0x20] sm:$0xff]
  %v5325 = vld [vmem:[%s5 + $0x28] sm:$0xff]
  %v5326 = vld [vmem:[%s5 + $0x30] sm:$0xff]
  %v5327 = vld [vmem:[%s5 + $0x38] sm:$0xff]
  %v5328 = vld [vmem:[%s5 + $0x40] sm:$0xff]
  %v5329 = vld [vmem:[%s5 + $0x48] sm:$0xff]
  %v5330 = vld [vmem:[%s5 + $0x50] sm:$0xff]
  %v5331 = vld [vmem:[%s5 + $0x58] sm:$0xff]
  %v5332 = vld [vmem:[%s5 + $0x60] sm:$0xff]
  %v5333 = vld [vmem:[%s5 + $0x68] sm:$0xff]
  %v5334 = vld [vmem:[%s5 + $0x70] sm:$0xff]
  %v5335 = vld [vmem:[%s5 + $0x78] sm:$0xff]
  %v5336 = vld [vmem:[%s5 + $0x80] sm:$0xff]
  %v5337 = vld [vmem:[%s5 + $0x88] sm:$0xff]
  %v5338 = vld [vmem:[%s5 + $0x90] sm:$0xff]
  %v5339 = vld [vmem:[%s5 + $0x98] sm:$0xff]
  %v5340 = vld [vmem:[%s5 + $0xa0] sm:$0xff]
  %v5341 = vld [vmem:[%s5 + $0xa8] sm:$0xff]
  %v5342 = vld [vmem:[%s5 + $0xb0] sm:$0xff]
  %v5343 = vld [vmem:[%s5 + $0xb8] sm:$0xff]
  %v5344 = vld [vmem:[%s5 + $0xc0] sm:$0xff]
  %v5345 = vld [vmem:[%s5 + $0xc8] sm:$0xff]
  %v5346 = vld [vmem:[%s5 + $0xd0] sm:$0xff]
  %v5347 = vld [vmem:[%s5 + $0xd8] sm:$0xff]
  %v5348 = vld [vmem:[%s5 + $0xe0] sm:$0xff]
  %v5349 = vld [vmem:[%s5 + $0xe8] sm:$0xff]
  %v5350 = vld [vmem:[%s5 + $0xf0] sm:$0xff]
  %v5351 = vld [vmem:[%s5 + $0xf8] sm:$0xff]
  %v5352 = vld [vmem:[%s5 + $0x100] sm:$0xff]
  %v5353 = vld [vmem:[%s5 + $0x108] sm:$0xff]
  %v5354 = vld [vmem:[%s5 + $0x110] sm:$0xff]
  %v5355 = vld [vmem:[%s5 + $0x118] sm:$0xff]
  %v5356 = vld [vmem:[%s5 + $0x120] sm:$0xff]
  %v5357 = vld [vmem:[%s5 + $0x128] sm:$0xff]
  %v5358 = vld [vmem:[%s5 + $0x130] sm:$0xff]
  %v5359 = vld [vmem:[%s5 + $0x138] sm:$0xff]
  %v5360 = vld [vmem:[%s5 + $0x140] sm:$0xff]
  %v5361 = vld [vmem:[%s5 + $0x148] sm:$0xff]
  %v5362 = vld [vmem:[%s5 + $0x150] sm:$0xff]
  %v5363 = vld [vmem:[%s5 + $0x158] sm:$0xff]
  %v5364 = vld [vmem:[%s5 + $0x160] sm:$0xff]
  %v5365 = vld [vmem:[%s5 + $0x168] sm:$0xff]
  %v5366 = vld [vmem:[%s5 + $0x170] sm:$0xff]
  %v5367 = vld [vmem:[%s5 + $0x178] sm:$0xff]
  %v5368 = vld [vmem:[%s5 + $0x180] sm:$0xff]
  %v5369 = vld [vmem:[%s5 + $0x188] sm:$0xff]
  %v5370 = vld [vmem:[%s5 + $0x190] sm:$0xff]
  %v5371 = vld [vmem:[%s5 + $0x198] sm:$0xff]
  %v5372 = vld [vmem:[%s5 + $0x1a0] sm:$0xff]
  %v5373 = vld [vmem:[%s5 + $0x1a8] sm:$0xff]
  %v5374 = vld [vmem:[%s5 + $0x1b0] sm:$0xff]
  %v5375 = vld [vmem:[%s5 + $0x1b8] sm:$0xff]
  %v5376 = vld [vmem:[%s5 + $0x1c0] sm:$0xff]
  %v5377 = vld [vmem:[%s5 + $0x1c8] sm:$0xff]
  %v5378 = vld [vmem:[%s5 + $0x1d0] sm:$0xff]
  %v5379 = vld [vmem:[%s5 + $0x1d8] sm:$0xff]
  %v5380 = vld [vmem:[%s5 + $0x1e0] sm:$0xff]
  %v5381 = vld [vmem:[%s5 + $0x1e8] sm:$0xff]
  %v5382 = vld [vmem:[%s5 + $0x1f0] sm:$0xff]
  %v5383 = vld [vmem:[%s5 + $0x1f8] sm:$0xff]
  %v5384 = vld [vmem:[%s5 + $0x200] sm:$0xff]
  %v5385 = vld [vmem:[%s5 + $0x208] sm:$0xff]
  %v5386 = vld [vmem:[%s5 + $0x210] sm:$0xff]
  %v5387 = vld [vmem:[%s5 + $0x218] sm:$0xff]
  %v5388 = vld [vmem:[%s5 + $0x220] sm:$0xff]
  %v5389 = vld [vmem:[%s5 + $0x228] sm:$0xff]
  %v5390 = vld [vmem:[%s5 + $0x230] sm:$0xff]
  %v5391 = vld [vmem:[%s5 + $0x238] sm:$0xff]
  %v5392 = vld [vmem:[%s5 + $0x240] sm:$0xff]
  %v5393 = vld [vmem:[%s5 + $0x248] sm:$0xff]
  %v5394 = vld [vmem:[%s5 + $0x250] sm:$0xff]
  %v5395 = vld [vmem:[%s5 + $0x258] sm:$0xff]
  %v5396 = vld [vmem:[%s5 + $0x260] sm:$0xff]
  %v5397 = vld [vmem:[%s5 + $0x268] sm:$0xff]
  %v5398 = vld [vmem:[%s5 + $0x270] sm:$0xff]
  %v5399 = vld [vmem:[%s5 + $0x278] sm:$0xff]
  %v5400 = vld [vmem:[%s5 + $0x280] sm:$0xff]
  %v5401 = vld [vmem:[%s5 + $0x288] sm:$0xff]
  %v5402 = vld [vmem:[%s5 + $0x290] sm:$0xff]
  %v5403 = vld [vmem:[%s5 + $0x298] sm:$0xff]
  %v5404 = vld [vmem:[%s5 + $0x2a0] sm:$0xff]
  %v5405 = vld [vmem:[%s5 + $0x2a8] sm:$0xff]
  %v5406 = vld [vmem:[%s5 + $0x2b0] sm:$0xff]
  %v5407 = vld [vmem:[%s5 + $0x2b8] sm:$0xff]
  %v5408 = vld [vmem:[%s5 + $0x2c0] sm:$0xff]
  %v5409 = vld [vmem:[%s5 + $0x2c8] sm:$0xff]
  %v5410 = vld [vmem:[%s5 + $0x2d0] sm:$0xff]
  %v5411 = vld [vmem:[%s5 + $0x2d8] sm:$0xff]
  %v5412 = vld [vmem:[%s5 + $0x2e0] sm:$0xff]
  %v5413 = vld [vmem:[%s5 + $0x2e8] sm:$0xff]
  %v5414 = vld [vmem:[%s5 + $0x2f0] sm:$0xff]
  %v5415 = vld [vmem:[%s5 + $0x2f8] sm:$0xff]
  %v5416 = vld [vmem:[%s5 + $0x300] sm:$0xff]
  %v5417 = vld [vmem:[%s5 + $0x308] sm:$0xff]
  %v5418 = vld [vmem:[%s5 + $0x310] sm:$0xff]
  %v5419 = vld [vmem:[%s5 + $0x318] sm:$0xff]
  %v5420 = vld [vmem:[%s5 + $0x320] sm:$0xff]
  %v5421 = vld [vmem:[%s5 + $0x328] sm:$0xff]
  %v5422 = vld [vmem:[%s5 + $0x330] sm:$0xff]
  %v5423 = vld [vmem:[%s5 + $0x338] sm:$0xff]
  %v5424 = vld [vmem:[%s5 + $0x340] sm:$0xff]
  %v5425 = vld [vmem:[%s5 + $0x348] sm:$0xff]
  %v5426 = vld [vmem:[%s5 + $0x350] sm:$0xff]
  %v5427 = vld [vmem:[%s5 + $0x358] sm:$0xff]
  %v5428 = vld [vmem:[%s5 + $0x360] sm:$0xff]
  %v5429 = vld [vmem:[%s5 + $0x368] sm:$0xff]
  %v5430 = vld [vmem:[%s5 + $0x370] sm:$0xff]
  %v5431 = vld [vmem:[%s5 + $0x378] sm:$0xff]
  %v5432 = vld [vmem:[%s5 + $0x380] sm:$0xff]
  %v5433 = vld [vmem:[%s5 + $0x388] sm:$0xff]
  %v5434 = vld [vmem:[%s5 + $0x390] sm:$0xff]
  %v5435 = vld [vmem:[%s5 + $0x398] sm:$0xff]
  %v5436 = vld [vmem:[%s5 + $0x3a0] sm:$0xff]
  %v5437 = vld [vmem:[%s5 + $0x3a8] sm:$0xff]
  %v5438 = vld [vmem:[%s5 + $0x3b0] sm:$0xff]
  %v5439 = vld [vmem:[%s5 + $0x3b8] sm:$0xff]
  %v5440 = vld [vmem:[%s5 + $0x3c0] sm:$0xff]
  %v5441 = vld [vmem:[%s5 + $0x3c8] sm:$0xff]
  %v5442 = vld [vmem:[%s5 + $0x3d0] sm:$0xff]
  %v5443 = vld [vmem:[%s5 + $0x3d8] sm:$0xff]
  %v5444 = vld [vmem:[%s5 + $0x3e0] sm:$0xff]
  %v5445 = vld [vmem:[%s5 + $0x3e8] sm:$0xff]
  %v5446 = vld [vmem:[%s5 + $0x3f0] sm:$0xff]
  %v5447 = vld [vmem:[%s5 + $0x3f8] sm:$0xff]
  %v5448 = vld [vmem:[%s5 + $0x400] sm:$0xff]
  %v5449 = vld [vmem:[%s5 + $0x408] sm:$0xff]
  %v5450 = vld [vmem:[%s5 + $0x410] sm:$0xff]
  %v5451 = vld [vmem:[%s5 + $0x418] sm:$0xff]
  %v5452 = vld [vmem:[%s5 + $0x420] sm:$0xff]
  %v5453 = vld [vmem:[%s5 + $0x428] sm:$0xff]
  %v5454 = vld [vmem:[%s5 + $0x430] sm:$0xff]
  %v5455 = vld [vmem:[%s5 + $0x438] sm:$0xff]
  %v5456 = vld [vmem:[%s5 + $0x440] sm:$0xff]
  %v5457 = vld [vmem:[%s5 + $0x448] sm:$0xff]
  %v5458 = vld [vmem:[%s5 + $0x450] sm:$0xff]
  %v5459 = vld [vmem:[%s5 + $0x458] sm:$0xff]
  %v5460 = vld [vmem:[%s5 + $0x460] sm:$0xff]
  %v5461 = vld [vmem:[%s5 + $0x468] sm:$0xff]
  %v5462 = vld [vmem:[%s5 + $0x470] sm:$0xff]
  %v5463 = vld [vmem:[%s5 + $0x478] sm:$0xff]
  %v5464 = vld [vmem:[%s5 + $0x480] sm:$0xff]
  %v5465 = vld [vmem:[%s5 + $0x488] sm:$0xff]
  %v5466 = vld [vmem:[%s5 + $0x490] sm:$0xff]
  %v5467 = vld [vmem:[%s5 + $0x498] sm:$0xff]
  %v5468 = vld [vmem:[%s5 + $0x4a0] sm:$0xff]
  %v5469 = vld [vmem:[%s5 + $0x4a8] sm:$0xff]
  %v5470 = vld [vmem:[%s5 + $0x4b0] sm:$0xff]
  %v5471 = vld [vmem:[%s5 + $0x4b8] sm:$0xff]
  %v5472 = vld [vmem:[%s5 + $0x4c0] sm:$0xff]
  %v5473 = vld [vmem:[%s5 + $0x4c8] sm:$0xff]
  %v5474 = vld [vmem:[%s5 + $0x4d0] sm:$0xff]
  %v5475 = vld [vmem:[%s5 + $0x4d8] sm:$0xff]
  %v5476 = vld [vmem:[%s5 + $0x4e0] sm:$0xff]
  %v5477 = vld [vmem:[%s5 + $0x4e8] sm:$0xff]
  %v5478 = vld [vmem:[%s5 + $0x4f0] sm:$0xff]
  %v5479 = vld [vmem:[%s5 + $0x4f8] sm:$0xff]
  %v5480 = vld [vmem:[%s5 + $0x500] sm:$0xff]
  %v5481 = vld [vmem:[%s5 + $0x508] sm:$0xff]
  %v5482 = vld [vmem:[%s5 + $0x510] sm:$0xff]
  %v5483 = vld [vmem:[%s5 + $0x518] sm:$0xff]
  %v5484 = vld [vmem:[%s5 + $0x520] sm:$0xff]
  %v5485 = vld [vmem:[%s5 + $0x528] sm:$0xff]
  %v5486 = vld [vmem:[%s5 + $0x530] sm:$0xff]
  %v5487 = vld [vmem:[%s5 + $0x538] sm:$0xff]
  %v5488 = vld [vmem:[%s5 + $0x540] sm:$0xff]
  %v5489 = vld [vmem:[%s5 + $0x548] sm:$0xff]
  %v5490 = vld [vmem:[%s5 + $0x550] sm:$0xff]
  %v5491 = vld [vmem:[%s5 + $0x558] sm:$0xff]
  %v5492 = vld [vmem:[%s5 + $0x560] sm:$0xff]
  %v5493 = vld [vmem:[%s5 + $0x568] sm:$0xff]
  %v5494 = vld [vmem:[%s5 + $0x570] sm:$0xff]
  %v5495 = vld [vmem:[%s5 + $0x578] sm:$0xff]
  %v5496 = vld [vmem:[%s5 + $0x580] sm:$0xff]
  %v5497 = vld [vmem:[%s5 + $0x588] sm:$0xff]
  %v5498 = vld [vmem:[%s5 + $0x590] sm:$0xff]
  %v5499 = vld [vmem:[%s5 + $0x598] sm:$0xff]
  %v5500 = vld [vmem:[%s5 + $0x5a0] sm:$0xff]
  %v5501 = vld [vmem:[%s5 + $0x5a8] sm:$0xff]
  %v5502 = vld [vmem:[%s5 + $0x5b0] sm:$0xff]
  %v5503 = vld [vmem:[%s5 + $0x5b8] sm:$0xff]
  %v5504 = vld [vmem:[%s5 + $0x5c0] sm:$0xff]
  %v5505 = vld [vmem:[%s5 + $0x5c8] sm:$0xff]
  %v5506 = vld [vmem:[%s5 + $0x5d0] sm:$0xff]
  %v5507 = vld [vmem:[%s5 + $0x5d8] sm:$0xff]
  %v5508 = vld [vmem:[%s5 + $0x5e0] sm:$0xff]
  %v5509 = vld [vmem:[%s5 + $0x5e8] sm:$0xff]
  %v5510 = vld [vmem:[%s5 + $0x5f0] sm:$0xff]
  %v5511 = vld [vmem:[%s5 + $0x5f8] sm:$0xff]
  %v5512 = vld [vmem:[%s6] sm:$0x3f]
  %v5514 = vlaneseq
  %v5515 = vshrl.u32 %v5514, 7
  %v5516 = vsub.s32 0, %v5515
  %v5517 = vrot.slane %v5512, %v5516
  %v5518 = vlaneseq
  %v5519 = vshrl.u32 %v5518, 7
  %v5520 = vsub.s32 1, %v5519
  %v5521 = vrot.slane %v5512, %v5520
  %v5522 = vlaneseq
  %v5523 = vshrl.u32 %v5522, 7
  %v5524 = vsub.s32 2, %v5523
  %v5525 = vrot.slane %v5512, %v5524
  %v5526 = vlaneseq
  %v5527 = vshrl.u32 %v5526, 7
  %v5528 = vsub.s32 3, %v5527
  %v5529 = vrot.slane %v5512, %v5528
  %v5530 = vlaneseq
  %v5531 = vshrl.u32 %v5530, 7
  %v5532 = vsub.s32 4, %v5531
  %v5533 = vrot.slane %v5512, %v5532
  %v5534 = vlaneseq
  %v5535 = vshrl.u32 %v5534, 7
  %v5536 = vsub.s32 5, %v5535
  %v5537 = vrot.slane %v5512, %v5536
  %5544 = vmatprep.subr.mxu0 %v5321
  %5545 = vmatpush1.msra.mxu0 %v5320
  %5546 = vmatprep.subr.mxu0 %v5327
  %5547 = vmatpush1.msra.mxu0 %v5326
  %5548 = vmatprep.subr.mxu0 %v5333
  %5549 = vmatpush1.msra.mxu0 %v5332
  %5550 = vmatprep.subr.mxu0 %v5339
  %5551 = vmatpush1.msra.mxu0 %v5338
  %5552 = vmatprep.subr.mxu0 %v5345
  %5553 = vmatpush1.msra.mxu0 %v5344
  %5554 = vmatprep.subr.mxu0 %v5351
  %5555 = vmatpush1.msra.mxu0 %v5350
  %5556 = vmatprep.subr.mxu0 %v5357
  %5557 = vmatpush1.msra.mxu0 %v5356
  %5558 = vmatprep.subr.mxu0 %v5363
  %5559 = vmatpush1.msra.mxu0 %v5362
  %5560 = vmatprep.subr.mxu0 %v5369
  %5561 = vmatpush1.msra.mxu0 %v5368
  %5562 = vmatprep.subr.mxu0 %v5375
  %5563 = vmatpush1.msra.mxu0 %v5374
  %5564 = vmatprep.subr.mxu0 %v5381
  %5565 = vmatpush1.msra.mxu0 %v5380
  %5566 = vmatprep.subr.mxu0 %v5387
  %5567 = vmatpush1.msra.mxu0 %v5386
  %5568 = vmatprep.subr.mxu0 %v5393
  %5569 = vmatpush1.msra.mxu0 %v5392
  %5570 = vmatprep.subr.mxu0 %v5399
  %5571 = vmatpush1.msra.mxu0 %v5398
  %5572 = vmatprep.subr.mxu0 %v5405
  %5573 = vmatpush1.msra.mxu0 %v5404
  %5574 = vmatprep.subr.mxu0 %v5411
  %5575 = vmatpush1.msra.mxu0 %v5410
  %5576 = vmatprep.subr.mxu0 %v5417
  %5577 = vmatpush1.msra.mxu0 %v5416
  %5578 = vmatprep.subr.mxu0 %v5423
  %5579 = vmatpush1.msra.mxu0 %v5422
  %5580 = vmatprep.subr.mxu0 %v5429
  %5581 = vmatpush1.msra.mxu0 %v5428
  %5582 = vmatprep.subr.mxu0 %v5435
  %5583 = vmatpush1.msra.mxu0 %v5434
  %5584 = vmatprep.subr.mxu0 %v5441
  %5585 = vmatpush1.msra.mxu0 %v5440
  %5586 = vmatprep.subr.mxu0 %v5447
  %5587 = vmatpush1.msra.mxu0 %v5446
  %5588 = vmatprep.subr.mxu0 %v5453
  %5589 = vmatpush1.msra.mxu0 %v5452
  %5590 = vmatprep.subr.mxu0 %v5459
  %5591 = vmatpush1.msra.mxu0 %v5458
  %5592 = vmatprep.subr.mxu0 %v5465
  %5593 = vmatpush1.msra.mxu0 %v5464
  %5594 = vmatprep.subr.mxu0 %v5471
  %5595 = vmatpush1.msra.mxu0 %v5470
  %5596 = vmatprep.subr.mxu0 %v5477
  %5597 = vmatpush1.msra.mxu0 %v5476
  %5598 = vmatprep.subr.mxu0 %v5483
  %5599 = vmatpush1.msra.mxu0 %v5482
  %5600 = vmatprep.subr.mxu0 %v5489
  %5601 = vmatpush1.msra.mxu0 %v5488
  %5602 = vmatprep.subr.mxu0 %v5495
  %5603 = vmatpush1.msra.mxu0 %v5494
  %5604 = vmatprep.subr.mxu0 %v5501
  %5605 = vmatpush1.msra.mxu0 %v5500
  %5606 = vmatprep.subr.mxu0 %v5507
  %5607 = vmatpush1.msra.mxu0 %v5506
  %5608 = vmatprep.mubr.f32.mxu0 %v4635
  %5609 = vmatmul.mubr.f32.gmra.mrb[0].mxu0 %v4634
  %v5610 = vpop.f32.mrb[0].mxu0
  %v5611 = vadd.f32 %v5517, %v5610
  %v5612 = vpop.f32.mrb[0].mxu0
  %v5613 = vadd.f32 %v5521, %v5612
  %5614 = vmatprep.mubr.f32.mxu0 %v4637
  %5615 = vmatmul.mubr.f32.gmra.mrb[0].mxu0 %v4636
  %v5616 = vpop.f32.mrb[0].mxu0
  %v5617 = vadd.f32 %v5517, %v5616
  %v5618 = vpop.f32.mrb[0].mxu0
  %v5619 = vadd.f32 %v5521, %v5618
  %5620 = vmatprep.mubr.f32.mxu0 %v4639
  %5621 = vmatmul.mubr.f32.gmra.mrb[0].mxu0 %v4638
  %v5622 = vpop.f32.mrb[0].mxu0
  %v5623 = vadd.f32 %v5517, %v5622
  %v5624 = vpop.f32.mrb[0].mxu0
  %v5625 = vadd.f32 %v5521, %v5624
  %5626 = vmatprep.mubr.f32.mxu0 %v4641
  %5627 = vmatmul.mubr.f32.gmra.mrb[0].mxu0 %v4640
  %v5628 = vpop.f32.mrb[0].mxu0
  %v5629 = vadd.f32 %v5517, %v5628
  %v5630 = vpop.f32.mrb[0].mxu0
  %v5631 = vadd.f32 %v5521, %v5630
  %5632 = vdwg.mxu0
  %5633 = vmatprep.subr.mxu0 %v5323
  %5634 = vmatpush1.msra.mxu0 %v5322
  %5635 = vmatprep.subr.mxu0 %v5329
  %5636 = vmatpush1.msra.mxu0 %v5328
  %5637 = vmatprep.subr.mxu0 %v5335
  %5638 = vmatpush1.msra.mxu0 %v5334
  %5639 = vmatprep.subr.mxu0 %v5341
  %5640 = vmatpush1.msra.mxu0 %v5340
  %5641 = vmatprep.subr.mxu0 %v5347
  %5642 = vmatpush1.msra.mxu0 %v5346
  %5643 = vmatprep.subr.mxu0 %v5353
  %5644 = vmatpush1.msra.mxu0 %v5352
  %5645 = vmatprep.subr.mxu0 %v5359
  %5646 = vmatpush1.msra.mxu0 %v5358
  %5647 = vmatprep.subr.mxu0 %v5365
  %5648 = vmatpush1.msra.mxu0 %v5364
  %5649 = vmatprep.subr.mxu0 %v5371
  %5650 = vmatpush1.msra.mxu0 %v5370
  %5651 = vmatprep.subr.mxu0 %v5377
  %5652 = vmatpush1.msra.mxu0 %v5376
  %5653 = vmatprep.subr.mxu0 %v5383
  %5654 = vmatpush1.msra.mxu0 %v5382
  %5655 = vmatprep.subr.mxu0 %v5389
  %5656 = vmatpush1.msra.mxu0 %v5388
  %5657 = vmatprep.subr.mxu0 %v5395
  %5658 = vmatpush1.msra.mxu0 %v5394
  %5659 = vmatprep.subr.mxu0 %v5401
  %5660 = vmatpush1.msra.mxu0 %v5400
  %5661 = vmatprep.subr.mxu0 %v5407
  %5662 = vmatpush1.msra.mxu0 %v5406
  %5663 = vmatprep.subr.mxu0 %v5413
  %5664 = vmatpush1.msra.mxu0 %v5412
  %5665 = vmatprep.subr.mxu0 %v5419
  %5666 = vmatpush1.msra.mxu0 %v5418
  %5667 = vmatprep.subr.mxu0 %v5425
  %5668 = vmatpush1.msra.mxu0 %v5424
  %5669 = vmatprep.subr.mxu0 %v5431
  %5670 = vmatpush1.msra.mxu0 %v5430
  %5671 = vmatprep.subr.mxu0 %v5437
  %5672 = vmatpush1.msra.mxu0 %v5436
  %5673 = vmatprep.subr.mxu0 %v5443
  %5674 = vmatpush1.msra.mxu0 %v5442
  %5675 = vmatprep.subr.mxu0 %v5449
  %5676 = vmatpush1.msra.mxu0 %v5448
  %5677 = vmatprep.subr.mxu0 %v5455
  %5678 = vmatpush1.msra.mxu0 %v5454
  %5679 = vmatprep.subr.mxu0 %v5461
  %5680 = vmatpush1.msra.mxu0 %v5460
  %5681 = vmatprep.subr.mxu0 %v5467
  %5682 = vmatpush1.msra.mxu0 %v5466
  %5683 = vmatprep.subr.mxu0 %v5473
  %5684 = vmatpush1.msra.mxu0 %v5472
  %5685 = vmatprep.subr.mxu0 %v5479
  %5686 = vmatpush1.msra.mxu0 %v5478
  %5687 = vmatprep.subr.mxu0 %v5485
  %5688 = vmatpush1.msra.mxu0 %v5484
  %5689 = vmatprep.subr.mxu0 %v5491
  %5690 = vmatpush1.msra.mxu0 %v5490
  %5691 = vmatprep.subr.mxu0 %v5497
  %5692 = vmatpush1.msra.mxu0 %v5496
  %5693 = vmatprep.subr.mxu0 %v5503
  %5694 = vmatpush1.msra.mxu0 %v5502
  %5695 = vmatprep.subr.mxu0 %v5509
  %5696 = vmatpush1.msra.mxu0 %v5508
  %5697 = vmatprep.mubr.f32.mxu0 %v4635
  %5698 = vmatmul.mubr.f32.gmra.mrb[0].mxu0 %v4634
  %v5699 = vpop.f32.mrb[0].mxu0
  %v5700 = vadd.f32 %v5525, %v5699
  %v5701 = vpop.f32.mrb[0].mxu0
  %v5702 = vadd.f32 %v5529, %v5701
  %5703 = vmatprep.mubr.f32.mxu0 %v4637
  %5704 = vmatmul.mubr.f32.gmra.mrb[0].mxu0 %v4636
  %v5705 = vpop.f32.mrb[0].mxu0
  %v5706 = vadd.f32 %v5525, %v5705
  %v5707 = vpop.f32.mrb[0].mxu0
  %v5708 = vadd.f32 %v5529, %v5707
  %5709 = vmatprep.mubr.f32.mxu0 %v4639
  %5710 = vmatmul.mubr.f32.gmra.mrb[0].mxu0 %v4638
  %v5711 = vpop.f32.mrb[0].mxu0
  %v5712 = vadd.f32 %v5525, %v5711
  %v5713 = vpop.f32.mrb[0].mxu0
  %v5714 = vadd.f32 %v5529, %v5713
  %5715 = vmatprep.mubr.f32.mxu0 %v4641
  %5716 = vmatmul.mubr.f32.gmra.mrb[0].mxu0 %v4640
  %v5717 = vpop.f32.mrb[0].mxu0
  %v5718 = vadd.f32 %v5525, %v5717
  %v5719 = vpop.f32.mrb[0].mxu0
  %v5720 = vadd.f32 %v5529, %v5719
  %5721 = vdwg.mxu0
  %5722 = vmatprep.subr.mxu0 %v5325
  %5723 = vmatpush1.msra.mxu0 %v5324
  %5724 = vmatprep.subr.mxu0 %v5331
  %5725 = vmatpush1.msra.mxu0 %v5330
  %5726 = vmatprep.subr.mxu0 %v5337
  %5727 = vmatpush1.msra.mxu0 %v5336
  %5728 = vmatprep.subr.mxu0 %v5343
  %5729 = vmatpush1.msra.mxu0 %v5342
  %5730 = vmatprep.subr.mxu0 %v5349
  %5731 = vmatpush1.msra.mxu0 %v5348
  %5732 = vmatprep.subr.mxu0 %v5355
  %5733 = vmatpush1.msra.mxu0 %v5354
  %5734 = vmatprep.subr.mxu0 %v5361
  %5735 = vmatpush1.msra.mxu0 %v5360
  %5736 = vmatprep.subr.mxu0 %v5367
  %5737 = vmatpush1.msra.mxu0 %v5366
  %5738 = vmatprep.subr.mxu0 %v5373
  %5739 = vmatpush1.msra.mxu0 %v5372
  %5740 = vmatprep.subr.mxu0 %v5379
  %5741 = vmatpush1.msra.mxu0 %v5378
  %5742 = vmatprep.subr.mxu0 %v5385
  %5743 = vmatpush1.msra.mxu0 %v5384
  %5744 = vmatprep.subr.mxu0 %v5391
  %5745 = vmatpush1.msra.mxu0 %v5390
  %5746 = vmatprep.subr.mxu0 %v5397
  %5747 = vmatpush1.msra.mxu0 %v5396
  %5748 = vmatprep.subr.mxu0 %v5403
  %5749 = vmatpush1.msra.mxu0 %v5402
  %5750 = vmatprep.subr.mxu0 %v5409
  %5751 = vmatpush1.msra.mxu0 %v5408
  %5752 = vmatprep.subr.mxu0 %v5415
  %5753 = vmatpush1.msra.mxu0 %v5414
  %5754 = vmatprep.subr.mxu0 %v5421
  %5755 = vmatpush1.msra.mxu0 %v5420
  %5756 = vmatprep.subr.mxu0 %v5427
  %5757 = vmatpush1.msra.mxu0 %v5426
  %5758 = vmatprep.subr.mxu0 %v5433
  %5759 = vmatpush1.msra.mxu0 %v5432
  %5760 = vmatprep.subr.mxu0 %v5439
  %5761 = vmatpush1.msra.mxu0 %v5438
  %5762 = vmatprep.subr.mxu0 %v5445
  %5763 = vmatpush1.msra.mxu0 %v5444
  %5764 = vmatprep.subr.mxu0 %v5451
  %5765 = vmatpush1.msra.mxu0 %v5450
  %5766 = vmatprep.subr.mxu0 %v5457
  %5767 = vmatpush1.msra.mxu0 %v5456
  %5768 = vmatprep.subr.mxu0 %v5463
  %5769 = vmatpush1.msra.mxu0 %v5462
  %5770 = vmatprep.subr.mxu0 %v5469
  %5771 = vmatpush1.msra.mxu0 %v5468
  %5772 = vmatprep.subr.mxu0 %v5475
  %5773 = vmatpush1.msra.mxu0 %v5474
  %5774 = vmatprep.subr.mxu0 %v5481
  %5775 = vmatpush1.msra.mxu0 %v5480
  %5776 = vmatprep.subr.mxu0 %v5487
  %5777 = vmatpush1.msra.mxu0 %v5486
  %5778 = vmatprep.subr.mxu0 %v5493
  %5779 = vmatpush1.msra.mxu0 %v5492
  %5780 = vmatprep.subr.mxu0 %v5499
  %5781 = vmatpush1.msra.mxu0 %v5498
  %5782 = vmatprep.subr.mxu0 %v5505
  %5783 = vmatpush1.msra.mxu0 %v5504
  %5784 = vmatprep.subr.mxu0 %v5511
  %5785 = vmatpush1.msra.mxu0 %v5510
  %5786 = vmatprep.mubr.f32.mxu0 %v4635
  %5787 = vmatmul.mubr.f32.gmra.mrb[0].mxu0 %v4634
  %v5788 = vpop.f32.mrb[0].mxu0
  %v5789 = vadd.f32 %v5533, %v5788
  %v5790 = vpop.f32.mrb[0].mxu0
  %v5791 = vadd.f32 %v5537, %v5790
  %5792 = vmatprep.mubr.f32.mxu0 %v4637
  %5793 = vmatmul.mubr.f32.gmra.mrb[0].mxu0 %v4636
  %v5794 = vpop.f32.mrb[0].mxu0
  %v5795 = vadd.f32 %v5533, %v5794
  %v5796 = vpop.f32.mrb[0].mxu0
  %v5797 = vadd.f32 %v5537, %v5796
  %5798 = vmatprep.mubr.f32.mxu0 %v4639
  %5799 = vmatmul.mubr.f32.gmra.mrb[0].mxu0 %v4638
  %v5800 = vpop.f32.mrb[0].mxu0
  %v5801 = vadd.f32 %v5533, %v5800
  %v5802 = vpop.f32.mrb[0].mxu0
  %v5803 = vadd.f32 %v5537, %v5802
  %5804 = vmatprep.mubr.f32.mxu0 %v4641
  %5805 = vmatmul.mubr.f32.gmra.mrb[0].mxu0 %v4640
  %v5806 = vpop.f32.mrb[0].mxu0
  %v5807 = vadd.f32 %v5533, %v5806
  %v5808 = vpop.f32.mrb[0].mxu0
  %v5809 = vadd.f32 %v5537, %v5808
  %5810 = vdwg.mxu0
  %v5811 = vadd.f32 %v5296, %v5611
  %v5812 = vadd.f32 %v5297, %v5613
  %v5813 = vadd.f32 %v5302, %v5617
  %v5814 = vadd.f32 %v5303, %v5619
  %v5815 = vadd.f32 %v5308, %v5623
  %v5816 = vadd.f32 %v5309, %v5625
  %v5817 = vadd.f32 %v5314, %v5629
  %v5818 = vadd.f32 %v5315, %v5631
  %v5819 = vxor.u32 %v5811, 2147483648
  %v5820 = vxor.u32 %v5812, 2147483648
  %v5821 = vxor.u32 %v5813, 2147483648
  %v5822 = vxor.u32 %v5814, 2147483648
  %v5823 = vxor.u32 %v5815, 2147483648
  %v5824 = vxor.u32 %v5816, 2147483648
  %v5825 = vxor.u32 %v5817, 2147483648
  %v5826 = vxor.u32 %v5818, 2147483648
  %v5827 = vmul.f32 %v5819, 1.442695
  %v5828 = vpow.pop %v5827
  %v5829 = vmul.f32 %v5820, 1.442695
  %v5830 = vpow.pop %v5829
  %v5831 = vmul.f32 %v5821, 1.442695
  %v5832 = vpow.pop %v5831
  %v5833 = vmul.f32 %v5822, 1.442695
  %v5834 = vpow.pop %v5833
  %v5835 = vmul.f32 %v5823, 1.442695
  %v5836 = vpow.pop %v5835
  %v5837 = vmul.f32 %v5824, 1.442695
  %v5838 = vpow.pop %v5837
  %v5839 = vmul.f32 %v5825, 1.442695
  %v5840 = vpow.pop %v5839
  %v5841 = vmul.f32 %v5826, 1.442695
  %v5842 = vpow.pop %v5841
  %v5843 = vadd.f32 %v5828, 1.0
  %v5844 = vadd.f32 %v5830, 1.0
  %v5845 = vadd.f32 %v5832, 1.0
  %v5846 = vadd.f32 %v5834, 1.0
  %v5847 = vadd.f32 %v5836, 1.0
  %v5848 = vadd.f32 %v5838, 1.0
  %v5849 = vadd.f32 %v5840, 1.0
  %v5850 = vadd.f32 %v5842, 1.0
  %v5851 = vrcp.pop %v5843
  %v5852 = vmul.f32 1.0, %v5851
  %v5853 = vrcp.pop %v5844
  %v5854 = vmul.f32 1.0, %v5853
  %v5855 = vrcp.pop %v5845
  %v5856 = vmul.f32 1.0, %v5855
  %v5857 = vrcp.pop %v5846
  %v5858 = vmul.f32 1.0, %v5857
  %v5859 = vrcp.pop %v5847
  %v5860 = vmul.f32 1.0, %v5859
  %v5861 = vrcp.pop %v5848
  %v5862 = vmul.f32 1.0, %v5861
  %v5863 = vrcp.pop %v5849
  %v5864 = vmul.f32 1.0, %v5863
  %v5865 = vrcp.pop %v5850
  %v5866 = vmul.f32 1.0, %v5865
  %v5867 = vadd.f32 %v5298, %v5700
  %v5868 = vadd.f32 %v5299, %v5702
  %v5869 = vadd.f32 %v5304, %v5706
  %v5870 = vadd.f32 %v5305, %v5708
  %v5871 = vadd.f32 %v5310, %v5712
  %v5872 = vadd.f32 %v5311, %v5714
  %v5873 = vadd.f32 %v5316, %v5718
  %v5874 = vadd.f32 %v5317, %v5720
  %v5875 = vxor.u32 %v5867, 2147483648
  %v5876 = vxor.u32 %v5868, 2147483648
  %v5877 = vxor.u32 %v5869, 2147483648
  %v5878 = vxor.u32 %v5870, 2147483648
  %v5879 = vxor.u32 %v5871, 2147483648
  %v5880 = vxor.u32 %v5872, 2147483648
  %v5881 = vxor.u32 %v5873, 2147483648
  %v5882 = vxor.u32 %v5874, 2147483648
  %v5883 = vmul.f32 %v5875, 1.442695
  %v5884 = vpow.pop %v5883
  %v5885 = vmul.f32 %v5876, 1.442695
  %v5886 = vpow.pop %v5885
  %v5887 = vmul.f32 %v5877, 1.442695
  %v5888 = vpow.pop %v5887
  %v5889 = vmul.f32 %v5878, 1.442695
  %v5890 = vpow.pop %v5889
  %v5891 = vmul.f32 %v5879, 1.442695
  %v5892 = vpow.pop %v5891
  %v5893 = vmul.f32 %v5880, 1.442695
  %v5894 = vpow.pop %v5893
  %v5895 = vmul.f32 %v5881, 1.442695
  %v5896 = vpow.pop %v5895
  %v5897 = vmul.f32 %v5882, 1.442695
  %v5898 = vpow.pop %v5897
  %v5899 = vadd.f32 %v5884, 1.0
  %v5900 = vadd.f32 %v5886, 1.0
  %v5901 = vadd.f32 %v5888, 1.0
  %v5902 = vadd.f32 %v5890, 1.0
  %v5903 = vadd.f32 %v5892, 1.0
  %v5904 = vadd.f32 %v5894, 1.0
  %v5905 = vadd.f32 %v5896, 1.0
  %v5906 = vadd.f32 %v5898, 1.0
  %v5907 = vrcp.pop %v5899
  %v5908 = vmul.f32 1.0, %v5907
  %v5909 = vrcp.pop %v5900
  %v5910 = vmul.f32 1.0, %v5909
  %v5911 = vrcp.pop %v5901
  %v5912 = vmul.f32 1.0, %v5911
  %v5913 = vrcp.pop %v5902
  %v5914 = vmul.f32 1.0, %v5913
  %v5915 = vrcp.pop %v5903
  %v5916 = vmul.f32 1.0, %v5915
  %v5917 = vrcp.pop %v5904
  %v5918 = vmul.f32 1.0, %v5917
  %v5919 = vrcp.pop %v5905
  %v5920 = vmul.f32 1.0, %v5919
  %v5921 = vrcp.pop %v5906
  %v5922 = vmul.f32 1.0, %v5921
  %v5923 = vmul.f32 %v5852, %v5789
  %v5924 = vmul.f32 %v5854, %v5791
  %v5925 = vmul.f32 %v5856, %v5795
  %v5926 = vmul.f32 %v5858, %v5797
  %v5927 = vmul.f32 %v5860, %v5801
  %v5928 = vmul.f32 %v5862, %v5803
  %v5929 = vmul.f32 %v5864, %v5807
  %v5930 = vmul.f32 %v5866, %v5809
  %v5931 = vadd.f32 %v5300, %v5923
  %v5932 = vadd.f32 %v5301, %v5924
  %v5933 = vadd.f32 %v5306, %v5925
  %v5934 = vadd.f32 %v5307, %v5926
  %v5935 = vadd.f32 %v5312, %v5927
  %v5936 = vadd.f32 %v5313, %v5928
  %v5937 = vadd.f32 %v5318, %v5929
  %v5938 = vadd.f32 %v5319, %v5930
  %v5939 = vtanh.pop %v5931
  %v5940 = vtanh.pop %v5932
  %v5941 = vtanh.pop %v5933
  %v5942 = vtanh.pop %v5934
  %v5943 = vtanh.pop %v5935
  %v5944 = vtanh.pop %v5936
  %v5945 = vtanh.pop %v5937
  %v5946 = vtanh.pop %v5938
  %v5947 = vsub.f32 1.0, %v5908
  %v5948 = vsub.f32 1.0, %v5910
  %v5949 = vsub.f32 1.0, %v5912
  %v5950 = vsub.f32 1.0, %v5914
  %v5951 = vsub.f32 1.0, %v5916
  %v5952 = vsub.f32 1.0, %v5918
  %v5953 = vsub.f32 1.0, %v5920
  %v5954 = vsub.f32 1.0, %v5922
  %v5955 = vmul.f32 %v5947, %v5939
  %v5956 = vmul.f32 %v5948, %v5940
  %v5957 = vmul.f32 %v5949, %v5941
  %v5958 = vmul.f32 %v5950, %v5942
  %v5959 = vmul.f32 %v5951, %v5943
  %v5960 = vmul.f32 %v5952, %v5944
  %v5961 = vmul.f32 %v5953, %v5945
  %v5962 = vmul.f32 %v5954, %v5946
  %v5963 = vmul.f32 %v5908, %v4634
  %v5964 = vmul.f32 %v5910, %v4635
  %v5965 = vmul.f32 %v5912, %v4636
  %v5966 = vmul.f32 %v5914, %v4637
  %v5967 = vmul.f32 %v5916, %v4638
  %v5968 = vmul.f32 %v5918, %v4639
  %v5969 = vmul.f32 %v5920, %v4640
  %v5970 = vmul.f32 %v5922, %v4641
  %v5971 = vadd.f32 %v5955, %v5963
  %v5972 = vadd.f32 %v5956, %v5964
  %v5973 = vadd.f32 %v5957, %v5965
  %v5974 = vadd.f32 %v5958, %v5966
  %v5975 = vadd.f32 %v5959, %v5967
  %v5976 = vadd.f32 %v5960, %v5968
  %v5977 = vadd.f32 %v5961, %v5969
  %v5978 = vadd.f32 %v5962, %v5970
  %v5979 = vld [vmem:[%s8] sm:$0xff]
  %v5980 = vld [vmem:[%s8 + $0x8] sm:$0xff]
  %v5981 = vld [vmem:[%s8 + $0x10] sm:$0xff]
  %v5982 = vld [vmem:[%s8 + $0x18] sm:$0xff]
  %v5983 = vld [vmem:[%s8 + $0x20] sm:$0xff]
  %v5984 = vld [vmem:[%s8 + $0x28] sm:$0xff]
  %v5985 = vld [vmem:[%s8 + $0x30] sm:$0xff]
  %v5986 = vld [vmem:[%s8 + $0x38] sm:$0xff]
  %v5987 = vld [vmem:[%s8 + $0x40] sm:$0xff]
  %v5988 = vld [vmem:[%s8 + $0x48] sm:$0xff]
  %v5989 = vld [vmem:[%s8 + $0x50] sm:$0xff]
  %v5990 = vld [vmem:[%s8 + $0x58] sm:$0xff]
  %v5991 = vld [vmem:[%s8 + $0x60] sm:$0xff]
  %v5992 = vld [vmem:[%s8 + $0x68] sm:$0xff]
  %v5993 = vld [vmem:[%s8 + $0x70] sm:$0xff]
  %v5994 = vld [vmem:[%s8 + $0x78] sm:$0xff]
  %v5995 = vld [vmem:[%s8 + $0x80] sm:$0xff]
  %v5996 = vld [vmem:[%s8 + $0x88] sm:$0xff]
  %v5997 = vld [vmem:[%s8 + $0x90] sm:$0xff]
  %v5998 = vld [vmem:[%s8 + $0x98] sm:$0xff]
  %v5999 = vld [vmem:[%s8 + $0xa0] sm:$0xff]
  %v6000 = vld [vmem:[%s8 + $0xa8] sm:$0xff]
  %v6001 = vld [vmem:[%s8 + $0xb0] sm:$0xff]
  %v6002 = vld [vmem:[%s8 + $0xb8] sm:$0xff]
  %v6003 = vld [vmem:[%s8 + $0xc0] sm:$0xff]
  %v6004 = vld [vmem:[%s8 + $0xc8] sm:$0xff]
  %v6005 = vld [vmem:[%s8 + $0xd0] sm:$0xff]
  %v6006 = vld [vmem:[%s8 + $0xd8] sm:$0xff]
  %v6007 = vld [vmem:[%s8 + $0xe0] sm:$0xff]
  %v6008 = vld [vmem:[%s8 + $0xe8] sm:$0xff]
  %v6009 = vld [vmem:[%s8 + $0xf0] sm:$0xff]
  %v6010 = vld [vmem:[%s8 + $0xf8] sm:$0xff]
  %v6011 = vld [vmem:[%s9] sm:$0x1]
  %v6013 = vlaneseq
  %v6014 = vshrl.u32 %v6013, 7
  %v6015 = vsub.s32 0, %v6014
  %v6016 = vrot.slane %v6011, %v6015
  %6018 = vmatprep.subr.mxu0 0.0
  %6019 = vmatpush1.msra.mxu0 %v5979
  %6020 = vmatprep.subr.mxu0 0.0
  %6021 = vmatpush1.msra.mxu0 %v5980
  %6022 = vmatprep.subr.mxu0 0.0
  %6023 = vmatpush1.msra.mxu0 %v5981
  %6024 = vmatprep.subr.mxu0 0.0
  %6025 = vmatpush1.msra.mxu0 %v5982
  %6026 = vmatprep.subr.mxu0 0.0
  %6027 = vmatpush1.msra.mxu0 %v5983
  %6028 = vmatprep.subr.mxu0 0.0
  %6029 = vmatpush1.msra.mxu0 %v5984
  %6030 = vmatprep.subr.mxu0 0.0
  %6031 = vmatpush1.msra.mxu0 %v5985
  %6032 = vmatprep.subr.mxu0 0.0
  %6033 = vmatpush1.msra.mxu0 %v5986
  %6034 = vmatprep.subr.mxu0 0.0
  %6035 = vmatpush1.msra.mxu0 %v5987
  %6036 = vmatprep.subr.mxu0 0.0
  %6037 = vmatpush1.msra.mxu0 %v5988
  %6038 = vmatprep.subr.mxu0 0.0
  %6039 = vmatpush1.msra.mxu0 %v5989
  %6040 = vmatprep.subr.mxu0 0.0
  %6041 = vmatpush1.msra.mxu0 %v5990
  %6042 = vmatprep.subr.mxu0 0.0
  %6043 = vmatpush1.msra.mxu0 %v5991
  %6044 = vmatprep.subr.mxu0 0.0
  %6045 = vmatpush1.msra.mxu0 %v5992
  %6046 = vmatprep.subr.mxu0 0.0
  %6047 = vmatpush1.msra.mxu0 %v5993
  %6048 = vmatprep.subr.mxu0 0.0
  %6049 = vmatpush1.msra.mxu0 %v5994
  %6050 = vmatprep.subr.mxu0 0.0
  %6051 = vmatpush1.msra.mxu0 %v5995
  %6052 = vmatprep.subr.mxu0 0.0
  %6053 = vmatpush1.msra.mxu0 %v5996
  %6054 = vmatprep.subr.mxu0 0.0
  %6055 = vmatpush1.msra.mxu0 %v5997
  %6056 = vmatprep.subr.mxu0 0.0
  %6057 = vmatpush1.msra.mxu0 %v5998
  %6058 = vmatprep.subr.mxu0 0.0
  %6059 = vmatpush1.msra.mxu0 %v5999
  %6060 = vmatprep.subr.mxu0 0.0
  %6061 = vmatpush1.msra.mxu0 %v6000
  %6062 = vmatprep.subr.mxu0 0.0
  %6063 = vmatpush1.msra.mxu0 %v6001
  %6064 = vmatprep.subr.mxu0 0.0
  %6065 = vmatpush1.msra.mxu0 %v6002
  %6066 = vmatprep.subr.mxu0 0.0
  %6067 = vmatpush1.msra.mxu0 %v6003
  %6068 = vmatprep.subr.mxu0 0.0
  %6069 = vmatpush1.msra.mxu0 %v6004
  %6070 = vmatprep.subr.mxu0 0.0
  %6071 = vmatpush1.msra.mxu0 %v6005
  %6072 = vmatprep.subr.mxu0 0.0
  %6073 = vmatpush1.msra.mxu0 %v6006
  %6074 = vmatprep.subr.mxu0 0.0
  %6075 = vmatpush1.msra.mxu0 %v6007
  %6076 = vmatprep.subr.mxu0 0.0
  %6077 = vmatpush1.msra.mxu0 %v6008
  %6078 = vmatprep.subr.mxu0 0.0
  %6079 = vmatpush1.msra.mxu0 %v6009
  %6080 = vmatprep.subr.mxu0 0.0
  %6081 = vmatpush1.msra.mxu0 %v6010
  %6082 = vmatprep.mubr.f32.mxu0 %v5972
  %6083 = vmatmul.mubr.f32.gmra.mrb[0].mxu0 %v5971
  %v6084 = vpop.f32.mrb[0].mxu0
  %v6085 = vadd.f32 %v6016, %v6084
  %v6086 = vpop.f32.mrb[0].mxu0
  %6087 = vmatprep.mubr.f32.mxu0 %v5974
  %6088 = vmatmul.mubr.f32.gmra.mrb[0].mxu0 %v5973
  %v6089 = vpop.f32.mrb[0].mxu0
  %v6090 = vadd.f32 %v6016, %v6089
  %v6091 = vpop.f32.mrb[0].mxu0
  %6092 = vmatprep.mubr.f32.mxu0 %v5976
  %6093 = vmatmul.mubr.f32.gmra.mrb[0].mxu0 %v5975
  %v6094 = vpop.f32.mrb[0].mxu0
  %v6095 = vadd.f32 %v6016, %v6094
  %v6096 = vpop.f32.mrb[0].mxu0
  %6097 = vmatprep.mubr.f32.mxu0 %v5978
  %6098 = vmatmul.mubr.f32.gmra.mrb[0].mxu0 %v5977
  %v6099 = vpop.f32.mrb[0].mxu0
  %v6100 = vadd.f32 %v6016, %v6099
  %v6101 = vpop.f32.mrb[0].mxu0
  %6102 = vdwg.mxu0
  %s6103 = scalar_lea.vmem %s10, 96
  %6104 = vst [vmem:[%s6103] sm:$0xff] %v6085
  %6105 = vst [vmem:[%s6103 + $0x8] sm:$0xff] %v6090
  %6106 = vst [vmem:[%s6103 + $0x10] sm:$0xff] %v6095
  %6107 = vst [vmem:[%s6103 + $0x18] sm:$0xff] %v6100
  %6108 = vmax.xlane.f32.xlu0 %v6085
  %v6109 = vpop.xlane.xlu0 %6108
  %6110 = vmax.xlane.f32.xlu0 %v6090
  %v6111 = vpop.xlane.xlu0 %6110
  %6112 = vmax.xlane.f32.xlu0 %v6095
  %v6113 = vpop.xlane.xlu0 %6112
  %6114 = vmax.xlane.f32.xlu0 %v6100
  %v6115 = vpop.xlane.xlu0 %6114
  %vm6116 = vcmp.ge.f32.partialorder %v6085, %v6109
  %vm6117 = vcmp.ge.f32.partialorder %v6090, %v6111
  %vm6118 = vcmp.ge.f32.partialorder %v6095, %v6113
  %vm6119 = vcmp.ge.f32.partialorder %v6100, %v6115
  %v6120 = vsel %vm6116, %v3441, 2147483647
  %v6121 = vsel %vm6117, %v3441, 2147483647
  %v6122 = vsel %vm6118, %v3441, 2147483647
  %v6123 = vsel %vm6119, %v3441, 2147483647
  %v6124 = vand.u32 %v6120, 65535
  %v6125 = vshra.s32 %v6120, 16
  %v6126 = vcvt.s32.f32 %v6124
  %v6127 = vcvt.s32.f32 %v6125
  %6128 = vmin.xlane.f32.xlu0 %v6127
  %v6129 = vpop.xlane.xlu0 %6128
  %vm6130 = vcmp.eq.f32.partialorder %v6127, %v6129
  %v6131 = vsel %vm6130, %v6126, inf
  %6132 = vmin.xlane.f32.xlu0 %v6131
  %v6133 = vpop.xlane.xlu0 %6132
  %v6134 = vcvt.f32.s32 %v6133
  %v6135 = vcvt.f32.s32 %v6129
  %v6136 = vshll.u32 %v6135, 16
  %v6137 = vadd.s32 %v6136, %v6134
  %v6138 = vand.u32 %v6121, 65535
  %v6139 = vshra.s32 %v6121, 16
  %v6140 = vcvt.s32.f32 %v6138
  %v6141 = vcvt.s32.f32 %v6139
  %6142 = vmin.xlane.f32.xlu0 %v6141
  %v6143 = vpop.xlane.xlu0 %6142
  %vm6144 = vcmp.eq.f32.partialorder %v6141, %v6143
  %v6145 = vsel %vm6144, %v6140, inf
  %6146 = vmin.xlane.f32.xlu0 %v6145
  %v6147 = vpop.xlane.xlu0 %6146
  %v6148 = vcvt.f32.s32 %v6147
  %v6149 = vcvt.f32.s32 %v6143
  %v6150 = vshll.u32 %v6149, 16
  %v6151 = vadd.s32 %v6150, %v6148
  %v6152 = vand.u32 %v6122, 65535
  %v6153 = vshra.s32 %v6122, 16
  %v6154 = vcvt.s32.f32 %v6152
  %v6155 = vcvt.s32.f32 %v6153
  %6156 = vmin.xlane.f32.xlu0 %v6155
  %v6157 = vpop.xlane.xlu0 %6156
  %vm6158 = vcmp.eq.f32.partialorder %v6155, %v6157
  %v6159 = vsel %vm6158, %v6154, inf
  %6160 = vmin.xlane.f32.xlu0 %v6159
  %v6161 = vpop.xlane.xlu0 %6160
  %v6162 = vcvt.f32.s32 %v6161
  %v6163 = vcvt.f32.s32 %v6157
  %v6164 = vshll.u32 %v6163, 16
  %v6165 = vadd.s32 %v6164, %v6162
  %v6166 = vand.u32 %v6123, 65535
  %v6167 = vshra.s32 %v6123, 16
  %v6168 = vcvt.s32.f32 %v6166
  %v6169 = vcvt.s32.f32 %v6167
  %6170 = vmin.xlane.f32.xlu0 %v6169
  %v6171 = vpop.xlane.xlu0 %6170
  %vm6172 = vcmp.eq.f32.partialorder %v6169, %v6171
  %v6173 = vsel %vm6172, %v6168, inf
  %6174 = vmin.xlane.f32.xlu0 %v6173
  %v6175 = vpop.xlane.xlu0 %6174
  %v6176 = vcvt.f32.s32 %v6175
  %v6177 = vcvt.f32.s32 %v6171
  %v6178 = vshll.u32 %v6177, 16
  %v6179 = vadd.s32 %v6178, %v6176
  %vm6180 = vcmp.eq.s32.totalorder %v3441, %v6137
  %vm6181 = vcmp.eq.s32.totalorder %v3441, %v6151
  %vm6182 = vcmp.eq.s32.totalorder %v3441, %v6165
  %vm6183 = vcmp.eq.s32.totalorder %v3441, %v6179
  %v6184 = vsel %vm6180, 1, 0
  %v6185 = vsel %vm6181, 1, 0
  %v6186 = vsel %vm6182, 1, 0
  %v6187 = vsel %vm6183, 1, 0
  %v6188 = vcvt.s32.f32 %v6184
  %v6189 = vcvt.s32.f32 %v6185
  %v6190 = vcvt.s32.f32 %v6186
  %v6191 = vcvt.s32.f32 %v6187
  %v6192 = vld [vmem:[%s7] sm:$0xff]
  %v6193 = vld [vmem:[%s7 + $0x8] sm:$0xff]
  %v6194 = vld [vmem:[%s7 + $0x10] sm:$0xff]
  %v6195 = vld [vmem:[%s7 + $0x18] sm:$0xff]
  %v6196 = vld [vmem:[%s7 + $0x20] sm:$0xff]
  %v6197 = vld [vmem:[%s7 + $0x28] sm:$0xff]
  %v6198 = vld [vmem:[%s7 + $0x30] sm:$0xff]
  %v6199 = vld [vmem:[%s7 + $0x38] sm:$0xff]
  %v6200 = vld [vmem:[%s7 + $0x40] sm:$0xff]
  %v6201 = vld [vmem:[%s7 + $0x48] sm:$0xff]
  %v6202 = vld [vmem:[%s7 + $0x50] sm:$0xff]
  %v6203 = vld [vmem:[%s7 + $0x58] sm:$0xff]
  %v6204 = vld [vmem:[%s7 + $0x60] sm:$0xff]
  %v6205 = vld [vmem:[%s7 + $0x68] sm:$0xff]
  %v6206 = vld [vmem:[%s7 + $0x70] sm:$0xff]
  %v6207 = vld [vmem:[%s7 + $0x78] sm:$0xff]
  %v6208 = vld [vmem:[%s7 + $0x80] sm:$0xff]
  %v6209 = vld [vmem:[%s7 + $0x88] sm:$0xff]
  %v6210 = vld [vmem:[%s7 + $0x90] sm:$0xff]
  %v6211 = vld [vmem:[%s7 + $0x98] sm:$0xff]
  %v6212 = vld [vmem:[%s7 + $0xa0] sm:$0xff]
  %v6213 = vld [vmem:[%s7 + $0xa8] sm:$0xff]
  %v6214 = vld [vmem:[%s7 + $0xb0] sm:$0xff]
  %v6215 = vld [vmem:[%s7 + $0xb8] sm:$0xff]
  %v6216 = vld [vmem:[%s7 + $0xc0] sm:$0xff]
  %v6217 = vld [vmem:[%s7 + $0xc8] sm:$0xff]
  %v6218 = vld [vmem:[%s7 + $0xd0] sm:$0xff]
  %v6219 = vld [vmem:[%s7 + $0xd8] sm:$0xff]
  %v6220 = vld [vmem:[%s7 + $0xe0] sm:$0xff]
  %v6221 = vld [vmem:[%s7 + $0xe8] sm:$0xff]
  %v6222 = vld [vmem:[%s7 + $0xf0] sm:$0xff]
  %v6223 = vld [vmem:[%s7 + $0xf8] sm:$0xff]
  %v6224 = vld [vmem:[%s7 + $0x100] sm:$0xff]
  %v6225 = vld [vmem:[%s7 + $0x108] sm:$0xff]
  %v6226 = vld [vmem:[%s7 + $0x110] sm:$0xff]
  %v6227 = vld [vmem:[%s7 + $0x118] sm:$0xff]
  %v6228 = vld [vmem:[%s7 + $0x120] sm:$0xff]
  %v6229 = vld [vmem:[%s7 + $0x128] sm:$0xff]
  %v6230 = vld [vmem:[%s7 + $0x130] sm:$0xff]
  %v6231 = vld [vmem:[%s7 + $0x138] sm:$0xff]
  %v6232 = vld [vmem:[%s7 + $0x140] sm:$0xff]
  %v6233 = vld [vmem:[%s7 + $0x148] sm:$0xff]
  %v6234 = vld [vmem:[%s7 + $0x150] sm:$0xff]
  %v6235 = vld [vmem:[%s7 + $0x158] sm:$0xff]
  %v6236 = vld [vmem:[%s7 + $0x160] sm:$0xff]
  %v6237 = vld [vmem:[%s7 + $0x168] sm:$0xff]
  %v6238 = vld [vmem:[%s7 + $0x170] sm:$0xff]
  %v6239 = vld [vmem:[%s7 + $0x178] sm:$0xff]
  %v6240 = vld [vmem:[%s7 + $0x180] sm:$0xff]
  %v6241 = vld [vmem:[%s7 + $0x188] sm:$0xff]
  %v6242 = vld [vmem:[%s7 + $0x190] sm:$0xff]
  %v6243 = vld [vmem:[%s7 + $0x198] sm:$0xff]
  %v6244 = vld [vmem:[%s7 + $0x1a0] sm:$0xff]
  %v6245 = vld [vmem:[%s7 + $0x1a8] sm:$0xff]
  %v6246 = vld [vmem:[%s7 + $0x1b0] sm:$0xff]
  %v6247 = vld [vmem:[%s7 + $0x1b8] sm:$0xff]
  %v6248 = vld [vmem:[%s7 + $0x1c0] sm:$0xff]
  %v6249 = vld [vmem:[%s7 + $0x1c8] sm:$0xff]
  %v6250 = vld [vmem:[%s7 + $0x1d0] sm:$0xff]
  %v6251 = vld [vmem:[%s7 + $0x1d8] sm:$0xff]
  %v6252 = vld [vmem:[%s7 + $0x1e0] sm:$0xff]
  %v6253 = vld [vmem:[%s7 + $0x1e8] sm:$0xff]
  %v6254 = vld [vmem:[%s7 + $0x1f0] sm:$0xff]
  %v6255 = vld [vmem:[%s7 + $0x1f8] sm:$0xff]
  %v6256 = vld [vmem:[%s7 + $0x200] sm:$0xff]
  %v6257 = vld [vmem:[%s7 + $0x208] sm:$0xff]
  %v6258 = vld [vmem:[%s7 + $0x210] sm:$0xff]
  %v6259 = vld [vmem:[%s7 + $0x218] sm:$0xff]
  %v6260 = vld [vmem:[%s7 + $0x220] sm:$0xff]
  %v6261 = vld [vmem:[%s7 + $0x228] sm:$0xff]
  %v6262 = vld [vmem:[%s7 + $0x230] sm:$0xff]
  %v6263 = vld [vmem:[%s7 + $0x238] sm:$0xff]
  %v6264 = vld [vmem:[%s7 + $0x240] sm:$0xff]
  %v6265 = vld [vmem:[%s7 + $0x248] sm:$0xff]
  %v6266 = vld [vmem:[%s7 + $0x250] sm:$0xff]
  %v6267 = vld [vmem:[%s7 + $0x258] sm:$0xff]
  %v6268 = vld [vmem:[%s7 + $0x260] sm:$0xff]
  %v6269 = vld [vmem:[%s7 + $0x268] sm:$0xff]
  %v6270 = vld [vmem:[%s7 + $0x270] sm:$0xff]
  %v6271 = vld [vmem:[%s7 + $0x278] sm:$0xff]
  %v6272 = vld [vmem:[%s7 + $0x280] sm:$0xff]
  %v6273 = vld [vmem:[%s7 + $0x288] sm:$0xff]
  %v6274 = vld [vmem:[%s7 + $0x290] sm:$0xff]
  %v6275 = vld [vmem:[%s7 + $0x298] sm:$0xff]
  %v6276 = vld [vmem:[%s7 + $0x2a0] sm:$0xff]
  %v6277 = vld [vmem:[%s7 + $0x2a8] sm:$0xff]
  %v6278 = vld [vmem:[%s7 + $0x2b0] sm:$0xff]
  %v6279 = vld [vmem:[%s7 + $0x2b8] sm:$0xff]
  %v6280 = vld [vmem:[%s7 + $0x2c0] sm:$0xff]
  %v6281 = vld [vmem:[%s7 + $0x2c8] sm:$0xff]
  %v6282 = vld [vmem:[%s7 + $0x2d0] sm:$0xff]
  %v6283 = vld [vmem:[%s7 + $0x2d8] sm:$0xff]
  %v6284 = vld [vmem:[%s7 + $0x2e0] sm:$0xff]
  %v6285 = vld [vmem:[%s7 + $0x2e8] sm:$0xff]
  %v6286 = vld [vmem:[%s7 + $0x2f0] sm:$0xff]
  %v6287 = vld [vmem:[%s7 + $0x2f8] sm:$0xff]
  %6288 = vmatprep.subr.mxu0 %v6193
  %6289 = vmatpush1.msra.mxu0 %v6192
  %6290 = vmatprep.subr.mxu0 %v6199
  %6291 = vmatpush1.msra.mxu0 %v6198
  %6292 = vmatprep.subr.mxu0 %v6205
  %6293 = vmatpush1.msra.mxu0 %v6204
  %6294 = vmatprep.subr.mxu0 %v6211
  %6295 = vmatpush1.msra.mxu0 %v6210
  %6296 = vmatprep.subr.mxu0 %v6217
  %6297 = vmatpush1.msra.mxu0 %v6216
  %6298 = vmatprep.subr.mxu0 %v6223
  %6299 = vmatpush1.msra.mxu0 %v6222
  %6300 = vmatprep.subr.mxu0 %v6229
  %6301 = vmatpush1.msra.mxu0 %v6228
  %6302 = vmatprep.subr.mxu0 %v6235
  %6303 = vmatpush1.msra.mxu0 %v6234
  %6304 = vmatprep.subr.mxu0 %v6241
  %6305 = vmatpush1.msra.mxu0 %v6240
  %6306 = vmatprep.subr.mxu0 %v6247
  %6307 = vmatpush1.msra.mxu0 %v6246
  %6308 = vmatprep.subr.mxu0 %v6253
  %6309 = vmatpush1.msra.mxu0 %v6252
  %6310 = vmatprep.subr.mxu0 %v6259
  %6311 = vmatpush1.msra.mxu0 %v6258
  %6312 = vmatprep.subr.mxu0 %v6265
  %6313 = vmatpush1.msra.mxu0 %v6264
  %6314 = vmatprep.subr.mxu0 %v6271
  %6315 = vmatpush1.msra.mxu0 %v6270
  %6316 = vmatprep.subr.mxu0 %v6277
  %6317 = vmatpush1.msra.mxu0 %v6276
  %6318 = vmatprep.subr.mxu0 %v6283
  %6319 = vmatpush1.msra.mxu0 %v6282
  %6320 = vmatprep.subr.mxu0 0.0
  %6321 = vmatpush1.msra.mxu0 0.0
  %6322 = vmatprep.subr.mxu0 0.0
  %6323 = vmatpush1.msra.mxu0 0.0
  %6324 = vmatprep.subr.mxu0 0.0
  %6325 = vmatpush1.msra.mxu0 0.0
  %6326 = vmatprep.subr.mxu0 0.0
  %6327 = vmatpush1.msra.mxu0 0.0
  %6328 = vmatprep.subr.mxu0 0.0
  %6329 = vmatpush1.msra.mxu0 0.0
  %6330 = vmatprep.subr.mxu0 0.0
  %6331 = vmatpush1.msra.mxu0 0.0
  %6332 = vmatprep.subr.mxu0 0.0
  %6333 = vmatpush1.msra.mxu0 0.0
  %6334 = vmatprep.subr.mxu0 0.0
  %6335 = vmatpush1.msra.mxu0 0.0
  %6336 = vmatprep.subr.mxu0 0.0
  %6337 = vmatpush1.msra.mxu0 0.0
  %6338 = vmatprep.subr.mxu0 0.0
  %6339 = vmatpush1.msra.mxu0 0.0
  %6340 = vmatprep.subr.mxu0 0.0
  %6341 = vmatpush1.msra.mxu0 0.0
  %6342 = vmatprep.subr.mxu0 0.0
  %6343 = vmatpush1.msra.mxu0 0.0
  %6344 = vmatprep.subr.mxu0 0.0
  %6345 = vmatpush1.msra.mxu0 0.0
  %6346 = vmatprep.subr.mxu0 0.0
  %6347 = vmatpush1.msra.mxu0 0.0
  %6348 = vmatprep.subr.mxu0 0.0
  %6349 = vmatpush1.msra.mxu0 0.0
  %6350 = vmatprep.subr.mxu0 0.0
  %6351 = vmatpush1.msra.mxu0 0.0
  %6352 = vmatprep.mubr.f32.mxu0 0.0
  %6353 = vmatmul.mubr.f32.gmra.mrb[0].mxu0 %v6188
  %v6354 = vpop.f32.mrb[0].mxu0
  %v6355 = vadd.f32 0.0, %v6354
  %v6356 = vpop.f32.mrb[0].mxu0
  %v6357 = vadd.f32 0.0, %v6356
  %6358 = vmatprep.mubr.f32.mxu0 0.0
  %6359 = vmatmul.mubr.f32.gmra.mrb[0].mxu0 %v6189
  %v6360 = vpop.f32.mrb[0].mxu0
  %v6361 = vadd.f32 0.0, %v6360
  %v6362 = vpop.f32.mrb[0].mxu0
  %v6363 = vadd.f32 0.0, %v6362
  %6364 = vmatprep.mubr.f32.mxu0 0.0
  %6365 = vmatmul.mubr.f32.gmra.mrb[0].mxu0 %v6190
  %v6366 = vpop.f32.mrb[0].mxu0
  %v6367 = vadd.f32 0.0, %v6366
  %v6368 = vpop.f32.mrb[0].mxu0
  %v6369 = vadd.f32 0.0, %v6368
  %6370 = vmatprep.mubr.f32.mxu0 0.0
  %6371 = vmatmul.mubr.f32.gmra.mrb[0].mxu0 %v6191
  %v6372 = vpop.f32.mrb[0].mxu0
  %v6373 = vadd.f32 0.0, %v6372
  %v6374 = vpop.f32.mrb[0].mxu0
  %v6375 = vadd.f32 0.0, %v6374
  %6376 = vdwg.mxu0
  %6377 = vmatprep.subr.mxu0 %v6195
  %6378 = vmatpush1.msra.mxu0 %v6194
  %6379 = vmatprep.subr.mxu0 %v6201
  %6380 = vmatpush1.msra.mxu0 %v6200
  %6381 = vmatprep.subr.mxu0 %v6207
  %6382 = vmatpush1.msra.mxu0 %v6206
  %6383 = vmatprep.subr.mxu0 %v6213
  %6384 = vmatpush1.msra.mxu0 %v6212
  %6385 = vmatprep.subr.mxu0 %v6219
  %6386 = vmatpush1.msra.mxu0 %v6218
  %6387 = vmatprep.subr.mxu0 %v6225
  %6388 = vmatpush1.msra.mxu0 %v6224
  %6389 = vmatprep.subr.mxu0 %v6231
  %6390 = vmatpush1.msra.mxu0 %v6230
  %6391 = vmatprep.subr.mxu0 %v6237
  %6392 = vmatpush1.msra.mxu0 %v6236
  %6393 = vmatprep.subr.mxu0 %v6243
  %6394 = vmatpush1.msra.mxu0 %v6242
  %6395 = vmatprep.subr.mxu0 %v6249
  %6396 = vmatpush1.msra.mxu0 %v6248
  %6397 = vmatprep.subr.mxu0 %v6255
  %6398 = vmatpush1.msra.mxu0 %v6254
  %6399 = vmatprep.subr.mxu0 %v6261
  %6400 = vmatpush1.msra.mxu0 %v6260
  %6401 = vmatprep.subr.mxu0 %v6267
  %6402 = vmatpush1.msra.mxu0 %v6266
  %6403 = vmatprep.subr.mxu0 %v6273
  %6404 = vmatpush1.msra.mxu0 %v6272
  %6405 = vmatprep.subr.mxu0 %v6279
  %6406 = vmatpush1.msra.mxu0 %v6278
  %6407 = vmatprep.subr.mxu0 %v6285
  %6408 = vmatpush1.msra.mxu0 %v6284
  %6409 = vmatprep.subr.mxu0 0.0
  %6410 = vmatpush1.msra.mxu0 0.0
  %6411 = vmatprep.subr.mxu0 0.0
  %6412 = vmatpush1.msra.mxu0 0.0
  %6413 = vmatprep.subr.mxu0 0.0
  %6414 = vmatpush1.msra.mxu0 0.0
  %6415 = vmatprep.subr.mxu0 0.0
  %6416 = vmatpush1.msra.mxu0 0.0
  %6417 = vmatprep.subr.mxu0 0.0
  %6418 = vmatpush1.msra.mxu0 0.0
  %6419 = vmatprep.subr.mxu0 0.0
  %6420 = vmatpush1.msra.mxu0 0.0
  %6421 = vmatprep.subr.mxu0 0.0
  %6422 = vmatpush1.msra.mxu0 0.0
  %6423 = vmatprep.subr.mxu0 0.0
  %6424 = vmatpush1.msra.mxu0 0.0
  %6425 = vmatprep.subr.mxu0 0.0
  %6426 = vmatpush1.msra.mxu0 0.0
  %6427 = vmatprep.subr.mxu0 0.0
  %6428 = vmatpush1.msra.mxu0 0.0
  %6429 = vmatprep.subr.mxu0 0.0
  %6430 = vmatpush1.msra.mxu0 0.0
  %6431 = vmatprep.subr.mxu0 0.0
  %6432 = vmatpush1.msra.mxu0 0.0
  %6433 = vmatprep.subr.mxu0 0.0
  %6434 = vmatpush1.msra.mxu0 0.0
  %6435 = vmatprep.subr.mxu0 0.0
  %6436 = vmatpush1.msra.mxu0 0.0
  %6437 = vmatprep.subr.mxu0 0.0
  %6438 = vmatpush1.msra.mxu0 0.0
  %6439 = vmatprep.subr.mxu0 0.0
  %6440 = vmatpush1.msra.mxu0 0.0
  %6441 = vmatprep.mubr.f32.mxu0 0.0
  %6442 = vmatmul.mubr.f32.gmra.mrb[0].mxu0 %v6188
  %v6443 = vpop.f32.mrb[0].mxu0
  %v6444 = vadd.f32 0.0, %v6443
  %v6445 = vpop.f32.mrb[0].mxu0
  %v6446 = vadd.f32 0.0, %v6445
  %6447 = vmatprep.mubr.f32.mxu0 0.0
  %6448 = vmatmul.mubr.f32.gmra.mrb[0].mxu0 %v6189
  %v6449 = vpop.f32.mrb[0].mxu0
  %v6450 = vadd.f32 0.0, %v6449
  %v6451 = vpop.f32.mrb[0].mxu0
  %v6452 = vadd.f32 0.0, %v6451
  %6453 = vmatprep.mubr.f32.mxu0 0.0
  %6454 = vmatmul.mubr.f32.gmra.mrb[0].mxu0 %v6190
  %v6455 = vpop.f32.mrb[0].mxu0
  %v6456 = vadd.f32 0.0, %v6455
  %v6457 = vpop.f32.mrb[0].mxu0
  %v6458 = vadd.f32 0.0, %v6457
  %6459 = vmatprep.mubr.f32.mxu0 0.0
  %6460 = vmatmul.mubr.f32.gmra.mrb[0].mxu0 %v6191
  %v6461 = vpop.f32.mrb[0].mxu0
  %v6462 = vadd.f32 0.0, %v6461
  %v6463 = vpop.f32.mrb[0].mxu0
  %v6464 = vadd.f32 0.0, %v6463
  %6465 = vdwg.mxu0
  %6466 = vmatprep.subr.mxu0 %v6197
  %6467 = vmatpush1.msra.mxu0 %v6196
  %6468 = vmatprep.subr.mxu0 %v6203
  %6469 = vmatpush1.msra.mxu0 %v6202
  %6470 = vmatprep.subr.mxu0 %v6209
  %6471 = vmatpush1.msra.mxu0 %v6208
  %6472 = vmatprep.subr.mxu0 %v6215
  %6473 = vmatpush1.msra.mxu0 %v6214
  %6474 = vmatprep.subr.mxu0 %v6221
  %6475 = vmatpush1.msra.mxu0 %v6220
  %6476 = vmatprep.subr.mxu0 %v6227
  %6477 = vmatpush1.msra.mxu0 %v6226
  %6478 = vmatprep.subr.mxu0 %v6233
  %6479 = vmatpush1.msra.mxu0 %v6232
  %6480 = vmatprep.subr.mxu0 %v6239
  %6481 = vmatpush1.msra.mxu0 %v6238
  %6482 = vmatprep.subr.mxu0 %v6245
  %6483 = vmatpush1.msra.mxu0 %v6244
  %6484 = vmatprep.subr.mxu0 %v6251
  %6485 = vmatpush1.msra.mxu0 %v6250
  %6486 = vmatprep.subr.mxu0 %v6257
  %6487 = vmatpush1.msra.mxu0 %v6256
  %6488 = vmatprep.subr.mxu0 %v6263
  %6489 = vmatpush1.msra.mxu0 %v6262
  %6490 = vmatprep.subr.mxu0 %v6269
  %6491 = vmatpush1.msra.mxu0 %v6268
  %6492 = vmatprep.subr.mxu0 %v6275
  %6493 = vmatpush1.msra.mxu0 %v6274
  %6494 = vmatprep.subr.mxu0 %v6281
  %6495 = vmatpush1.msra.mxu0 %v6280
  %6496 = vmatprep.subr.mxu0 %v6287
  %6497 = vmatpush1.msra.mxu0 %v6286
  %6498 = vmatprep.subr.mxu0 0.0
  %6499 = vmatpush1.msra.mxu0 0.0
  %6500 = vmatprep.subr.mxu0 0.0
  %6501 = vmatpush1.msra.mxu0 0.0
  %6502 = vmatprep.subr.mxu0 0.0
  %6503 = vmatpush1.msra.mxu0 0.0
  %6504 = vmatprep.subr.mxu0 0.0
  %6505 = vmatpush1.msra.mxu0 0.0
  %6506 = vmatprep.subr.mxu0 0.0
  %6507 = vmatpush1.msra.mxu0 0.0
  %6508 = vmatprep.subr.mxu0 0.0
  %6509 = vmatpush1.msra.mxu0 0.0
  %6510 = vmatprep.subr.mxu0 0.0
  %6511 = vmatpush1.msra.mxu0 0.0
  %6512 = vmatprep.subr.mxu0 0.0
  %6513 = vmatpush1.msra.mxu0 0.0
  %6514 = vmatprep.subr.mxu0 0.0
  %6515 = vmatpush1.msra.mxu0 0.0
  %6516 = vmatprep.subr.mxu0 0.0
  %6517 = vmatpush1.msra.mxu0 0.0
  %6518 = vmatprep.subr.mxu0 0.0
  %6519 = vmatpush1.msra.mxu0 0.0
  %6520 = vmatprep.subr.mxu0 0.0
  %6521 = vmatpush1.msra.mxu0 0.0
  %6522 = vmatprep.subr.mxu0 0.0
  %6523 = vmatpush1.msra.mxu0 0.0
  %6524 = vmatprep.subr.mxu0 0.0
  %6525 = vmatpush1.msra.mxu0 0.0
  %6526 = vmatprep.subr.mxu0 0.0
  %6527 = vmatpush1.msra.mxu0 0.0
  %6528 = vmatprep.subr.mxu0 0.0
  %6529 = vmatpush1.msra.mxu0 0.0
  %6530 = vmatprep.mubr.f32.mxu0 0.0
  %6531 = vmatmul.mubr.f32.gmra.mrb[0].mxu0 %v6188
  %v6532 = vpop.f32.mrb[0].mxu0
  %v6533 = vadd.f32 0.0, %v6532
  %v6534 = vpop.f32.mrb[0].mxu0
  %v6535 = vadd.f32 0.0, %v6534
  %6536 = vmatprep.mubr.f32.mxu0 0.0
  %6537 = vmatmul.mubr.f32.gmra.mrb[0].mxu0 %v6189
  %v6538 = vpop.f32.mrb[0].mxu0
  %v6539 = vadd.f32 0.0, %v6538
  %v6540 = vpop.f32.mrb[0].mxu0
  %v6541 = vadd.f32 0.0, %v6540
  %6542 = vmatprep.mubr.f32.mxu0 0.0
  %6543 = vmatmul.mubr.f32.gmra.mrb[0].mxu0 %v6190
  %v6544 = vpop.f32.mrb[0].mxu0
  %v6545 = vadd.f32 0.0, %v6544
  %v6546 = vpop.f32.mrb[0].mxu0
  %v6547 = vadd.f32 0.0, %v6546
  %6548 = vmatprep.mubr.f32.mxu0 0.0
  %6549 = vmatmul.mubr.f32.gmra.mrb[0].mxu0 %v6191
  %v6550 = vpop.f32.mrb[0].mxu0
  %v6551 = vadd.f32 0.0, %v6550
  %v6552 = vpop.f32.mrb[0].mxu0
  %v6553 = vadd.f32 0.0, %v6552
  %6554 = vdwg.mxu0
  %s6555 = sld [smem:[#allocation3 + $0x3]]
  %s6556 = scvt.s32.f32 %s6555
  %s6557 = scalar_lea.vmem %s2, 576
  %v6558 = vld [vmem:[%s6557] sm:$0xff]
  %v6559 = vld [vmem:[%s6557 + $0x8] sm:$0xff]
  %v6560 = vld [vmem:[%s6557 + $0x10] sm:$0xff]
  %v6561 = vld [vmem:[%s6557 + $0x18] sm:$0xff]
  %v6562 = vld [vmem:[%s6557 + $0x20] sm:$0xff]
  %v6563 = vld [vmem:[%s6557 + $0x28] sm:$0xff]
  %v6564 = vld [vmem:[%s6557 + $0x30] sm:$0xff]
  %v6565 = vld [vmem:[%s6557 + $0x38] sm:$0xff]
  %v6566 = vld [vmem:[%s6557 + $0x40] sm:$0xff]
  %v6567 = vld [vmem:[%s6557 + $0x48] sm:$0xff]
  %v6568 = vld [vmem:[%s6557 + $0x50] sm:$0xff]
  %v6569 = vld [vmem:[%s6557 + $0x58] sm:$0xff]
  %v6570 = vld [vmem:[%s6557 + $0x60] sm:$0xff]
  %v6571 = vld [vmem:[%s6557 + $0x68] sm:$0xff]
  %v6572 = vld [vmem:[%s6557 + $0x70] sm:$0xff]
  %v6573 = vld [vmem:[%s6557 + $0x78] sm:$0xff]
  %v6574 = vld [vmem:[%s6557 + $0x80] sm:$0xff]
  %v6575 = vld [vmem:[%s6557 + $0x88] sm:$0xff]
  %v6576 = vld [vmem:[%s6557 + $0x90] sm:$0xff]
  %v6577 = vld [vmem:[%s6557 + $0x98] sm:$0xff]
  %v6578 = vld [vmem:[%s6557 + $0xa0] sm:$0xff]
  %v6579 = vld [vmem:[%s6557 + $0xa8] sm:$0xff]
  %v6580 = vld [vmem:[%s6557 + $0xb0] sm:$0xff]
  %v6581 = vld [vmem:[%s6557 + $0xb8] sm:$0xff]
  %v6582 = vstv %s6556
  %v6583 = vmul.f32 %v6582, %v6558
  %v6584 = vmul.f32 %v6582, %v6559
  %v6585 = vmul.f32 %v6582, %v6560
  %v6586 = vmul.f32 %v6582, %v6561
  %v6587 = vmul.f32 %v6582, %v6562
  %v6588 = vmul.f32 %v6582, %v6563
  %v6589 = vmul.f32 %v6582, %v6564
  %v6590 = vmul.f32 %v6582, %v6565
  %v6591 = vmul.f32 %v6582, %v6566
  %v6592 = vmul.f32 %v6582, %v6567
  %v6593 = vmul.f32 %v6582, %v6568
  %v6594 = vmul.f32 %v6582, %v6569
  %v6595 = vmul.f32 %v6582, %v6570
  %v6596 = vmul.f32 %v6582, %v6571
  %v6597 = vmul.f32 %v6582, %v6572
  %v6598 = vmul.f32 %v6582, %v6573
  %v6599 = vmul.f32 %v6582, %v6574
  %v6600 = vmul.f32 %v6582, %v6575
  %v6601 = vmul.f32 %v6582, %v6576
  %v6602 = vmul.f32 %v6582, %v6577
  %v6603 = vmul.f32 %v6582, %v6578
  %v6604 = vmul.f32 %v6582, %v6579
  %v6605 = vmul.f32 %v6582, %v6580
  %v6606 = vmul.f32 %v6582, %v6581
  %s6607 = ssub.f32 1.0, %s6556
  %v6608 = vstv %s6607
  %v6609 = vmul.f32 %v6608, %v6355
  %v6610 = vmul.f32 %v6608, %v6357
  %v6611 = vmul.f32 %v6608, %v6444
  %v6612 = vmul.f32 %v6608, %v6446
  %v6613 = vmul.f32 %v6608, %v6533
  %v6614 = vmul.f32 %v6608, %v6535
  %v6615 = vmul.f32 %v6608, %v6361
  %v6616 = vmul.f32 %v6608, %v6363
  %v6617 = vmul.f32 %v6608, %v6450
  %v6618 = vmul.f32 %v6608, %v6452
  %v6619 = vmul.f32 %v6608, %v6539
  %v6620 = vmul.f32 %v6608, %v6541
  %v6621 = vmul.f32 %v6608, %v6367
  %v6622 = vmul.f32 %v6608, %v6369
  %v6623 = vmul.f32 %v6608, %v6456
  %v6624 = vmul.f32 %v6608, %v6458
  %v6625 = vmul.f32 %v6608, %v6545
  %v6626 = vmul.f32 %v6608, %v6547
  %v6627 = vmul.f32 %v6608, %v6373
  %v6628 = vmul.f32 %v6608, %v6375
  %v6629 = vmul.f32 %v6608, %v6462
  %v6630 = vmul.f32 %v6608, %v6464
  %v6631 = vmul.f32 %v6608, %v6551
  %v6632 = vmul.f32 %v6608, %v6553
  %v6633 = vadd.f32 %v6583, %v6609
  %v6634 = vadd.f32 %v6584, %v6610
  %v6635 = vadd.f32 %v6585, %v6611
  %v6636 = vadd.f32 %v6586, %v6612
  %v6637 = vadd.f32 %v6587, %v6613
  %v6638 = vadd.f32 %v6588, %v6614
  %v6639 = vadd.f32 %v6589, %v6615
  %v6640 = vadd.f32 %v6590, %v6616
  %v6641 = vadd.f32 %v6591, %v6617
  %v6642 = vadd.f32 %v6592, %v6618
  %v6643 = vadd.f32 %v6593, %v6619
  %v6644 = vadd.f32 %v6594, %v6620
  %v6645 = vadd.f32 %v6595, %v6621
  %v6646 = vadd.f32 %v6596, %v6622
  %v6647 = vadd.f32 %v6597, %v6623
  %v6648 = vadd.f32 %v6598, %v6624
  %v6649 = vadd.f32 %v6599, %v6625
  %v6650 = vadd.f32 %v6600, %v6626
  %v6651 = vadd.f32 %v6601, %v6627
  %v6652 = vadd.f32 %v6602, %v6628
  %v6653 = vadd.f32 %v6603, %v6629
  %v6654 = vadd.f32 %v6604, %v6630
  %v6655 = vadd.f32 %v6605, %v6631
  %v6656 = vadd.f32 %v6606, %v6632
  %v6657 = vld [vmem:[%s5] sm:$0xff]
  %v6658 = vld [vmem:[%s5 + $0x8] sm:$0xff]
  %v6659 = vld [vmem:[%s5 + $0x10] sm:$0xff]
  %v6660 = vld [vmem:[%s5 + $0x18] sm:$0xff]
  %v6661 = vld [vmem:[%s5 + $0x20] sm:$0xff]
  %v6662 = vld [vmem:[%s5 + $0x28] sm:$0xff]
  %v6663 = vld [vmem:[%s5 + $0x30] sm:$0xff]
  %v6664 = vld [vmem:[%s5 + $0x38] sm:$0xff]
  %v6665 = vld [vmem:[%s5 + $0x40] sm:$0xff]
  %v6666 = vld [vmem:[%s5 + $0x48] sm:$0xff]
  %v6667 = vld [vmem:[%s5 + $0x50] sm:$0xff]
  %v6668 = vld [vmem:[%s5 + $0x58] sm:$0xff]
  %v6669 = vld [vmem:[%s5 + $0x60] sm:$0xff]
  %v6670 = vld [vmem:[%s5 + $0x68] sm:$0xff]
  %v6671 = vld [vmem:[%s5 + $0x70] sm:$0xff]
  %v6672 = vld [vmem:[%s5 + $0x78] sm:$0xff]
  %v6673 = vld [vmem:[%s5 + $0x80] sm:$0xff]
  %v6674 = vld [vmem:[%s5 + $0x88] sm:$0xff]
  %v6675 = vld [vmem:[%s5 + $0x90] sm:$0xff]
  %v6676 = vld [vmem:[%s5 + $0x98] sm:$0xff]
  %v6677 = vld [vmem:[%s5 + $0xa0] sm:$0xff]
  %v6678 = vld [vmem:[%s5 + $0xa8] sm:$0xff]
  %v6679 = vld [vmem:[%s5 + $0xb0] sm:$0xff]
  %v6680 = vld [vmem:[%s5 + $0xb8] sm:$0xff]
  %v6681 = vld [vmem:[%s5 + $0xc0] sm:$0xff]
  %v6682 = vld [vmem:[%s5 + $0xc8] sm:$0xff]
  %v6683 = vld [vmem:[%s5 + $0xd0] sm:$0xff]
  %v6684 = vld [vmem:[%s5 + $0xd8] sm:$0xff]
  %v6685 = vld [vmem:[%s5 + $0xe0] sm:$0xff]
  %v6686 = vld [vmem:[%s5 + $0xe8] sm:$0xff]
  %v6687 = vld [vmem:[%s5 + $0xf0] sm:$0xff]
  %v6688 = vld [vmem:[%s5 + $0xf8] sm:$0xff]
  %v6689 = vld [vmem:[%s5 + $0x100] sm:$0xff]
  %v6690 = vld [vmem:[%s5 + $0x108] sm:$0xff]
  %v6691 = vld [vmem:[%s5 + $0x110] sm:$0xff]
  %v6692 = vld [vmem:[%s5 + $0x118] sm:$0xff]
  %v6693 = vld [vmem:[%s5 + $0x120] sm:$0xff]
  %v6694 = vld [vmem:[%s5 + $0x128] sm:$0xff]
  %v6695 = vld [vmem:[%s5 + $0x130] sm:$0xff]
  %v6696 = vld [vmem:[%s5 + $0x138] sm:$0xff]
  %v6697 = vld [vmem:[%s5 + $0x140] sm:$0xff]
  %v6698 = vld [vmem:[%s5 + $0x148] sm:$0xff]
  %v6699 = vld [vmem:[%s5 + $0x150] sm:$0xff]
  %v6700 = vld [vmem:[%s5 + $0x158] sm:$0xff]
  %v6701 = vld [vmem:[%s5 + $0x160] sm:$0xff]
  %v6702 = vld [vmem:[%s5 + $0x168] sm:$0xff]
  %v6703 = vld [vmem:[%s5 + $0x170] sm:$0xff]
  %v6704 = vld [vmem:[%s5 + $0x178] sm:$0xff]
  %v6705 = vld [vmem:[%s5 + $0x180] sm:$0xff]
  %v6706 = vld [vmem:[%s5 + $0x188] sm:$0xff]
  %v6707 = vld [vmem:[%s5 + $0x190] sm:$0xff]
  %v6708 = vld [vmem:[%s5 + $0x198] sm:$0xff]
  %v6709 = vld [vmem:[%s5 + $0x1a0] sm:$0xff]
  %v6710 = vld [vmem:[%s5 + $0x1a8] sm:$0xff]
  %v6711 = vld [vmem:[%s5 + $0x1b0] sm:$0xff]
  %v6712 = vld [vmem:[%s5 + $0x1b8] sm:$0xff]
  %v6713 = vld [vmem:[%s5 + $0x1c0] sm:$0xff]
  %v6714 = vld [vmem:[%s5 + $0x1c8] sm:$0xff]
  %v6715 = vld [vmem:[%s5 + $0x1d0] sm:$0xff]
  %v6716 = vld [vmem:[%s5 + $0x1d8] sm:$0xff]
  %v6717 = vld [vmem:[%s5 + $0x1e0] sm:$0xff]
  %v6718 = vld [vmem:[%s5 + $0x1e8] sm:$0xff]
  %v6719 = vld [vmem:[%s5 + $0x1f0] sm:$0xff]
  %v6720 = vld [vmem:[%s5 + $0x1f8] sm:$0xff]
  %v6721 = vld [vmem:[%s5 + $0x200] sm:$0xff]
  %v6722 = vld [vmem:[%s5 + $0x208] sm:$0xff]
  %v6723 = vld [vmem:[%s5 + $0x210] sm:$0xff]
  %v6724 = vld [vmem:[%s5 + $0x218] sm:$0xff]
  %v6725 = vld [vmem:[%s5 + $0x220] sm:$0xff]
  %v6726 = vld [vmem:[%s5 + $0x228] sm:$0xff]
  %v6727 = vld [vmem:[%s5 + $0x230] sm:$0xff]
  %v6728 = vld [vmem:[%s5 + $0x238] sm:$0xff]
  %v6729 = vld [vmem:[%s5 + $0x240] sm:$0xff]
  %v6730 = vld [vmem:[%s5 + $0x248] sm:$0xff]
  %v6731 = vld [vmem:[%s5 + $0x250] sm:$0xff]
  %v6732 = vld [vmem:[%s5 + $0x258] sm:$0xff]
  %v6733 = vld [vmem:[%s5 + $0x260] sm:$0xff]
  %v6734 = vld [vmem:[%s5 + $0x268] sm:$0xff]
  %v6735 = vld [vmem:[%s5 + $0x270] sm:$0xff]
  %v6736 = vld [vmem:[%s5 + $0x278] sm:$0xff]
  %v6737 = vld [vmem:[%s5 + $0x280] sm:$0xff]
  %v6738 = vld [vmem:[%s5 + $0x288] sm:$0xff]
  %v6739 = vld [vmem:[%s5 + $0x290] sm:$0xff]
  %v6740 = vld [vmem:[%s5 + $0x298] sm:$0xff]
  %v6741 = vld [vmem:[%s5 + $0x2a0] sm:$0xff]
  %v6742 = vld [vmem:[%s5 + $0x2a8] sm:$0xff]
  %v6743 = vld [vmem:[%s5 + $0x2b0] sm:$0xff]
  %v6744 = vld [vmem:[%s5 + $0x2b8] sm:$0xff]
  %v6745 = vld [vmem:[%s5 + $0x2c0] sm:$0xff]
  %v6746 = vld [vmem:[%s5 + $0x2c8] sm:$0xff]
  %v6747 = vld [vmem:[%s5 + $0x2d0] sm:$0xff]
  %v6748 = vld [vmem:[%s5 + $0x2d8] sm:$0xff]
  %v6749 = vld [vmem:[%s5 + $0x2e0] sm:$0xff]
  %v6750 = vld [vmem:[%s5 + $0x2e8] sm:$0xff]
  %v6751 = vld [vmem:[%s5 + $0x2f0] sm:$0xff]
  %v6752 = vld [vmem:[%s5 + $0x2f8] sm:$0xff]
  %v6753 = vld [vmem:[%s5 + $0x300] sm:$0xff]
  %v6754 = vld [vmem:[%s5 + $0x308] sm:$0xff]
  %v6755 = vld [vmem:[%s5 + $0x310] sm:$0xff]
  %v6756 = vld [vmem:[%s5 + $0x318] sm:$0xff]
  %v6757 = vld [vmem:[%s5 + $0x320] sm:$0xff]
  %v6758 = vld [vmem:[%s5 + $0x328] sm:$0xff]
  %v6759 = vld [vmem:[%s5 + $0x330] sm:$0xff]
  %v6760 = vld [vmem:[%s5 + $0x338] sm:$0xff]
  %v6761 = vld [vmem:[%s5 + $0x340] sm:$0xff]
  %v6762 = vld [vmem:[%s5 + $0x348] sm:$0xff]
  %v6763 = vld [vmem:[%s5 + $0x350] sm:$0xff]
  %v6764 = vld [vmem:[%s5 + $0x358] sm:$0xff]
  %v6765 = vld [vmem:[%s5 + $0x360] sm:$0xff]
  %v6766 = vld [vmem:[%s5 + $0x368] sm:$0xff]
  %v6767 = vld [vmem:[%s5 + $0x370] sm:$0xff]
  %v6768 = vld [vmem:[%s5 + $0x378] sm:$0xff]
  %v6769 = vld [vmem:[%s5 + $0x380] sm:$0xff]
  %v6770 = vld [vmem:[%s5 + $0x388] sm:$0xff]
  %v6771 = vld [vmem:[%s5 + $0x390] sm:$0xff]
  %v6772 = vld [vmem:[%s5 + $0x398] sm:$0xff]
  %v6773 = vld [vmem:[%s5 + $0x3a0] sm:$0xff]
  %v6774 = vld [vmem:[%s5 + $0x3a8] sm:$0xff]
  %v6775 = vld [vmem:[%s5 + $0x3b0] sm:$0xff]
  %v6776 = vld [vmem:[%s5 + $0x3b8] sm:$0xff]
  %v6777 = vld [vmem:[%s5 + $0x3c0] sm:$0xff]
  %v6778 = vld [vmem:[%s5 + $0x3c8] sm:$0xff]
  %v6779 = vld [vmem:[%s5 + $0x3d0] sm:$0xff]
  %v6780 = vld [vmem:[%s5 + $0x3d8] sm:$0xff]
  %v6781 = vld [vmem:[%s5 + $0x3e0] sm:$0xff]
  %v6782 = vld [vmem:[%s5 + $0x3e8] sm:$0xff]
  %v6783 = vld [vmem:[%s5 + $0x3f0] sm:$0xff]
  %v6784 = vld [vmem:[%s5 + $0x3f8] sm:$0xff]
  %v6785 = vld [vmem:[%s5 + $0x400] sm:$0xff]
  %v6786 = vld [vmem:[%s5 + $0x408] sm:$0xff]
  %v6787 = vld [vmem:[%s5 + $0x410] sm:$0xff]
  %v6788 = vld [vmem:[%s5 + $0x418] sm:$0xff]
  %v6789 = vld [vmem:[%s5 + $0x420] sm:$0xff]
  %v6790 = vld [vmem:[%s5 + $0x428] sm:$0xff]
  %v6791 = vld [vmem:[%s5 + $0x430] sm:$0xff]
  %v6792 = vld [vmem:[%s5 + $0x438] sm:$0xff]
  %v6793 = vld [vmem:[%s5 + $0x440] sm:$0xff]
  %v6794 = vld [vmem:[%s5 + $0x448] sm:$0xff]
  %v6795 = vld [vmem:[%s5 + $0x450] sm:$0xff]
  %v6796 = vld [vmem:[%s5 + $0x458] sm:$0xff]
  %v6797 = vld [vmem:[%s5 + $0x460] sm:$0xff]
  %v6798 = vld [vmem:[%s5 + $0x468] sm:$0xff]
  %v6799 = vld [vmem:[%s5 + $0x470] sm:$0xff]
  %v6800 = vld [vmem:[%s5 + $0x478] sm:$0xff]
  %v6801 = vld [vmem:[%s5 + $0x480] sm:$0xff]
  %v6802 = vld [vmem:[%s5 + $0x488] sm:$0xff]
  %v6803 = vld [vmem:[%s5 + $0x490] sm:$0xff]
  %v6804 = vld [vmem:[%s5 + $0x498] sm:$0xff]
  %v6805 = vld [vmem:[%s5 + $0x4a0] sm:$0xff]
  %v6806 = vld [vmem:[%s5 + $0x4a8] sm:$0xff]
  %v6807 = vld [vmem:[%s5 + $0x4b0] sm:$0xff]
  %v6808 = vld [vmem:[%s5 + $0x4b8] sm:$0xff]
  %v6809 = vld [vmem:[%s5 + $0x4c0] sm:$0xff]
  %v6810 = vld [vmem:[%s5 + $0x4c8] sm:$0xff]
  %v6811 = vld [vmem:[%s5 + $0x4d0] sm:$0xff]
  %v6812 = vld [vmem:[%s5 + $0x4d8] sm:$0xff]
  %v6813 = vld [vmem:[%s5 + $0x4e0] sm:$0xff]
  %v6814 = vld [vmem:[%s5 + $0x4e8] sm:$0xff]
  %v6815 = vld [vmem:[%s5 + $0x4f0] sm:$0xff]
  %v6816 = vld [vmem:[%s5 + $0x4f8] sm:$0xff]
  %v6817 = vld [vmem:[%s5 + $0x500] sm:$0xff]
  %v6818 = vld [vmem:[%s5 + $0x508] sm:$0xff]
  %v6819 = vld [vmem:[%s5 + $0x510] sm:$0xff]
  %v6820 = vld [vmem:[%s5 + $0x518] sm:$0xff]
  %v6821 = vld [vmem:[%s5 + $0x520] sm:$0xff]
  %v6822 = vld [vmem:[%s5 + $0x528] sm:$0xff]
  %v6823 = vld [vmem:[%s5 + $0x530] sm:$0xff]
  %v6824 = vld [vmem:[%s5 + $0x538] sm:$0xff]
  %v6825 = vld [vmem:[%s5 + $0x540] sm:$0xff]
  %v6826 = vld [vmem:[%s5 + $0x548] sm:$0xff]
  %v6827 = vld [vmem:[%s5 + $0x550] sm:$0xff]
  %v6828 = vld [vmem:[%s5 + $0x558] sm:$0xff]
  %v6829 = vld [vmem:[%s5 + $0x560] sm:$0xff]
  %v6830 = vld [vmem:[%s5 + $0x568] sm:$0xff]
  %v6831 = vld [vmem:[%s5 + $0x570] sm:$0xff]
  %v6832 = vld [vmem:[%s5 + $0x578] sm:$0xff]
  %v6833 = vld [vmem:[%s5 + $0x580] sm:$0xff]
  %v6834 = vld [vmem:[%s5 + $0x588] sm:$0xff]
  %v6835 = vld [vmem:[%s5 + $0x590] sm:$0xff]
  %v6836 = vld [vmem:[%s5 + $0x598] sm:$0xff]
  %v6837 = vld [vmem:[%s5 + $0x5a0] sm:$0xff]
  %v6838 = vld [vmem:[%s5 + $0x5a8] sm:$0xff]
  %v6839 = vld [vmem:[%s5 + $0x5b0] sm:$0xff]
  %v6840 = vld [vmem:[%s5 + $0x5b8] sm:$0xff]
  %v6841 = vld [vmem:[%s5 + $0x5c0] sm:$0xff]
  %v6842 = vld [vmem:[%s5 + $0x5c8] sm:$0xff]
  %v6843 = vld [vmem:[%s5 + $0x5d0] sm:$0xff]
  %v6844 = vld [vmem:[%s5 + $0x5d8] sm:$0xff]
  %v6845 = vld [vmem:[%s5 + $0x5e0] sm:$0xff]
  %v6846 = vld [vmem:[%s5 + $0x5e8] sm:$0xff]
  %v6847 = vld [vmem:[%s5 + $0x5f0] sm:$0xff]
  %v6848 = vld [vmem:[%s5 + $0x5f8] sm:$0xff]
  %v6849 = vld [vmem:[%s6] sm:$0x3f]
  %v6851 = vlaneseq
  %v6852 = vshrl.u32 %v6851, 7
  %v6853 = vsub.s32 0, %v6852
  %v6854 = vrot.slane %v6849, %v6853
  %v6855 = vlaneseq
  %v6856 = vshrl.u32 %v6855, 7
  %v6857 = vsub.s32 1, %v6856
  %v6858 = vrot.slane %v6849, %v6857
  %v6859 = vlaneseq
  %v6860 = vshrl.u32 %v6859, 7
  %v6861 = vsub.s32 2, %v6860
  %v6862 = vrot.slane %v6849, %v6861
  %v6863 = vlaneseq
  %v6864 = vshrl.u32 %v6863, 7
  %v6865 = vsub.s32 3, %v6864
  %v6866 = vrot.slane %v6849, %v6865
  %v6867 = vlaneseq
  %v6868 = vshrl.u32 %v6867, 7
  %v6869 = vsub.s32 4, %v6868
  %v6870 = vrot.slane %v6849, %v6869
  %v6871 = vlaneseq
  %v6872 = vshrl.u32 %v6871, 7
  %v6873 = vsub.s32 5, %v6872
  %v6874 = vrot.slane %v6849, %v6873
  %6881 = vmatprep.subr.mxu0 %v6658
  %6882 = vmatpush1.msra.mxu0 %v6657
  %6883 = vmatprep.subr.mxu0 %v6664
  %6884 = vmatpush1.msra.mxu0 %v6663
  %6885 = vmatprep.subr.mxu0 %v6670
  %6886 = vmatpush1.msra.mxu0 %v6669
  %6887 = vmatprep.subr.mxu0 %v6676
  %6888 = vmatpush1.msra.mxu0 %v6675
  %6889 = vmatprep.subr.mxu0 %v6682
  %6890 = vmatpush1.msra.mxu0 %v6681
  %6891 = vmatprep.subr.mxu0 %v6688
  %6892 = vmatpush1.msra.mxu0 %v6687
  %6893 = vmatprep.subr.mxu0 %v6694
  %6894 = vmatpush1.msra.mxu0 %v6693
  %6895 = vmatprep.subr.mxu0 %v6700
  %6896 = vmatpush1.msra.mxu0 %v6699
  %6897 = vmatprep.subr.mxu0 %v6706
  %6898 = vmatpush1.msra.mxu0 %v6705
  %6899 = vmatprep.subr.mxu0 %v6712
  %6900 = vmatpush1.msra.mxu0 %v6711
  %6901 = vmatprep.subr.mxu0 %v6718
  %6902 = vmatpush1.msra.mxu0 %v6717
  %6903 = vmatprep.subr.mxu0 %v6724
  %6904 = vmatpush1.msra.mxu0 %v6723
  %6905 = vmatprep.subr.mxu0 %v6730
  %6906 = vmatpush1.msra.mxu0 %v6729
  %6907 = vmatprep.subr.mxu0 %v6736
  %6908 = vmatpush1.msra.mxu0 %v6735
  %6909 = vmatprep.subr.mxu0 %v6742
  %6910 = vmatpush1.msra.mxu0 %v6741
  %6911 = vmatprep.subr.mxu0 %v6748
  %6912 = vmatpush1.msra.mxu0 %v6747
  %6913 = vmatprep.subr.mxu0 %v6754
  %6914 = vmatpush1.msra.mxu0 %v6753
  %6915 = vmatprep.subr.mxu0 %v6760
  %6916 = vmatpush1.msra.mxu0 %v6759
  %6917 = vmatprep.subr.mxu0 %v6766
  %6918 = vmatpush1.msra.mxu0 %v6765
  %6919 = vmatprep.subr.mxu0 %v6772
  %6920 = vmatpush1.msra.mxu0 %v6771
  %6921 = vmatprep.subr.mxu0 %v6778
  %6922 = vmatpush1.msra.mxu0 %v6777
  %6923 = vmatprep.subr.mxu0 %v6784
  %6924 = vmatpush1.msra.mxu0 %v6783
  %6925 = vmatprep.subr.mxu0 %v6790
  %6926 = vmatpush1.msra.mxu0 %v6789
  %6927 = vmatprep.subr.mxu0 %v6796
  %6928 = vmatpush1.msra.mxu0 %v6795
  %6929 = vmatprep.subr.mxu0 %v6802
  %6930 = vmatpush1.msra.mxu0 %v6801
  %6931 = vmatprep.subr.mxu0 %v6808
  %6932 = vmatpush1.msra.mxu0 %v6807
  %6933 = vmatprep.subr.mxu0 %v6814
  %6934 = vmatpush1.msra.mxu0 %v6813
  %6935 = vmatprep.subr.mxu0 %v6820
  %6936 = vmatpush1.msra.mxu0 %v6819
  %6937 = vmatprep.subr.mxu0 %v6826
  %6938 = vmatpush1.msra.mxu0 %v6825
  %6939 = vmatprep.subr.mxu0 %v6832
  %6940 = vmatpush1.msra.mxu0 %v6831
  %6941 = vmatprep.subr.mxu0 %v6838
  %6942 = vmatpush1.msra.mxu0 %v6837
  %6943 = vmatprep.subr.mxu0 %v6844
  %6944 = vmatpush1.msra.mxu0 %v6843
  %6945 = vmatprep.mubr.f32.mxu0 %v5972
  %6946 = vmatmul.mubr.f32.gmra.mrb[0].mxu0 %v5971
  %v6947 = vpop.f32.mrb[0].mxu0
  %v6948 = vadd.f32 %v6854, %v6947
  %v6949 = vpop.f32.mrb[0].mxu0
  %v6950 = vadd.f32 %v6858, %v6949
  %6951 = vmatprep.mubr.f32.mxu0 %v5974
  %6952 = vmatmul.mubr.f32.gmra.mrb[0].mxu0 %v5973
  %v6953 = vpop.f32.mrb[0].mxu0
  %v6954 = vadd.f32 %v6854, %v6953
  %v6955 = vpop.f32.mrb[0].mxu0
  %v6956 = vadd.f32 %v6858, %v6955
  %6957 = vmatprep.mubr.f32.mxu0 %v5976
  %6958 = vmatmul.mubr.f32.gmra.mrb[0].mxu0 %v5975
  %v6959 = vpop.f32.mrb[0].mxu0
  %v6960 = vadd.f32 %v6854, %v6959
  %v6961 = vpop.f32.mrb[0].mxu0
  %v6962 = vadd.f32 %v6858, %v6961
  %6963 = vmatprep.mubr.f32.mxu0 %v5978
  %6964 = vmatmul.mubr.f32.gmra.mrb[0].mxu0 %v5977
  %v6965 = vpop.f32.mrb[0].mxu0
  %v6966 = vadd.f32 %v6854, %v6965
  %v6967 = vpop.f32.mrb[0].mxu0
  %v6968 = vadd.f32 %v6858, %v6967
  %6969 = vdwg.mxu0
  %6970 = vmatprep.subr.mxu0 %v6660
  %6971 = vmatpush1.msra.mxu0 %v6659
  %6972 = vmatprep.subr.mxu0 %v6666
  %6973 = vmatpush1.msra.mxu0 %v6665
  %6974 = vmatprep.subr.mxu0 %v6672
  %6975 = vmatpush1.msra.mxu0 %v6671
  %6976 = vmatprep.subr.mxu0 %v6678
  %6977 = vmatpush1.msra.mxu0 %v6677
  %6978 = vmatprep.subr.mxu0 %v6684
  %6979 = vmatpush1.msra.mxu0 %v6683
  %6980 = vmatprep.subr.mxu0 %v6690
  %6981 = vmatpush1.msra.mxu0 %v6689
  %6982 = vmatprep.subr.mxu0 %v6696
  %6983 = vmatpush1.msra.mxu0 %v6695
  %6984 = vmatprep.subr.mxu0 %v6702
  %6985 = vmatpush1.msra.mxu0 %v6701
  %6986 = vmatprep.subr.mxu0 %v6708
  %6987 = vmatpush1.msra.mxu0 %v6707
  %6988 = vmatprep.subr.mxu0 %v6714
  %6989 = vmatpush1.msra.mxu0 %v6713
  %6990 = vmatprep.subr.mxu0 %v6720
  %6991 = vmatpush1.msra.mxu0 %v6719
  %6992 = vmatprep.subr.mxu0 %v6726
  %6993 = vmatpush1.msra.mxu0 %v6725
  %6994 = vmatprep.subr.mxu0 %v6732
  %6995 = vmatpush1.msra.mxu0 %v6731
  %6996 = vmatprep.subr.mxu0 %v6738
  %6997 = vmatpush1.msra.mxu0 %v6737
  %6998 = vmatprep.subr.mxu0 %v6744
  %6999 = vmatpush1.msra.mxu0 %v6743
  %7000 = vmatprep.subr.mxu0 %v6750
  %7001 = vmatpush1.msra.mxu0 %v6749
  %7002 = vmatprep.subr.mxu0 %v6756
  %7003 = vmatpush1.msra.mxu0 %v6755
  %7004 = vmatprep.subr.mxu0 %v6762
  %7005 = vmatpush1.msra.mxu0 %v6761
  %7006 = vmatprep.subr.mxu0 %v6768
  %7007 = vmatpush1.msra.mxu0 %v6767
  %7008 = vmatprep.subr.mxu0 %v6774
  %7009 = vmatpush1.msra.mxu0 %v6773
  %7010 = vmatprep.subr.mxu0 %v6780
  %7011 = vmatpush1.msra.mxu0 %v6779
  %7012 = vmatprep.subr.mxu0 %v6786
  %7013 = vmatpush1.msra.mxu0 %v6785
  %7014 = vmatprep.subr.mxu0 %v6792
  %7015 = vmatpush1.msra.mxu0 %v6791
  %7016 = vmatprep.subr.mxu0 %v6798
  %7017 = vmatpush1.msra.mxu0 %v6797
  %7018 = vmatprep.subr.mxu0 %v6804
  %7019 = vmatpush1.msra.mxu0 %v6803
  %7020 = vmatprep.subr.mxu0 %v6810
  %7021 = vmatpush1.msra.mxu0 %v6809
  %7022 = vmatprep.subr.mxu0 %v6816
  %7023 = vmatpush1.msra.mxu0 %v6815
  %7024 = vmatprep.subr.mxu0 %v6822
  %7025 = vmatpush1.msra.mxu0 %v6821
  %7026 = vmatprep.subr.mxu0 %v6828
  %7027 = vmatpush1.msra.mxu0 %v6827
  %7028 = vmatprep.subr.mxu0 %v6834
  %7029 = vmatpush1.msra.mxu0 %v6833
  %7030 = vmatprep.subr.mxu0 %v6840
  %7031 = vmatpush1.msra.mxu0 %v6839
  %7032 = vmatprep.subr.mxu0 %v6846
  %7033 = vmatpush1.msra.mxu0 %v6845
  %7034 = vmatprep.mubr.f32.mxu0 %v5972
  %7035 = vmatmul.mubr.f32.gmra.mrb[0].mxu0 %v5971
  %v7036 = vpop.f32.mrb[0].mxu0
  %v7037 = vadd.f32 %v6862, %v7036
  %v7038 = vpop.f32.mrb[0].mxu0
  %v7039 = vadd.f32 %v6866, %v7038
  %7040 = vmatprep.mubr.f32.mxu0 %v5974
  %7041 = vmatmul.mubr.f32.gmra.mrb[0].mxu0 %v5973
  %v7042 = vpop.f32.mrb[0].mxu0
  %v7043 = vadd.f32 %v6862, %v7042
  %v7044 = vpop.f32.mrb[0].mxu0
  %v7045 = vadd.f32 %v6866, %v7044
  %7046 = vmatprep.mubr.f32.mxu0 %v5976
  %7047 = vmatmul.mubr.f32.gmra.mrb[0].mxu0 %v5975
  %v7048 = vpop.f32.mrb[0].mxu0
  %v7049 = vadd.f32 %v6862, %v7048
  %v7050 = vpop.f32.mrb[0].mxu0
  %v7051 = vadd.f32 %v6866, %v7050
  %7052 = vmatprep.mubr.f32.mxu0 %v5978
  %7053 = vmatmul.mubr.f32.gmra.mrb[0].mxu0 %v5977
  %v7054 = vpop.f32.mrb[0].mxu0
  %v7055 = vadd.f32 %v6862, %v7054
  %v7056 = vpop.f32.mrb[0].mxu0
  %v7057 = vadd.f32 %v6866, %v7056
  %7058 = vdwg.mxu0
  %7059 = vmatprep.subr.mxu0 %v6662
  %7060 = vmatpush1.msra.mxu0 %v6661
  %7061 = vmatprep.subr.mxu0 %v6668
  %7062 = vmatpush1.msra.mxu0 %v6667
  %7063 = vmatprep.subr.mxu0 %v6674
  %7064 = vmatpush1.msra.mxu0 %v6673
  %7065 = vmatprep.subr.mxu0 %v6680
  %7066 = vmatpush1.msra.mxu0 %v6679
  %7067 = vmatprep.subr.mxu0 %v6686
  %7068 = vmatpush1.msra.mxu0 %v6685
  %7069 = vmatprep.subr.mxu0 %v6692
  %7070 = vmatpush1.msra.mxu0 %v6691
  %7071 = vmatprep.subr.mxu0 %v6698
  %7072 = vmatpush1.msra.mxu0 %v6697
  %7073 = vmatprep.subr.mxu0 %v6704
  %7074 = vmatpush1.msra.mxu0 %v6703
  %7075 = vmatprep.subr.mxu0 %v6710
  %7076 = vmatpush1.msra.mxu0 %v6709
  %7077 = vmatprep.subr.mxu0 %v6716
  %7078 = vmatpush1.msra.mxu0 %v6715
  %7079 = vmatprep.subr.mxu0 %v6722
  %7080 = vmatpush1.msra.mxu0 %v6721
  %7081 = vmatprep.subr.mxu0 %v6728
  %7082 = vmatpush1.msra.mxu0 %v6727
  %7083 = vmatprep.subr.mxu0 %v6734
  %7084 = vmatpush1.msra.mxu0 %v6733
  %7085 = vmatprep.subr.mxu0 %v6740
  %7086 = vmatpush1.msra.mxu0 %v6739
  %7087 = vmatprep.subr.mxu0 %v6746
  %7088 = vmatpush1.msra.mxu0 %v6745
  %7089 = vmatprep.subr.mxu0 %v6752
  %7090 = vmatpush1.msra.mxu0 %v6751
  %7091 = vmatprep.subr.mxu0 %v6758
  %7092 = vmatpush1.msra.mxu0 %v6757
  %7093 = vmatprep.subr.mxu0 %v6764
  %7094 = vmatpush1.msra.mxu0 %v6763
  %7095 = vmatprep.subr.mxu0 %v6770
  %7096 = vmatpush1.msra.mxu0 %v6769
  %7097 = vmatprep.subr.mxu0 %v6776
  %7098 = vmatpush1.msra.mxu0 %v6775
  %7099 = vmatprep.subr.mxu0 %v6782
  %7100 = vmatpush1.msra.mxu0 %v6781
  %7101 = vmatprep.subr.mxu0 %v6788
  %7102 = vmatpush1.msra.mxu0 %v6787
  %7103 = vmatprep.subr.mxu0 %v6794
  %7104 = vmatpush1.msra.mxu0 %v6793
  %7105 = vmatprep.subr.mxu0 %v6800
  %7106 = vmatpush1.msra.mxu0 %v6799
  %7107 = vmatprep.subr.mxu0 %v6806
  %7108 = vmatpush1.msra.mxu0 %v6805
  %7109 = vmatprep.subr.mxu0 %v6812
  %7110 = vmatpush1.msra.mxu0 %v6811
  %7111 = vmatprep.subr.mxu0 %v6818
  %7112 = vmatpush1.msra.mxu0 %v6817
  %7113 = vmatprep.subr.mxu0 %v6824
  %7114 = vmatpush1.msra.mxu0 %v6823
  %7115 = vmatprep.subr.mxu0 %v6830
  %7116 = vmatpush1.msra.mxu0 %v6829
  %7117 = vmatprep.subr.mxu0 %v6836
  %7118 = vmatpush1.msra.mxu0 %v6835
  %7119 = vmatprep.subr.mxu0 %v6842
  %7120 = vmatpush1.msra.mxu0 %v6841
  %7121 = vmatprep.subr.mxu0 %v6848
  %7122 = vmatpush1.msra.mxu0 %v6847
  %7123 = vmatprep.mubr.f32.mxu0 %v5972
  %7124 = vmatmul.mubr.f32.gmra.mrb[0].mxu0 %v5971
  %v7125 = vpop.f32.mrb[0].mxu0
  %v7126 = vadd.f32 %v6870, %v7125
  %v7127 = vpop.f32.mrb[0].mxu0
  %v7128 = vadd.f32 %v6874, %v7127
  %7129 = vmatprep.mubr.f32.mxu0 %v5974
  %7130 = vmatmul.mubr.f32.gmra.mrb[0].mxu0 %v5973
  %v7131 = vpop.f32.mrb[0].mxu0
  %v7132 = vadd.f32 %v6870, %v7131
  %v7133 = vpop.f32.mrb[0].mxu0
  %v7134 = vadd.f32 %v6874, %v7133
  %7135 = vmatprep.mubr.f32.mxu0 %v5976
  %7136 = vmatmul.mubr.f32.gmra.mrb[0].mxu0 %v5975
  %v7137 = vpop.f32.mrb[0].mxu0
  %v7138 = vadd.f32 %v6870, %v7137
  %v7139 = vpop.f32.mrb[0].mxu0
  %v7140 = vadd.f32 %v6874, %v7139
  %7141 = vmatprep.mubr.f32.mxu0 %v5978
  %7142 = vmatmul.mubr.f32.gmra.mrb[0].mxu0 %v5977
  %v7143 = vpop.f32.mrb[0].mxu0
  %v7144 = vadd.f32 %v6870, %v7143
  %v7145 = vpop.f32.mrb[0].mxu0
  %v7146 = vadd.f32 %v6874, %v7145
  %7147 = vdwg.mxu0
  %v7148 = vadd.f32 %v6633, %v6948
  %v7149 = vadd.f32 %v6634, %v6950
  %v7150 = vadd.f32 %v6639, %v6954
  %v7151 = vadd.f32 %v6640, %v6956
  %v7152 = vadd.f32 %v6645, %v6960
  %v7153 = vadd.f32 %v6646, %v6962
  %v7154 = vadd.f32 %v6651, %v6966
  %v7155 = vadd.f32 %v6652, %v6968
  %v7156 = vxor.u32 %v7148, 2147483648
  %v7157 = vxor.u32 %v7149, 2147483648
  %v7158 = vxor.u32 %v7150, 2147483648
  %v7159 = vxor.u32 %v7151, 2147483648
  %v7160 = vxor.u32 %v7152, 2147483648
  %v7161 = vxor.u32 %v7153, 2147483648
  %v7162 = vxor.u32 %v7154, 2147483648
  %v7163 = vxor.u32 %v7155, 2147483648
  %v7164 = vmul.f32 %v7156, 1.442695
  %v7165 = vpow.pop %v7164
  %v7166 = vmul.f32 %v7157, 1.442695
  %v7167 = vpow.pop %v7166
  %v7168 = vmul.f32 %v7158, 1.442695
  %v7169 = vpow.pop %v7168
  %v7170 = vmul.f32 %v7159, 1.442695
  %v7171 = vpow.pop %v7170
  %v7172 = vmul.f32 %v7160, 1.442695
  %v7173 = vpow.pop %v7172
  %v7174 = vmul.f32 %v7161, 1.442695
  %v7175 = vpow.pop %v7174
  %v7176 = vmul.f32 %v7162, 1.442695
  %v7177 = vpow.pop %v7176
  %v7178 = vmul.f32 %v7163, 1.442695
  %v7179 = vpow.pop %v7178
  %v7180 = vadd.f32 %v7165, 1.0
  %v7181 = vadd.f32 %v7167, 1.0
  %v7182 = vadd.f32 %v7169, 1.0
  %v7183 = vadd.f32 %v7171, 1.0
  %v7184 = vadd.f32 %v7173, 1.0
  %v7185 = vadd.f32 %v7175, 1.0
  %v7186 = vadd.f32 %v7177, 1.0
  %v7187 = vadd.f32 %v7179, 1.0
  %v7188 = vrcp.pop %v7180
  %v7189 = vmul.f32 1.0, %v7188
  %v7190 = vrcp.pop %v7181
  %v7191 = vmul.f32 1.0, %v7190
  %v7192 = vrcp.pop %v7182
  %v7193 = vmul.f32 1.0, %v7192
  %v7194 = vrcp.pop %v7183
  %v7195 = vmul.f32 1.0, %v7194
  %v7196 = vrcp.pop %v7184
  %v7197 = vmul.f32 1.0, %v7196
  %v7198 = vrcp.pop %v7185
  %v7199 = vmul.f32 1.0, %v7198
  %v7200 = vrcp.pop %v7186
  %v7201 = vmul.f32 1.0, %v7200
  %v7202 = vrcp.pop %v7187
  %v7203 = vmul.f32 1.0, %v7202
  %v7204 = vadd.f32 %v6635, %v7037
  %v7205 = vadd.f32 %v6636, %v7039
  %v7206 = vadd.f32 %v6641, %v7043
  %v7207 = vadd.f32 %v6642, %v7045
  %v7208 = vadd.f32 %v6647, %v7049
  %v7209 = vadd.f32 %v6648, %v7051
  %v7210 = vadd.f32 %v6653, %v7055
  %v7211 = vadd.f32 %v6654, %v7057
  %v7212 = vxor.u32 %v7204, 2147483648
  %v7213 = vxor.u32 %v7205, 2147483648
  %v7214 = vxor.u32 %v7206, 2147483648
  %v7215 = vxor.u32 %v7207, 2147483648
  %v7216 = vxor.u32 %v7208, 2147483648
  %v7217 = vxor.u32 %v7209, 2147483648
  %v7218 = vxor.u32 %v7210, 2147483648
  %v7219 = vxor.u32 %v7211, 2147483648
  %v7220 = vmul.f32 %v7212, 1.442695
  %v7221 = vpow.pop %v7220
  %v7222 = vmul.f32 %v7213, 1.442695
  %v7223 = vpow.pop %v7222
  %v7224 = vmul.f32 %v7214, 1.442695
  %v7225 = vpow.pop %v7224
  %v7226 = vmul.f32 %v7215, 1.442695
  %v7227 = vpow.pop %v7226
  %v7228 = vmul.f32 %v7216, 1.442695
  %v7229 = vpow.pop %v7228
  %v7230 = vmul.f32 %v7217, 1.442695
  %v7231 = vpow.pop %v7230
  %v7232 = vmul.f32 %v7218, 1.442695
  %v7233 = vpow.pop %v7232
  %v7234 = vmul.f32 %v7219, 1.442695
  %v7235 = vpow.pop %v7234
  %v7236 = vadd.f32 %v7221, 1.0
  %v7237 = vadd.f32 %v7223, 1.0
  %v7238 = vadd.f32 %v7225, 1.0
  %v7239 = vadd.f32 %v7227, 1.0
  %v7240 = vadd.f32 %v7229, 1.0
  %v7241 = vadd.f32 %v7231, 1.0
  %v7242 = vadd.f32 %v7233, 1.0
  %v7243 = vadd.f32 %v7235, 1.0
  %v7244 = vrcp.pop %v7236
  %v7245 = vmul.f32 1.0, %v7244
  %v7246 = vrcp.pop %v7237
  %v7247 = vmul.f32 1.0, %v7246
  %v7248 = vrcp.pop %v7238
  %v7249 = vmul.f32 1.0, %v7248
  %v7250 = vrcp.pop %v7239
  %v7251 = vmul.f32 1.0, %v7250
  %v7252 = vrcp.pop %v7240
  %v7253 = vmul.f32 1.0, %v7252
  %v7254 = vrcp.pop %v7241
  %v7255 = vmul.f32 1.0, %v7254
  %v7256 = vrcp.pop %v7242
  %v7257 = vmul.f32 1.0, %v7256
  %v7258 = vrcp.pop %v7243
  %v7259 = vmul.f32 1.0, %v7258
  %v7260 = vmul.f32 %v7189, %v7126
  %v7261 = vmul.f32 %v7191, %v7128
  %v7262 = vmul.f32 %v7193, %v7132
  %v7263 = vmul.f32 %v7195, %v7134
  %v7264 = vmul.f32 %v7197, %v7138
  %v7265 = vmul.f32 %v7199, %v7140
  %v7266 = vmul.f32 %v7201, %v7144
  %v7267 = vmul.f32 %v7203, %v7146
  %v7268 = vadd.f32 %v6637, %v7260
  %v7269 = vadd.f32 %v6638, %v7261
  %v7270 = vadd.f32 %v6643, %v7262
  %v7271 = vadd.f32 %v6644, %v7263
  %v7272 = vadd.f32 %v6649, %v7264
  %v7273 = vadd.f32 %v6650, %v7265
  %v7274 = vadd.f32 %v6655, %v7266
  %v7275 = vadd.f32 %v6656, %v7267
  %v7276 = vtanh.pop %v7268
  %v7277 = vtanh.pop %v7269
  %v7278 = vtanh.pop %v7270
  %v7279 = vtanh.pop %v7271
  %v7280 = vtanh.pop %v7272
  %v7281 = vtanh.pop %v7273
  %v7282 = vtanh.pop %v7274
  %v7283 = vtanh.pop %v7275
  %v7284 = vsub.f32 1.0, %v7245
  %v7285 = vsub.f32 1.0, %v7247
  %v7286 = vsub.f32 1.0, %v7249
  %v7287 = vsub.f32 1.0, %v7251
  %v7288 = vsub.f32 1.0, %v7253
  %v7289 = vsub.f32 1.0, %v7255
  %v7290 = vsub.f32 1.0, %v7257
  %v7291 = vsub.f32 1.0, %v7259
  %v7292 = vmul.f32 %v7284, %v7276
  %v7293 = vmul.f32 %v7285, %v7277
  %v7294 = vmul.f32 %v7286, %v7278
  %v7295 = vmul.f32 %v7287, %v7279
  %v7296 = vmul.f32 %v7288, %v7280
  %v7297 = vmul.f32 %v7289, %v7281
  %v7298 = vmul.f32 %v7290, %v7282
  %v7299 = vmul.f32 %v7291, %v7283
  %v7300 = vmul.f32 %v7245, %v5971
  %v7301 = vmul.f32 %v7247, %v5972
  %v7302 = vmul.f32 %v7249, %v5973
  %v7303 = vmul.f32 %v7251, %v5974
  %v7304 = vmul.f32 %v7253, %v5975
  %v7305 = vmul.f32 %v7255, %v5976
  %v7306 = vmul.f32 %v7257, %v5977
  %v7307 = vmul.f32 %v7259, %v5978
  %v7308 = vadd.f32 %v7292, %v7300
  %v7309 = vadd.f32 %v7293, %v7301
  %v7310 = vadd.f32 %v7294, %v7302
  %v7311 = vadd.f32 %v7295, %v7303
  %v7312 = vadd.f32 %v7296, %v7304
  %v7313 = vadd.f32 %v7297, %v7305
  %v7314 = vadd.f32 %v7298, %v7306
  %v7315 = vadd.f32 %v7299, %v7307
  %v7316 = vld [vmem:[%s8] sm:$0xff]
  %v7317 = vld [vmem:[%s8 + $0x8] sm:$0xff]
  %v7318 = vld [vmem:[%s8 + $0x10] sm:$0xff]
  %v7319 = vld [vmem:[%s8 + $0x18] sm:$0xff]
  %v7320 = vld [vmem:[%s8 + $0x20] sm:$0xff]
  %v7321 = vld [vmem:[%s8 + $0x28] sm:$0xff]
  %v7322 = vld [vmem:[%s8 + $0x30] sm:$0xff]
  %v7323 = vld [vmem:[%s8 + $0x38] sm:$0xff]
  %v7324 = vld [vmem:[%s8 + $0x40] sm:$0xff]
  %v7325 = vld [vmem:[%s8 + $0x48] sm:$0xff]
  %v7326 = vld [vmem:[%s8 + $0x50] sm:$0xff]
  %v7327 = vld [vmem:[%s8 + $0x58] sm:$0xff]
  %v7328 = vld [vmem:[%s8 + $0x60] sm:$0xff]
  %v7329 = vld [vmem:[%s8 + $0x68] sm:$0xff]
  %v7330 = vld [vmem:[%s8 + $0x70] sm:$0xff]
  %v7331 = vld [vmem:[%s8 + $0x78] sm:$0xff]
  %v7332 = vld [vmem:[%s8 + $0x80] sm:$0xff]
  %v7333 = vld [vmem:[%s8 + $0x88] sm:$0xff]
  %v7334 = vld [vmem:[%s8 + $0x90] sm:$0xff]
  %v7335 = vld [vmem:[%s8 + $0x98] sm:$0xff]
  %v7336 = vld [vmem:[%s8 + $0xa0] sm:$0xff]
  %v7337 = vld [vmem:[%s8 + $0xa8] sm:$0xff]
  %v7338 = vld [vmem:[%s8 + $0xb0] sm:$0xff]
  %v7339 = vld [vmem:[%s8 + $0xb8] sm:$0xff]
  %v7340 = vld [vmem:[%s8 + $0xc0] sm:$0xff]
  %v7341 = vld [vmem:[%s8 + $0xc8] sm:$0xff]
  %v7342 = vld [vmem:[%s8 + $0xd0] sm:$0xff]
  %v7343 = vld [vmem:[%s8 + $0xd8] sm:$0xff]
  %v7344 = vld [vmem:[%s8 + $0xe0] sm:$0xff]
  %v7345 = vld [vmem:[%s8 + $0xe8] sm:$0xff]
  %v7346 = vld [vmem:[%s8 + $0xf0] sm:$0xff]
  %v7347 = vld [vmem:[%s8 + $0xf8] sm:$0xff]
  %v7348 = vld [vmem:[%s9] sm:$0x1]
  %v7350 = vlaneseq
  %v7351 = vshrl.u32 %v7350, 7
  %v7352 = vsub.s32 0, %v7351
  %v7353 = vrot.slane %v7348, %v7352
  %7355 = vmatprep.subr.mxu0 0.0
  %7356 = vmatpush1.msra.mxu0 %v7316
  %7357 = vmatprep.subr.mxu0 0.0
  %7358 = vmatpush1.msra.mxu0 %v7317
  %7359 = vmatprep.subr.mxu0 0.0
  %7360 = vmatpush1.msra.mxu0 %v7318
  %7361 = vmatprep.subr.mxu0 0.0
  %7362 = vmatpush1.msra.mxu0 %v7319
  %7363 = vmatprep.subr.mxu0 0.0
  %7364 = vmatpush1.msra.mxu0 %v7320
  %7365 = vmatprep.subr.mxu0 0.0
  %7366 = vmatpush1.msra.mxu0 %v7321
  %7367 = vmatprep.subr.mxu0 0.0
  %7368 = vmatpush1.msra.mxu0 %v7322
  %7369 = vmatprep.subr.mxu0 0.0
  %7370 = vmatpush1.msra.mxu0 %v7323
  %7371 = vmatprep.subr.mxu0 0.0
  %7372 = vmatpush1.msra.mxu0 %v7324
  %7373 = vmatprep.subr.mxu0 0.0
  %7374 = vmatpush1.msra.mxu0 %v7325
  %7375 = vmatprep.subr.mxu0 0.0
  %7376 = vmatpush1.msra.mxu0 %v7326
  %7377 = vmatprep.subr.mxu0 0.0
  %7378 = vmatpush1.msra.mxu0 %v7327
  %7379 = vmatprep.subr.mxu0 0.0
  %7380 = vmatpush1.msra.mxu0 %v7328
  %7381 = vmatprep.subr.mxu0 0.0
  %7382 = vmatpush1.msra.mxu0 %v7329
  %7383 = vmatprep.subr.mxu0 0.0
  %7384 = vmatpush1.msra.mxu0 %v7330
  %7385 = vmatprep.subr.mxu0 0.0
  %7386 = vmatpush1.msra.mxu0 %v7331
  %7387 = vmatprep.subr.mxu0 0.0
  %7388 = vmatpush1.msra.mxu0 %v7332
  %7389 = vmatprep.subr.mxu0 0.0
  %7390 = vmatpush1.msra.mxu0 %v7333
  %7391 = vmatprep.subr.mxu0 0.0
  %7392 = vmatpush1.msra.mxu0 %v7334
  %7393 = vmatprep.subr.mxu0 0.0
  %7394 = vmatpush1.msra.mxu0 %v7335
  %7395 = vmatprep.subr.mxu0 0.0
  %7396 = vmatpush1.msra.mxu0 %v7336
  %7397 = vmatprep.subr.mxu0 0.0
  %7398 = vmatpush1.msra.mxu0 %v7337
  %7399 = vmatprep.subr.mxu0 0.0
  %7400 = vmatpush1.msra.mxu0 %v7338
  %7401 = vmatprep.subr.mxu0 0.0
  %7402 = vmatpush1.msra.mxu0 %v7339
  %7403 = vmatprep.subr.mxu0 0.0
  %7404 = vmatpush1.msra.mxu0 %v7340
  %7405 = vmatprep.subr.mxu0 0.0
  %7406 = vmatpush1.msra.mxu0 %v7341
  %7407 = vmatprep.subr.mxu0 0.0
  %7408 = vmatpush1.msra.mxu0 %v7342
  %7409 = vmatprep.subr.mxu0 0.0
  %7410 = vmatpush1.msra.mxu0 %v7343
  %7411 = vmatprep.subr.mxu0 0.0
  %7412 = vmatpush1.msra.mxu0 %v7344
  %7413 = vmatprep.subr.mxu0 0.0
  %7414 = vmatpush1.msra.mxu0 %v7345
  %7415 = vmatprep.subr.mxu0 0.0
  %7416 = vmatpush1.msra.mxu0 %v7346
  %7417 = vmatprep.subr.mxu0 0.0
  %7418 = vmatpush1.msra.mxu0 %v7347
  %7419 = vmatprep.mubr.f32.mxu0 %v7309
  %7420 = vmatmul.mubr.f32.gmra.mrb[0].mxu0 %v7308
  %v7421 = vpop.f32.mrb[0].mxu0
  %v7422 = vadd.f32 %v7353, %v7421
  %v7423 = vpop.f32.mrb[0].mxu0
  %7424 = vmatprep.mubr.f32.mxu0 %v7311
  %7425 = vmatmul.mubr.f32.gmra.mrb[0].mxu0 %v7310
  %v7426 = vpop.f32.mrb[0].mxu0
  %v7427 = vadd.f32 %v7353, %v7426
  %v7428 = vpop.f32.mrb[0].mxu0
  %7429 = vmatprep.mubr.f32.mxu0 %v7313
  %7430 = vmatmul.mubr.f32.gmra.mrb[0].mxu0 %v7312
  %v7431 = vpop.f32.mrb[0].mxu0
  %v7432 = vadd.f32 %v7353, %v7431
  %v7433 = vpop.f32.mrb[0].mxu0
  %7434 = vmatprep.mubr.f32.mxu0 %v7315
  %7435 = vmatmul.mubr.f32.gmra.mrb[0].mxu0 %v7314
  %v7436 = vpop.f32.mrb[0].mxu0
  %v7437 = vadd.f32 %v7353, %v7436
  %v7438 = vpop.f32.mrb[0].mxu0
  %7439 = vdwg.mxu0
  %s7440 = scalar_lea.vmem %s10, 128
  %7441 = vst [vmem:[%s7440] sm:$0xff] %v7422
  %7442 = vst [vmem:[%s7440 + $0x8] sm:$0xff] %v7427
  %7443 = vst [vmem:[%s7440 + $0x10] sm:$0xff] %v7432
  %7444 = vst [vmem:[%s7440 + $0x18] sm:$0xff] %v7437
  %7445 = vmax.xlane.f32.xlu0 %v7422
  %v7446 = vpop.xlane.xlu0 %7445
  %7447 = vmax.xlane.f32.xlu0 %v7427
  %v7448 = vpop.xlane.xlu0 %7447
  %7449 = vmax.xlane.f32.xlu0 %v7432
  %v7450 = vpop.xlane.xlu0 %7449
  %7451 = vmax.xlane.f32.xlu0 %v7437
  %v7452 = vpop.xlane.xlu0 %7451
  %vm7453 = vcmp.ge.f32.partialorder %v7422, %v7446
  %vm7454 = vcmp.ge.f32.partialorder %v7427, %v7448
  %vm7455 = vcmp.ge.f32.partialorder %v7432, %v7450
  %vm7456 = vcmp.ge.f32.partialorder %v7437, %v7452
  %v7457 = vsel %vm7453, %v3441, 2147483647
  %v7458 = vsel %vm7454, %v3441, 2147483647
  %v7459 = vsel %vm7455, %v3441, 2147483647
  %v7460 = vsel %vm7456, %v3441, 2147483647
  %v7461 = vand.u32 %v7457, 65535
  %v7462 = vshra.s32 %v7457, 16
  %v7463 = vcvt.s32.f32 %v7461
  %v7464 = vcvt.s32.f32 %v7462
  %7465 = vmin.xlane.f32.xlu0 %v7464
  %v7466 = vpop.xlane.xlu0 %7465
  %vm7467 = vcmp.eq.f32.partialorder %v7464, %v7466
  %v7468 = vsel %vm7467, %v7463, inf
  %7469 = vmin.xlane.f32.xlu0 %v7468
  %v7470 = vpop.xlane.xlu0 %7469
  %v7471 = vcvt.f32.s32 %v7470
  %v7472 = vcvt.f32.s32 %v7466
  %v7473 = vshll.u32 %v7472, 16
  %v7474 = vadd.s32 %v7473, %v7471
  %v7475 = vand.u32 %v7458, 65535
  %v7476 = vshra.s32 %v7458, 16
  %v7477 = vcvt.s32.f32 %v7475
  %v7478 = vcvt.s32.f32 %v7476
  %7479 = vmin.xlane.f32.xlu0 %v7478
  %v7480 = vpop.xlane.xlu0 %7479
  %vm7481 = vcmp.eq.f32.partialorder %v7478, %v7480
  %v7482 = vsel %vm7481, %v7477, inf
  %7483 = vmin.xlane.f32.xlu0 %v7482
  %v7484 = vpop.xlane.xlu0 %7483
  %v7485 = vcvt.f32.s32 %v7484
  %v7486 = vcvt.f32.s32 %v7480
  %v7487 = vshll.u32 %v7486, 16
  %v7488 = vadd.s32 %v7487, %v7485
  %v7489 = vand.u32 %v7459, 65535
  %v7490 = vshra.s32 %v7459, 16
  %v7491 = vcvt.s32.f32 %v7489
  %v7492 = vcvt.s32.f32 %v7490
  %7493 = vmin.xlane.f32.xlu0 %v7492
  %v7494 = vpop.xlane.xlu0 %7493
  %vm7495 = vcmp.eq.f32.partialorder %v7492, %v7494
  %v7496 = vsel %vm7495, %v7491, inf
  %7497 = vmin.xlane.f32.xlu0 %v7496
  %v7498 = vpop.xlane.xlu0 %7497
  %v7499 = vcvt.f32.s32 %v7498
  %v7500 = vcvt.f32.s32 %v7494
  %v7501 = vshll.u32 %v7500, 16
  %v7502 = vadd.s32 %v7501, %v7499
  %v7503 = vand.u32 %v7460, 65535
  %v7504 = vshra.s32 %v7460, 16
  %v7505 = vcvt.s32.f32 %v7503
  %v7506 = vcvt.s32.f32 %v7504
  %7507 = vmin.xlane.f32.xlu0 %v7506
  %v7508 = vpop.xlane.xlu0 %7507
  %vm7509 = vcmp.eq.f32.partialorder %v7506, %v7508
  %v7510 = vsel %vm7509, %v7505, inf
  %7511 = vmin.xlane.f32.xlu0 %v7510
  %v7512 = vpop.xlane.xlu0 %7511
  %v7513 = vcvt.f32.s32 %v7512
  %v7514 = vcvt.f32.s32 %v7508
  %v7515 = vshll.u32 %v7514, 16
  %v7516 = vadd.s32 %v7515, %v7513
  %vm7517 = vcmp.eq.s32.totalorder %v3441, %v7474
  %vm7518 = vcmp.eq.s32.totalorder %v3441, %v7488
  %vm7519 = vcmp.eq.s32.totalorder %v3441, %v7502
  %vm7520 = vcmp.eq.s32.totalorder %v3441, %v7516
  %v7521 = vsel %vm7517, 1, 0
  %v7522 = vsel %vm7518, 1, 0
  %v7523 = vsel %vm7519, 1, 0
  %v7524 = vsel %vm7520, 1, 0
  %v7525 = vcvt.s32.f32 %v7521
  %v7526 = vcvt.s32.f32 %v7522
  %v7527 = vcvt.s32.f32 %v7523
  %v7528 = vcvt.s32.f32 %v7524
  %v7529 = vld [vmem:[%s7] sm:$0xff]
  %v7530 = vld [vmem:[%s7 + $0x8] sm:$0xff]
  %v7531 = vld [vmem:[%s7 + $0x10] sm:$0xff]
  %v7532 = vld [vmem:[%s7 + $0x18] sm:$0xff]
  %v7533 = vld [vmem:[%s7 + $0x20] sm:$0xff]
  %v7534 = vld [vmem:[%s7 + $0x28] sm:$0xff]
  %v7535 = vld [vmem:[%s7 + $0x30] sm:$0xff]
  %v7536 = vld [vmem:[%s7 + $0x38] sm:$0xff]
  %v7537 = vld [vmem:[%s7 + $0x40] sm:$0xff]
  %v7538 = vld [vmem:[%s7 + $0x48] sm:$0xff]
  %v7539 = vld [vmem:[%s7 + $0x50] sm:$0xff]
  %v7540 = vld [vmem:[%s7 + $0x58] sm:$0xff]
  %v7541 = vld [vmem:[%s7 + $0x60] sm:$0xff]
  %v7542 = vld [vmem:[%s7 + $0x68] sm:$0xff]
  %v7543 = vld [vmem:[%s7 + $0x70] sm:$0xff]
  %v7544 = vld [vmem:[%s7 + $0x78] sm:$0xff]
  %v7545 = vld [vmem:[%s7 + $0x80] sm:$0xff]
  %v7546 = vld [vmem:[%s7 + $0x88] sm:$0xff]
  %v7547 = vld [vmem:[%s7 + $0x90] sm:$0xff]
  %v7548 = vld [vmem:[%s7 + $0x98] sm:$0xff]
  %v7549 = vld [vmem:[%s7 + $0xa0] sm:$0xff]
  %v7550 = vld [vmem:[%s7 + $0xa8] sm:$0xff]
  %v7551 = vld [vmem:[%s7 + $0xb0] sm:$0xff]
  %v7552 = vld [vmem:[%s7 + $0xb8] sm:$0xff]
  %v7553 = vld [vmem:[%s7 + $0xc0] sm:$0xff]
  %v7554 = vld [vmem:[%s7 + $0xc8] sm:$0xff]
  %v7555 = vld [vmem:[%s7 + $0xd0] sm:$0xff]
  %v7556 = vld [vmem:[%s7 + $0xd8] sm:$0xff]
  %v7557 = vld [vmem:[%s7 + $0xe0] sm:$0xff]
  %v7558 = vld [vmem:[%s7 + $0xe8] sm:$0xff]
  %v7559 = vld [vmem:[%s7 + $0xf0] sm:$0xff]
  %v7560 = vld [vmem:[%s7 + $0xf8] sm:$0xff]
  %v7561 = vld [vmem:[%s7 + $0x100] sm:$0xff]
  %v7562 = vld [vmem:[%s7 + $0x108] sm:$0xff]
  %v7563 = vld [vmem:[%s7 + $0x110] sm:$0xff]
  %v7564 = vld [vmem:[%s7 + $0x118] sm:$0xff]
  %v7565 = vld [vmem:[%s7 + $0x120] sm:$0xff]
  %v7566 = vld [vmem:[%s7 + $0x128] sm:$0xff]
  %v7567 = vld [vmem:[%s7 + $0x130] sm:$0xff]
  %v7568 = vld [vmem:[%s7 + $0x138] sm:$0xff]
  %v7569 = vld [vmem:[%s7 + $0x140] sm:$0xff]
  %v7570 = vld [vmem:[%s7 + $0x148] sm:$0xff]
  %v7571 = vld [vmem:[%s7 + $0x150] sm:$0xff]
  %v7572 = vld [vmem:[%s7 + $0x158] sm:$0xff]
  %v7573 = vld [vmem:[%s7 + $0x160] sm:$0xff]
  %v7574 = vld [vmem:[%s7 + $0x168] sm:$0xff]
  %v7575 = vld [vmem:[%s7 + $0x170] sm:$0xff]
  %v7576 = vld [vmem:[%s7 + $0x178] sm:$0xff]
  %v7577 = vld [vmem:[%s7 + $0x180] sm:$0xff]
  %v7578 = vld [vmem:[%s7 + $0x188] sm:$0xff]
  %v7579 = vld [vmem:[%s7 + $0x190] sm:$0xff]
  %v7580 = vld [vmem:[%s7 + $0x198] sm:$0xff]
  %v7581 = vld [vmem:[%s7 + $0x1a0] sm:$0xff]
  %v7582 = vld [vmem:[%s7 + $0x1a8] sm:$0xff]
  %v7583 = vld [vmem:[%s7 + $0x1b0] sm:$0xff]
  %v7584 = vld [vmem:[%s7 + $0x1b8] sm:$0xff]
  %v7585 = vld [vmem:[%s7 + $0x1c0] sm:$0xff]
  %v7586 = vld [vmem:[%s7 + $0x1c8] sm:$0xff]
  %v7587 = vld [vmem:[%s7 + $0x1d0] sm:$0xff]
  %v7588 = vld [vmem:[%s7 + $0x1d8] sm:$0xff]
  %v7589 = vld [vmem:[%s7 + $0x1e0] sm:$0xff]
  %v7590 = vld [vmem:[%s7 + $0x1e8] sm:$0xff]
  %v7591 = vld [vmem:[%s7 + $0x1f0] sm:$0xff]
  %v7592 = vld [vmem:[%s7 + $0x1f8] sm:$0xff]
  %v7593 = vld [vmem:[%s7 + $0x200] sm:$0xff]
  %v7594 = vld [vmem:[%s7 + $0x208] sm:$0xff]
  %v7595 = vld [vmem:[%s7 + $0x210] sm:$0xff]
  %v7596 = vld [vmem:[%s7 + $0x218] sm:$0xff]
  %v7597 = vld [vmem:[%s7 + $0x220] sm:$0xff]
  %v7598 = vld [vmem:[%s7 + $0x228] sm:$0xff]
  %v7599 = vld [vmem:[%s7 + $0x230] sm:$0xff]
  %v7600 = vld [vmem:[%s7 + $0x238] sm:$0xff]
  %v7601 = vld [vmem:[%s7 + $0x240] sm:$0xff]
  %v7602 = vld [vmem:[%s7 + $0x248] sm:$0xff]
  %v7603 = vld [vmem:[%s7 + $0x250] sm:$0xff]
  %v7604 = vld [vmem:[%s7 + $0x258] sm:$0xff]
  %v7605 = vld [vmem:[%s7 + $0x260] sm:$0xff]
  %v7606 = vld [vmem:[%s7 + $0x268] sm:$0xff]
  %v7607 = vld [vmem:[%s7 + $0x270] sm:$0xff]
  %v7608 = vld [vmem:[%s7 + $0x278] sm:$0xff]
  %v7609 = vld [vmem:[%s7 + $0x280] sm:$0xff]
  %v7610 = vld [vmem:[%s7 + $0x288] sm:$0xff]
  %v7611 = vld [vmem:[%s7 + $0x290] sm:$0xff]
  %v7612 = vld [vmem:[%s7 + $0x298] sm:$0xff]
  %v7613 = vld [vmem:[%s7 + $0x2a0] sm:$0xff]
  %v7614 = vld [vmem:[%s7 + $0x2a8] sm:$0xff]
  %v7615 = vld [vmem:[%s7 + $0x2b0] sm:$0xff]
  %v7616 = vld [vmem:[%s7 + $0x2b8] sm:$0xff]
  %v7617 = vld [vmem:[%s7 + $0x2c0] sm:$0xff]
  %v7618 = vld [vmem:[%s7 + $0x2c8] sm:$0xff]
  %v7619 = vld [vmem:[%s7 + $0x2d0] sm:$0xff]
  %v7620 = vld [vmem:[%s7 + $0x2d8] sm:$0xff]
  %v7621 = vld [vmem:[%s7 + $0x2e0] sm:$0xff]
  %v7622 = vld [vmem:[%s7 + $0x2e8] sm:$0xff]
  %v7623 = vld [vmem:[%s7 + $0x2f0] sm:$0xff]
  %v7624 = vld [vmem:[%s7 + $0x2f8] sm:$0xff]
  %7625 = vmatprep.subr.mxu0 %v7530
  %7626 = vmatpush1.msra.mxu0 %v7529
  %7627 = vmatprep.subr.mxu0 %v7536
  %7628 = vmatpush1.msra.mxu0 %v7535
  %7629 = vmatprep.subr.mxu0 %v7542
  %7630 = vmatpush1.msra.mxu0 %v7541
  %7631 = vmatprep.subr.mxu0 %v7548
  %7632 = vmatpush1.msra.mxu0 %v7547
  %7633 = vmatprep.subr.mxu0 %v7554
  %7634 = vmatpush1.msra.mxu0 %v7553
  %7635 = vmatprep.subr.mxu0 %v7560
  %7636 = vmatpush1.msra.mxu0 %v7559
  %7637 = vmatprep.subr.mxu0 %v7566
  %7638 = vmatpush1.msra.mxu0 %v7565
  %7639 = vmatprep.subr.mxu0 %v7572
  %7640 = vmatpush1.msra.mxu0 %v7571
  %7641 = vmatprep.subr.mxu0 %v7578
  %7642 = vmatpush1.msra.mxu0 %v7577
  %7643 = vmatprep.subr.mxu0 %v7584
  %7644 = vmatpush1.msra.mxu0 %v7583
  %7645 = vmatprep.subr.mxu0 %v7590
  %7646 = vmatpush1.msra.mxu0 %v7589
  %7647 = vmatprep.subr.mxu0 %v7596
  %7648 = vmatpush1.msra.mxu0 %v7595
  %7649 = vmatprep.subr.mxu0 %v7602
  %7650 = vmatpush1.msra.mxu0 %v7601
  %7651 = vmatprep.subr.mxu0 %v7608
  %7652 = vmatpush1.msra.mxu0 %v7607
  %7653 = vmatprep.subr.mxu0 %v7614
  %7654 = vmatpush1.msra.mxu0 %v7613
  %7655 = vmatprep.subr.mxu0 %v7620
  %7656 = vmatpush1.msra.mxu0 %v7619
  %7657 = vmatprep.subr.mxu0 0.0
  %7658 = vmatpush1.msra.mxu0 0.0
  %7659 = vmatprep.subr.mxu0 0.0
  %7660 = vmatpush1.msra.mxu0 0.0
  %7661 = vmatprep.subr.mxu0 0.0
  %7662 = vmatpush1.msra.mxu0 0.0
  %7663 = vmatprep.subr.mxu0 0.0
  %7664 = vmatpush1.msra.mxu0 0.0
  %7665 = vmatprep.subr.mxu0 0.0
  %7666 = vmatpush1.msra.mxu0 0.0
  %7667 = vmatprep.subr.mxu0 0.0
  %7668 = vmatpush1.msra.mxu0 0.0
  %7669 = vmatprep.subr.mxu0 0.0
  %7670 = vmatpush1.msra.mxu0 0.0
  %7671 = vmatprep.subr.mxu0 0.0
  %7672 = vmatpush1.msra.mxu0 0.0
  %7673 = vmatprep.subr.mxu0 0.0
  %7674 = vmatpush1.msra.mxu0 0.0
  %7675 = vmatprep.subr.mxu0 0.0
  %7676 = vmatpush1.msra.mxu0 0.0
  %7677 = vmatprep.subr.mxu0 0.0
  %7678 = vmatpush1.msra.mxu0 0.0
  %7679 = vmatprep.subr.mxu0 0.0
  %7680 = vmatpush1.msra.mxu0 0.0
  %7681 = vmatprep.subr.mxu0 0.0
  %7682 = vmatpush1.msra.mxu0 0.0
  %7683 = vmatprep.subr.mxu0 0.0
  %7684 = vmatpush1.msra.mxu0 0.0
  %7685 = vmatprep.subr.mxu0 0.0
  %7686 = vmatpush1.msra.mxu0 0.0
  %7687 = vmatprep.subr.mxu0 0.0
  %7688 = vmatpush1.msra.mxu0 0.0
  %7689 = vmatprep.mubr.f32.mxu0 0.0
  %7690 = vmatmul.mubr.f32.gmra.mrb[0].mxu0 %v7525
  %v7691 = vpop.f32.mrb[0].mxu0
  %v7692 = vadd.f32 0.0, %v7691
  %v7693 = vpop.f32.mrb[0].mxu0
  %v7694 = vadd.f32 0.0, %v7693
  %7695 = vmatprep.mubr.f32.mxu0 0.0
  %7696 = vmatmul.mubr.f32.gmra.mrb[0].mxu0 %v7526
  %v7697 = vpop.f32.mrb[0].mxu0
  %v7698 = vadd.f32 0.0, %v7697
  %v7699 = vpop.f32.mrb[0].mxu0
  %v7700 = vadd.f32 0.0, %v7699
  %7701 = vmatprep.mubr.f32.mxu0 0.0
  %7702 = vmatmul.mubr.f32.gmra.mrb[0].mxu0 %v7527
  %v7703 = vpop.f32.mrb[0].mxu0
  %v7704 = vadd.f32 0.0, %v7703
  %v7705 = vpop.f32.mrb[0].mxu0
  %v7706 = vadd.f32 0.0, %v7705
  %7707 = vmatprep.mubr.f32.mxu0 0.0
  %7708 = vmatmul.mubr.f32.gmra.mrb[0].mxu0 %v7528
  %v7709 = vpop.f32.mrb[0].mxu0
  %v7710 = vadd.f32 0.0, %v7709
  %v7711 = vpop.f32.mrb[0].mxu0
  %v7712 = vadd.f32 0.0, %v7711
  %7713 = vdwg.mxu0
  %7714 = vmatprep.subr.mxu0 %v7532
  %7715 = vmatpush1.msra.mxu0 %v7531
  %7716 = vmatprep.subr.mxu0 %v7538
  %7717 = vmatpush1.msra.mxu0 %v7537
  %7718 = vmatprep.subr.mxu0 %v7544
  %7719 = vmatpush1.msra.mxu0 %v7543
  %7720 = vmatprep.subr.mxu0 %v7550
  %7721 = vmatpush1.msra.mxu0 %v7549
  %7722 = vmatprep.subr.mxu0 %v7556
  %7723 = vmatpush1.msra.mxu0 %v7555
  %7724 = vmatprep.subr.mxu0 %v7562
  %7725 = vmatpush1.msra.mxu0 %v7561
  %7726 = vmatprep.subr.mxu0 %v7568
  %7727 = vmatpush1.msra.mxu0 %v7567
  %7728 = vmatprep.subr.mxu0 %v7574
  %7729 = vmatpush1.msra.mxu0 %v7573
  %7730 = vmatprep.subr.mxu0 %v7580
  %7731 = vmatpush1.msra.mxu0 %v7579
  %7732 = vmatprep.subr.mxu0 %v7586
  %7733 = vmatpush1.msra.mxu0 %v7585
  %7734 = vmatprep.subr.mxu0 %v7592
  %7735 = vmatpush1.msra.mxu0 %v7591
  %7736 = vmatprep.subr.mxu0 %v7598
  %7737 = vmatpush1.msra.mxu0 %v7597
  %7738 = vmatprep.subr.mxu0 %v7604
  %7739 = vmatpush1.msra.mxu0 %v7603
  %7740 = vmatprep.subr.mxu0 %v7610
  %7741 = vmatpush1.msra.mxu0 %v7609
  %7742 = vmatprep.subr.mxu0 %v7616
  %7743 = vmatpush1.msra.mxu0 %v7615
  %7744 = vmatprep.subr.mxu0 %v7622
  %7745 = vmatpush1.msra.mxu0 %v7621
  %7746 = vmatprep.subr.mxu0 0.0
  %7747 = vmatpush1.msra.mxu0 0.0
  %7748 = vmatprep.subr.mxu0 0.0
  %7749 = vmatpush1.msra.mxu0 0.0
  %7750 = vmatprep.subr.mxu0 0.0
  %7751 = vmatpush1.msra.mxu0 0.0
  %7752 = vmatprep.subr.mxu0 0.0
  %7753 = vmatpush1.msra.mxu0 0.0
  %7754 = vmatprep.subr.mxu0 0.0
  %7755 = vmatpush1.msra.mxu0 0.0
  %7756 = vmatprep.subr.mxu0 0.0
  %7757 = vmatpush1.msra.mxu0 0.0
  %7758 = vmatprep.subr.mxu0 0.0
  %7759 = vmatpush1.msra.mxu0 0.0
  %7760 = vmatprep.subr.mxu0 0.0
  %7761 = vmatpush1.msra.mxu0 0.0
  %7762 = vmatprep.subr.mxu0 0.0
  %7763 = vmatpush1.msra.mxu0 0.0
  %7764 = vmatprep.subr.mxu0 0.0
  %7765 = vmatpush1.msra.mxu0 0.0
  %7766 = vmatprep.subr.mxu0 0.0
  %7767 = vmatpush1.msra.mxu0 0.0
  %7768 = vmatprep.subr.mxu0 0.0
  %7769 = vmatpush1.msra.mxu0 0.0
  %7770 = vmatprep.subr.mxu0 0.0
  %7771 = vmatpush1.msra.mxu0 0.0
  %7772 = vmatprep.subr.mxu0 0.0
  %7773 = vmatpush1.msra.mxu0 0.0
  %7774 = vmatprep.subr.mxu0 0.0
  %7775 = vmatpush1.msra.mxu0 0.0
  %7776 = vmatprep.subr.mxu0 0.0
  %7777 = vmatpush1.msra.mxu0 0.0
  %7778 = vmatprep.mubr.f32.mxu0 0.0
  %7779 = vmatmul.mubr.f32.gmra.mrb[0].mxu0 %v7525
  %v7780 = vpop.f32.mrb[0].mxu0
  %v7781 = vadd.f32 0.0, %v7780
  %v7782 = vpop.f32.mrb[0].mxu0
  %v7783 = vadd.f32 0.0, %v7782
  %7784 = vmatprep.mubr.f32.mxu0 0.0
  %7785 = vmatmul.mubr.f32.gmra.mrb[0].mxu0 %v7526
  %v7786 = vpop.f32.mrb[0].mxu0
  %v7787 = vadd.f32 0.0, %v7786
  %v7788 = vpop.f32.mrb[0].mxu0
  %v7789 = vadd.f32 0.0, %v7788
  %7790 = vmatprep.mubr.f32.mxu0 0.0
  %7791 = vmatmul.mubr.f32.gmra.mrb[0].mxu0 %v7527
  %v7792 = vpop.f32.mrb[0].mxu0
  %v7793 = vadd.f32 0.0, %v7792
  %v7794 = vpop.f32.mrb[0].mxu0
  %v7795 = vadd.f32 0.0, %v7794
  %7796 = vmatprep.mubr.f32.mxu0 0.0
  %7797 = vmatmul.mubr.f32.gmra.mrb[0].mxu0 %v7528
  %v7798 = vpop.f32.mrb[0].mxu0
  %v7799 = vadd.f32 0.0, %v7798
  %v7800 = vpop.f32.mrb[0].mxu0
  %v7801 = vadd.f32 0.0, %v7800
  %7802 = vdwg.mxu0
  %7803 = vmatprep.subr.mxu0 %v7534
  %7804 = vmatpush1.msra.mxu0 %v7533
  %7805 = vmatprep.subr.mxu0 %v7540
  %7806 = vmatpush1.msra.mxu0 %v7539
  %7807 = vmatprep.subr.mxu0 %v7546
  %7808 = vmatpush1.msra.mxu0 %v7545
  %7809 = vmatprep.subr.mxu0 %v7552
  %7810 = vmatpush1.msra.mxu0 %v7551
  %7811 = vmatprep.subr.mxu0 %v7558
  %7812 = vmatpush1.msra.mxu0 %v7557
  %7813 = vmatprep.subr.mxu0 %v7564
  %7814 = vmatpush1.msra.mxu0 %v7563
  %7815 = vmatprep.subr.mxu0 %v7570
  %7816 = vmatpush1.msra.mxu0 %v7569
  %7817 = vmatprep.subr.mxu0 %v7576
  %7818 = vmatpush1.msra.mxu0 %v7575
  %7819 = vmatprep.subr.mxu0 %v7582
  %7820 = vmatpush1.msra.mxu0 %v7581
  %7821 = vmatprep.subr.mxu0 %v7588
  %7822 = vmatpush1.msra.mxu0 %v7587
  %7823 = vmatprep.subr.mxu0 %v7594
  %7824 = vmatpush1.msra.mxu0 %v7593
  %7825 = vmatprep.subr.mxu0 %v7600
  %7826 = vmatpush1.msra.mxu0 %v7599
  %7827 = vmatprep.subr.mxu0 %v7606
  %7828 = vmatpush1.msra.mxu0 %v7605
  %7829 = vmatprep.subr.mxu0 %v7612
  %7830 = vmatpush1.msra.mxu0 %v7611
  %7831 = vmatprep.subr.mxu0 %v7618
  %7832 = vmatpush1.msra.mxu0 %v7617
  %7833 = vmatprep.subr.mxu0 %v7624
  %7834 = vmatpush1.msra.mxu0 %v7623
  %7835 = vmatprep.subr.mxu0 0.0
  %7836 = vmatpush1.msra.mxu0 0.0
  %7837 = vmatprep.subr.mxu0 0.0
  %7838 = vmatpush1.msra.mxu0 0.0
  %7839 = vmatprep.subr.mxu0 0.0
  %7840 = vmatpush1.msra.mxu0 0.0
  %7841 = vmatprep.subr.mxu0 0.0
  %7842 = vmatpush1.msra.mxu0 0.0
  %7843 = vmatprep.subr.mxu0 0.0
  %7844 = vmatpush1.msra.mxu0 0.0
  %7845 = vmatprep.subr.mxu0 0.0
  %7846 = vmatpush1.msra.mxu0 0.0
  %7847 = vmatprep.subr.mxu0 0.0
  %7848 = vmatpush1.msra.mxu0 0.0
  %7849 = vmatprep.subr.mxu0 0.0
  %7850 = vmatpush1.msra.mxu0 0.0
  %7851 = vmatprep.subr.mxu0 0.0
  %7852 = vmatpush1.msra.mxu0 0.0
  %7853 = vmatprep.subr.mxu0 0.0
  %7854 = vmatpush1.msra.mxu0 0.0
  %7855 = vmatprep.subr.mxu0 0.0
  %7856 = vmatpush1.msra.mxu0 0.0
  %7857 = vmatprep.subr.mxu0 0.0
  %7858 = vmatpush1.msra.mxu0 0.0
  %7859 = vmatprep.subr.mxu0 0.0
  %7860 = vmatpush1.msra.mxu0 0.0
  %7861 = vmatprep.subr.mxu0 0.0
  %7862 = vmatpush1.msra.mxu0 0.0
  %7863 = vmatprep.subr.mxu0 0.0
  %7864 = vmatpush1.msra.mxu0 0.0
  %7865 = vmatprep.subr.mxu0 0.0
  %7866 = vmatpush1.msra.mxu0 0.0
  %7867 = vmatprep.mubr.f32.mxu0 0.0
  %7868 = vmatmul.mubr.f32.gmra.mrb[0].mxu0 %v7525
  %v7869 = vpop.f32.mrb[0].mxu0
  %v7870 = vadd.f32 0.0, %v7869
  %v7871 = vpop.f32.mrb[0].mxu0
  %v7872 = vadd.f32 0.0, %v7871
  %7873 = vmatprep.mubr.f32.mxu0 0.0
  %7874 = vmatmul.mubr.f32.gmra.mrb[0].mxu0 %v7526
  %v7875 = vpop.f32.mrb[0].mxu0
  %v7876 = vadd.f32 0.0, %v7875
  %v7877 = vpop.f32.mrb[0].mxu0
  %v7878 = vadd.f32 0.0, %v7877
  %7879 = vmatprep.mubr.f32.mxu0 0.0
  %7880 = vmatmul.mubr.f32.gmra.mrb[0].mxu0 %v7527
  %v7881 = vpop.f32.mrb[0].mxu0
  %v7882 = vadd.f32 0.0, %v7881
  %v7883 = vpop.f32.mrb[0].mxu0
  %v7884 = vadd.f32 0.0, %v7883
  %7885 = vmatprep.mubr.f32.mxu0 0.0
  %7886 = vmatmul.mubr.f32.gmra.mrb[0].mxu0 %v7528
  %v7887 = vpop.f32.mrb[0].mxu0
  %v7888 = vadd.f32 0.0, %v7887
  %v7889 = vpop.f32.mrb[0].mxu0
  %v7890 = vadd.f32 0.0, %v7889
  %7891 = vdwg.mxu0
  %s7892 = sld [smem:[#allocation3 + $0x4]]
  %s7893 = scvt.s32.f32 %s7892
  %s7894 = scalar_lea.vmem %s2, 768
  %v7895 = vld [vmem:[%s7894] sm:$0xff]
  %v7896 = vld [vmem:[%s7894 + $0x8] sm:$0xff]
  %v7897 = vld [vmem:[%s7894 + $0x10] sm:$0xff]
  %v7898 = vld [vmem:[%s7894 + $0x18] sm:$0xff]
  %v7899 = vld [vmem:[%s7894 + $0x20] sm:$0xff]
  %v7900 = vld [vmem:[%s7894 + $0x28] sm:$0xff]
  %v7901 = vld [vmem:[%s7894 + $0x30] sm:$0xff]
  %v7902 = vld [vmem:[%s7894 + $0x38] sm:$0xff]
  %v7903 = vld [vmem:[%s7894 + $0x40] sm:$0xff]
  %v7904 = vld [vmem:[%s7894 + $0x48] sm:$0xff]
  %v7905 = vld [vmem:[%s7894 + $0x50] sm:$0xff]
  %v7906 = vld [vmem:[%s7894 + $0x58] sm:$0xff]
  %v7907 = vld [vmem:[%s7894 + $0x60] sm:$0xff]
  %v7908 = vld [vmem:[%s7894 + $0x68] sm:$0xff]
  %v7909 = vld [vmem:[%s7894 + $0x70] sm:$0xff]
  %v7910 = vld [vmem:[%s7894 + $0x78] sm:$0xff]
  %v7911 = vld [vmem:[%s7894 + $0x80] sm:$0xff]
  %v7912 = vld [vmem:[%s7894 + $0x88] sm:$0xff]
  %v7913 = vld [vmem:[%s7894 + $0x90] sm:$0xff]
  %v7914 = vld [vmem:[%s7894 + $0x98] sm:$0xff]
  %v7915 = vld [vmem:[%s7894 + $0xa0] sm:$0xff]
  %v7916 = vld [vmem:[%s7894 + $0xa8] sm:$0xff]
  %v7917 = vld [vmem:[%s7894 + $0xb0] sm:$0xff]
  %v7918 = vld [vmem:[%s7894 + $0xb8] sm:$0xff]
  %v7919 = vstv %s7893
  %v7920 = vmul.f32 %v7919, %v7895
  %v7921 = vmul.f32 %v7919, %v7896
  %v7922 = vmul.f32 %v7919, %v7897
  %v7923 = vmul.f32 %v7919, %v7898
  %v7924 = vmul.f32 %v7919, %v7899
  %v7925 = vmul.f32 %v7919, %v7900
  %v7926 = vmul.f32 %v7919, %v7901
  %v7927 = vmul.f32 %v7919, %v7902
  %v7928 = vmul.f32 %v7919, %v7903
  %v7929 = vmul.f32 %v7919, %v7904
  %v7930 = vmul.f32 %v7919, %v7905
  %v7931 = vmul.f32 %v7919, %v7906
  %v7932 = vmul.f32 %v7919, %v7907
  %v7933 = vmul.f32 %v7919, %v7908
  %v7934 = vmul.f32 %v7919, %v7909
  %v7935 = vmul.f32 %v7919, %v7910
  %v7936 = vmul.f32 %v7919, %v7911
  %v7937 = vmul.f32 %v7919, %v7912
  %v7938 = vmul.f32 %v7919, %v7913
  %v7939 = vmul.f32 %v7919, %v7914
  %v7940 = vmul.f32 %v7919, %v7915
  %v7941 = vmul.f32 %v7919, %v7916
  %v7942 = vmul.f32 %v7919, %v7917
  %v7943 = vmul.f32 %v7919, %v7918
  %s7944 = ssub.f32 1.0, %s7893
  %v7945 = vstv %s7944
  %v7946 = vmul.f32 %v7945, %v7692
  %v7947 = vmul.f32 %v7945, %v7694
  %v7948 = vmul.f32 %v7945, %v7781
  %v7949 = vmul.f32 %v7945, %v7783
  %v7950 = vmul.f32 %v7945, %v7870
  %v7951 = vmul.f32 %v7945, %v7872
  %v7952 = vmul.f32 %v7945, %v7698
  %v7953 = vmul.f32 %v7945, %v7700
  %v7954 = vmul.f32 %v7945, %v7787
  %v7955 = vmul.f32 %v7945, %v7789
  %v7956 = vmul.f32 %v7945, %v7876
  %v7957 = vmul.f32 %v7945, %v7878
  %v7958 = vmul.f32 %v7945, %v7704
  %v7959 = vmul.f32 %v7945, %v7706
  %v7960 = vmul.f32 %v7945, %v7793
  %v7961 = vmul.f32 %v7945, %v7795
  %v7962 = vmul.f32 %v7945, %v7882
  %v7963 = vmul.f32 %v7945, %v7884
  %v7964 = vmul.f32 %v7945, %v7710
  %v7965 = vmul.f32 %v7945, %v7712
  %v7966 = vmul.f32 %v7945, %v7799
  %v7967 = vmul.f32 %v7945, %v7801
  %v7968 = vmul.f32 %v7945, %v7888
  %v7969 = vmul.f32 %v7945, %v7890
  %v7970 = vadd.f32 %v7920, %v7946
  %v7971 = vadd.f32 %v7921, %v7947
  %v7972 = vadd.f32 %v7922, %v7948
  %v7973 = vadd.f32 %v7923, %v7949
  %v7974 = vadd.f32 %v7924, %v7950
  %v7975 = vadd.f32 %v7925, %v7951
  %v7976 = vadd.f32 %v7926, %v7952
  %v7977 = vadd.f32 %v7927, %v7953
  %v7978 = vadd.f32 %v7928, %v7954
  %v7979 = vadd.f32 %v7929, %v7955
  %v7980 = vadd.f32 %v7930, %v7956
  %v7981 = vadd.f32 %v7931, %v7957
  %v7982 = vadd.f32 %v7932, %v7958
  %v7983 = vadd.f32 %v7933, %v7959
  %v7984 = vadd.f32 %v7934, %v7960
  %v7985 = vadd.f32 %v7935, %v7961
  %v7986 = vadd.f32 %v7936, %v7962
  %v7987 = vadd.f32 %v7937, %v7963
  %v7988 = vadd.f32 %v7938, %v7964
  %v7989 = vadd.f32 %v7939, %v7965
  %v7990 = vadd.f32 %v7940, %v7966
  %v7991 = vadd.f32 %v7941, %v7967
  %v7992 = vadd.f32 %v7942, %v7968
  %v7993 = vadd.f32 %v7943, %v7969
  %v7994 = vld [vmem:[%s5] sm:$0xff]
  %v7995 = vld [vmem:[%s5 + $0x8] sm:$0xff]
  %v7996 = vld [vmem:[%s5 + $0x10] sm:$0xff]
  %v7997 = vld [vmem:[%s5 + $0x18] sm:$0xff]
  %v7998 = vld [vmem:[%s5 + $0x20] sm:$0xff]
  %v7999 = vld [vmem:[%s5 + $0x28] sm:$0xff]
  %v8000 = vld [vmem:[%s5 + $0x30] sm:$0xff]
  %v8001 = vld [vmem:[%s5 + $0x38] sm:$0xff]
  %v8002 = vld [vmem:[%s5 + $0x40] sm:$0xff]
  %v8003 = vld [vmem:[%s5 + $0x48] sm:$0xff]
  %v8004 = vld [vmem:[%s5 + $0x50] sm:$0xff]
  %v8005 = vld [vmem:[%s5 + $0x58] sm:$0xff]
  %v8006 = vld [vmem:[%s5 + $0x60] sm:$0xff]
  %v8007 = vld [vmem:[%s5 + $0x68] sm:$0xff]
  %v8008 = vld [vmem:[%s5 + $0x70] sm:$0xff]
  %v8009 = vld [vmem:[%s5 + $0x78] sm:$0xff]
  %v8010 = vld [vmem:[%s5 + $0x80] sm:$0xff]
  %v8011 = vld [vmem:[%s5 + $0x88] sm:$0xff]
  %v8012 = vld [vmem:[%s5 + $0x90] sm:$0xff]
  %v8013 = vld [vmem:[%s5 + $0x98] sm:$0xff]
  %v8014 = vld [vmem:[%s5 + $0xa0] sm:$0xff]
  %v8015 = vld [vmem:[%s5 + $0xa8] sm:$0xff]
  %v8016 = vld [vmem:[%s5 + $0xb0] sm:$0xff]
  %v8017 = vld [vmem:[%s5 + $0xb8] sm:$0xff]
  %v8018 = vld [vmem:[%s5 + $0xc0] sm:$0xff]
  %v8019 = vld [vmem:[%s5 + $0xc8] sm:$0xff]
  %v8020 = vld [vmem:[%s5 + $0xd0] sm:$0xff]
  %v8021 = vld [vmem:[%s5 + $0xd8] sm:$0xff]
  %v8022 = vld [vmem:[%s5 + $0xe0] sm:$0xff]
  %v8023 = vld [vmem:[%s5 + $0xe8] sm:$0xff]
  %v8024 = vld [vmem:[%s5 + $0xf0] sm:$0xff]
  %v8025 = vld [vmem:[%s5 + $0xf8] sm:$0xff]
  %v8026 = vld [vmem:[%s5 + $0x100] sm:$0xff]
  %v8027 = vld [vmem:[%s5 + $0x108] sm:$0xff]
  %v8028 = vld [vmem:[%s5 + $0x110] sm:$0xff]
  %v8029 = vld [vmem:[%s5 + $0x118] sm:$0xff]
  %v8030 = vld [vmem:[%s5 + $0x120] sm:$0xff]
  %v8031 = vld [vmem:[%s5 + $0x128] sm:$0xff]
  %v8032 = vld [vmem:[%s5 + $0x130] sm:$0xff]
  %v8033 = vld [vmem:[%s5 + $0x138] sm:$0xff]
  %v8034 = vld [vmem:[%s5 + $0x140] sm:$0xff]
  %v8035 = vld [vmem:[%s5 + $0x148] sm:$0xff]
  %v8036 = vld [vmem:[%s5 + $0x150] sm:$0xff]
  %v8037 = vld [vmem:[%s5 + $0x158] sm:$0xff]
  %v8038 = vld [vmem:[%s5 + $0x160] sm:$0xff]
  %v8039 = vld [vmem:[%s5 + $0x168] sm:$0xff]
  %v8040 = vld [vmem:[%s5 + $0x170] sm:$0xff]
  %v8041 = vld [vmem:[%s5 + $0x178] sm:$0xff]
  %v8042 = vld [vmem:[%s5 + $0x180] sm:$0xff]
  %v8043 = vld [vmem:[%s5 + $0x188] sm:$0xff]
  %v8044 = vld [vmem:[%s5 + $0x190] sm:$0xff]
  %v8045 = vld [vmem:[%s5 + $0x198] sm:$0xff]
  %v8046 = vld [vmem:[%s5 + $0x1a0] sm:$0xff]
  %v8047 = vld [vmem:[%s5 + $0x1a8] sm:$0xff]
  %v8048 = vld [vmem:[%s5 + $0x1b0] sm:$0xff]
  %v8049 = vld [vmem:[%s5 + $0x1b8] sm:$0xff]
  %v8050 = vld [vmem:[%s5 + $0x1c0] sm:$0xff]
  %v8051 = vld [vmem:[%s5 + $0x1c8] sm:$0xff]
  %v8052 = vld [vmem:[%s5 + $0x1d0] sm:$0xff]
  %v8053 = vld [vmem:[%s5 + $0x1d8] sm:$0xff]
  %v8054 = vld [vmem:[%s5 + $0x1e0] sm:$0xff]
  %v8055 = vld [vmem:[%s5 + $0x1e8] sm:$0xff]
  %v8056 = vld [vmem:[%s5 + $0x1f0] sm:$0xff]
  %v8057 = vld [vmem:[%s5 + $0x1f8] sm:$0xff]
  %v8058 = vld [vmem:[%s5 + $0x200] sm:$0xff]
  %v8059 = vld [vmem:[%s5 + $0x208] sm:$0xff]
  %v8060 = vld [vmem:[%s5 + $0x210] sm:$0xff]
  %v8061 = vld [vmem:[%s5 + $0x218] sm:$0xff]
  %v8062 = vld [vmem:[%s5 + $0x220] sm:$0xff]
  %v8063 = vld [vmem:[%s5 + $0x228] sm:$0xff]
  %v8064 = vld [vmem:[%s5 + $0x230] sm:$0xff]
  %v8065 = vld [vmem:[%s5 + $0x238] sm:$0xff]
  %v8066 = vld [vmem:[%s5 + $0x240] sm:$0xff]
  %v8067 = vld [vmem:[%s5 + $0x248] sm:$0xff]
  %v8068 = vld [vmem:[%s5 + $0x250] sm:$0xff]
  %v8069 = vld [vmem:[%s5 + $0x258] sm:$0xff]
  %v8070 = vld [vmem:[%s5 + $0x260] sm:$0xff]
  %v8071 = vld [vmem:[%s5 + $0x268] sm:$0xff]
  %v8072 = vld [vmem:[%s5 + $0x270] sm:$0xff]
  %v8073 = vld [vmem:[%s5 + $0x278] sm:$0xff]
  %v8074 = vld [vmem:[%s5 + $0x280] sm:$0xff]
  %v8075 = vld [vmem:[%s5 + $0x288] sm:$0xff]
  %v8076 = vld [vmem:[%s5 + $0x290] sm:$0xff]
  %v8077 = vld [vmem:[%s5 + $0x298] sm:$0xff]
  %v8078 = vld [vmem:[%s5 + $0x2a0] sm:$0xff]
  %v8079 = vld [vmem:[%s5 + $0x2a8] sm:$0xff]
  %v8080 = vld [vmem:[%s5 + $0x2b0] sm:$0xff]
  %v8081 = vld [vmem:[%s5 + $0x2b8] sm:$0xff]
  %v8082 = vld [vmem:[%s5 + $0x2c0] sm:$0xff]
  %v8083 = vld [vmem:[%s5 + $0x2c8] sm:$0xff]
  %v8084 = vld [vmem:[%s5 + $0x2d0] sm:$0xff]
  %v8085 = vld [vmem:[%s5 + $0x2d8] sm:$0xff]
  %v8086 = vld [vmem:[%s5 + $0x2e0] sm:$0xff]
  %v8087 = vld [vmem:[%s5 + $0x2e8] sm:$0xff]
  %v8088 = vld [vmem:[%s5 + $0x2f0] sm:$0xff]
  %v8089 = vld [vmem:[%s5 + $0x2f8] sm:$0xff]
  %v8090 = vld [vmem:[%s5 + $0x300] sm:$0xff]
  %v8091 = vld [vmem:[%s5 + $0x308] sm:$0xff]
  %v8092 = vld [vmem:[%s5 + $0x310] sm:$0xff]
  %v8093 = vld [vmem:[%s5 + $0x318] sm:$0xff]
  %v8094 = vld [vmem:[%s5 + $0x320] sm:$0xff]
  %v8095 = vld [vmem:[%s5 + $0x328] sm:$0xff]
  %v8096 = vld [vmem:[%s5 + $0x330] sm:$0xff]
  %v8097 = vld [vmem:[%s5 + $0x338] sm:$0xff]
  %v8098 = vld [vmem:[%s5 + $0x340] sm:$0xff]
  %v8099 = vld [vmem:[%s5 + $0x348] sm:$0xff]
  %v8100 = vld [vmem:[%s5 + $0x350] sm:$0xff]
  %v8101 = vld [vmem:[%s5 + $0x358] sm:$0xff]
  %v8102 = vld [vmem:[%s5 + $0x360] sm:$0xff]
  %v8103 = vld [vmem:[%s5 + $0x368] sm:$0xff]
  %v8104 = vld [vmem:[%s5 + $0x370] sm:$0xff]
  %v8105 = vld [vmem:[%s5 + $0x378] sm:$0xff]
  %v8106 = vld [vmem:[%s5 + $0x380] sm:$0xff]
  %v8107 = vld [vmem:[%s5 + $0x388] sm:$0xff]
  %v8108 = vld [vmem:[%s5 + $0x390] sm:$0xff]
  %v8109 = vld [vmem:[%s5 + $0x398] sm:$0xff]
  %v8110 = vld [vmem:[%s5 + $0x3a0] sm:$0xff]
  %v8111 = vld [vmem:[%s5 + $0x3a8] sm:$0xff]
  %v8112 = vld [vmem:[%s5 + $0x3b0] sm:$0xff]
  %v8113 = vld [vmem:[%s5 + $0x3b8] sm:$0xff]
  %v8114 = vld [vmem:[%s5 + $0x3c0] sm:$0xff]
  %v8115 = vld [vmem:[%s5 + $0x3c8] sm:$0xff]
  %v8116 = vld [vmem:[%s5 + $0x3d0] sm:$0xff]
  %v8117 = vld [vmem:[%s5 + $0x3d8] sm:$0xff]
  %v8118 = vld [vmem:[%s5 + $0x3e0] sm:$0xff]
  %v8119 = vld [vmem:[%s5 + $0x3e8] sm:$0xff]
  %v8120 = vld [vmem:[%s5 + $0x3f0] sm:$0xff]
  %v8121 = vld [vmem:[%s5 + $0x3f8] sm:$0xff]
  %v8122 = vld [vmem:[%s5 + $0x400] sm:$0xff]
  %v8123 = vld [vmem:[%s5 + $0x408] sm:$0xff]
  %v8124 = vld [vmem:[%s5 + $0x410] sm:$0xff]
  %v8125 = vld [vmem:[%s5 + $0x418] sm:$0xff]
  %v8126 = vld [vmem:[%s5 + $0x420] sm:$0xff]
  %v8127 = vld [vmem:[%s5 + $0x428] sm:$0xff]
  %v8128 = vld [vmem:[%s5 + $0x430] sm:$0xff]
  %v8129 = vld [vmem:[%s5 + $0x438] sm:$0xff]
  %v8130 = vld [vmem:[%s5 + $0x440] sm:$0xff]
  %v8131 = vld [vmem:[%s5 + $0x448] sm:$0xff]
  %v8132 = vld [vmem:[%s5 + $0x450] sm:$0xff]
  %v8133 = vld [vmem:[%s5 + $0x458] sm:$0xff]
  %v8134 = vld [vmem:[%s5 + $0x460] sm:$0xff]
  %v8135 = vld [vmem:[%s5 + $0x468] sm:$0xff]
  %v8136 = vld [vmem:[%s5 + $0x470] sm:$0xff]
  %v8137 = vld [vmem:[%s5 + $0x478] sm:$0xff]
  %v8138 = vld [vmem:[%s5 + $0x480] sm:$0xff]
  %v8139 = vld [vmem:[%s5 + $0x488] sm:$0xff]
  %v8140 = vld [vmem:[%s5 + $0x490] sm:$0xff]
  %v8141 = vld [vmem:[%s5 + $0x498] sm:$0xff]
  %v8142 = vld [vmem:[%s5 + $0x4a0] sm:$0xff]
  %v8143 = vld [vmem:[%s5 + $0x4a8] sm:$0xff]
  %v8144 = vld [vmem:[%s5 + $0x4b0] sm:$0xff]
  %v8145 = vld [vmem:[%s5 + $0x4b8] sm:$0xff]
  %v8146 = vld [vmem:[%s5 + $0x4c0] sm:$0xff]
  %v8147 = vld [vmem:[%s5 + $0x4c8] sm:$0xff]
  %v8148 = vld [vmem:[%s5 + $0x4d0] sm:$0xff]
  %v8149 = vld [vmem:[%s5 + $0x4d8] sm:$0xff]
  %v8150 = vld [vmem:[%s5 + $0x4e0] sm:$0xff]
  %v8151 = vld [vmem:[%s5 + $0x4e8] sm:$0xff]
  %v8152 = vld [vmem:[%s5 + $0x4f0] sm:$0xff]
  %v8153 = vld [vmem:[%s5 + $0x4f8] sm:$0xff]
  %v8154 = vld [vmem:[%s5 + $0x500] sm:$0xff]
  %v8155 = vld [vmem:[%s5 + $0x508] sm:$0xff]
  %v8156 = vld [vmem:[%s5 + $0x510] sm:$0xff]
  %v8157 = vld [vmem:[%s5 + $0x518] sm:$0xff]
  %v8158 = vld [vmem:[%s5 + $0x520] sm:$0xff]
  %v8159 = vld [vmem:[%s5 + $0x528] sm:$0xff]
  %v8160 = vld [vmem:[%s5 + $0x530] sm:$0xff]
  %v8161 = vld [vmem:[%s5 + $0x538] sm:$0xff]
  %v8162 = vld [vmem:[%s5 + $0x540] sm:$0xff]
  %v8163 = vld [vmem:[%s5 + $0x548] sm:$0xff]
  %v8164 = vld [vmem:[%s5 + $0x550] sm:$0xff]
  %v8165 = vld [vmem:[%s5 + $0x558] sm:$0xff]
  %v8166 = vld [vmem:[%s5 + $0x560] sm:$0xff]
  %v8167 = vld [vmem:[%s5 + $0x568] sm:$0xff]
  %v8168 = vld [vmem:[%s5 + $0x570] sm:$0xff]
  %v8169 = vld [vmem:[%s5 + $0x578] sm:$0xff]
  %v8170 = vld [vmem:[%s5 + $0x580] sm:$0xff]
  %v8171 = vld [vmem:[%s5 + $0x588] sm:$0xff]
  %v8172 = vld [vmem:[%s5 + $0x590] sm:$0xff]
  %v8173 = vld [vmem:[%s5 + $0x598] sm:$0xff]
  %v8174 = vld [vmem:[%s5 + $0x5a0] sm:$0xff]
  %v8175 = vld [vmem:[%s5 + $0x5a8] sm:$0xff]
  %v8176 = vld [vmem:[%s5 + $0x5b0] sm:$0xff]
  %v8177 = vld [vmem:[%s5 + $0x5b8] sm:$0xff]
  %v8178 = vld [vmem:[%s5 + $0x5c0] sm:$0xff]
  %v8179 = vld [vmem:[%s5 + $0x5c8] sm:$0xff]
  %v8180 = vld [vmem:[%s5 + $0x5d0] sm:$0xff]
  %v8181 = vld [vmem:[%s5 + $0x5d8] sm:$0xff]
  %v8182 = vld [vmem:[%s5 + $0x5e0] sm:$0xff]
  %v8183 = vld [vmem:[%s5 + $0x5e8] sm:$0xff]
  %v8184 = vld [vmem:[%s5 + $0x5f0] sm:$0xff]
  %v8185 = vld [vmem:[%s5 + $0x5f8] sm:$0xff]
  %v8186 = vld [vmem:[%s6] sm:$0x3f]
  %v8188 = vlaneseq
  %v8189 = vshrl.u32 %v8188, 7
  %v8190 = vsub.s32 0, %v8189
  %v8191 = vrot.slane %v8186, %v8190
  %v8192 = vlaneseq
  %v8193 = vshrl.u32 %v8192, 7
  %v8194 = vsub.s32 1, %v8193
  %v8195 = vrot.slane %v8186, %v8194
  %v8196 = vlaneseq
  %v8197 = vshrl.u32 %v8196, 7
  %v8198 = vsub.s32 2, %v8197
  %v8199 = vrot.slane %v8186, %v8198
  %v8200 = vlaneseq
  %v8201 = vshrl.u32 %v8200, 7
  %v8202 = vsub.s32 3, %v8201
  %v8203 = vrot.slane %v8186, %v8202
  %v8204 = vlaneseq
  %v8205 = vshrl.u32 %v8204, 7
  %v8206 = vsub.s32 4, %v8205
  %v8207 = vrot.slane %v8186, %v8206
  %v8208 = vlaneseq
  %v8209 = vshrl.u32 %v8208, 7
  %v8210 = vsub.s32 5, %v8209
  %v8211 = vrot.slane %v8186, %v8210
  %8218 = vmatprep.subr.mxu0 %v7995
  %8219 = vmatpush1.msra.mxu0 %v7994
  %8220 = vmatprep.subr.mxu0 %v8001
  %8221 = vmatpush1.msra.mxu0 %v8000
  %8222 = vmatprep.subr.mxu0 %v8007
  %8223 = vmatpush1.msra.mxu0 %v8006
  %8224 = vmatprep.subr.mxu0 %v8013
  %8225 = vmatpush1.msra.mxu0 %v8012
  %8226 = vmatprep.subr.mxu0 %v8019
  %8227 = vmatpush1.msra.mxu0 %v8018
  %8228 = vmatprep.subr.mxu0 %v8025
  %8229 = vmatpush1.msra.mxu0 %v8024
  %8230 = vmatprep.subr.mxu0 %v8031
  %8231 = vmatpush1.msra.mxu0 %v8030
  %8232 = vmatprep.subr.mxu0 %v8037
  %8233 = vmatpush1.msra.mxu0 %v8036
  %8234 = vmatprep.subr.mxu0 %v8043
  %8235 = vmatpush1.msra.mxu0 %v8042
  %8236 = vmatprep.subr.mxu0 %v8049
  %8237 = vmatpush1.msra.mxu0 %v8048
  %8238 = vmatprep.subr.mxu0 %v8055
  %8239 = vmatpush1.msra.mxu0 %v8054
  %8240 = vmatprep.subr.mxu0 %v8061
  %8241 = vmatpush1.msra.mxu0 %v8060
  %8242 = vmatprep.subr.mxu0 %v8067
  %8243 = vmatpush1.msra.mxu0 %v8066
  %8244 = vmatprep.subr.mxu0 %v8073
  %8245 = vmatpush1.msra.mxu0 %v8072
  %8246 = vmatprep.subr.mxu0 %v8079
  %8247 = vmatpush1.msra.mxu0 %v8078
  %8248 = vmatprep.subr.mxu0 %v8085
  %8249 = vmatpush1.msra.mxu0 %v8084
  %8250 = vmatprep.subr.mxu0 %v8091
  %8251 = vmatpush1.msra.mxu0 %v8090
  %8252 = vmatprep.subr.mxu0 %v8097
  %8253 = vmatpush1.msra.mxu0 %v8096
  %8254 = vmatprep.subr.mxu0 %v8103
  %8255 = vmatpush1.msra.mxu0 %v8102
  %8256 = vmatprep.subr.mxu0 %v8109
  %8257 = vmatpush1.msra.mxu0 %v8108
  %8258 = vmatprep.subr.mxu0 %v8115
  %8259 = vmatpush1.msra.mxu0 %v8114
  %8260 = vmatprep.subr.mxu0 %v8121
  %8261 = vmatpush1.msra.mxu0 %v8120
  %8262 = vmatprep.subr.mxu0 %v8127
  %8263 = vmatpush1.msra.mxu0 %v8126
  %8264 = vmatprep.subr.mxu0 %v8133
  %8265 = vmatpush1.msra.mxu0 %v8132
  %8266 = vmatprep.subr.mxu0 %v8139
  %8267 = vmatpush1.msra.mxu0 %v8138
  %8268 = vmatprep.subr.mxu0 %v8145
  %8269 = vmatpush1.msra.mxu0 %v8144
  %8270 = vmatprep.subr.mxu0 %v8151
  %8271 = vmatpush1.msra.mxu0 %v8150
  %8272 = vmatprep.subr.mxu0 %v8157
  %8273 = vmatpush1.msra.mxu0 %v8156
  %8274 = vmatprep.subr.mxu0 %v8163
  %8275 = vmatpush1.msra.mxu0 %v8162
  %8276 = vmatprep.subr.mxu0 %v8169
  %8277 = vmatpush1.msra.mxu0 %v8168
  %8278 = vmatprep.subr.mxu0 %v8175
  %8279 = vmatpush1.msra.mxu0 %v8174
  %8280 = vmatprep.subr.mxu0 %v8181
  %8281 = vmatpush1.msra.mxu0 %v8180
  %8282 = vmatprep.mubr.f32.mxu0 %v7309
  %8283 = vmatmul.mubr.f32.gmra.mrb[0].mxu0 %v7308
  %v8284 = vpop.f32.mrb[0].mxu0
  %v8285 = vadd.f32 %v8191, %v8284
  %v8286 = vpop.f32.mrb[0].mxu0
  %v8287 = vadd.f32 %v8195, %v8286
  %8288 = vmatprep.mubr.f32.mxu0 %v7311
  %8289 = vmatmul.mubr.f32.gmra.mrb[0].mxu0 %v7310
  %v8290 = vpop.f32.mrb[0].mxu0
  %v8291 = vadd.f32 %v8191, %v8290
  %v8292 = vpop.f32.mrb[0].mxu0
  %v8293 = vadd.f32 %v8195, %v8292
  %8294 = vmatprep.mubr.f32.mxu0 %v7313
  %8295 = vmatmul.mubr.f32.gmra.mrb[0].mxu0 %v7312
  %v8296 = vpop.f32.mrb[0].mxu0
  %v8297 = vadd.f32 %v8191, %v8296
  %v8298 = vpop.f32.mrb[0].mxu0
  %v8299 = vadd.f32 %v8195, %v8298
  %8300 = vmatprep.mubr.f32.mxu0 %v7315
  %8301 = vmatmul.mubr.f32.gmra.mrb[0].mxu0 %v7314
  %v8302 = vpop.f32.mrb[0].mxu0
  %v8303 = vadd.f32 %v8191, %v8302
  %v8304 = vpop.f32.mrb[0].mxu0
  %v8305 = vadd.f32 %v8195, %v8304
  %8306 = vdwg.mxu0
  %8307 = vmatprep.subr.mxu0 %v7997
  %8308 = vmatpush1.msra.mxu0 %v7996
  %8309 = vmatprep.subr.mxu0 %v8003
  %8310 = vmatpush1.msra.mxu0 %v8002
  %8311 = vmatprep.subr.mxu0 %v8009
  %8312 = vmatpush1.msra.mxu0 %v8008
  %8313 = vmatprep.subr.mxu0 %v8015
  %8314 = vmatpush1.msra.mxu0 %v8014
  %8315 = vmatprep.subr.mxu0 %v8021
  %8316 = vmatpush1.msra.mxu0 %v8020
  %8317 = vmatprep.subr.mxu0 %v8027
  %8318 = vmatpush1.msra.mxu0 %v8026
  %8319 = vmatprep.subr.mxu0 %v8033
  %8320 = vmatpush1.msra.mxu0 %v8032
  %8321 = vmatprep.subr.mxu0 %v8039
  %8322 = vmatpush1.msra.mxu0 %v8038
  %8323 = vmatprep.subr.mxu0 %v8045
  %8324 = vmatpush1.msra.mxu0 %v8044
  %8325 = vmatprep.subr.mxu0 %v8051
  %8326 = vmatpush1.msra.mxu0 %v8050
  %8327 = vmatprep.subr.mxu0 %v8057
  %8328 = vmatpush1.msra.mxu0 %v8056
  %8329 = vmatprep.subr.mxu0 %v8063
  %8330 = vmatpush1.msra.mxu0 %v8062
  %8331 = vmatprep.subr.mxu0 %v8069
  %8332 = vmatpush1.msra.mxu0 %v8068
  %8333 = vmatprep.subr.mxu0 %v8075
  %8334 = vmatpush1.msra.mxu0 %v8074
  %8335 = vmatprep.subr.mxu0 %v8081
  %8336 = vmatpush1.msra.mxu0 %v8080
  %8337 = vmatprep.subr.mxu0 %v8087
  %8338 = vmatpush1.msra.mxu0 %v8086
  %8339 = vmatprep.subr.mxu0 %v8093
  %8340 = vmatpush1.msra.mxu0 %v8092
  %8341 = vmatprep.subr.mxu0 %v8099
  %8342 = vmatpush1.msra.mxu0 %v8098
  %8343 = vmatprep.subr.mxu0 %v8105
  %8344 = vmatpush1.msra.mxu0 %v8104
  %8345 = vmatprep.subr.mxu0 %v8111
  %8346 = vmatpush1.msra.mxu0 %v8110
  %8347 = vmatprep.subr.mxu0 %v8117
  %8348 = vmatpush1.msra.mxu0 %v8116
  %8349 = vmatprep.subr.mxu0 %v8123
  %8350 = vmatpush1.msra.mxu0 %v8122
  %8351 = vmatprep.subr.mxu0 %v8129
  %8352 = vmatpush1.msra.mxu0 %v8128
  %8353 = vmatprep.subr.mxu0 %v8135
  %8354 = vmatpush1.msra.mxu0 %v8134
  %8355 = vmatprep.subr.mxu0 %v8141
  %8356 = vmatpush1.msra.mxu0 %v8140
  %8357 = vmatprep.subr.mxu0 %v8147
  %8358 = vmatpush1.msra.mxu0 %v8146
  %8359 = vmatprep.subr.mxu0 %v8153
  %8360 = vmatpush1.msra.mxu0 %v8152
  %8361 = vmatprep.subr.mxu0 %v8159
  %8362 = vmatpush1.msra.mxu0 %v8158
  %8363 = vmatprep.subr.mxu0 %v8165
  %8364 = vmatpush1.msra.mxu0 %v8164
  %8365 = vmatprep.subr.mxu0 %v8171
  %8366 = vmatpush1.msra.mxu0 %v8170
  %8367 = vmatprep.subr.mxu0 %v8177
  %8368 = vmatpush1.msra.mxu0 %v8176
  %8369 = vmatprep.subr.mxu0 %v8183
  %8370 = vmatpush1.msra.mxu0 %v8182
  %8371 = vmatprep.mubr.f32.mxu0 %v7309
  %8372 = vmatmul.mubr.f32.gmra.mrb[0].mxu0 %v7308
  %v8373 = vpop.f32.mrb[0].mxu0
  %v8374 = vadd.f32 %v8199, %v8373
  %v8375 = vpop.f32.mrb[0].mxu0
  %v8376 = vadd.f32 %v8203, %v8375
  %8377 = vmatprep.mubr.f32.mxu0 %v7311
  %8378 = vmatmul.mubr.f32.gmra.mrb[0].mxu0 %v7310
  %v8379 = vpop.f32.mrb[0].mxu0
  %v8380 = vadd.f32 %v8199, %v8379
  %v8381 = vpop.f32.mrb[0].mxu0
  %v8382 = vadd.f32 %v8203, %v8381
  %8383 = vmatprep.mubr.f32.mxu0 %v7313
  %8384 = vmatmul.mubr.f32.gmra.mrb[0].mxu0 %v7312
  %v8385 = vpop.f32.mrb[0].mxu0
  %v8386 = vadd.f32 %v8199, %v8385
  %v8387 = vpop.f32.mrb[0].mxu0
  %v8388 = vadd.f32 %v8203, %v8387
  %8389 = vmatprep.mubr.f32.mxu0 %v7315
  %8390 = vmatmul.mubr.f32.gmra.mrb[0].mxu0 %v7314
  %v8391 = vpop.f32.mrb[0].mxu0
  %v8392 = vadd.f32 %v8199, %v8391
  %v8393 = vpop.f32.mrb[0].mxu0
  %v8394 = vadd.f32 %v8203, %v8393
  %8395 = vdwg.mxu0
  %8396 = vmatprep.subr.mxu0 %v7999
  %8397 = vmatpush1.msra.mxu0 %v7998
  %8398 = vmatprep.subr.mxu0 %v8005
  %8399 = vmatpush1.msra.mxu0 %v8004
  %8400 = vmatprep.subr.mxu0 %v8011
  %8401 = vmatpush1.msra.mxu0 %v8010
  %8402 = vmatprep.subr.mxu0 %v8017
  %8403 = vmatpush1.msra.mxu0 %v8016
  %8404 = vmatprep.subr.mxu0 %v8023
  %8405 = vmatpush1.msra.mxu0 %v8022
  %8406 = vmatprep.subr.mxu0 %v8029
  %8407 = vmatpush1.msra.mxu0 %v8028
  %8408 = vmatprep.subr.mxu0 %v8035
  %8409 = vmatpush1.msra.mxu0 %v8034
  %8410 = vmatprep.subr.mxu0 %v8041
  %8411 = vmatpush1.msra.mxu0 %v8040
  %8412 = vmatprep.subr.mxu0 %v8047
  %8413 = vmatpush1.msra.mxu0 %v8046
  %8414 = vmatprep.subr.mxu0 %v8053
  %8415 = vmatpush1.msra.mxu0 %v8052
  %8416 = vmatprep.subr.mxu0 %v8059
  %8417 = vmatpush1.msra.mxu0 %v8058
  %8418 = vmatprep.subr.mxu0 %v8065
  %8419 = vmatpush1.msra.mxu0 %v8064
  %8420 = vmatprep.subr.mxu0 %v8071
  %8421 = vmatpush1.msra.mxu0 %v8070
  %8422 = vmatprep.subr.mxu0 %v8077
  %8423 = vmatpush1.msra.mxu0 %v8076
  %8424 = vmatprep.subr.mxu0 %v8083
  %8425 = vmatpush1.msra.mxu0 %v8082
  %8426 = vmatprep.subr.mxu0 %v8089
  %8427 = vmatpush1.msra.mxu0 %v8088
  %8428 = vmatprep.subr.mxu0 %v8095
  %8429 = vmatpush1.msra.mxu0 %v8094
  %8430 = vmatprep.subr.mxu0 %v8101
  %8431 = vmatpush1.msra.mxu0 %v8100
  %8432 = vmatprep.subr.mxu0 %v8107
  %8433 = vmatpush1.msra.mxu0 %v8106
  %8434 = vmatprep.subr.mxu0 %v8113
  %8435 = vmatpush1.msra.mxu0 %v8112
  %8436 = vmatprep.subr.mxu0 %v8119
  %8437 = vmatpush1.msra.mxu0 %v8118
  %8438 = vmatprep.subr.mxu0 %v8125
  %8439 = vmatpush1.msra.mxu0 %v8124
  %8440 = vmatprep.subr.mxu0 %v8131
  %8441 = vmatpush1.msra.mxu0 %v8130
  %8442 = vmatprep.subr.mxu0 %v8137
  %8443 = vmatpush1.msra.mxu0 %v8136
  %8444 = vmatprep.subr.mxu0 %v8143
  %8445 = vmatpush1.msra.mxu0 %v8142
  %8446 = vmatprep.subr.mxu0 %v8149
  %8447 = vmatpush1.msra.mxu0 %v8148
  %8448 = vmatprep.subr.mxu0 %v8155
  %8449 = vmatpush1.msra.mxu0 %v8154
  %8450 = vmatprep.subr.mxu0 %v8161
  %8451 = vmatpush1.msra.mxu0 %v8160
  %8452 = vmatprep.subr.mxu0 %v8167
  %8453 = vmatpush1.msra.mxu0 %v8166
  %8454 = vmatprep.subr.mxu0 %v8173
  %8455 = vmatpush1.msra.mxu0 %v8172
  %8456 = vmatprep.subr.mxu0 %v8179
  %8457 = vmatpush1.msra.mxu0 %v8178
  %8458 = vmatprep.subr.mxu0 %v8185
  %8459 = vmatpush1.msra.mxu0 %v8184
  %8460 = vmatprep.mubr.f32.mxu0 %v7309
  %8461 = vmatmul.mubr.f32.gmra.mrb[0].mxu0 %v7308
  %v8462 = vpop.f32.mrb[0].mxu0
  %v8463 = vadd.f32 %v8207, %v8462
  %v8464 = vpop.f32.mrb[0].mxu0
  %v8465 = vadd.f32 %v8211, %v8464
  %8466 = vmatprep.mubr.f32.mxu0 %v7311
  %8467 = vmatmul.mubr.f32.gmra.mrb[0].mxu0 %v7310
  %v8468 = vpop.f32.mrb[0].mxu0
  %v8469 = vadd.f32 %v8207, %v8468
  %v8470 = vpop.f32.mrb[0].mxu0
  %v8471 = vadd.f32 %v8211, %v8470
  %8472 = vmatprep.mubr.f32.mxu0 %v7313
  %8473 = vmatmul.mubr.f32.gmra.mrb[0].mxu0 %v7312
  %v8474 = vpop.f32.mrb[0].mxu0
  %v8475 = vadd.f32 %v8207, %v8474
  %v8476 = vpop.f32.mrb[0].mxu0
  %v8477 = vadd.f32 %v8211, %v8476
  %8478 = vmatprep.mubr.f32.mxu0 %v7315
  %8479 = vmatmul.mubr.f32.gmra.mrb[0].mxu0 %v7314
  %v8480 = vpop.f32.mrb[0].mxu0
  %v8481 = vadd.f32 %v8207, %v8480
  %v8482 = vpop.f32.mrb[0].mxu0
  %v8483 = vadd.f32 %v8211, %v8482
  %8484 = vdwg.mxu0
  %v8485 = vadd.f32 %v7970, %v8285
  %v8486 = vadd.f32 %v7971, %v8287
  %v8487 = vadd.f32 %v7976, %v8291
  %v8488 = vadd.f32 %v7977, %v8293
  %v8489 = vadd.f32 %v7982, %v8297
  %v8490 = vadd.f32 %v7983, %v8299
  %v8491 = vadd.f32 %v7988, %v8303
  %v8492 = vadd.f32 %v7989, %v8305
  %v8493 = vxor.u32 %v8485, 2147483648
  %v8494 = vxor.u32 %v8486, 2147483648
  %v8495 = vxor.u32 %v8487, 2147483648
  %v8496 = vxor.u32 %v8488, 2147483648
  %v8497 = vxor.u32 %v8489, 2147483648
  %v8498 = vxor.u32 %v8490, 2147483648
  %v8499 = vxor.u32 %v8491, 2147483648
  %v8500 = vxor.u32 %v8492, 2147483648
  %v8501 = vmul.f32 %v8493, 1.442695
  %v8502 = vpow.pop %v8501
  %v8503 = vmul.f32 %v8494, 1.442695
  %v8504 = vpow.pop %v8503
  %v8505 = vmul.f32 %v8495, 1.442695
  %v8506 = vpow.pop %v8505
  %v8507 = vmul.f32 %v8496, 1.442695
  %v8508 = vpow.pop %v8507
  %v8509 = vmul.f32 %v8497, 1.442695
  %v8510 = vpow.pop %v8509
  %v8511 = vmul.f32 %v8498, 1.442695
  %v8512 = vpow.pop %v8511
  %v8513 = vmul.f32 %v8499, 1.442695
  %v8514 = vpow.pop %v8513
  %v8515 = vmul.f32 %v8500, 1.442695
  %v8516 = vpow.pop %v8515
  %v8517 = vadd.f32 %v8502, 1.0
  %v8518 = vadd.f32 %v8504, 1.0
  %v8519 = vadd.f32 %v8506, 1.0
  %v8520 = vadd.f32 %v8508, 1.0
  %v8521 = vadd.f32 %v8510, 1.0
  %v8522 = vadd.f32 %v8512, 1.0
  %v8523 = vadd.f32 %v8514, 1.0
  %v8524 = vadd.f32 %v8516, 1.0
  %v8525 = vrcp.pop %v8517
  %v8526 = vmul.f32 1.0, %v8525
  %v8527 = vrcp.pop %v8518
  %v8528 = vmul.f32 1.0, %v8527
  %v8529 = vrcp.pop %v8519
  %v8530 = vmul.f32 1.0, %v8529
  %v8531 = vrcp.pop %v8520
  %v8532 = vmul.f32 1.0, %v8531
  %v8533 = vrcp.pop %v8521
  %v8534 = vmul.f32 1.0, %v8533
  %v8535 = vrcp.pop %v8522
  %v8536 = vmul.f32 1.0, %v8535
  %v8537 = vrcp.pop %v8523
  %v8538 = vmul.f32 1.0, %v8537
  %v8539 = vrcp.pop %v8524
  %v8540 = vmul.f32 1.0, %v8539
  %v8541 = vadd.f32 %v7972, %v8374
  %v8542 = vadd.f32 %v7973, %v8376
  %v8543 = vadd.f32 %v7978, %v8380
  %v8544 = vadd.f32 %v7979, %v8382
  %v8545 = vadd.f32 %v7984, %v8386
  %v8546 = vadd.f32 %v7985, %v8388
  %v8547 = vadd.f32 %v7990, %v8392
  %v8548 = vadd.f32 %v7991, %v8394
  %v8549 = vxor.u32 %v8541, 2147483648
  %v8550 = vxor.u32 %v8542, 2147483648
  %v8551 = vxor.u32 %v8543, 2147483648
  %v8552 = vxor.u32 %v8544, 2147483648
  %v8553 = vxor.u32 %v8545, 2147483648
  %v8554 = vxor.u32 %v8546, 2147483648
  %v8555 = vxor.u32 %v8547, 2147483648
  %v8556 = vxor.u32 %v8548, 2147483648
  %v8557 = vmul.f32 %v8549, 1.442695
  %v8558 = vpow.pop %v8557
  %v8559 = vmul.f32 %v8550, 1.442695
  %v8560 = vpow.pop %v8559
  %v8561 = vmul.f32 %v8551, 1.442695
  %v8562 = vpow.pop %v8561
  %v8563 = vmul.f32 %v8552, 1.442695
  %v8564 = vpow.pop %v8563
  %v8565 = vmul.f32 %v8553, 1.442695
  %v8566 = vpow.pop %v8565
  %v8567 = vmul.f32 %v8554, 1.442695
  %v8568 = vpow.pop %v8567
  %v8569 = vmul.f32 %v8555, 1.442695
  %v8570 = vpow.pop %v8569
  %v8571 = vmul.f32 %v8556, 1.442695
  %v8572 = vpow.pop %v8571
  %v8573 = vadd.f32 %v8558, 1.0
  %v8574 = vadd.f32 %v8560, 1.0
  %v8575 = vadd.f32 %v8562, 1.0
  %v8576 = vadd.f32 %v8564, 1.0
  %v8577 = vadd.f32 %v8566, 1.0
  %v8578 = vadd.f32 %v8568, 1.0
  %v8579 = vadd.f32 %v8570, 1.0
  %v8580 = vadd.f32 %v8572, 1.0
  %v8581 = vrcp.pop %v8573
  %v8582 = vmul.f32 1.0, %v8581
  %v8583 = vrcp.pop %v8574
  %v8584 = vmul.f32 1.0, %v8583
  %v8585 = vrcp.pop %v8575
  %v8586 = vmul.f32 1.0, %v8585
  %v8587 = vrcp.pop %v8576
  %v8588 = vmul.f32 1.0, %v8587
  %v8589 = vrcp.pop %v8577
  %v8590 = vmul.f32 1.0, %v8589
  %v8591 = vrcp.pop %v8578
  %v8592 = vmul.f32 1.0, %v8591
  %v8593 = vrcp.pop %v8579
  %v8594 = vmul.f32 1.0, %v8593
  %v8595 = vrcp.pop %v8580
  %v8596 = vmul.f32 1.0, %v8595
  %v8597 = vmul.f32 %v8526, %v8463
  %v8598 = vmul.f32 %v8528, %v8465
  %v8599 = vmul.f32 %v8530, %v8469
  %v8600 = vmul.f32 %v8532, %v8471
  %v8601 = vmul.f32 %v8534, %v8475
  %v8602 = vmul.f32 %v8536, %v8477
  %v8603 = vmul.f32 %v8538, %v8481
  %v8604 = vmul.f32 %v8540, %v8483
  %v8605 = vadd.f32 %v7974, %v8597
  %v8606 = vadd.f32 %v7975, %v8598
  %v8607 = vadd.f32 %v7980, %v8599
  %v8608 = vadd.f32 %v7981, %v8600
  %v8609 = vadd.f32 %v7986, %v8601
  %v8610 = vadd.f32 %v7987, %v8602
  %v8611 = vadd.f32 %v7992, %v8603
  %v8612 = vadd.f32 %v7993, %v8604
  %v8613 = vtanh.pop %v8605
  %v8614 = vtanh.pop %v8606
  %v8615 = vtanh.pop %v8607
  %v8616 = vtanh.pop %v8608
  %v8617 = vtanh.pop %v8609
  %v8618 = vtanh.pop %v8610
  %v8619 = vtanh.pop %v8611
  %v8620 = vtanh.pop %v8612
  %v8621 = vsub.f32 1.0, %v8582
  %v8622 = vsub.f32 1.0, %v8584
  %v8623 = vsub.f32 1.0, %v8586
  %v8624 = vsub.f32 1.0, %v8588
  %v8625 = vsub.f32 1.0, %v8590
  %v8626 = vsub.f32 1.0, %v8592
  %v8627 = vsub.f32 1.0, %v8594
  %v8628 = vsub.f32 1.0, %v8596
  %v8629 = vmul.f32 %v8621, %v8613
  %v8630 = vmul.f32 %v8622, %v8614
  %v8631 = vmul.f32 %v8623, %v8615
  %v8632 = vmul.f32 %v8624, %v8616
  %v8633 = vmul.f32 %v8625, %v8617
  %v8634 = vmul.f32 %v8626, %v8618
  %v8635 = vmul.f32 %v8627, %v8619
  %v8636 = vmul.f32 %v8628, %v8620
  %v8637 = vmul.f32 %v8582, %v7308
  %v8638 = vmul.f32 %v8584, %v7309
  %v8639 = vmul.f32 %v8586, %v7310
  %v8640 = vmul.f32 %v8588, %v7311
  %v8641 = vmul.f32 %v8590, %v7312
  %v8642 = vmul.f32 %v8592, %v7313
  %v8643 = vmul.f32 %v8594, %v7314
  %v8644 = vmul.f32 %v8596, %v7315
  %v8645 = vadd.f32 %v8629, %v8637
  %v8646 = vadd.f32 %v8630, %v8638
  %v8647 = vadd.f32 %v8631, %v8639
  %v8648 = vadd.f32 %v8632, %v8640
  %v8649 = vadd.f32 %v8633, %v8641
  %v8650 = vadd.f32 %v8634, %v8642
  %v8651 = vadd.f32 %v8635, %v8643
  %v8652 = vadd.f32 %v8636, %v8644
  %v8653 = vld [vmem:[%s8] sm:$0xff]
  %v8654 = vld [vmem:[%s8 + $0x8] sm:$0xff]
  %v8655 = vld [vmem:[%s8 + $0x10] sm:$0xff]
  %v8656 = vld [vmem:[%s8 + $0x18] sm:$0xff]
  %v8657 = vld [vmem:[%s8 + $0x20] sm:$0xff]
  %v8658 = vld [vmem:[%s8 + $0x28] sm:$0xff]
  %v8659 = vld [vmem:[%s8 + $0x30] sm:$0xff]
  %v8660 = vld [vmem:[%s8 + $0x38] sm:$0xff]
  %v8661 = vld [vmem:[%s8 + $0x40] sm:$0xff]
  %v8662 = vld [vmem:[%s8 + $0x48] sm:$0xff]
  %v8663 = vld [vmem:[%s8 + $0x50] sm:$0xff]
  %v8664 = vld [vmem:[%s8 + $0x58] sm:$0xff]
  %v8665 = vld [vmem:[%s8 + $0x60] sm:$0xff]
  %v8666 = vld [vmem:[%s8 + $0x68] sm:$0xff]
  %v8667 = vld [vmem:[%s8 + $0x70] sm:$0xff]
  %v8668 = vld [vmem:[%s8 + $0x78] sm:$0xff]
  %v8669 = vld [vmem:[%s8 + $0x80] sm:$0xff]
  %v8670 = vld [vmem:[%s8 + $0x88] sm:$0xff]
  %v8671 = vld [vmem:[%s8 + $0x90] sm:$0xff]
  %v8672 = vld [vmem:[%s8 + $0x98] sm:$0xff]
  %v8673 = vld [vmem:[%s8 + $0xa0] sm:$0xff]
  %v8674 = vld [vmem:[%s8 + $0xa8] sm:$0xff]
  %v8675 = vld [vmem:[%s8 + $0xb0] sm:$0xff]
  %v8676 = vld [vmem:[%s8 + $0xb8] sm:$0xff]
  %v8677 = vld [vmem:[%s8 + $0xc0] sm:$0xff]
  %v8678 = vld [vmem:[%s8 + $0xc8] sm:$0xff]
  %v8679 = vld [vmem:[%s8 + $0xd0] sm:$0xff]
  %v8680 = vld [vmem:[%s8 + $0xd8] sm:$0xff]
  %v8681 = vld [vmem:[%s8 + $0xe0] sm:$0xff]
  %v8682 = vld [vmem:[%s8 + $0xe8] sm:$0xff]
  %v8683 = vld [vmem:[%s8 + $0xf0] sm:$0xff]
  %v8684 = vld [vmem:[%s8 + $0xf8] sm:$0xff]
  %v8685 = vld [vmem:[%s9] sm:$0x1]
  %v8687 = vlaneseq
  %v8688 = vshrl.u32 %v8687, 7
  %v8689 = vsub.s32 0, %v8688
  %v8690 = vrot.slane %v8685, %v8689
  %8692 = vmatprep.subr.mxu0 0.0
  %8693 = vmatpush1.msra.mxu0 %v8653
  %8694 = vmatprep.subr.mxu0 0.0
  %8695 = vmatpush1.msra.mxu0 %v8654
  %8696 = vmatprep.subr.mxu0 0.0
  %8697 = vmatpush1.msra.mxu0 %v8655
  %8698 = vmatprep.subr.mxu0 0.0
  %8699 = vmatpush1.msra.mxu0 %v8656
  %8700 = vmatprep.subr.mxu0 0.0
  %8701 = vmatpush1.msra.mxu0 %v8657
  %8702 = vmatprep.subr.mxu0 0.0
  %8703 = vmatpush1.msra.mxu0 %v8658
  %8704 = vmatprep.subr.mxu0 0.0
  %8705 = vmatpush1.msra.mxu0 %v8659
  %8706 = vmatprep.subr.mxu0 0.0
  %8707 = vmatpush1.msra.mxu0 %v8660
  %8708 = vmatprep.subr.mxu0 0.0
  %8709 = vmatpush1.msra.mxu0 %v8661
  %8710 = vmatprep.subr.mxu0 0.0
  %8711 = vmatpush1.msra.mxu0 %v8662
  %8712 = vmatprep.subr.mxu0 0.0
  %8713 = vmatpush1.msra.mxu0 %v8663
  %8714 = vmatprep.subr.mxu0 0.0
  %8715 = vmatpush1.msra.mxu0 %v8664
  %8716 = vmatprep.subr.mxu0 0.0
  %8717 = vmatpush1.msra.mxu0 %v8665
  %8718 = vmatprep.subr.mxu0 0.0
  %8719 = vmatpush1.msra.mxu0 %v8666
  %8720 = vmatprep.subr.mxu0 0.0
  %8721 = vmatpush1.msra.mxu0 %v8667
  %8722 = vmatprep.subr.mxu0 0.0
  %8723 = vmatpush1.msra.mxu0 %v8668
  %8724 = vmatprep.subr.mxu0 0.0
  %8725 = vmatpush1.msra.mxu0 %v8669
  %8726 = vmatprep.subr.mxu0 0.0
  %8727 = vmatpush1.msra.mxu0 %v8670
  %8728 = vmatprep.subr.mxu0 0.0
  %8729 = vmatpush1.msra.mxu0 %v8671
  %8730 = vmatprep.subr.mxu0 0.0
  %8731 = vmatpush1.msra.mxu0 %v8672
  %8732 = vmatprep.subr.mxu0 0.0
  %8733 = vmatpush1.msra.mxu0 %v8673
  %8734 = vmatprep.subr.mxu0 0.0
  %8735 = vmatpush1.msra.mxu0 %v8674
  %8736 = vmatprep.subr.mxu0 0.0
  %8737 = vmatpush1.msra.mxu0 %v8675
  %8738 = vmatprep.subr.mxu0 0.0
  %8739 = vmatpush1.msra.mxu0 %v8676
  %8740 = vmatprep.subr.mxu0 0.0
  %8741 = vmatpush1.msra.mxu0 %v8677
  %8742 = vmatprep.subr.mxu0 0.0
  %8743 = vmatpush1.msra.mxu0 %v8678
  %8744 = vmatprep.subr.mxu0 0.0
  %8745 = vmatpush1.msra.mxu0 %v8679
  %8746 = vmatprep.subr.mxu0 0.0
  %8747 = vmatpush1.msra.mxu0 %v8680
  %8748 = vmatprep.subr.mxu0 0.0
  %8749 = vmatpush1.msra.mxu0 %v8681
  %8750 = vmatprep.subr.mxu0 0.0
  %8751 = vmatpush1.msra.mxu0 %v8682
  %8752 = vmatprep.subr.mxu0 0.0
  %8753 = vmatpush1.msra.mxu0 %v8683
  %8754 = vmatprep.subr.mxu0 0.0
  %8755 = vmatpush1.msra.mxu0 %v8684
  %8756 = vmatprep.mubr.f32.mxu0 %v8646
  %8757 = vmatmul.mubr.f32.gmra.mrb[0].mxu0 %v8645
  %v8758 = vpop.f32.mrb[0].mxu0
  %v8759 = vadd.f32 %v8690, %v8758
  %v8760 = vpop.f32.mrb[0].mxu0
  %8761 = vmatprep.mubr.f32.mxu0 %v8648
  %8762 = vmatmul.mubr.f32.gmra.mrb[0].mxu0 %v8647
  %v8763 = vpop.f32.mrb[0].mxu0
  %v8764 = vadd.f32 %v8690, %v8763
  %v8765 = vpop.f32.mrb[0].mxu0
  %8766 = vmatprep.mubr.f32.mxu0 %v8650
  %8767 = vmatmul.mubr.f32.gmra.mrb[0].mxu0 %v8649
  %v8768 = vpop.f32.mrb[0].mxu0
  %v8769 = vadd.f32 %v8690, %v8768
  %v8770 = vpop.f32.mrb[0].mxu0
  %8771 = vmatprep.mubr.f32.mxu0 %v8652
  %8772 = vmatmul.mubr.f32.gmra.mrb[0].mxu0 %v8651
  %v8773 = vpop.f32.mrb[0].mxu0
  %v8774 = vadd.f32 %v8690, %v8773
  %v8775 = vpop.f32.mrb[0].mxu0
  %8776 = vdwg.mxu0
  %s8777 = scalar_lea.vmem %s10, 160
  %8778 = vst [vmem:[%s8777] sm:$0xff] %v8759
  %8779 = vst [vmem:[%s8777 + $0x8] sm:$0xff] %v8764
  %8780 = vst [vmem:[%s8777 + $0x10] sm:$0xff] %v8769
  %8781 = vst [vmem:[%s8777 + $0x18] sm:$0xff] %v8774
  %8782 = vmax.xlane.f32.xlu0 %v8759
  %v8783 = vpop.xlane.xlu0 %8782
  %8784 = vmax.xlane.f32.xlu0 %v8764
  %v8785 = vpop.xlane.xlu0 %8784
  %8786 = vmax.xlane.f32.xlu0 %v8769
  %v8787 = vpop.xlane.xlu0 %8786
  %8788 = vmax.xlane.f32.xlu0 %v8774
  %v8789 = vpop.xlane.xlu0 %8788
  %vm8790 = vcmp.ge.f32.partialorder %v8759, %v8783
  %vm8791 = vcmp.ge.f32.partialorder %v8764, %v8785
  %vm8792 = vcmp.ge.f32.partialorder %v8769, %v8787
  %vm8793 = vcmp.ge.f32.partialorder %v8774, %v8789
  %v8794 = vsel %vm8790, %v3441, 2147483647
  %v8795 = vsel %vm8791, %v3441, 2147483647
  %v8796 = vsel %vm8792, %v3441, 2147483647
  %v8797 = vsel %vm8793, %v3441, 2147483647
  %v8798 = vand.u32 %v8794, 65535
  %v8799 = vshra.s32 %v8794, 16
  %v8800 = vcvt.s32.f32 %v8798
  %v8801 = vcvt.s32.f32 %v8799
  %8802 = vmin.xlane.f32.xlu0 %v8801
  %v8803 = vpop.xlane.xlu0 %8802
  %vm8804 = vcmp.eq.f32.partialorder %v8801, %v8803
  %v8805 = vsel %vm8804, %v8800, inf
  %8806 = vmin.xlane.f32.xlu0 %v8805
  %v8807 = vpop.xlane.xlu0 %8806
  %v8808 = vcvt.f32.s32 %v8807
  %v8809 = vcvt.f32.s32 %v8803
  %v8810 = vshll.u32 %v8809, 16
  %v8811 = vadd.s32 %v8810, %v8808
  %v8812 = vand.u32 %v8795, 65535
  %v8813 = vshra.s32 %v8795, 16
  %v8814 = vcvt.s32.f32 %v8812
  %v8815 = vcvt.s32.f32 %v8813
  %8816 = vmin.xlane.f32.xlu0 %v8815
  %v8817 = vpop.xlane.xlu0 %8816
  %vm8818 = vcmp.eq.f32.partialorder %v8815, %v8817
  %v8819 = vsel %vm8818, %v8814, inf
  %8820 = vmin.xlane.f32.xlu0 %v8819
  %v8821 = vpop.xlane.xlu0 %8820
  %v8822 = vcvt.f32.s32 %v8821
  %v8823 = vcvt.f32.s32 %v8817
  %v8824 = vshll.u32 %v8823, 16
  %v8825 = vadd.s32 %v8824, %v8822
  %v8826 = vand.u32 %v8796, 65535
  %v8827 = vshra.s32 %v8796, 16
  %v8828 = vcvt.s32.f32 %v8826
  %v8829 = vcvt.s32.f32 %v8827
  %8830 = vmin.xlane.f32.xlu0 %v8829
  %v8831 = vpop.xlane.xlu0 %8830
  %vm8832 = vcmp.eq.f32.partialorder %v8829, %v8831
  %v8833 = vsel %vm8832, %v8828, inf
  %8834 = vmin.xlane.f32.xlu0 %v8833
  %v8835 = vpop.xlane.xlu0 %8834
  %v8836 = vcvt.f32.s32 %v8835
  %v8837 = vcvt.f32.s32 %v8831
  %v8838 = vshll.u32 %v8837, 16
  %v8839 = vadd.s32 %v8838, %v8836
  %v8840 = vand.u32 %v8797, 65535
  %v8841 = vshra.s32 %v8797, 16
  %v8842 = vcvt.s32.f32 %v8840
  %v8843 = vcvt.s32.f32 %v8841
  %8844 = vmin.xlane.f32.xlu0 %v8843
  %v8845 = vpop.xlane.xlu0 %8844
  %vm8846 = vcmp.eq.f32.partialorder %v8843, %v8845
  %v8847 = vsel %vm8846, %v8842, inf
  %8848 = vmin.xlane.f32.xlu0 %v8847
  %v8849 = vpop.xlane.xlu0 %8848
  %v8850 = vcvt.f32.s32 %v8849
  %v8851 = vcvt.f32.s32 %v8845
  %v8852 = vshll.u32 %v8851, 16
  %v8853 = vadd.s32 %v8852, %v8850
  %vm8854 = vcmp.eq.s32.totalorder %v3441, %v8811
  %vm8855 = vcmp.eq.s32.totalorder %v3441, %v8825
  %vm8856 = vcmp.eq.s32.totalorder %v3441, %v8839
  %vm8857 = vcmp.eq.s32.totalorder %v3441, %v8853
  %v8858 = vsel %vm8854, 1, 0
  %v8859 = vsel %vm8855, 1, 0
  %v8860 = vsel %vm8856, 1, 0
  %v8861 = vsel %vm8857, 1, 0
  %v8862 = vcvt.s32.f32 %v8858
  %v8863 = vcvt.s32.f32 %v8859
  %v8864 = vcvt.s32.f32 %v8860
  %v8865 = vcvt.s32.f32 %v8861
  %v8866 = vld [vmem:[%s7] sm:$0xff]
  %v8867 = vld [vmem:[%s7 + $0x8] sm:$0xff]
  %v8868 = vld [vmem:[%s7 + $0x10] sm:$0xff]
  %v8869 = vld [vmem:[%s7 + $0x18] sm:$0xff]
  %v8870 = vld [vmem:[%s7 + $0x20] sm:$0xff]
  %v8871 = vld [vmem:[%s7 + $0x28] sm:$0xff]
  %v8872 = vld [vmem:[%s7 + $0x30] sm:$0xff]
  %v8873 = vld [vmem:[%s7 + $0x38] sm:$0xff]
  %v8874 = vld [vmem:[%s7 + $0x40] sm:$0xff]
  %v8875 = vld [vmem:[%s7 + $0x48] sm:$0xff]
  %v8876 = vld [vmem:[%s7 + $0x50] sm:$0xff]
  %v8877 = vld [vmem:[%s7 + $0x58] sm:$0xff]
  %v8878 = vld [vmem:[%s7 + $0x60] sm:$0xff]
  %v8879 = vld [vmem:[%s7 + $0x68] sm:$0xff]
  %v8880 = vld [vmem:[%s7 + $0x70] sm:$0xff]
  %v8881 = vld [vmem:[%s7 + $0x78] sm:$0xff]
  %v8882 = vld [vmem:[%s7 + $0x80] sm:$0xff]
  %v8883 = vld [vmem:[%s7 + $0x88] sm:$0xff]
  %v8884 = vld [vmem:[%s7 + $0x90] sm:$0xff]
  %v8885 = vld [vmem:[%s7 + $0x98] sm:$0xff]
  %v8886 = vld [vmem:[%s7 + $0xa0] sm:$0xff]
  %v8887 = vld [vmem:[%s7 + $0xa8] sm:$0xff]
  %v8888 = vld [vmem:[%s7 + $0xb0] sm:$0xff]
  %v8889 = vld [vmem:[%s7 + $0xb8] sm:$0xff]
  %v8890 = vld [vmem:[%s7 + $0xc0] sm:$0xff]
  %v8891 = vld [vmem:[%s7 + $0xc8] sm:$0xff]
  %v8892 = vld [vmem:[%s7 + $0xd0] sm:$0xff]
  %v8893 = vld [vmem:[%s7 + $0xd8] sm:$0xff]
  %v8894 = vld [vmem:[%s7 + $0xe0] sm:$0xff]
  %v8895 = vld [vmem:[%s7 + $0xe8] sm:$0xff]
  %v8896 = vld [vmem:[%s7 + $0xf0] sm:$0xff]
  %v8897 = vld [vmem:[%s7 + $0xf8] sm:$0xff]
  %v8898 = vld [vmem:[%s7 + $0x100] sm:$0xff]
  %v8899 = vld [vmem:[%s7 + $0x108] sm:$0xff]
  %v8900 = vld [vmem:[%s7 + $0x110] sm:$0xff]
  %v8901 = vld [vmem:[%s7 + $0x118] sm:$0xff]
  %v8902 = vld [vmem:[%s7 + $0x120] sm:$0xff]
  %v8903 = vld [vmem:[%s7 + $0x128] sm:$0xff]
  %v8904 = vld [vmem:[%s7 + $0x130] sm:$0xff]
  %v8905 = vld [vmem:[%s7 + $0x138] sm:$0xff]
  %v8906 = vld [vmem:[%s7 + $0x140] sm:$0xff]
  %v8907 = vld [vmem:[%s7 + $0x148] sm:$0xff]
  %v8908 = vld [vmem:[%s7 + $0x150] sm:$0xff]
  %v8909 = vld [vmem:[%s7 + $0x158] sm:$0xff]
  %v8910 = vld [vmem:[%s7 + $0x160] sm:$0xff]
  %v8911 = vld [vmem:[%s7 + $0x168] sm:$0xff]
  %v8912 = vld [vmem:[%s7 + $0x170] sm:$0xff]
  %v8913 = vld [vmem:[%s7 + $0x178] sm:$0xff]
  %v8914 = vld [vmem:[%s7 + $0x180] sm:$0xff]
  %v8915 = vld [vmem:[%s7 + $0x188] sm:$0xff]
  %v8916 = vld [vmem:[%s7 + $0x190] sm:$0xff]
  %v8917 = vld [vmem:[%s7 + $0x198] sm:$0xff]
  %v8918 = vld [vmem:[%s7 + $0x1a0] sm:$0xff]
  %v8919 = vld [vmem:[%s7 + $0x1a8] sm:$0xff]
  %v8920 = vld [vmem:[%s7 + $0x1b0] sm:$0xff]
  %v8921 = vld [vmem:[%s7 + $0x1b8] sm:$0xff]
  %v8922 = vld [vmem:[%s7 + $0x1c0] sm:$0xff]
  %v8923 = vld [vmem:[%s7 + $0x1c8] sm:$0xff]
  %v8924 = vld [vmem:[%s7 + $0x1d0] sm:$0xff]
  %v8925 = vld [vmem:[%s7 + $0x1d8] sm:$0xff]
  %v8926 = vld [vmem:[%s7 + $0x1e0] sm:$0xff]
  %v8927 = vld [vmem:[%s7 + $0x1e8] sm:$0xff]
  %v8928 = vld [vmem:[%s7 + $0x1f0] sm:$0xff]
  %v8929 = vld [vmem:[%s7 + $0x1f8] sm:$0xff]
  %v8930 = vld [vmem:[%s7 + $0x200] sm:$0xff]
  %v8931 = vld [vmem:[%s7 + $0x208] sm:$0xff]
  %v8932 = vld [vmem:[%s7 + $0x210] sm:$0xff]
  %v8933 = vld [vmem:[%s7 + $0x218] sm:$0xff]
  %v8934 = vld [vmem:[%s7 + $0x220] sm:$0xff]
  %v8935 = vld [vmem:[%s7 + $0x228] sm:$0xff]
  %v8936 = vld [vmem:[%s7 + $0x230] sm:$0xff]
  %v8937 = vld [vmem:[%s7 + $0x238] sm:$0xff]
  %v8938 = vld [vmem:[%s7 + $0x240] sm:$0xff]
  %v8939 = vld [vmem:[%s7 + $0x248] sm:$0xff]
  %v8940 = vld [vmem:[%s7 + $0x250] sm:$0xff]
  %v8941 = vld [vmem:[%s7 + $0x258] sm:$0xff]
  %v8942 = vld [vmem:[%s7 + $0x260] sm:$0xff]
  %v8943 = vld [vmem:[%s7 + $0x268] sm:$0xff]
  %v8944 = vld [vmem:[%s7 + $0x270] sm:$0xff]
  %v8945 = vld [vmem:[%s7 + $0x278] sm:$0xff]
  %v8946 = vld [vmem:[%s7 + $0x280] sm:$0xff]
  %v8947 = vld [vmem:[%s7 + $0x288] sm:$0xff]
  %v8948 = vld [vmem:[%s7 + $0x290] sm:$0xff]
  %v8949 = vld [vmem:[%s7 + $0x298] sm:$0xff]
  %v8950 = vld [vmem:[%s7 + $0x2a0] sm:$0xff]
  %v8951 = vld [vmem:[%s7 + $0x2a8] sm:$0xff]
  %v8952 = vld [vmem:[%s7 + $0x2b0] sm:$0xff]
  %v8953 = vld [vmem:[%s7 + $0x2b8] sm:$0xff]
  %v8954 = vld [vmem:[%s7 + $0x2c0] sm:$0xff]
  %v8955 = vld [vmem:[%s7 + $0x2c8] sm:$0xff]
  %v8956 = vld [vmem:[%s7 + $0x2d0] sm:$0xff]
  %v8957 = vld [vmem:[%s7 + $0x2d8] sm:$0xff]
  %v8958 = vld [vmem:[%s7 + $0x2e0] sm:$0xff]
  %v8959 = vld [vmem:[%s7 + $0x2e8] sm:$0xff]
  %v8960 = vld [vmem:[%s7 + $0x2f0] sm:$0xff]
  %v8961 = vld [vmem:[%s7 + $0x2f8] sm:$0xff]
  %8962 = vmatprep.subr.mxu0 %v8867
  %8963 = vmatpush1.msra.mxu0 %v8866
  %8964 = vmatprep.subr.mxu0 %v8873
  %8965 = vmatpush1.msra.mxu0 %v8872
  %8966 = vmatprep.subr.mxu0 %v8879
  %8967 = vmatpush1.msra.mxu0 %v8878
  %8968 = vmatprep.subr.mxu0 %v8885
  %8969 = vmatpush1.msra.mxu0 %v8884
  %8970 = vmatprep.subr.mxu0 %v8891
  %8971 = vmatpush1.msra.mxu0 %v8890
  %8972 = vmatprep.subr.mxu0 %v8897
  %8973 = vmatpush1.msra.mxu0 %v8896
  %8974 = vmatprep.subr.mxu0 %v8903
  %8975 = vmatpush1.msra.mxu0 %v8902
  %8976 = vmatprep.subr.mxu0 %v8909
  %8977 = vmatpush1.msra.mxu0 %v8908
  %8978 = vmatprep.subr.mxu0 %v8915
  %8979 = vmatpush1.msra.mxu0 %v8914
  %8980 = vmatprep.subr.mxu0 %v8921
  %8981 = vmatpush1.msra.mxu0 %v8920
  %8982 = vmatprep.subr.mxu0 %v8927
  %8983 = vmatpush1.msra.mxu0 %v8926
  %8984 = vmatprep.subr.mxu0 %v8933
  %8985 = vmatpush1.msra.mxu0 %v8932
  %8986 = vmatprep.subr.mxu0 %v8939
  %8987 = vmatpush1.msra.mxu0 %v8938
  %8988 = vmatprep.subr.mxu0 %v8945
  %8989 = vmatpush1.msra.mxu0 %v8944
  %8990 = vmatprep.subr.mxu0 %v8951
  %8991 = vmatpush1.msra.mxu0 %v8950
  %8992 = vmatprep.subr.mxu0 %v8957
  %8993 = vmatpush1.msra.mxu0 %v8956
  %8994 = vmatprep.subr.mxu0 0.0
  %8995 = vmatpush1.msra.mxu0 0.0
  %8996 = vmatprep.subr.mxu0 0.0
  %8997 = vmatpush1.msra.mxu0 0.0
  %8998 = vmatprep.subr.mxu0 0.0
  %8999 = vmatpush1.msra.mxu0 0.0
  %9000 = vmatprep.subr.mxu0 0.0
  %9001 = vmatpush1.msra.mxu0 0.0
  %9002 = vmatprep.subr.mxu0 0.0
  %9003 = vmatpush1.msra.mxu0 0.0
  %9004 = vmatprep.subr.mxu0 0.0
  %9005 = vmatpush1.msra.mxu0 0.0
  %9006 = vmatprep.subr.mxu0 0.0
  %9007 = vmatpush1.msra.mxu0 0.0
  %9008 = vmatprep.subr.mxu0 0.0
  %9009 = vmatpush1.msra.mxu0 0.0
  %9010 = vmatprep.subr.mxu0 0.0
  %9011 = vmatpush1.msra.mxu0 0.0
  %9012 = vmatprep.subr.mxu0 0.0
  %9013 = vmatpush1.msra.mxu0 0.0
  %9014 = vmatprep.subr.mxu0 0.0
  %9015 = vmatpush1.msra.mxu0 0.0
  %9016 = vmatprep.subr.mxu0 0.0
  %9017 = vmatpush1.msra.mxu0 0.0
  %9018 = vmatprep.subr.mxu0 0.0
  %9019 = vmatpush1.msra.mxu0 0.0
  %9020 = vmatprep.subr.mxu0 0.0
  %9021 = vmatpush1.msra.mxu0 0.0
  %9022 = vmatprep.subr.mxu0 0.0
  %9023 = vmatpush1.msra.mxu0 0.0
  %9024 = vmatprep.subr.mxu0 0.0
  %9025 = vmatpush1.msra.mxu0 0.0
  %9026 = vmatprep.mubr.f32.mxu0 0.0
  %9027 = vmatmul.mubr.f32.gmra.mrb[0].mxu0 %v8862
  %v9028 = vpop.f32.mrb[0].mxu0
  %v9029 = vadd.f32 0.0, %v9028
  %v9030 = vpop.f32.mrb[0].mxu0
  %v9031 = vadd.f32 0.0, %v9030
  %9032 = vmatprep.mubr.f32.mxu0 0.0
  %9033 = vmatmul.mubr.f32.gmra.mrb[0].mxu0 %v8863
  %v9034 = vpop.f32.mrb[0].mxu0
  %v9035 = vadd.f32 0.0, %v9034
  %v9036 = vpop.f32.mrb[0].mxu0
  %v9037 = vadd.f32 0.0, %v9036
  %9038 = vmatprep.mubr.f32.mxu0 0.0
  %9039 = vmatmul.mubr.f32.gmra.mrb[0].mxu0 %v8864
  %v9040 = vpop.f32.mrb[0].mxu0
  %v9041 = vadd.f32 0.0, %v9040
  %v9042 = vpop.f32.mrb[0].mxu0
  %v9043 = vadd.f32 0.0, %v9042
  %9044 = vmatprep.mubr.f32.mxu0 0.0
  %9045 = vmatmul.mubr.f32.gmra.mrb[0].mxu0 %v8865
  %v9046 = vpop.f32.mrb[0].mxu0
  %v9047 = vadd.f32 0.0, %v9046
  %v9048 = vpop.f32.mrb[0].mxu0
  %v9049 = vadd.f32 0.0, %v9048
  %9050 = vdwg.mxu0
  %9051 = vmatprep.subr.mxu0 %v8869
  %9052 = vmatpush1.msra.mxu0 %v8868
  %9053 = vmatprep.subr.mxu0 %v8875
  %9054 = vmatpush1.msra.mxu0 %v8874
  %9055 = vmatprep.subr.mxu0 %v8881
  %9056 = vmatpush1.msra.mxu0 %v8880
  %9057 = vmatprep.subr.mxu0 %v8887
  %9058 = vmatpush1.msra.mxu0 %v8886
  %9059 = vmatprep.subr.mxu0 %v8893
  %9060 = vmatpush1.msra.mxu0 %v8892
  %9061 = vmatprep.subr.mxu0 %v8899
  %9062 = vmatpush1.msra.mxu0 %v8898
  %9063 = vmatprep.subr.mxu0 %v8905
  %9064 = vmatpush1.msra.mxu0 %v8904
  %9065 = vmatprep.subr.mxu0 %v8911
  %9066 = vmatpush1.msra.mxu0 %v8910
  %9067 = vmatprep.subr.mxu0 %v8917
  %9068 = vmatpush1.msra.mxu0 %v8916
  %9069 = vmatprep.subr.mxu0 %v8923
  %9070 = vmatpush1.msra.mxu0 %v8922
  %9071 = vmatprep.subr.mxu0 %v8929
  %9072 = vmatpush1.msra.mxu0 %v8928
  %9073 = vmatprep.subr.mxu0 %v8935
  %9074 = vmatpush1.msra.mxu0 %v8934
  %9075 = vmatprep.subr.mxu0 %v8941
  %9076 = vmatpush1.msra.mxu0 %v8940
  %9077 = vmatprep.subr.mxu0 %v8947
  %9078 = vmatpush1.msra.mxu0 %v8946
  %9079 = vmatprep.subr.mxu0 %v8953
  %9080 = vmatpush1.msra.mxu0 %v8952
  %9081 = vmatprep.subr.mxu0 %v8959
  %9082 = vmatpush1.msra.mxu0 %v8958
  %9083 = vmatprep.subr.mxu0 0.0
  %9084 = vmatpush1.msra.mxu0 0.0
  %9085 = vmatprep.subr.mxu0 0.0
  %9086 = vmatpush1.msra.mxu0 0.0
  %9087 = vmatprep.subr.mxu0 0.0
  %9088 = vmatpush1.msra.mxu0 0.0
  %9089 = vmatprep.subr.mxu0 0.0
  %9090 = vmatpush1.msra.mxu0 0.0
  %9091 = vmatprep.subr.mxu0 0.0
  %9092 = vmatpush1.msra.mxu0 0.0
  %9093 = vmatprep.subr.mxu0 0.0
  %9094 = vmatpush1.msra.mxu0 0.0
  %9095 = vmatprep.subr.mxu0 0.0
  %9096 = vmatpush1.msra.mxu0 0.0
  %9097 = vmatprep.subr.mxu0 0.0
  %9098 = vmatpush1.msra.mxu0 0.0
  %9099 = vmatprep.subr.mxu0 0.0
  %9100 = vmatpush1.msra.mxu0 0.0
  %9101 = vmatprep.subr.mxu0 0.0
  %9102 = vmatpush1.msra.mxu0 0.0
  %9103 = vmatprep.subr.mxu0 0.0
  %9104 = vmatpush1.msra.mxu0 0.0
  %9105 = vmatprep.subr.mxu0 0.0
  %9106 = vmatpush1.msra.mxu0 0.0
  %9107 = vmatprep.subr.mxu0 0.0
  %9108 = vmatpush1.msra.mxu0 0.0
  %9109 = vmatprep.subr.mxu0 0.0
  %9110 = vmatpush1.msra.mxu0 0.0
  %9111 = vmatprep.subr.mxu0 0.0
  %9112 = vmatpush1.msra.mxu0 0.0
  %9113 = vmatprep.subr.mxu0 0.0
  %9114 = vmatpush1.msra.mxu0 0.0
  %9115 = vmatprep.mubr.f32.mxu0 0.0
  %9116 = vmatmul.mubr.f32.gmra.mrb[0].mxu0 %v8862
  %v9117 = vpop.f32.mrb[0].mxu0
  %v9118 = vadd.f32 0.0, %v9117
  %v9119 = vpop.f32.mrb[0].mxu0
  %v9120 = vadd.f32 0.0, %v9119
  %9121 = vmatprep.mubr.f32.mxu0 0.0
  %9122 = vmatmul.mubr.f32.gmra.mrb[0].mxu0 %v8863
  %v9123 = vpop.f32.mrb[0].mxu0
  %v9124 = vadd.f32 0.0, %v9123
  %v9125 = vpop.f32.mrb[0].mxu0
  %v9126 = vadd.f32 0.0, %v9125
  %9127 = vmatprep.mubr.f32.mxu0 0.0
  %9128 = vmatmul.mubr.f32.gmra.mrb[0].mxu0 %v8864
  %v9129 = vpop.f32.mrb[0].mxu0
  %v9130 = vadd.f32 0.0, %v9129
  %v9131 = vpop.f32.mrb[0].mxu0
  %v9132 = vadd.f32 0.0, %v9131
  %9133 = vmatprep.mubr.f32.mxu0 0.0
  %9134 = vmatmul.mubr.f32.gmra.mrb[0].mxu0 %v8865
  %v9135 = vpop.f32.mrb[0].mxu0
  %v9136 = vadd.f32 0.0, %v9135
  %v9137 = vpop.f32.mrb[0].mxu0
  %v9138 = vadd.f32 0.0, %v9137
  %9139 = vdwg.mxu0
  %9140 = vmatprep.subr.mxu0 %v8871
  %9141 = vmatpush1.msra.mxu0 %v8870
  %9142 = vmatprep.subr.mxu0 %v8877
  %9143 = vmatpush1.msra.mxu0 %v8876
  %9144 = vmatprep.subr.mxu0 %v8883
  %9145 = vmatpush1.msra.mxu0 %v8882
  %9146 = vmatprep.subr.mxu0 %v8889
  %9147 = vmatpush1.msra.mxu0 %v8888
  %9148 = vmatprep.subr.mxu0 %v8895
  %9149 = vmatpush1.msra.mxu0 %v8894
  %9150 = vmatprep.subr.mxu0 %v8901
  %9151 = vmatpush1.msra.mxu0 %v8900
  %9152 = vmatprep.subr.mxu0 %v8907
  %9153 = vmatpush1.msra.mxu0 %v8906
  %9154 = vmatprep.subr.mxu0 %v8913
  %9155 = vmatpush1.msra.mxu0 %v8912
  %9156 = vmatprep.subr.mxu0 %v8919
  %9157 = vmatpush1.msra.mxu0 %v8918
  %9158 = vmatprep.subr.mxu0 %v8925
  %9159 = vmatpush1.msra.mxu0 %v8924
  %9160 = vmatprep.subr.mxu0 %v8931
  %9161 = vmatpush1.msra.mxu0 %v8930
  %9162 = vmatprep.subr.mxu0 %v8937
  %9163 = vmatpush1.msra.mxu0 %v8936
  %9164 = vmatprep.subr.mxu0 %v8943
  %9165 = vmatpush1.msra.mxu0 %v8942
  %9166 = vmatprep.subr.mxu0 %v8949
  %9167 = vmatpush1.msra.mxu0 %v8948
  %9168 = vmatprep.subr.mxu0 %v8955
  %9169 = vmatpush1.msra.mxu0 %v8954
  %9170 = vmatprep.subr.mxu0 %v8961
  %9171 = vmatpush1.msra.mxu0 %v8960
  %9172 = vmatprep.subr.mxu0 0.0
  %9173 = vmatpush1.msra.mxu0 0.0
  %9174 = vmatprep.subr.mxu0 0.0
  %9175 = vmatpush1.msra.mxu0 0.0
  %9176 = vmatprep.subr.mxu0 0.0
  %9177 = vmatpush1.msra.mxu0 0.0
  %9178 = vmatprep.subr.mxu0 0.0
  %9179 = vmatpush1.msra.mxu0 0.0
  %9180 = vmatprep.subr.mxu0 0.0
  %9181 = vmatpush1.msra.mxu0 0.0
  %9182 = vmatprep.subr.mxu0 0.0
  %9183 = vmatpush1.msra.mxu0 0.0
  %9184 = vmatprep.subr.mxu0 0.0
  %9185 = vmatpush1.msra.mxu0 0.0
  %9186 = vmatprep.subr.mxu0 0.0
  %9187 = vmatpush1.msra.mxu0 0.0
  %9188 = vmatprep.subr.mxu0 0.0
  %9189 = vmatpush1.msra.mxu0 0.0
  %9190 = vmatprep.subr.mxu0 0.0
  %9191 = vmatpush1.msra.mxu0 0.0
  %9192 = vmatprep.subr.mxu0 0.0
  %9193 = vmatpush1.msra.mxu0 0.0
  %9194 = vmatprep.subr.mxu0 0.0
  %9195 = vmatpush1.msra.mxu0 0.0
  %9196 = vmatprep.subr.mxu0 0.0
  %9197 = vmatpush1.msra.mxu0 0.0
  %9198 = vmatprep.subr.mxu0 0.0
  %9199 = vmatpush1.msra.mxu0 0.0
  %9200 = vmatprep.subr.mxu0 0.0
  %9201 = vmatpush1.msra.mxu0 0.0
  %9202 = vmatprep.subr.mxu0 0.0
  %9203 = vmatpush1.msra.mxu0 0.0
  %9204 = vmatprep.mubr.f32.mxu0 0.0
  %9205 = vmatmul.mubr.f32.gmra.mrb[0].mxu0 %v8862
  %v9206 = vpop.f32.mrb[0].mxu0
  %v9207 = vadd.f32 0.0, %v9206
  %v9208 = vpop.f32.mrb[0].mxu0
  %v9209 = vadd.f32 0.0, %v9208
  %9210 = vmatprep.mubr.f32.mxu0 0.0
  %9211 = vmatmul.mubr.f32.gmra.mrb[0].mxu0 %v8863
  %v9212 = vpop.f32.mrb[0].mxu0
  %v9213 = vadd.f32 0.0, %v9212
  %v9214 = vpop.f32.mrb[0].mxu0
  %v9215 = vadd.f32 0.0, %v9214
  %9216 = vmatprep.mubr.f32.mxu0 0.0
  %9217 = vmatmul.mubr.f32.gmra.mrb[0].mxu0 %v8864
  %v9218 = vpop.f32.mrb[0].mxu0
  %v9219 = vadd.f32 0.0, %v9218
  %v9220 = vpop.f32.mrb[0].mxu0
  %v9221 = vadd.f32 0.0, %v9220
  %9222 = vmatprep.mubr.f32.mxu0 0.0
  %9223 = vmatmul.mubr.f32.gmra.mrb[0].mxu0 %v8865
  %v9224 = vpop.f32.mrb[0].mxu0
  %v9225 = vadd.f32 0.0, %v9224
  %v9226 = vpop.f32.mrb[0].mxu0
  %v9227 = vadd.f32 0.0, %v9226
  %9228 = vdwg.mxu0
  %s9229 = sld [smem:[#allocation3 + $0x5]]
  %s9230 = scvt.s32.f32 %s9229
  %s9231 = scalar_lea.vmem %s2, 960
  %v9232 = vld [vmem:[%s9231] sm:$0xff]
  %v9233 = vld [vmem:[%s9231 + $0x8] sm:$0xff]
  %v9234 = vld [vmem:[%s9231 + $0x10] sm:$0xff]
  %v9235 = vld [vmem:[%s9231 + $0x18] sm:$0xff]
  %v9236 = vld [vmem:[%s9231 + $0x20] sm:$0xff]
  %v9237 = vld [vmem:[%s9231 + $0x28] sm:$0xff]
  %v9238 = vld [vmem:[%s9231 + $0x30] sm:$0xff]
  %v9239 = vld [vmem:[%s9231 + $0x38] sm:$0xff]
  %v9240 = vld [vmem:[%s9231 + $0x40] sm:$0xff]
  %v9241 = vld [vmem:[%s9231 + $0x48] sm:$0xff]
  %v9242 = vld [vmem:[%s9231 + $0x50] sm:$0xff]
  %v9243 = vld [vmem:[%s9231 + $0x58] sm:$0xff]
  %v9244 = vld [vmem:[%s9231 + $0x60] sm:$0xff]
  %v9245 = vld [vmem:[%s9231 + $0x68] sm:$0xff]
  %v9246 = vld [vmem:[%s9231 + $0x70] sm:$0xff]
  %v9247 = vld [vmem:[%s9231 + $0x78] sm:$0xff]
  %v9248 = vld [vmem:[%s9231 + $0x80] sm:$0xff]
  %v9249 = vld [vmem:[%s9231 + $0x88] sm:$0xff]
  %v9250 = vld [vmem:[%s9231 + $0x90] sm:$0xff]
  %v9251 = vld [vmem:[%s9231 + $0x98] sm:$0xff]
  %v9252 = vld [vmem:[%s9231 + $0xa0] sm:$0xff]
  %v9253 = vld [vmem:[%s9231 + $0xa8] sm:$0xff]
  %v9254 = vld [vmem:[%s9231 + $0xb0] sm:$0xff]
  %v9255 = vld [vmem:[%s9231 + $0xb8] sm:$0xff]
  %v9256 = vstv %s9230
  %v9257 = vmul.f32 %v9256, %v9232
  %v9258 = vmul.f32 %v9256, %v9233
  %v9259 = vmul.f32 %v9256, %v9234
  %v9260 = vmul.f32 %v9256, %v9235
  %v9261 = vmul.f32 %v9256, %v9236
  %v9262 = vmul.f32 %v9256, %v9237
  %v9263 = vmul.f32 %v9256, %v9238
  %v9264 = vmul.f32 %v9256, %v9239
  %v9265 = vmul.f32 %v9256, %v9240
  %v9266 = vmul.f32 %v9256, %v9241
  %v9267 = vmul.f32 %v9256, %v9242
  %v9268 = vmul.f32 %v9256, %v9243
  %v9269 = vmul.f32 %v9256, %v9244
  %v9270 = vmul.f32 %v9256, %v9245
  %v9271 = vmul.f32 %v9256, %v9246
  %v9272 = vmul.f32 %v9256, %v9247
  %v9273 = vmul.f32 %v9256, %v9248
  %v9274 = vmul.f32 %v9256, %v9249
  %v9275 = vmul.f32 %v9256, %v9250
  %v9276 = vmul.f32 %v9256, %v9251
  %v9277 = vmul.f32 %v9256, %v9252
  %v9278 = vmul.f32 %v9256, %v9253
  %v9279 = vmul.f32 %v9256, %v9254
  %v9280 = vmul.f32 %v9256, %v9255
  %s9281 = ssub.f32 1.0, %s9230
  %v9282 = vstv %s9281
  %v9283 = vmul.f32 %v9282, %v9029
  %v9284 = vmul.f32 %v9282, %v9031
  %v9285 = vmul.f32 %v9282, %v9118
  %v9286 = vmul.f32 %v9282, %v9120
  %v9287 = vmul.f32 %v9282, %v9207
  %v9288 = vmul.f32 %v9282, %v9209
  %v9289 = vmul.f32 %v9282, %v9035
  %v9290 = vmul.f32 %v9282, %v9037
  %v9291 = vmul.f32 %v9282, %v9124
  %v9292 = vmul.f32 %v9282, %v9126
  %v9293 = vmul.f32 %v9282, %v9213
  %v9294 = vmul.f32 %v9282, %v9215
  %v9295 = vmul.f32 %v9282, %v9041
  %v9296 = vmul.f32 %v9282, %v9043
  %v9297 = vmul.f32 %v9282, %v9130
  %v9298 = vmul.f32 %v9282, %v9132
  %v9299 = vmul.f32 %v9282, %v9219
  %v9300 = vmul.f32 %v9282, %v9221
  %v9301 = vmul.f32 %v9282, %v9047
  %v9302 = vmul.f32 %v9282, %v9049
  %v9303 = vmul.f32 %v9282, %v9136
  %v9304 = vmul.f32 %v9282, %v9138
  %v9305 = vmul.f32 %v9282, %v9225
  %v9306 = vmul.f32 %v9282, %v9227
  %v9307 = vadd.f32 %v9257, %v9283
  %v9308 = vadd.f32 %v9258, %v9284
  %v9309 = vadd.f32 %v9259, %v9285
  %v9310 = vadd.f32 %v9260, %v9286
  %v9311 = vadd.f32 %v9261, %v9287
  %v9312 = vadd.f32 %v9262, %v9288
  %v9313 = vadd.f32 %v9263, %v9289
  %v9314 = vadd.f32 %v9264, %v9290
  %v9315 = vadd.f32 %v9265, %v9291
  %v9316 = vadd.f32 %v9266, %v9292
  %v9317 = vadd.f32 %v9267, %v9293
  %v9318 = vadd.f32 %v9268, %v9294
  %v9319 = vadd.f32 %v9269, %v9295
  %v9320 = vadd.f32 %v9270, %v9296
  %v9321 = vadd.f32 %v9271, %v9297
  %v9322 = vadd.f32 %v9272, %v9298
  %v9323 = vadd.f32 %v9273, %v9299
  %v9324 = vadd.f32 %v9274, %v9300
  %v9325 = vadd.f32 %v9275, %v9301
  %v9326 = vadd.f32 %v9276, %v9302
  %v9327 = vadd.f32 %v9277, %v9303
  %v9328 = vadd.f32 %v9278, %v9304
  %v9329 = vadd.f32 %v9279, %v9305
  %v9330 = vadd.f32 %v9280, %v9306
  %v9331 = vld [vmem:[%s5] sm:$0xff]
  %v9332 = vld [vmem:[%s5 + $0x8] sm:$0xff]
  %v9333 = vld [vmem:[%s5 + $0x10] sm:$0xff]
  %v9334 = vld [vmem:[%s5 + $0x18] sm:$0xff]
  %v9335 = vld [vmem:[%s5 + $0x20] sm:$0xff]
  %v9336 = vld [vmem:[%s5 + $0x28] sm:$0xff]
  %v9337 = vld [vmem:[%s5 + $0x30] sm:$0xff]
  %v9338 = vld [vmem:[%s5 + $0x38] sm:$0xff]
  %v9339 = vld [vmem:[%s5 + $0x40] sm:$0xff]
  %v9340 = vld [vmem:[%s5 + $0x48] sm:$0xff]
  %v9341 = vld [vmem:[%s5 + $0x50] sm:$0xff]
  %v9342 = vld [vmem:[%s5 + $0x58] sm:$0xff]
  %v9343 = vld [vmem:[%s5 + $0x60] sm:$0xff]
  %v9344 = vld [vmem:[%s5 + $0x68] sm:$0xff]
  %v9345 = vld [vmem:[%s5 + $0x70] sm:$0xff]
  %v9346 = vld [vmem:[%s5 + $0x78] sm:$0xff]
  %v9347 = vld [vmem:[%s5 + $0x80] sm:$0xff]
  %v9348 = vld [vmem:[%s5 + $0x88] sm:$0xff]
  %v9349 = vld [vmem:[%s5 + $0x90] sm:$0xff]
  %v9350 = vld [vmem:[%s5 + $0x98] sm:$0xff]
  %v9351 = vld [vmem:[%s5 + $0xa0] sm:$0xff]
  %v9352 = vld [vmem:[%s5 + $0xa8] sm:$0xff]
  %v9353 = vld [vmem:[%s5 + $0xb0] sm:$0xff]
  %v9354 = vld [vmem:[%s5 + $0xb8] sm:$0xff]
  %v9355 = vld [vmem:[%s5 + $0xc0] sm:$0xff]
  %v9356 = vld [vmem:[%s5 + $0xc8] sm:$0xff]
  %v9357 = vld [vmem:[%s5 + $0xd0] sm:$0xff]
  %v9358 = vld [vmem:[%s5 + $0xd8] sm:$0xff]
  %v9359 = vld [vmem:[%s5 + $0xe0] sm:$0xff]
  %v9360 = vld [vmem:[%s5 + $0xe8] sm:$0xff]
  %v9361 = vld [vmem:[%s5 + $0xf0] sm:$0xff]
  %v9362 = vld [vmem:[%s5 + $0xf8] sm:$0xff]
  %v9363 = vld [vmem:[%s5 + $0x100] sm:$0xff]
  %v9364 = vld [vmem:[%s5 + $0x108] sm:$0xff]
  %v9365 = vld [vmem:[%s5 + $0x110] sm:$0xff]
  %v9366 = vld [vmem:[%s5 + $0x118] sm:$0xff]
  %v9367 = vld [vmem:[%s5 + $0x120] sm:$0xff]
  %v9368 = vld [vmem:[%s5 + $0x128] sm:$0xff]
  %v9369 = vld [vmem:[%s5 + $0x130] sm:$0xff]
  %v9370 = vld [vmem:[%s5 + $0x138] sm:$0xff]
  %v9371 = vld [vmem:[%s5 + $0x140] sm:$0xff]
  %v9372 = vld [vmem:[%s5 + $0x148] sm:$0xff]
  %v9373 = vld [vmem:[%s5 + $0x150] sm:$0xff]
  %v9374 = vld [vmem:[%s5 + $0x158] sm:$0xff]
  %v9375 = vld [vmem:[%s5 + $0x160] sm:$0xff]
  %v9376 = vld [vmem:[%s5 + $0x168] sm:$0xff]
  %v9377 = vld [vmem:[%s5 + $0x170] sm:$0xff]
  %v9378 = vld [vmem:[%s5 + $0x178] sm:$0xff]
  %v9379 = vld [vmem:[%s5 + $0x180] sm:$0xff]
  %v9380 = vld [vmem:[%s5 + $0x188] sm:$0xff]
  %v9381 = vld [vmem:[%s5 + $0x190] sm:$0xff]
  %v9382 = vld [vmem:[%s5 + $0x198] sm:$0xff]
  %v9383 = vld [vmem:[%s5 + $0x1a0] sm:$0xff]
  %v9384 = vld [vmem:[%s5 + $0x1a8] sm:$0xff]
  %v9385 = vld [vmem:[%s5 + $0x1b0] sm:$0xff]
  %v9386 = vld [vmem:[%s5 + $0x1b8] sm:$0xff]
  %v9387 = vld [vmem:[%s5 + $0x1c0] sm:$0xff]
  %v9388 = vld [vmem:[%s5 + $0x1c8] sm:$0xff]
  %v9389 = vld [vmem:[%s5 + $0x1d0] sm:$0xff]
  %v9390 = vld [vmem:[%s5 + $0x1d8] sm:$0xff]
  %v9391 = vld [vmem:[%s5 + $0x1e0] sm:$0xff]
  %v9392 = vld [vmem:[%s5 + $0x1e8] sm:$0xff]
  %v9393 = vld [vmem:[%s5 + $0x1f0] sm:$0xff]
  %v9394 = vld [vmem:[%s5 + $0x1f8] sm:$0xff]
  %v9395 = vld [vmem:[%s5 + $0x200] sm:$0xff]
  %v9396 = vld [vmem:[%s5 + $0x208] sm:$0xff]
  %v9397 = vld [vmem:[%s5 + $0x210] sm:$0xff]
  %v9398 = vld [vmem:[%s5 + $0x218] sm:$0xff]
  %v9399 = vld [vmem:[%s5 + $0x220] sm:$0xff]
  %v9400 = vld [vmem:[%s5 + $0x228] sm:$0xff]
  %v9401 = vld [vmem:[%s5 + $0x230] sm:$0xff]
  %v9402 = vld [vmem:[%s5 + $0x238] sm:$0xff]
  %v9403 = vld [vmem:[%s5 + $0x240] sm:$0xff]
  %v9404 = vld [vmem:[%s5 + $0x248] sm:$0xff]
  %v9405 = vld [vmem:[%s5 + $0x250] sm:$0xff]
  %v9406 = vld [vmem:[%s5 + $0x258] sm:$0xff]
  %v9407 = vld [vmem:[%s5 + $0x260] sm:$0xff]
  %v9408 = vld [vmem:[%s5 + $0x268] sm:$0xff]
  %v9409 = vld [vmem:[%s5 + $0x270] sm:$0xff]
  %v9410 = vld [vmem:[%s5 + $0x278] sm:$0xff]
  %v9411 = vld [vmem:[%s5 + $0x280] sm:$0xff]
  %v9412 = vld [vmem:[%s5 + $0x288] sm:$0xff]
  %v9413 = vld [vmem:[%s5 + $0x290] sm:$0xff]
  %v9414 = vld [vmem:[%s5 + $0x298] sm:$0xff]
  %v9415 = vld [vmem:[%s5 + $0x2a0] sm:$0xff]
  %v9416 = vld [vmem:[%s5 + $0x2a8] sm:$0xff]
  %v9417 = vld [vmem:[%s5 + $0x2b0] sm:$0xff]
  %v9418 = vld [vmem:[%s5 + $0x2b8] sm:$0xff]
  %v9419 = vld [vmem:[%s5 + $0x2c0] sm:$0xff]
  %v9420 = vld [vmem:[%s5 + $0x2c8] sm:$0xff]
  %v9421 = vld [vmem:[%s5 + $0x2d0] sm:$0xff]
  %v9422 = vld [vmem:[%s5 + $0x2d8] sm:$0xff]
  %v9423 = vld [vmem:[%s5 + $0x2e0] sm:$0xff]
  %v9424 = vld [vmem:[%s5 + $0x2e8] sm:$0xff]
  %v9425 = vld [vmem:[%s5 + $0x2f0] sm:$0xff]
  %v9426 = vld [vmem:[%s5 + $0x2f8] sm:$0xff]
  %v9427 = vld [vmem:[%s5 + $0x300] sm:$0xff]
  %v9428 = vld [vmem:[%s5 + $0x308] sm:$0xff]
  %v9429 = vld [vmem:[%s5 + $0x310] sm:$0xff]
  %v9430 = vld [vmem:[%s5 + $0x318] sm:$0xff]
  %v9431 = vld [vmem:[%s5 + $0x320] sm:$0xff]
  %v9432 = vld [vmem:[%s5 + $0x328] sm:$0xff]
  %v9433 = vld [vmem:[%s5 + $0x330] sm:$0xff]
  %v9434 = vld [vmem:[%s5 + $0x338] sm:$0xff]
  %v9435 = vld [vmem:[%s5 + $0x340] sm:$0xff]
  %v9436 = vld [vmem:[%s5 + $0x348] sm:$0xff]
  %v9437 = vld [vmem:[%s5 + $0x350] sm:$0xff]
  %v9438 = vld [vmem:[%s5 + $0x358] sm:$0xff]
  %v9439 = vld [vmem:[%s5 + $0x360] sm:$0xff]
  %v9440 = vld [vmem:[%s5 + $0x368] sm:$0xff]
  %v9441 = vld [vmem:[%s5 + $0x370] sm:$0xff]
  %v9442 = vld [vmem:[%s5 + $0x378] sm:$0xff]
  %v9443 = vld [vmem:[%s5 + $0x380] sm:$0xff]
  %v9444 = vld [vmem:[%s5 + $0x388] sm:$0xff]
  %v9445 = vld [vmem:[%s5 + $0x390] sm:$0xff]
  %v9446 = vld [vmem:[%s5 + $0x398] sm:$0xff]
  %v9447 = vld [vmem:[%s5 + $0x3a0] sm:$0xff]
  %v9448 = vld [vmem:[%s5 + $0x3a8] sm:$0xff]
  %v9449 = vld [vmem:[%s5 + $0x3b0] sm:$0xff]
  %v9450 = vld [vmem:[%s5 + $0x3b8] sm:$0xff]
  %v9451 = vld [vmem:[%s5 + $0x3c0] sm:$0xff]
  %v9452 = vld [vmem:[%s5 + $0x3c8] sm:$0xff]
  %v9453 = vld [vmem:[%s5 + $0x3d0] sm:$0xff]
  %v9454 = vld [vmem:[%s5 + $0x3d8] sm:$0xff]
  %v9455 = vld [vmem:[%s5 + $0x3e0] sm:$0xff]
  %v9456 = vld [vmem:[%s5 + $0x3e8] sm:$0xff]
  %v9457 = vld [vmem:[%s5 + $0x3f0] sm:$0xff]
  %v9458 = vld [vmem:[%s5 + $0x3f8] sm:$0xff]
  %v9459 = vld [vmem:[%s5 + $0x400] sm:$0xff]
  %v9460 = vld [vmem:[%s5 + $0x408] sm:$0xff]
  %v9461 = vld [vmem:[%s5 + $0x410] sm:$0xff]
  %v9462 = vld [vmem:[%s5 + $0x418] sm:$0xff]
  %v9463 = vld [vmem:[%s5 + $0x420] sm:$0xff]
  %v9464 = vld [vmem:[%s5 + $0x428] sm:$0xff]
  %v9465 = vld [vmem:[%s5 + $0x430] sm:$0xff]
  %v9466 = vld [vmem:[%s5 + $0x438] sm:$0xff]
  %v9467 = vld [vmem:[%s5 + $0x440] sm:$0xff]
  %v9468 = vld [vmem:[%s5 + $0x448] sm:$0xff]
  %v9469 = vld [vmem:[%s5 + $0x450] sm:$0xff]
  %v9470 = vld [vmem:[%s5 + $0x458] sm:$0xff]
  %v9471 = vld [vmem:[%s5 + $0x460] sm:$0xff]
  %v9472 = vld [vmem:[%s5 + $0x468] sm:$0xff]
  %v9473 = vld [vmem:[%s5 + $0x470] sm:$0xff]
  %v9474 = vld [vmem:[%s5 + $0x478] sm:$0xff]
  %v9475 = vld [vmem:[%s5 + $0x480] sm:$0xff]
  %v9476 = vld [vmem:[%s5 + $0x488] sm:$0xff]
  %v9477 = vld [vmem:[%s5 + $0x490] sm:$0xff]
  %v9478 = vld [vmem:[%s5 + $0x498] sm:$0xff]
  %v9479 = vld [vmem:[%s5 + $0x4a0] sm:$0xff]
  %v9480 = vld [vmem:[%s5 + $0x4a8] sm:$0xff]
  %v9481 = vld [vmem:[%s5 + $0x4b0] sm:$0xff]
  %v9482 = vld [vmem:[%s5 + $0x4b8] sm:$0xff]
  %v9483 = vld [vmem:[%s5 + $0x4c0] sm:$0xff]
  %v9484 = vld [vmem:[%s5 + $0x4c8] sm:$0xff]
  %v9485 = vld [vmem:[%s5 + $0x4d0] sm:$0xff]
  %v9486 = vld [vmem:[%s5 + $0x4d8] sm:$0xff]
  %v9487 = vld [vmem:[%s5 + $0x4e0] sm:$0xff]
  %v9488 = vld [vmem:[%s5 + $0x4e8] sm:$0xff]
  %v9489 = vld [vmem:[%s5 + $0x4f0] sm:$0xff]
  %v9490 = vld [vmem:[%s5 + $0x4f8] sm:$0xff]
  %v9491 = vld [vmem:[%s5 + $0x500] sm:$0xff]
  %v9492 = vld [vmem:[%s5 + $0x508] sm:$0xff]
  %v9493 = vld [vmem:[%s5 + $0x510] sm:$0xff]
  %v9494 = vld [vmem:[%s5 + $0x518] sm:$0xff]
  %v9495 = vld [vmem:[%s5 + $0x520] sm:$0xff]
  %v9496 = vld [vmem:[%s5 + $0x528] sm:$0xff]
  %v9497 = vld [vmem:[%s5 + $0x530] sm:$0xff]
  %v9498 = vld [vmem:[%s5 + $0x538] sm:$0xff]
  %v9499 = vld [vmem:[%s5 + $0x540] sm:$0xff]
  %v9500 = vld [vmem:[%s5 + $0x548] sm:$0xff]
  %v9501 = vld [vmem:[%s5 + $0x550] sm:$0xff]
  %v9502 = vld [vmem:[%s5 + $0x558] sm:$0xff]
  %v9503 = vld [vmem:[%s5 + $0x560] sm:$0xff]
  %v9504 = vld [vmem:[%s5 + $0x568] sm:$0xff]
  %v9505 = vld [vmem:[%s5 + $0x570] sm:$0xff]
  %v9506 = vld [vmem:[%s5 + $0x578] sm:$0xff]
  %v9507 = vld [vmem:[%s5 + $0x580] sm:$0xff]
  %v9508 = vld [vmem:[%s5 + $0x588] sm:$0xff]
  %v9509 = vld [vmem:[%s5 + $0x590] sm:$0xff]
  %v9510 = vld [vmem:[%s5 + $0x598] sm:$0xff]
  %v9511 = vld [vmem:[%s5 + $0x5a0] sm:$0xff]
  %v9512 = vld [vmem:[%s5 + $0x5a8] sm:$0xff]
  %v9513 = vld [vmem:[%s5 + $0x5b0] sm:$0xff]
  %v9514 = vld [vmem:[%s5 + $0x5b8] sm:$0xff]
  %v9515 = vld [vmem:[%s5 + $0x5c0] sm:$0xff]
  %v9516 = vld [vmem:[%s5 + $0x5c8] sm:$0xff]
  %v9517 = vld [vmem:[%s5 + $0x5d0] sm:$0xff]
  %v9518 = vld [vmem:[%s5 + $0x5d8] sm:$0xff]
  %v9519 = vld [vmem:[%s5 + $0x5e0] sm:$0xff]
  %v9520 = vld [vmem:[%s5 + $0x5e8] sm:$0xff]
  %v9521 = vld [vmem:[%s5 + $0x5f0] sm:$0xff]
  %v9522 = vld [vmem:[%s5 + $0x5f8] sm:$0xff]
  %v9523 = vld [vmem:[%s6] sm:$0x3f]
  %v9525 = vlaneseq
  %v9526 = vshrl.u32 %v9525, 7
  %v9527 = vsub.s32 0, %v9526
  %v9528 = vrot.slane %v9523, %v9527
  %v9529 = vlaneseq
  %v9530 = vshrl.u32 %v9529, 7
  %v9531 = vsub.s32 1, %v9530
  %v9532 = vrot.slane %v9523, %v9531
  %v9533 = vlaneseq
  %v9534 = vshrl.u32 %v9533, 7
  %v9535 = vsub.s32 2, %v9534
  %v9536 = vrot.slane %v9523, %v9535
  %v9537 = vlaneseq
  %v9538 = vshrl.u32 %v9537, 7
  %v9539 = vsub.s32 3, %v9538
  %v9540 = vrot.slane %v9523, %v9539
  %v9541 = vlaneseq
  %v9542 = vshrl.u32 %v9541, 7
  %v9543 = vsub.s32 4, %v9542
  %v9544 = vrot.slane %v9523, %v9543
  %v9545 = vlaneseq
  %v9546 = vshrl.u32 %v9545, 7
  %v9547 = vsub.s32 5, %v9546
  %v9548 = vrot.slane %v9523, %v9547
  %9555 = vmatprep.subr.mxu0 %v9332
  %9556 = vmatpush1.msra.mxu0 %v9331
  %9557 = vmatprep.subr.mxu0 %v9338
  %9558 = vmatpush1.msra.mxu0 %v9337
  %9559 = vmatprep.subr.mxu0 %v9344
  %9560 = vmatpush1.msra.mxu0 %v9343
  %9561 = vmatprep.subr.mxu0 %v9350
  %9562 = vmatpush1.msra.mxu0 %v9349
  %9563 = vmatprep.subr.mxu0 %v9356
  %9564 = vmatpush1.msra.mxu0 %v9355
  %9565 = vmatprep.subr.mxu0 %v9362
  %9566 = vmatpush1.msra.mxu0 %v9361
  %9567 = vmatprep.subr.mxu0 %v9368
  %9568 = vmatpush1.msra.mxu0 %v9367
  %9569 = vmatprep.subr.mxu0 %v9374
  %9570 = vmatpush1.msra.mxu0 %v9373
  %9571 = vmatprep.subr.mxu0 %v9380
  %9572 = vmatpush1.msra.mxu0 %v9379
  %9573 = vmatprep.subr.mxu0 %v9386
  %9574 = vmatpush1.msra.mxu0 %v9385
  %9575 = vmatprep.subr.mxu0 %v9392
  %9576 = vmatpush1.msra.mxu0 %v9391
  %9577 = vmatprep.subr.mxu0 %v9398
  %9578 = vmatpush1.msra.mxu0 %v9397
  %9579 = vmatprep.subr.mxu0 %v9404
  %9580 = vmatpush1.msra.mxu0 %v9403
  %9581 = vmatprep.subr.mxu0 %v9410
  %9582 = vmatpush1.msra.mxu0 %v9409
  %9583 = vmatprep.subr.mxu0 %v9416
  %9584 = vmatpush1.msra.mxu0 %v9415
  %9585 = vmatprep.subr.mxu0 %v9422
  %9586 = vmatpush1.msra.mxu0 %v9421
  %9587 = vmatprep.subr.mxu0 %v9428
  %9588 = vmatpush1.msra.mxu0 %v9427
  %9589 = vmatprep.subr.mxu0 %v9434
  %9590 = vmatpush1.msra.mxu0 %v9433
  %9591 = vmatprep.subr.mxu0 %v9440
  %9592 = vmatpush1.msra.mxu0 %v9439
  %9593 = vmatprep.subr.mxu0 %v9446
  %9594 = vmatpush1.msra.mxu0 %v9445
  %9595 = vmatprep.subr.mxu0 %v9452
  %9596 = vmatpush1.msra.mxu0 %v9451
  %9597 = vmatprep.subr.mxu0 %v9458
  %9598 = vmatpush1.msra.mxu0 %v9457
  %9599 = vmatprep.subr.mxu0 %v9464
  %9600 = vmatpush1.msra.mxu0 %v9463
  %9601 = vmatprep.subr.mxu0 %v9470
  %9602 = vmatpush1.msra.mxu0 %v9469
  %9603 = vmatprep.subr.mxu0 %v9476
  %9604 = vmatpush1.msra.mxu0 %v9475
  %9605 = vmatprep.subr.mxu0 %v9482
  %9606 = vmatpush1.msra.mxu0 %v9481
  %9607 = vmatprep.subr.mxu0 %v9488
  %9608 = vmatpush1.msra.mxu0 %v9487
  %9609 = vmatprep.subr.mxu0 %v9494
  %9610 = vmatpush1.msra.mxu0 %v9493
  %9611 = vmatprep.subr.mxu0 %v9500
  %9612 = vmatpush1.msra.mxu0 %v9499
  %9613 = vmatprep.subr.mxu0 %v9506
  %9614 = vmatpush1.msra.mxu0 %v9505
  %9615 = vmatprep.subr.mxu0 %v9512
  %9616 = vmatpush1.msra.mxu0 %v9511
  %9617 = vmatprep.subr.mxu0 %v9518
  %9618 = vmatpush1.msra.mxu0 %v9517
  %9619 = vmatprep.mubr.f32.mxu0 %v8646
  %9620 = vmatmul.mubr.f32.gmra.mrb[0].mxu0 %v8645
  %v9621 = vpop.f32.mrb[0].mxu0
  %v9622 = vadd.f32 %v9528, %v9621
  %v9623 = vpop.f32.mrb[0].mxu0
  %v9624 = vadd.f32 %v9532, %v9623
  %9625 = vmatprep.mubr.f32.mxu0 %v8648
  %9626 = vmatmul.mubr.f32.gmra.mrb[0].mxu0 %v8647
  %v9627 = vpop.f32.mrb[0].mxu0
  %v9628 = vadd.f32 %v9528, %v9627
  %v9629 = vpop.f32.mrb[0].mxu0
  %v9630 = vadd.f32 %v9532, %v9629
  %9631 = vmatprep.mubr.f32.mxu0 %v8650
  %9632 = vmatmul.mubr.f32.gmra.mrb[0].mxu0 %v8649
  %v9633 = vpop.f32.mrb[0].mxu0
  %v9634 = vadd.f32 %v9528, %v9633
  %v9635 = vpop.f32.mrb[0].mxu0
  %v9636 = vadd.f32 %v9532, %v9635
  %9637 = vmatprep.mubr.f32.mxu0 %v8652
  %9638 = vmatmul.mubr.f32.gmra.mrb[0].mxu0 %v8651
  %v9639 = vpop.f32.mrb[0].mxu0
  %v9640 = vadd.f32 %v9528, %v9639
  %v9641 = vpop.f32.mrb[0].mxu0
  %v9642 = vadd.f32 %v9532, %v9641
  %9643 = vdwg.mxu0
  %9644 = vmatprep.subr.mxu0 %v9334
  %9645 = vmatpush1.msra.mxu0 %v9333
  %9646 = vmatprep.subr.mxu0 %v9340
  %9647 = vmatpush1.msra.mxu0 %v9339
  %9648 = vmatprep.subr.mxu0 %v9346
  %9649 = vmatpush1.msra.mxu0 %v9345
  %9650 = vmatprep.subr.mxu0 %v9352
  %9651 = vmatpush1.msra.mxu0 %v9351
  %9652 = vmatprep.subr.mxu0 %v9358
  %9653 = vmatpush1.msra.mxu0 %v9357
  %9654 = vmatprep.subr.mxu0 %v9364
  %9655 = vmatpush1.msra.mxu0 %v9363
  %9656 = vmatprep.subr.mxu0 %v9370
  %9657 = vmatpush1.msra.mxu0 %v9369
  %9658 = vmatprep.subr.mxu0 %v9376
  %9659 = vmatpush1.msra.mxu0 %v9375
  %9660 = vmatprep.subr.mxu0 %v9382
  %9661 = vmatpush1.msra.mxu0 %v9381
  %9662 = vmatprep.subr.mxu0 %v9388
  %9663 = vmatpush1.msra.mxu0 %v9387
  %9664 = vmatprep.subr.mxu0 %v9394
  %9665 = vmatpush1.msra.mxu0 %v9393
  %9666 = vmatprep.subr.mxu0 %v9400
  %9667 = vmatpush1.msra.mxu0 %v9399
  %9668 = vmatprep.subr.mxu0 %v9406
  %9669 = vmatpush1.msra.mxu0 %v9405
  %9670 = vmatprep.subr.mxu0 %v9412
  %9671 = vmatpush1.msra.mxu0 %v9411
  %9672 = vmatprep.subr.mxu0 %v9418
  %9673 = vmatpush1.msra.mxu0 %v9417
  %9674 = vmatprep.subr.mxu0 %v9424
  %9675 = vmatpush1.msra.mxu0 %v9423
  %9676 = vmatprep.subr.mxu0 %v9430
  %9677 = vmatpush1.msra.mxu0 %v9429
  %9678 = vmatprep.subr.mxu0 %v9436
  %9679 = vmatpush1.msra.mxu0 %v9435
  %9680 = vmatprep.subr.mxu0 %v9442
  %9681 = vmatpush1.msra.mxu0 %v9441
  %9682 = vmatprep.subr.mxu0 %v9448
  %9683 = vmatpush1.msra.mxu0 %v9447
  %9684 = vmatprep.subr.mxu0 %v9454
  %9685 = vmatpush1.msra.mxu0 %v9453
  %9686 = vmatprep.subr.mxu0 %v9460
  %9687 = vmatpush1.msra.mxu0 %v9459
  %9688 = vmatprep.subr.mxu0 %v9466
  %9689 = vmatpush1.msra.mxu0 %v9465
  %9690 = vmatprep.subr.mxu0 %v9472
  %9691 = vmatpush1.msra.mxu0 %v9471
  %9692 = vmatprep.subr.mxu0 %v9478
  %9693 = vmatpush1.msra.mxu0 %v9477
  %9694 = vmatprep.subr.mxu0 %v9484
  %9695 = vmatpush1.msra.mxu0 %v9483
  %9696 = vmatprep.subr.mxu0 %v9490
  %9697 = vmatpush1.msra.mxu0 %v9489
  %9698 = vmatprep.subr.mxu0 %v9496
  %9699 = vmatpush1.msra.mxu0 %v9495
  %9700 = vmatprep.subr.mxu0 %v9502
  %9701 = vmatpush1.msra.mxu0 %v9501
  %9702 = vmatprep.subr.mxu0 %v9508
  %9703 = vmatpush1.msra.mxu0 %v9507
  %9704 = vmatprep.subr.mxu0 %v9514
  %9705 = vmatpush1.msra.mxu0 %v9513
  %9706 = vmatprep.subr.mxu0 %v9520
  %9707 = vmatpush1.msra.mxu0 %v9519
  %9708 = vmatprep.mubr.f32.mxu0 %v8646
  %9709 = vmatmul.mubr.f32.gmra.mrb[0].mxu0 %v8645
  %v9710 = vpop.f32.mrb[0].mxu0
  %v9711 = vadd.f32 %v9536, %v9710
  %v9712 = vpop.f32.mrb[0].mxu0
  %v9713 = vadd.f32 %v9540, %v9712
  %9714 = vmatprep.mubr.f32.mxu0 %v8648
  %9715 = vmatmul.mubr.f32.gmra.mrb[0].mxu0 %v8647
  %v9716 = vpop.f32.mrb[0].mxu0
  %v9717 = vadd.f32 %v9536, %v9716
  %v9718 = vpop.f32.mrb[0].mxu0
  %v9719 = vadd.f32 %v9540, %v9718
  %9720 = vmatprep.mubr.f32.mxu0 %v8650
  %9721 = vmatmul.mubr.f32.gmra.mrb[0].mxu0 %v8649
  %v9722 = vpop.f32.mrb[0].mxu0
  %v9723 = vadd.f32 %v9536, %v9722
  %v9724 = vpop.f32.mrb[0].mxu0
  %v9725 = vadd.f32 %v9540, %v9724
  %9726 = vmatprep.mubr.f32.mxu0 %v8652
  %9727 = vmatmul.mubr.f32.gmra.mrb[0].mxu0 %v8651
  %v9728 = vpop.f32.mrb[0].mxu0
  %v9729 = vadd.f32 %v9536, %v9728
  %v9730 = vpop.f32.mrb[0].mxu0
  %v9731 = vadd.f32 %v9540, %v9730
  %9732 = vdwg.mxu0
  %9733 = vmatprep.subr.mxu0 %v9336
  %9734 = vmatpush1.msra.mxu0 %v9335
  %9735 = vmatprep.subr.mxu0 %v9342
  %9736 = vmatpush1.msra.mxu0 %v9341
  %9737 = vmatprep.subr.mxu0 %v9348
  %9738 = vmatpush1.msra.mxu0 %v9347
  %9739 = vmatprep.subr.mxu0 %v9354
  %9740 = vmatpush1.msra.mxu0 %v9353
  %9741 = vmatprep.subr.mxu0 %v9360
  %9742 = vmatpush1.msra.mxu0 %v9359
  %9743 = vmatprep.subr.mxu0 %v9366
  %9744 = vmatpush1.msra.mxu0 %v9365
  %9745 = vmatprep.subr.mxu0 %v9372
  %9746 = vmatpush1.msra.mxu0 %v9371
  %9747 = vmatprep.subr.mxu0 %v9378
  %9748 = vmatpush1.msra.mxu0 %v9377
  %9749 = vmatprep.subr.mxu0 %v9384
  %9750 = vmatpush1.msra.mxu0 %v9383
  %9751 = vmatprep.subr.mxu0 %v9390
  %9752 = vmatpush1.msra.mxu0 %v9389
  %9753 = vmatprep.subr.mxu0 %v9396
  %9754 = vmatpush1.msra.mxu0 %v9395
  %9755 = vmatprep.subr.mxu0 %v9402
  %9756 = vmatpush1.msra.mxu0 %v9401
  %9757 = vmatprep.subr.mxu0 %v9408
  %9758 = vmatpush1.msra.mxu0 %v9407
  %9759 = vmatprep.subr.mxu0 %v9414
  %9760 = vmatpush1.msra.mxu0 %v9413
  %9761 = vmatprep.subr.mxu0 %v9420
  %9762 = vmatpush1.msra.mxu0 %v9419
  %9763 = vmatprep.subr.mxu0 %v9426
  %9764 = vmatpush1.msra.mxu0 %v9425
  %9765 = vmatprep.subr.mxu0 %v9432
  %9766 = vmatpush1.msra.mxu0 %v9431
  %9767 = vmatprep.subr.mxu0 %v9438
  %9768 = vmatpush1.msra.mxu0 %v9437
  %9769 = vmatprep.subr.mxu0 %v9444
  %9770 = vmatpush1.msra.mxu0 %v9443
  %9771 = vmatprep.subr.mxu0 %v9450
  %9772 = vmatpush1.msra.mxu0 %v9449
  %9773 = vmatprep.subr.mxu0 %v9456
  %9774 = vmatpush1.msra.mxu0 %v9455
  %9775 = vmatprep.subr.mxu0 %v9462
  %9776 = vmatpush1.msra.mxu0 %v9461
  %9777 = vmatprep.subr.mxu0 %v9468
  %9778 = vmatpush1.msra.mxu0 %v9467
  %9779 = vmatprep.subr.mxu0 %v9474
  %9780 = vmatpush1.msra.mxu0 %v9473
  %9781 = vmatprep.subr.mxu0 %v9480
  %9782 = vmatpush1.msra.mxu0 %v9479
  %9783 = vmatprep.subr.mxu0 %v9486
  %9784 = vmatpush1.msra.mxu0 %v9485
  %9785 = vmatprep.subr.mxu0 %v9492
  %9786 = vmatpush1.msra.mxu0 %v9491
  %9787 = vmatprep.subr.mxu0 %v9498
  %9788 = vmatpush1.msra.mxu0 %v9497
  %9789 = vmatprep.subr.mxu0 %v9504
  %9790 = vmatpush1.msra.mxu0 %v9503
  %9791 = vmatprep.subr.mxu0 %v9510
  %9792 = vmatpush1.msra.mxu0 %v9509
  %9793 = vmatprep.subr.mxu0 %v9516
  %9794 = vmatpush1.msra.mxu0 %v9515
  %9795 = vmatprep.subr.mxu0 %v9522
  %9796 = vmatpush1.msra.mxu0 %v9521
  %9797 = vmatprep.mubr.f32.mxu0 %v8646
  %9798 = vmatmul.mubr.f32.gmra.mrb[0].mxu0 %v8645
  %v9799 = vpop.f32.mrb[0].mxu0
  %v9800 = vadd.f32 %v9544, %v9799
  %v9801 = vpop.f32.mrb[0].mxu0
  %v9802 = vadd.f32 %v9548, %v9801
  %9803 = vmatprep.mubr.f32.mxu0 %v8648
  %9804 = vmatmul.mubr.f32.gmra.mrb[0].mxu0 %v8647
  %v9805 = vpop.f32.mrb[0].mxu0
  %v9806 = vadd.f32 %v9544, %v9805
  %v9807 = vpop.f32.mrb[0].mxu0
  %v9808 = vadd.f32 %v9548, %v9807
  %9809 = vmatprep.mubr.f32.mxu0 %v8650
  %9810 = vmatmul.mubr.f32.gmra.mrb[0].mxu0 %v8649
  %v9811 = vpop.f32.mrb[0].mxu0
  %v9812 = vadd.f32 %v9544, %v9811
  %v9813 = vpop.f32.mrb[0].mxu0
  %v9814 = vadd.f32 %v9548, %v9813
  %9815 = vmatprep.mubr.f32.mxu0 %v8652
  %9816 = vmatmul.mubr.f32.gmra.mrb[0].mxu0 %v8651
  %v9817 = vpop.f32.mrb[0].mxu0
  %v9818 = vadd.f32 %v9544, %v9817
  %v9819 = vpop.f32.mrb[0].mxu0
  %v9820 = vadd.f32 %v9548, %v9819
  %9821 = vdwg.mxu0
  %v9822 = vadd.f32 %v9307, %v9622
  %v9823 = vadd.f32 %v9308, %v9624
  %v9824 = vadd.f32 %v9313, %v9628
  %v9825 = vadd.f32 %v9314, %v9630
  %v9826 = vadd.f32 %v9319, %v9634
  %v9827 = vadd.f32 %v9320, %v9636
  %v9828 = vadd.f32 %v9325, %v9640
  %v9829 = vadd.f32 %v9326, %v9642
  %v9830 = vxor.u32 %v9822, 2147483648
  %v9831 = vxor.u32 %v9823, 2147483648
  %v9832 = vxor.u32 %v9824, 2147483648
  %v9833 = vxor.u32 %v9825, 2147483648
  %v9834 = vxor.u32 %v9826, 2147483648
  %v9835 = vxor.u32 %v9827, 2147483648
  %v9836 = vxor.u32 %v9828, 2147483648
  %v9837 = vxor.u32 %v9829, 2147483648
  %v9838 = vmul.f32 %v9830, 1.442695
  %v9839 = vpow.pop %v9838
  %v9840 = vmul.f32 %v9831, 1.442695
  %v9841 = vpow.pop %v9840
  %v9842 = vmul.f32 %v9832, 1.442695
  %v9843 = vpow.pop %v9842
  %v9844 = vmul.f32 %v9833, 1.442695
  %v9845 = vpow.pop %v9844
  %v9846 = vmul.f32 %v9834, 1.442695
  %v9847 = vpow.pop %v9846
  %v9848 = vmul.f32 %v9835, 1.442695
  %v9849 = vpow.pop %v9848
  %v9850 = vmul.f32 %v9836, 1.442695
  %v9851 = vpow.pop %v9850
  %v9852 = vmul.f32 %v9837, 1.442695
  %v9853 = vpow.pop %v9852
  %v9854 = vadd.f32 %v9839, 1.0
  %v9855 = vadd.f32 %v9841, 1.0
  %v9856 = vadd.f32 %v9843, 1.0
  %v9857 = vadd.f32 %v9845, 1.0
  %v9858 = vadd.f32 %v9847, 1.0
  %v9859 = vadd.f32 %v9849, 1.0
  %v9860 = vadd.f32 %v9851, 1.0
  %v9861 = vadd.f32 %v9853, 1.0
  %v9862 = vrcp.pop %v9854
  %v9863 = vmul.f32 1.0, %v9862
  %v9864 = vrcp.pop %v9855
  %v9865 = vmul.f32 1.0, %v9864
  %v9866 = vrcp.pop %v9856
  %v9867 = vmul.f32 1.0, %v9866
  %v9868 = vrcp.pop %v9857
  %v9869 = vmul.f32 1.0, %v9868
  %v9870 = vrcp.pop %v9858
  %v9871 = vmul.f32 1.0, %v9870
  %v9872 = vrcp.pop %v9859
  %v9873 = vmul.f32 1.0, %v9872
  %v9874 = vrcp.pop %v9860
  %v9875 = vmul.f32 1.0, %v9874
  %v9876 = vrcp.pop %v9861
  %v9877 = vmul.f32 1.0, %v9876
  %v9878 = vadd.f32 %v9309, %v9711
  %v9879 = vadd.f32 %v9310, %v9713
  %v9880 = vadd.f32 %v9315, %v9717
  %v9881 = vadd.f32 %v9316, %v9719
  %v9882 = vadd.f32 %v9321, %v9723
  %v9883 = vadd.f32 %v9322, %v9725
  %v9884 = vadd.f32 %v9327, %v9729
  %v9885 = vadd.f32 %v9328, %v9731
  %v9886 = vxor.u32 %v9878, 2147483648
  %v9887 = vxor.u32 %v9879, 2147483648
  %v9888 = vxor.u32 %v9880, 2147483648
  %v9889 = vxor.u32 %v9881, 2147483648
  %v9890 = vxor.u32 %v9882, 2147483648
  %v9891 = vxor.u32 %v9883, 2147483648
  %v9892 = vxor.u32 %v9884, 2147483648
  %v9893 = vxor.u32 %v9885, 2147483648
  %v9894 = vmul.f32 %v9886, 1.442695
  %v9895 = vpow.pop %v9894
  %v9896 = vmul.f32 %v9887, 1.442695
  %v9897 = vpow.pop %v9896
  %v9898 = vmul.f32 %v9888, 1.442695
  %v9899 = vpow.pop %v9898
  %v9900 = vmul.f32 %v9889, 1.442695
  %v9901 = vpow.pop %v9900
  %v9902 = vmul.f32 %v9890, 1.442695
  %v9903 = vpow.pop %v9902
  %v9904 = vmul.f32 %v9891, 1.442695
  %v9905 = vpow.pop %v9904
  %v9906 = vmul.f32 %v9892, 1.442695
  %v9907 = vpow.pop %v9906
  %v9908 = vmul.f32 %v9893, 1.442695
  %v9909 = vpow.pop %v9908
  %v9910 = vadd.f32 %v9895, 1.0
  %v9911 = vadd.f32 %v9897, 1.0
  %v9912 = vadd.f32 %v9899, 1.0
  %v9913 = vadd.f32 %v9901, 1.0
  %v9914 = vadd.f32 %v9903, 1.0
  %v9915 = vadd.f32 %v9905, 1.0
  %v9916 = vadd.f32 %v9907, 1.0
  %v9917 = vadd.f32 %v9909, 1.0
  %v9918 = vrcp.pop %v9910
  %v9919 = vmul.f32 1.0, %v9918
  %v9920 = vrcp.pop %v9911
  %v9921 = vmul.f32 1.0, %v9920
  %v9922 = vrcp.pop %v9912
  %v9923 = vmul.f32 1.0, %v9922
  %v9924 = vrcp.pop %v9913
  %v9925 = vmul.f32 1.0, %v9924
  %v9926 = vrcp.pop %v9914
  %v9927 = vmul.f32 1.0, %v9926
  %v9928 = vrcp.pop %v9915
  %v9929 = vmul.f32 1.0, %v9928
  %v9930 = vrcp.pop %v9916
  %v9931 = vmul.f32 1.0, %v9930
  %v9932 = vrcp.pop %v9917
  %v9933 = vmul.f32 1.0, %v9932
  %v9934 = vmul.f32 %v9863, %v9800
  %v9935 = vmul.f32 %v9865, %v9802
  %v9936 = vmul.f32 %v9867, %v9806
  %v9937 = vmul.f32 %v9869, %v9808
  %v9938 = vmul.f32 %v9871, %v9812
  %v9939 = vmul.f32 %v9873, %v9814
  %v9940 = vmul.f32 %v9875, %v9818
  %v9941 = vmul.f32 %v9877, %v9820
  %v9942 = vadd.f32 %v9311, %v9934
  %v9943 = vadd.f32 %v9312, %v9935
  %v9944 = vadd.f32 %v9317, %v9936
  %v9945 = vadd.f32 %v9318, %v9937
  %v9946 = vadd.f32 %v9323, %v9938
  %v9947 = vadd.f32 %v9324, %v9939
  %v9948 = vadd.f32 %v9329, %v9940
  %v9949 = vadd.f32 %v9330, %v9941
  %v9950 = vtanh.pop %v9942
  %v9951 = vtanh.pop %v9943
  %v9952 = vtanh.pop %v9944
  %v9953 = vtanh.pop %v9945
  %v9954 = vtanh.pop %v9946
  %v9955 = vtanh.pop %v9947
  %v9956 = vtanh.pop %v9948
  %v9957 = vtanh.pop %v9949
  %v9958 = vsub.f32 1.0, %v9919
  %v9959 = vsub.f32 1.0, %v9921
  %v9960 = vsub.f32 1.0, %v9923
  %v9961 = vsub.f32 1.0, %v9925
  %v9962 = vsub.f32 1.0, %v9927
  %v9963 = vsub.f32 1.0, %v9929
  %v9964 = vsub.f32 1.0, %v9931
  %v9965 = vsub.f32 1.0, %v9933
  %v9966 = vmul.f32 %v9958, %v9950
  %v9967 = vmul.f32 %v9959, %v9951
  %v9968 = vmul.f32 %v9960, %v9952
  %v9969 = vmul.f32 %v9961, %v9953
  %v9970 = vmul.f32 %v9962, %v9954
  %v9971 = vmul.f32 %v9963, %v9955
  %v9972 = vmul.f32 %v9964, %v9956
  %v9973 = vmul.f32 %v9965, %v9957
  %v9974 = vmul.f32 %v9919, %v8645
  %v9975 = vmul.f32 %v9921, %v8646
  %v9976 = vmul.f32 %v9923, %v8647
  %v9977 = vmul.f32 %v9925, %v8648
  %v9978 = vmul.f32 %v9927, %v8649
  %v9979 = vmul.f32 %v9929, %v8650
  %v9980 = vmul.f32 %v9931, %v8651
  %v9981 = vmul.f32 %v9933, %v8652
  %v9982 = vadd.f32 %v9966, %v9974
  %v9983 = vadd.f32 %v9967, %v9975
  %v9984 = vadd.f32 %v9968, %v9976
  %v9985 = vadd.f32 %v9969, %v9977
  %v9986 = vadd.f32 %v9970, %v9978
  %v9987 = vadd.f32 %v9971, %v9979
  %v9988 = vadd.f32 %v9972, %v9980
  %v9989 = vadd.f32 %v9973, %v9981
  %v9990 = vld [vmem:[%s8] sm:$0xff]
  %v9991 = vld [vmem:[%s8 + $0x8] sm:$0xff]
  %v9992 = vld [vmem:[%s8 + $0x10] sm:$0xff]
  %v9993 = vld [vmem:[%s8 + $0x18] sm:$0xff]
  %v9994 = vld [vmem:[%s8 + $0x20] sm:$0xff]
  %v9995 = vld [vmem:[%s8 + $0x28] sm:$0xff]
  %v9996 = vld [vmem:[%s8 + $0x30] sm:$0xff]
  %v9997 = vld [vmem:[%s8 + $0x38] sm:$0xff]
  %v9998 = vld [vmem:[%s8 + $0x40] sm:$0xff]
  %v9999 = vld [vmem:[%s8 + $0x48] sm:$0xff]
  %v10000 = vld [vmem:[%s8 + $0x50] sm:$0xff]
  %v10001 = vld [vmem:[%s8 + $0x58] sm:$0xff]
  %v10002 = vld [vmem:[%s8 + $0x60] sm:$0xff]
  %v10003 = vld [vmem:[%s8 + $0x68] sm:$0xff]
  %v10004 = vld [vmem:[%s8 + $0x70] sm:$0xff]
  %v10005 = vld [vmem:[%s8 + $0x78] sm:$0xff]
  %v10006 = vld [vmem:[%s8 + $0x80] sm:$0xff]
  %v10007 = vld [vmem:[%s8 + $0x88] sm:$0xff]
  %v10008 = vld [vmem:[%s8 + $0x90] sm:$0xff]
  %v10009 = vld [vmem:[%s8 + $0x98] sm:$0xff]
  %v10010 = vld [vmem:[%s8 + $0xa0] sm:$0xff]
  %v10011 = vld [vmem:[%s8 + $0xa8] sm:$0xff]
  %v10012 = vld [vmem:[%s8 + $0xb0] sm:$0xff]
  %v10013 = vld [vmem:[%s8 + $0xb8] sm:$0xff]
  %v10014 = vld [vmem:[%s8 + $0xc0] sm:$0xff]
  %v10015 = vld [vmem:[%s8 + $0xc8] sm:$0xff]
  %v10016 = vld [vmem:[%s8 + $0xd0] sm:$0xff]
  %v10017 = vld [vmem:[%s8 + $0xd8] sm:$0xff]
  %v10018 = vld [vmem:[%s8 + $0xe0] sm:$0xff]
  %v10019 = vld [vmem:[%s8 + $0xe8] sm:$0xff]
  %v10020 = vld [vmem:[%s8 + $0xf0] sm:$0xff]
  %v10021 = vld [vmem:[%s8 + $0xf8] sm:$0xff]
  %v10022 = vld [vmem:[%s9] sm:$0x1]
  %v10024 = vlaneseq
  %v10025 = vshrl.u32 %v10024, 7
  %v10026 = vsub.s32 0, %v10025
  %v10027 = vrot.slane %v10022, %v10026
  %10029 = vmatprep.subr.mxu0 0.0
  %10030 = vmatpush1.msra.mxu0 %v9990
  %10031 = vmatprep.subr.mxu0 0.0
  %10032 = vmatpush1.msra.mxu0 %v9991
  %10033 = vmatprep.subr.mxu0 0.0
  %10034 = vmatpush1.msra.mxu0 %v9992
  %10035 = vmatprep.subr.mxu0 0.0
  %10036 = vmatpush1.msra.mxu0 %v9993
  %10037 = vmatprep.subr.mxu0 0.0
  %10038 = vmatpush1.msra.mxu0 %v9994
  %10039 = vmatprep.subr.mxu0 0.0
  %10040 = vmatpush1.msra.mxu0 %v9995
  %10041 = vmatprep.subr.mxu0 0.0
  %10042 = vmatpush1.msra.mxu0 %v9996
  %10043 = vmatprep.subr.mxu0 0.0
  %10044 = vmatpush1.msra.mxu0 %v9997
  %10045 = vmatprep.subr.mxu0 0.0
  %10046 = vmatpush1.msra.mxu0 %v9998
  %10047 = vmatprep.subr.mxu0 0.0
  %10048 = vmatpush1.msra.mxu0 %v9999
  %10049 = vmatprep.subr.mxu0 0.0
  %10050 = vmatpush1.msra.mxu0 %v10000
  %10051 = vmatprep.subr.mxu0 0.0
  %10052 = vmatpush1.msra.mxu0 %v10001
  %10053 = vmatprep.subr.mxu0 0.0
  %10054 = vmatpush1.msra.mxu0 %v10002
  %10055 = vmatprep.subr.mxu0 0.0
  %10056 = vmatpush1.msra.mxu0 %v10003
  %10057 = vmatprep.subr.mxu0 0.0
  %10058 = vmatpush1.msra.mxu0 %v10004
  %10059 = vmatprep.subr.mxu0 0.0
  %10060 = vmatpush1.msra.mxu0 %v10005
  %10061 = vmatprep.subr.mxu0 0.0
  %10062 = vmatpush1.msra.mxu0 %v10006
  %10063 = vmatprep.subr.mxu0 0.0
  %10064 = vmatpush1.msra.mxu0 %v10007
  %10065 = vmatprep.subr.mxu0 0.0
  %10066 = vmatpush1.msra.mxu0 %v10008
  %10067 = vmatprep.subr.mxu0 0.0
  %10068 = vmatpush1.msra.mxu0 %v10009
  %10069 = vmatprep.subr.mxu0 0.0
  %10070 = vmatpush1.msra.mxu0 %v10010
  %10071 = vmatprep.subr.mxu0 0.0
  %10072 = vmatpush1.msra.mxu0 %v10011
  %10073 = vmatprep.subr.mxu0 0.0
  %10074 = vmatpush1.msra.mxu0 %v10012
  %10075 = vmatprep.subr.mxu0 0.0
  %10076 = vmatpush1.msra.mxu0 %v10013
  %10077 = vmatprep.subr.mxu0 0.0
  %10078 = vmatpush1.msra.mxu0 %v10014
  %10079 = vmatprep.subr.mxu0 0.0
  %10080 = vmatpush1.msra.mxu0 %v10015
  %10081 = vmatprep.subr.mxu0 0.0
  %10082 = vmatpush1.msra.mxu0 %v10016
  %10083 = vmatprep.subr.mxu0 0.0
  %10084 = vmatpush1.msra.mxu0 %v10017
  %10085 = vmatprep.subr.mxu0 0.0
  %10086 = vmatpush1.msra.mxu0 %v10018
  %10087 = vmatprep.subr.mxu0 0.0
  %10088 = vmatpush1.msra.mxu0 %v10019
  %10089 = vmatprep.subr.mxu0 0.0
  %10090 = vmatpush1.msra.mxu0 %v10020
  %10091 = vmatprep.subr.mxu0 0.0
  %10092 = vmatpush1.msra.mxu0 %v10021
  %10093 = vmatprep.mubr.f32.mxu0 %v9983
  %10094 = vmatmul.mubr.f32.gmra.mrb[0].mxu0 %v9982
  %v10095 = vpop.f32.mrb[0].mxu0
  %v10096 = vadd.f32 %v10027, %v10095
  %v10097 = vpop.f32.mrb[0].mxu0
  %10098 = vmatprep.mubr.f32.mxu0 %v9985
  %10099 = vmatmul.mubr.f32.gmra.mrb[0].mxu0 %v9984
  %v10100 = vpop.f32.mrb[0].mxu0
  %v10101 = vadd.f32 %v10027, %v10100
  %v10102 = vpop.f32.mrb[0].mxu0
  %10103 = vmatprep.mubr.f32.mxu0 %v9987
  %10104 = vmatmul.mubr.f32.gmra.mrb[0].mxu0 %v9986
  %v10105 = vpop.f32.mrb[0].mxu0
  %v10106 = vadd.f32 %v10027, %v10105
  %v10107 = vpop.f32.mrb[0].mxu0
  %10108 = vmatprep.mubr.f32.mxu0 %v9989
  %10109 = vmatmul.mubr.f32.gmra.mrb[0].mxu0 %v9988
  %v10110 = vpop.f32.mrb[0].mxu0
  %v10111 = vadd.f32 %v10027, %v10110
  %v10112 = vpop.f32.mrb[0].mxu0
  %10113 = vdwg.mxu0
  %s10114 = scalar_lea.vmem %s10, 192
  %10115 = vst [vmem:[%s10114] sm:$0xff] %v10096
  %10116 = vst [vmem:[%s10114 + $0x8] sm:$0xff] %v10101
  %10117 = vst [vmem:[%s10114 + $0x10] sm:$0xff] %v10106
  %10118 = vst [vmem:[%s10114 + $0x18] sm:$0xff] %v10111
  // Predicated region
  $region38: #{seq2seq_forward.1} parent=0 // pred_check
    _
  $region39: #{seq2seq_forward.1} parent=0 // pred_check_branch
    %10120 = sbr.rel (0) target = $region41
  $region40: #{seq2seq_forward.1} parent=0 // pred_region
    _
  $region41: #{seq2seq_forward.1} parent=0 // pred_fallthru
    _
  // Predicated region
  $region42: #{seq2seq_forward.1} parent=0 // pred_check
    _
  $region43: #{seq2seq_forward.1} parent=0 // pred_check_branch
    %10122 = sbr.rel (0) target = $region45
  $region44: #{seq2seq_forward.1} parent=0 // pred_region
    _
  $region45: #{seq2seq_forward.1} parent=0 // pred_fallthru
    _

</llo_original>
